<compile_context>
chip_gen: v6e
topology: v6e:2x2x1
jax: 0.10.0
libtpu: 0.0.40
codegen_flags: <defaults>
</compile_context>

<pallas_src>
import functools

import jax
import jax.numpy as jnp
from jax import lax
from jax.experimental import pallas as pl
from jax.experimental.pallas import tpu as pltpu

# Force full-f32 matmuls everywhere (wrapper prep, reference, in-kernel dots).
jax.config.update("jax_default_matmul_precision", "highest")

_HIGHEST = lax.Precision.HIGHEST


def _round_up(x, m):
    return ((x + m - 1) // m) * m


def _rnn_fc_softmax_kernel(tok_ref,   # (S*Bp, 1) int32 token ids, row = t*Bp + b
                           t_ref,     # (Vp, Hp)  T = emb @ W_ih^T + (b_ih+b_hh)
                           whh_ref,   # (Hp, Hp)  W_hh^T, zero padded
                           wfc_ref,   # (Hp, Vp)  W_fc^T, zero padded
                           bfc_ref,   # (1, Vp)   b_fc; padded cols = -1e30
                           out_ref):  # (Bp, Vp)  softmax probabilities
    SB = tok_ref.shape[0]
    Vp, Hp = t_ref.shape
    Bp = out_ref.shape[0]
    S = SB // Bp

    # Fused embedding gather + input projection: one-hot(ids) @ T selects rows
    # of the precomputed table exactly (0/1 weights, fp32 contract precision).
    ids = tok_ref[...]                                          # (S*Bp, 1)
    col = lax.broadcasted_iota(jnp.int32, (SB, Vp), 1)
    onehot = jnp.where(col == ids, jnp.float32(1.0), jnp.float32(0.0))
    xp = jnp.dot(onehot, t_ref[...], precision=_HIGHEST,
                 preferred_element_type=jnp.float32)            # (S*Bp, Hp)

    whh = whh_ref[...]                                          # hoisted load

    # Serial recurrence, statically unrolled: only h @ W_hh^T + xp[t] -> tanh
    # sits on the critical path; h stays in vregs.
    h = jnp.zeros((Bp, Hp), jnp.float32)
    for t in range(S):                                          # S static (=8)
        h = jnp.tanh(xp[t * Bp:(t + 1) * Bp, :]
                     + jnp.dot(h, whh, precision=_HIGHEST,
                               preferred_element_type=jnp.float32))

    # FC + softmax epilogue (padded vocab columns carry -1e30 bias -> exp == 0).
    logits = (jnp.dot(h, wfc_ref[...], precision=_HIGHEST,
                      preferred_element_type=jnp.float32)
              + bfc_ref[...])                                   # (Bp, Vp)
    m = jnp.max(logits, axis=-1, keepdims=True)
    e = jnp.exp(logits - m)
    denom = jnp.sum(e, axis=-1, keepdims=True)
    # Full-precision reciprocal (approx=True -> EUP vrcp would risk ~1e-4 err).
    out_ref[...] = e * pl.reciprocal(denom, approx=False)


def prepare_params(params):
    """One-time weight prep: fold, transpose, pad to tiles; cache the result."""
    emb = params["embedding"]          # (V, D), row 0 zeroed (padding_idx=0)
    w_ih = params["w_ih"]              # (H, D)
    w_hh = params["w_hh"]              # (H, H)
    b_ih = params["b_ih"]              # (H,)
    b_hh = params["b_hh"]              # (H,)
    w_fc = params["w_fc"]              # (V, H)
    b_fc = params["b_fc"]              # (V,)

    V = emb.shape[0]
    H = w_ih.shape[0]
    Hp = _round_up(H, 128)
    Vp = _round_up(V, 128)

    # Fused embedding + RNN input projection table (padded lanes stay zero;
    # token 0 / padding_idx maps to the zero embedding row -> T[0] = b_rnn,
    # identical to the reference ordering).
    t_tab = jnp.dot(emb, w_ih.T, precision=_HIGHEST) + (b_ih + b_hh)    # (V, H)
    t_tab = jnp.pad(t_tab, ((0, Vp - V), (0, Hp - H)))                  # (Vp, Hp)

    whh_t = jnp.pad(w_hh.T, ((0, Hp - H), (0, Hp - H)))                 # (Hp, Hp)
    wfc_t = jnp.pad(w_fc.T, ((0, Hp - H), (0, Vp - V)))                 # (Hp, Vp)
    bfc_p = jnp.full((1, Vp), -1e30, jnp.float32).at[:, :V].set(b_fc)   # (1, Vp)

    return {"t_tab": t_tab, "whh_t": whh_t, "wfc_t": wfc_t, "bfc_p": bfc_p}


@functools.partial(jax.jit, static_argnames=("vocab_size",))
def torch_model_forward(x_tokens, prep, vocab_size):
    """x_tokens: (B, S) int32 token ids. Returns (B, vocab_size) softmax probs."""
    B, S = x_tokens.shape
    Vp, Hp = prep["t_tab"].shape
    Bp = _round_up(B, 8)

    # Row t*Bp + b of `tok` holds tokens[b, t]; padded batch rows use token 0
    # (their rows are discarded by the final slice).
    tok = jnp.pad(x_tokens.T.astype(jnp.int32), ((0, 0), (0, Bp - B)))  # (S, Bp)
    tok = tok.reshape(S * Bp, 1)

    vmem_spec = pl.BlockSpec(memory_space=pltpu.MemorySpace.VMEM)
    out = pl.pallas_call(
        _rnn_fc_softmax_kernel,
        out_shape=jax.ShapeDtypeStruct((Bp, Vp), jnp.float32),
        in_specs=[vmem_spec] * 5,
        out_specs=vmem_spec,
    )(tok, prep["t_tab"], prep["whh_t"], prep["wfc_t"], prep["bfc_p"])
    return out[:B, :vocab_size]


def init_params(key, vocab_size, vector_dim, hidden_dim):
    ks = jax.random.split(key, 7)
    emb = jax.random.normal(ks[0], (vocab_size, vector_dim), jnp.float32)
    emb = emb.at[0].set(0.0)   # padding_idx=0

    # nn.RNN / nn.Linear style uniform(-1/sqrt(fan), 1/sqrt(fan)) init.
    k_rnn = 1.0 / jnp.sqrt(hidden_dim)
    w_ih = jax.random.uniform(ks[1], (hidden_dim, vector_dim), jnp.float32, -k_rnn, k_rnn)
    w_hh = jax.random.uniform(ks[2], (hidden_dim, hidden_dim), jnp.float32, -k_rnn, k_rnn)
    b_ih = jax.random.uniform(ks[3], (hidden_dim,), jnp.float32, -k_rnn, k_rnn)
    b_hh = jax.random.uniform(ks[4], (hidden_dim,), jnp.float32, -k_rnn, k_rnn)

    k_fc = 1.0 / jnp.sqrt(hidden_dim)
    w_fc = jax.random.uniform(ks[5], (vocab_size, hidden_dim), jnp.float32, -k_fc, k_fc)
    b_fc = jax.random.uniform(ks[6], (vocab_size,), jnp.float32, -k_fc, k_fc)

    return {"embedding": emb, "w_ih": w_ih, "w_hh": w_hh,
            "b_ih": b_ih, "b_hh": b_hh, "w_fc": w_fc, "b_fc": b_fc}


def _reference_forward(x_tokens, params):
    """Pure-JAX reference (mirrors the PyTorch module's inference path)."""
    emb = jnp.take(params["embedding"], x_tokens, axis=0)      # (B, S, D)
    B, S, D = emb.shape
    H = params["w_ih"].shape[0]
    h = jnp.zeros((B, H), jnp.float32)
    for t in range(S):
        h = jnp.tanh(emb[:, t, :] @ params["w_ih"].T + params["b_ih"]
                     + h @ params["w_hh"].T + params["b_hh"])
    logits = h @ params["w_fc"].T + params["b_fc"]
    return jax.nn.softmax(logits, axis=-1)


if __name__ == "__main__":
    # Small shapes consistent with the module's forward:
    #   batch=2, sentence_length=8, vector_dim=16, hidden_dim=32, vocab=30
    B, S, D, H, V = 2, 8, 16, 32, 30

    key = jax.random.PRNGKey(0)
    k_param, k_tok = jax.random.split(key)
    params = init_params(k_param, V, D, H)
    x_tokens = jax.random.randint(k_tok, (B, S), 0, V, dtype=jnp.int32)

    prep = prepare_params(params)        # one-time weight prep, cached/reused
    prep = jax.block_until_ready(prep)

    probs = torch_model_forward(x_tokens, prep, vocab_size=V)  # single dispatch
    probs = jax.block_until_ready(probs)

    ref = _reference_forward(x_tokens, params)
    assert probs.shape == (B, V)
    assert jnp.allclose(jnp.sum(probs, axis=-1), 1.0, atol=1e-5)
    assert jnp.allclose(probs, ref, atol=1e-5, rtol=1e-5)

    # TODO(synk): training-mode CrossEntropyLoss branch (forward(x, y)) is not
    # implemented; only the inference path (y=None -> softmax probs) is kerneled.
    print("KERNEL_OK")
</pallas_src>

<mosaic_0001>
module attributes {stable_mosaic.version = 11 : i64} {
  func.func @_rnn_fc_softmax_kernel(%arg0: memref<64x1xi32, #tpu.memory_space<vmem>>, %arg1: memref<128x128xf32, #tpu.memory_space<vmem>>, %arg2: memref<128x128xf32, #tpu.memory_space<vmem>>, %arg3: memref<128x128xf32, #tpu.memory_space<vmem>>, %arg4: memref<1x128xf32, #tpu.memory_space<vmem>>, %arg5: memref<8x128xf32, #tpu.memory_space<vmem>>) attributes {dimension_semantics = [], scalar_prefetch = 0 : i64, scratch_operands = 0 : i64, tpu.core_type = #tpu.core_type<tc>} {
    %c0 = arith.constant 0 : index
    %c0_0 = arith.constant 0 : index
    %0 = vector.load %arg0[%c0, %c0_0] : memref<64x1xi32, #tpu.memory_space<vmem>>, vector<64x1xi32>
    %1 = tpu.iota {dimensions = array<i32: 1>} : vector<64x128xi32>
    %2 = vector.broadcast %0 : vector<64x1xi32> to vector<64x128xi32>
    %3 = arith.cmpi eq, %1, %2 : vector<64x128xi32>
    %cst = arith.constant 1.000000e+00 : f32
    %cst_1 = arith.constant 0.000000e+00 : f32
    %4 = vector.broadcast %cst : f32 to vector<64x128xf32>
    %5 = vector.broadcast %cst_1 : f32 to vector<64x128xf32>
    %6 = arith.select %3, %4, %5 : vector<64x128xi1>, vector<64x128xf32>
    %c0_2 = arith.constant 0 : index
    %c0_3 = arith.constant 0 : index
    %7 = vector.load %arg1[%c0_2, %c0_3] : memref<128x128xf32, #tpu.memory_space<vmem>>, vector<128x128xf32>
    %cst_4 = arith.constant dense<0.000000e+00> : vector<64x128xf32>
    %8 = tpu.matmul %6, %7, %cst_4 {dimension_numbers = #tpu.dot_dimension_numbers<[1], [0], [0], [1], [0, 0, 1, 1], [], []>, precision = #tpu.contract_precision<fp32>} : vector<64x128xf32>, vector<128x128xf32>, vector<64x128xf32> -> vector<64x128xf32>
    %c0_5 = arith.constant 0 : index
    %c0_6 = arith.constant 0 : index
    %9 = vector.load %arg2[%c0_5, %c0_6] : memref<128x128xf32, #tpu.memory_space<vmem>>, vector<128x128xf32>
    %cst_7 = arith.constant 0.000000e+00 : f32
    %10 = vector.broadcast %cst_7 : f32 to vector<8x128xf32>
    %11 = vector.extract_strided_slice %8 {offsets = [0, 0], sizes = [8, 128], strides = [1, 1]} : vector<64x128xf32> to vector<8x128xf32>
    %cst_8 = arith.constant dense<0.000000e+00> : vector<8x128xf32>
    %12 = tpu.matmul %10, %9, %cst_8 {dimension_numbers = #tpu.dot_dimension_numbers<[1], [0], [0], [1], [0, 0, 1, 1], [], []>, precision = #tpu.contract_precision<fp32>} : vector<8x128xf32>, vector<128x128xf32>, vector<8x128xf32> -> vector<8x128xf32>
    %13 = arith.addf %11, %12 : vector<8x128xf32>
    %14 = math.tanh %13 : vector<8x128xf32>
    %15 = vector.extract_strided_slice %8 {offsets = [8, 0], sizes = [8, 128], strides = [1, 1]} : vector<64x128xf32> to vector<8x128xf32>
    %cst_9 = arith.constant dense<0.000000e+00> : vector<8x128xf32>
    %16 = tpu.matmul %14, %9, %cst_9 {dimension_numbers = #tpu.dot_dimension_numbers<[1], [0], [0], [1], [0, 0, 1, 1], [], []>, precision = #tpu.contract_precision<fp32>} : vector<8x128xf32>, vector<128x128xf32>, vector<8x128xf32> -> vector<8x128xf32>
    %17 = arith.addf %15, %16 : vector<8x128xf32>
    %18 = math.tanh %17 : vector<8x128xf32>
    %19 = vector.extract_strided_slice %8 {offsets = [16, 0], sizes = [8, 128], strides = [1, 1]} : vector<64x128xf32> to vector<8x128xf32>
    %cst_10 = arith.constant dense<0.000000e+00> : vector<8x128xf32>
    %20 = tpu.matmul %18, %9, %cst_10 {dimension_numbers = #tpu.dot_dimension_numbers<[1], [0], [0], [1], [0, 0, 1, 1], [], []>, precision = #tpu.contract_precision<fp32>} : vector<8x128xf32>, vector<128x128xf32>, vector<8x128xf32> -> vector<8x128xf32>
    %21 = arith.addf %19, %20 : vector<8x128xf32>
    %22 = math.tanh %21 : vector<8x128xf32>
    %23 = vector.extract_strided_slice %8 {offsets = [24, 0], sizes = [8, 128], strides = [1, 1]} : vector<64x128xf32> to vector<8x128xf32>
    %cst_11 = arith.constant dense<0.000000e+00> : vector<8x128xf32>
    %24 = tpu.matmul %22, %9, %cst_11 {dimension_numbers = #tpu.dot_dimension_numbers<[1], [0], [0], [1], [0, 0, 1, 1], [], []>, precision = #tpu.contract_precision<fp32>} : vector<8x128xf32>, vector<128x128xf32>, vector<8x128xf32> -> vector<8x128xf32>
    %25 = arith.addf %23, %24 : vector<8x128xf32>
    %26 = math.tanh %25 : vector<8x128xf32>
    %27 = vector.extract_strided_slice %8 {offsets = [32, 0], sizes = [8, 128], strides = [1, 1]} : vector<64x128xf32> to vector<8x128xf32>
    %cst_12 = arith.constant dense<0.000000e+00> : vector<8x128xf32>
    %28 = tpu.matmul %26, %9, %cst_12 {dimension_numbers = #tpu.dot_dimension_numbers<[1], [0], [0], [1], [0, 0, 1, 1], [], []>, precision = #tpu.contract_precision<fp32>} : vector<8x128xf32>, vector<128x128xf32>, vector<8x128xf32> -> vector<8x128xf32>
    %29 = arith.addf %27, %28 : vector<8x128xf32>
    %30 = math.tanh %29 : vector<8x128xf32>
    %31 = vector.extract_strided_slice %8 {offsets = [40, 0], sizes = [8, 128], strides = [1, 1]} : vector<64x128xf32> to vector<8x128xf32>
    %cst_13 = arith.constant dense<0.000000e+00> : vector<8x128xf32>
    %32 = tpu.matmul %30, %9, %cst_13 {dimension_numbers = #tpu.dot_dimension_numbers<[1], [0], [0], [1], [0, 0, 1, 1], [], []>, precision = #tpu.contract_precision<fp32>} : vector<8x128xf32>, vector<128x128xf32>, vector<8x128xf32> -> vector<8x128xf32>
    %33 = arith.addf %31, %32 : vector<8x128xf32>
    %34 = math.tanh %33 : vector<8x128xf32>
    %35 = vector.extract_strided_slice %8 {offsets = [48, 0], sizes = [8, 128], strides = [1, 1]} : vector<64x128xf32> to vector<8x128xf32>
    %cst_14 = arith.constant dense<0.000000e+00> : vector<8x128xf32>
    %36 = tpu.matmul %34, %9, %cst_14 {dimension_numbers = #tpu.dot_dimension_numbers<[1], [0], [0], [1], [0, 0, 1, 1], [], []>, precision = #tpu.contract_precision<fp32>} : vector<8x128xf32>, vector<128x128xf32>, vector<8x128xf32> -> vector<8x128xf32>
    %37 = arith.addf %35, %36 : vector<8x128xf32>
    %38 = math.tanh %37 : vector<8x128xf32>
    %39 = vector.extract_strided_slice %8 {offsets = [56, 0], sizes = [8, 128], strides = [1, 1]} : vector<64x128xf32> to vector<8x128xf32>
    %cst_15 = arith.constant dense<0.000000e+00> : vector<8x128xf32>
    %40 = tpu.matmul %38, %9, %cst_15 {dimension_numbers = #tpu.dot_dimension_numbers<[1], [0], [0], [1], [0, 0, 1, 1], [], []>, precision = #tpu.contract_precision<fp32>} : vector<8x128xf32>, vector<128x128xf32>, vector<8x128xf32> -> vector<8x128xf32>
    %41 = arith.addf %39, %40 : vector<8x128xf32>
    %42 = math.tanh %41 : vector<8x128xf32>
    %c0_16 = arith.constant 0 : index
    %c0_17 = arith.constant 0 : index
    %43 = vector.load %arg3[%c0_16, %c0_17] : memref<128x128xf32, #tpu.memory_space<vmem>>, vector<128x128xf32>
    %cst_18 = arith.constant dense<0.000000e+00> : vector<8x128xf32>
    %44 = tpu.matmul %42, %43, %cst_18 {dimension_numbers = #tpu.dot_dimension_numbers<[1], [0], [0], [1], [0, 0, 1, 1], [], []>, precision = #tpu.contract_precision<fp32>} : vector<8x128xf32>, vector<128x128xf32>, vector<8x128xf32> -> vector<8x128xf32>
    %c0_19 = arith.constant 0 : index
    %c0_20 = arith.constant 0 : index
    %45 = vector.load %arg4[%c0_19, %c0_20] : memref<1x128xf32, #tpu.memory_space<vmem>>, vector<1x128xf32>
    %46 = vector.broadcast %45 : vector<1x128xf32> to vector<8x128xf32>
    %47 = arith.addf %44, %46 : vector<8x128xf32>
    %cst_21 = arith.constant dense<0xFF800000> : vector<8xf32>
    %48 = vector.multi_reduction <maximumf>, %47, %cst_21 [1] : vector<8x128xf32> to vector<8xf32>
    %49 = vector.shape_cast %48 : vector<8xf32> to vector<8x1xf32>
    %50 = vector.broadcast %49 : vector<8x1xf32> to vector<8x128xf32>
    %51 = arith.subf %47, %50 : vector<8x128xf32>
    %52 = math.exp %51 : vector<8x128xf32>
    %cst_22 = arith.constant dense<0.000000e+00> : vector<8xf32>
    %53 = vector.multi_reduction <add>, %52, %cst_22 [1] : vector<8x128xf32> to vector<8xf32>
    %54 = vector.shape_cast %53 : vector<8xf32> to vector<8x1xf32>
    %55 = tpu.reciprocal %54 : vector<8x1xf32> -> vector<8x1xf32>
    %56 = vector.broadcast %55 : vector<8x1xf32> to vector<8x128xf32>
    %57 = arith.mulf %52, %56 : vector<8x128xf32>
    %c0_23 = arith.constant 0 : index
    %c0_24 = arith.constant 0 : index
    %58 = vector.load %arg5[%c0_23, %c0_24] : memref<8x128xf32, #tpu.memory_space<vmem>>, vector<8x128xf32>
    tpu.vector_store %arg5[%c0_23, %c0_24], %57 {strides = array<i32>} : memref<8x128xf32, #tpu.memory_space<vmem>>, vector<8x128xf32>,
    return
  }
}

</mosaic_0001>

<llo_original>
// kernel: torch_model_forward.1
$region0: #{torch_model_forward.1}
  #allocation0 [shape = 'u32[]', space=smem, size = 0x4, offset = 0x4, fixed_abs, tag = 'smem constant byte address 0x4 - core index']
  #allocation1 [shape = 'u32[144,128]{1,0:T(1,128)}', space=vmem, size = 0x12000, scoped, tag = 'internal scratch']
  %s0 = inlined_call_operand.vmem [shape: s32[64,1], index: 0, kind: input, shape index: {}]
  %s1 = inlined_call_operand.hbm [shape: f32[128,128], index: 1, kind: input, shape index: {}]
  %s2 = inlined_call_operand.hbm [shape: f32[128,128], index: 2, kind: input, shape index: {}]
  %s3 = inlined_call_operand.hbm [shape: f32[128,128], index: 3, kind: input, shape index: {}]
  %s4 = inlined_call_operand.vmem [shape: f32[1,128], index: 4, kind: input, shape index: {}]
  %s5 = inlined_call_operand.vmem [shape: f32[8,128], index: 5, kind: output, shape index: {}]
  %s6 = sld [smem:[#allocation0]]
  $region42: #{torch_model_forward.1} parent=0
    _
  %s8 = ssub.s32 1, %s6
  %s9 = scalar_select 0, %s8, %s6
  $region1: #{torch_model_forward.1} parent=0
    #allocation2 [shape = 'u8[65536]{0}', space=vmem, size = 0x10000, scoped, tag = 'input window, operand 1, single buffered']
    #allocation3 [shape = 's32[1]{0}', space=sflag, size = 0x4, scoped, tag = 'scoped memory for torch_model_forward.1']
    #allocation4 [shape = 'u8[65536]{0}', space=vmem, size = 0x10000, scoped, tag = 'input window, operand 2, single buffered']
    #allocation5 [shape = 's32[1]{0}', space=sflag, size = 0x4, scoped, tag = 'scoped memory for torch_model_forward.1']
    #allocation6 [shape = 'u8[65536]{0}', space=vmem, size = 0x10000, scoped, tag = 'input window, operand 3, single buffered']
    %10 = vsyncpa [#allocation3], 0
    %11 = vsyncpa [#allocation5], 0
    // Predicated region
    $region2: #{torch_model_forward.1} parent=1 // pred_check
      _
    $region3: #{torch_model_forward.1} parent=1 // pred_check_branch
      %13 = sbr.rel (0) target = $region5
    $region4: #{torch_model_forward.1} parent=1 // pred_region
      _
    $region5: #{torch_model_forward.1} parent=1 // pred_fallthru
      _
    // Predicated region
    $region6: #{torch_model_forward.1} parent=1 // pred_check
      _
    $region7: #{torch_model_forward.1} parent=1 // pred_check_branch
      %15 = sbr.rel (0) target = $region9
    $region8: #{torch_model_forward.1} parent=1 // pred_region
      %s17 = ssub.s32 2048, 2048
      %18 = vsyncadd [#allocation3], %s17
      %s19 = sshll.u32 [#allocation2], 4
      %s20 = int_to_ptr.vmem [resolvable:$true] %s19
      %25 = dma.hbm_to_vmem [thread:$0]  %s1, 2048, %s20, [#allocation3], 128, 128, 8
    $region9: #{torch_model_forward.1} parent=1 // pred_fallthru
      _
    // Predicated region
    $region10: #{torch_model_forward.1} parent=1 // pred_check
      _
    $region11: #{torch_model_forward.1} parent=1 // pred_check_branch
      %27 = sbr.rel (0) target = $region13
    $region12: #{torch_model_forward.1} parent=1 // pred_region
      %s29 = ssub.s32 2048, 2048
      %30 = vsyncadd [#allocation5], %s29
      %s31 = sshll.u32 [#allocation4], 4
      %s32 = int_to_ptr.vmem [resolvable:$true] %s31
      %37 = dma.hbm_to_vmem [thread:$0]  %s2, 2048, %s32, [#allocation5], 128, 128, 8
    $region13: #{torch_model_forward.1} parent=1 // pred_fallthru
      _
    // Predicated region
    $region14: #{torch_model_forward.1} parent=1 // pred_check
      _
    $region15: #{torch_model_forward.1} parent=1 // pred_check_branch
      %39 = sbr.rel (0) target = $region17
    $region16: #{torch_model_forward.1} parent=1 // pred_region
      %s41 = ssub.s32 2048, 2048
      %42 = vsyncadd [#allocation5], %s41
      %s43 = sshll.u32 [#allocation6], 4
      %s44 = int_to_ptr.vmem [resolvable:$true] %s43
      %49 = dma.hbm_to_vmem [thread:$0]  %s3, 2048, %s44, [#allocation5], 128, 128, 8
    $region17: #{torch_model_forward.1} parent=1 // pred_fallthru
      _
    // Predicated region
    $region18: #{torch_model_forward.1} parent=1 // pred_check
      _
    $region19: #{torch_model_forward.1} parent=1 // pred_check_branch
      %51 = sbr.rel (0) target = $region21
    $region20: #{torch_model_forward.1} parent=1 // pred_region
      _
    $region21: #{torch_model_forward.1} parent=1 // pred_fallthru
      _
    // Predicated region
    $region22: #{torch_model_forward.1} parent=1 // pred_check
      _
    $region23: #{torch_model_forward.1} parent=1 // pred_check_branch
      %53 = sbr.rel (0) target = $region25
    $region24: #{torch_model_forward.1} parent=1 // pred_region
      %54 = dma.done [#allocation3], 2048
    $region25: #{torch_model_forward.1} parent=1 // pred_fallthru
      _
    // Predicated region
    $region26: #{torch_model_forward.1} parent=1 // pred_check
      _
    $region27: #{torch_model_forward.1} parent=1 // pred_check_branch
      %56 = sbr.rel (0) target = $region29
    $region28: #{torch_model_forward.1} parent=1 // pred_region
      %57 = dma.done [#allocation5], 2048
    $region29: #{torch_model_forward.1} parent=1 // pred_fallthru
      _
    // Predicated region
    $region30: #{torch_model_forward.1} parent=1 // pred_check
      _
    $region31: #{torch_model_forward.1} parent=1 // pred_check_branch
      %59 = sbr.rel (0) target = $region33
    $region32: #{torch_model_forward.1} parent=1 // pred_region
      %60 = dma.done [#allocation5], 2048
    $region33: #{torch_model_forward.1} parent=1 // pred_fallthru
      _
    %v61 = vld [vmem:[%s0] sm:$0xff]
    %v62 = vld [vmem:[%s0 + $0x8] sm:$0xff]
    %v63 = vld [vmem:[%s0 + $0x10] sm:$0xff]
    %v64 = vld [vmem:[%s0 + $0x18] sm:$0xff]
    %v65 = vld [vmem:[%s0 + $0x20] sm:$0xff]
    %v66 = vld [vmem:[%s0 + $0x28] sm:$0xff]
    %v67 = vld [vmem:[%s0 + $0x30] sm:$0xff]
    %v68 = vld [vmem:[%s0 + $0x38] sm:$0xff]
    %v69 = vlaneseq
    %v70 = vand.u32 %v69, 127
    %71 = vset.pattern.permute.xlu0 0
    %72 = vperm.xlu0 %71, %v61
    %v73 = vpop.permute.xlu0 %72
    %74 = vset.pattern.permute.xlu0 0
    %75 = vperm.xlu0 %74, %v62
    %v76 = vpop.permute.xlu0 %75
    %77 = vset.pattern.permute.xlu0 0
    %78 = vperm.xlu0 %77, %v63
    %v79 = vpop.permute.xlu0 %78
    %80 = vset.pattern.permute.xlu0 0
    %81 = vperm.xlu0 %80, %v64
    %v82 = vpop.permute.xlu0 %81
    %83 = vset.pattern.permute.xlu0 0
    %84 = vperm.xlu0 %83, %v65
    %v85 = vpop.permute.xlu0 %84
    %86 = vset.pattern.permute.xlu0 0
    %87 = vperm.xlu0 %86, %v66
    %v88 = vpop.permute.xlu0 %87
    %89 = vset.pattern.permute.xlu0 0
    %90 = vperm.xlu0 %89, %v67
    %v91 = vpop.permute.xlu0 %90
    %92 = vset.pattern.permute.xlu0 0
    %93 = vperm.xlu0 %92, %v68
    %v94 = vpop.permute.xlu0 %93
    %vm95 = vcmp.eq.s32.totalorder %v70, %v73
    %vm96 = vcmp.eq.s32.totalorder %v70, %v76
    %vm97 = vcmp.eq.s32.totalorder %v70, %v79
    %vm98 = vcmp.eq.s32.totalorder %v70, %v82
    %vm99 = vcmp.eq.s32.totalorder %v70, %v85
    %vm100 = vcmp.eq.s32.totalorder %v70, %v88
    %vm101 = vcmp.eq.s32.totalorder %v70, %v91
    %vm102 = vcmp.eq.s32.totalorder %v70, %v94
    %v103 = vsel %vm95, 1.0, 0.0
    %v104 = vsel %vm96, 1.0, 0.0
    %v105 = vsel %vm97, 1.0, 0.0
    %v106 = vsel %vm98, 1.0, 0.0
    %v107 = vsel %vm99, 1.0, 0.0
    %v108 = vsel %vm100, 1.0, 0.0
    %v109 = vsel %vm101, 1.0, 0.0
    %v110 = vsel %vm102, 1.0, 0.0
    %v111 = vld [vmem:[#allocation2] sm:$0xff]
    %v112 = vld [vmem:[#allocation2 + $0x8] sm:$0xff]
    %v113 = vld [vmem:[#allocation2 + $0x10] sm:$0xff]
    %v114 = vld [vmem:[#allocation2 + $0x18] sm:$0xff]
    %v115 = vld [vmem:[#allocation2 + $0x20] sm:$0xff]
    %v116 = vld [vmem:[#allocation2 + $0x28] sm:$0xff]
    %v117 = vld [vmem:[#allocation2 + $0x30] sm:$0xff]
    %v118 = vld [vmem:[#allocation2 + $0x38] sm:$0xff]
    %v119 = vld [vmem:[#allocation2 + $0x40] sm:$0xff]
    %v120 = vld [vmem:[#allocation2 + $0x48] sm:$0xff]
    %v121 = vld [vmem:[#allocation2 + $0x50] sm:$0xff]
    %v122 = vld [vmem:[#allocation2 + $0x58] sm:$0xff]
    %v123 = vld [vmem:[#allocation2 + $0x60] sm:$0xff]
    %v124 = vld [vmem:[#allocation2 + $0x68] sm:$0xff]
    %v125 = vld [vmem:[#allocation2 + $0x70] sm:$0xff]
    %v126 = vld [vmem:[#allocation2 + $0x78] sm:$0xff]
    %127 = vmatprep.subr.mxu0 0.0
    %v128 = vand.u32 %v126, 4294901760
    %129 = vmatpush1.msra.mxu0 %v128
    %130 = vmatprep.subr.mxu0 0.0
    %v131 = vand.u32 %v125, 4294901760
    %132 = vmatpush1.msra.mxu0 %v131
    %133 = vmatprep.subr.mxu0 0.0
    %v134 = vand.u32 %v124, 4294901760
    %135 = vmatpush1.msra.mxu0 %v134
    %136 = vmatprep.subr.mxu0 0.0
    %v137 = vand.u32 %v123, 4294901760
    %138 = vmatpush1.msra.mxu0 %v137
    %139 = vmatprep.subr.mxu0 0.0
    %v140 = vand.u32 %v122, 4294901760
    %141 = vmatpush1.msra.mxu0 %v140
    %142 = vmatprep.subr.mxu0 0.0
    %v143 = vand.u32 %v121, 4294901760
    %144 = vmatpush1.msra.mxu0 %v143
    %145 = vmatprep.subr.mxu0 0.0
    %v146 = vand.u32 %v120, 4294901760
    %147 = vmatpush1.msra.mxu0 %v146
    %148 = vmatprep.subr.mxu0 0.0
    %v149 = vand.u32 %v119, 4294901760
    %150 = vmatpush1.msra.mxu0 %v149
    %151 = vmatprep.subr.mxu0 0.0
    %v152 = vand.u32 %v118, 4294901760
    %153 = vmatpush1.msra.mxu0 %v152
    %154 = vmatprep.subr.mxu0 0.0
    %v155 = vand.u32 %v117, 4294901760
    %156 = vmatpush1.msra.mxu0 %v155
    %157 = vmatprep.subr.mxu0 0.0
    %v158 = vand.u32 %v116, 4294901760
    %159 = vmatpush1.msra.mxu0 %v158
    %160 = vmatprep.subr.mxu0 0.0
    %v161 = vand.u32 %v115, 4294901760
    %162 = vmatpush1.msra.mxu0 %v161
    %163 = vmatprep.subr.mxu0 0.0
    %v164 = vand.u32 %v114, 4294901760
    %165 = vmatpush1.msra.mxu0 %v164
    %166 = vmatprep.subr.mxu0 0.0
    %v167 = vand.u32 %v113, 4294901760
    %168 = vmatpush1.msra.mxu0 %v167
    %169 = vmatprep.subr.mxu0 0.0
    %v170 = vand.u32 %v112, 4294901760
    %171 = vmatpush1.msra.mxu0 %v170
    %172 = vmatprep.subr.mxu0 0.0
    %v173 = vand.u32 %v111, 4294901760
    %174 = vmatpush1.msra.mxu0 %v173
    %175 = vmatprep.subr.mxu0 0.0
    %176 = vmatpush2.msra.mxu0 0.0
    %177 = vmatprep.subr.mxu0 0.0
    %178 = vmatpush2.msra.mxu0 0.0
    %179 = vmatprep.subr.mxu0 0.0
    %180 = vmatpush2.msra.mxu0 0.0
    %181 = vmatprep.subr.mxu0 0.0
    %182 = vmatpush2.msra.mxu0 0.0
    %183 = vmatprep.subr.mxu0 0.0
    %184 = vmatpush2.msra.mxu0 0.0
    %185 = vmatprep.subr.mxu0 0.0
    %186 = vmatpush2.msra.mxu0 0.0
    %187 = vmatprep.subr.mxu0 0.0
    %188 = vmatpush2.msra.mxu0 0.0
    %189 = vmatprep.subr.mxu0 0.0
    %190 = vmatpush2.msra.mxu0 0.0
    %191 = vmatprep.subr.mxu0 0.0
    %192 = vmatpush2.msra.mxu0 0.0
    %193 = vmatprep.subr.mxu0 0.0
    %194 = vmatpush2.msra.mxu0 0.0
    %195 = vmatprep.subr.mxu0 0.0
    %196 = vmatpush2.msra.mxu0 0.0
    %197 = vmatprep.subr.mxu0 0.0
    %198 = vmatpush2.msra.mxu0 0.0
    %199 = vmatprep.subr.mxu0 0.0
    %200 = vmatpush2.msra.mxu0 0.0
    %201 = vmatprep.subr.mxu0 0.0
    %202 = vmatpush2.msra.mxu0 0.0
    %203 = vmatprep.subr.mxu0 0.0
    %204 = vmatpush2.msra.mxu0 0.0
    %205 = vmatprep.subr.mxu0 0.0
    %206 = vmatpush2.msra.mxu0 0.0
    %207 = vmatprep.mubr.f32.mxu0 0.0
    %v208 = vsub.f32 %v103, %v103
    %v209 = vand.u32 %v208, 4294901760
    %v210 = vsub.f32 %v208, %v209
    %v211 = vand.u32 %v210, 4294901760
    %212 = vmatmul.mubr.f32.gmra.mxu0 %v211
    %v213 = vpop.f32.mrf.mxu0
    %v214 = vadd.f32 0.0, %v213
    %v215 = vpop.f32.mrf.mxu0
    %216 = vmatprep.mubr.f32.mxu0 0.0
    %v217 = vsub.f32 %v104, %v104
    %v218 = vand.u32 %v217, 4294901760
    %v219 = vsub.f32 %v217, %v218
    %v220 = vand.u32 %v219, 4294901760
    %221 = vmatmul.mubr.f32.gmra.mxu0 %v220
    %v222 = vpop.f32.mrf.mxu0
    %v223 = vadd.f32 0.0, %v222
    %v224 = vpop.f32.mrf.mxu0
    %225 = vmatprep.mubr.f32.mxu0 0.0
    %v226 = vsub.f32 %v105, %v105
    %v227 = vand.u32 %v226, 4294901760
    %v228 = vsub.f32 %v226, %v227
    %v229 = vand.u32 %v228, 4294901760
    %230 = vmatmul.mubr.f32.gmra.mxu0 %v229
    %v231 = vpop.f32.mrf.mxu0
    %v232 = vadd.f32 0.0, %v231
    %v233 = vpop.f32.mrf.mxu0
    %234 = vmatprep.mubr.f32.mxu0 0.0
    %v235 = vsub.f32 %v106, %v106
    %v236 = vand.u32 %v235, 4294901760
    %v237 = vsub.f32 %v235, %v236
    %v238 = vand.u32 %v237, 4294901760
    %239 = vmatmul.mubr.f32.gmra.mxu0 %v238
    %v240 = vpop.f32.mrf.mxu0
    %v241 = vadd.f32 0.0, %v240
    %v242 = vpop.f32.mrf.mxu0
    %243 = vmatprep.mubr.f32.mxu0 0.0
    %v244 = vsub.f32 %v107, %v107
    %v245 = vand.u32 %v244, 4294901760
    %v246 = vsub.f32 %v244, %v245
    %v247 = vand.u32 %v246, 4294901760
    %248 = vmatmul.mubr.f32.gmra.mxu0 %v247
    %v249 = vpop.f32.mrf.mxu0
    %v250 = vadd.f32 0.0, %v249
    %v251 = vpop.f32.mrf.mxu0
    %252 = vmatprep.mubr.f32.mxu0 0.0
    %v253 = vsub.f32 %v108, %v108
    %v254 = vand.u32 %v253, 4294901760
    %v255 = vsub.f32 %v253, %v254
    %v256 = vand.u32 %v255, 4294901760
    %257 = vmatmul.mubr.f32.gmra.mxu0 %v256
    %v258 = vpop.f32.mrf.mxu0
    %v259 = vadd.f32 0.0, %v258
    %v260 = vpop.f32.mrf.mxu0
    %261 = vmatprep.mubr.f32.mxu0 0.0
    %v262 = vsub.f32 %v109, %v109
    %v263 = vand.u32 %v262, 4294901760
    %v264 = vsub.f32 %v262, %v263
    %v265 = vand.u32 %v264, 4294901760
    %266 = vmatmul.mubr.f32.gmra.mxu0 %v265
    %v267 = vpop.f32.mrf.mxu0
    %v268 = vadd.f32 0.0, %v267
    %v269 = vpop.f32.mrf.mxu0
    %270 = vmatprep.mubr.f32.mxu0 0.0
    %v271 = vsub.f32 %v110, %v110
    %v272 = vand.u32 %v271, 4294901760
    %v273 = vsub.f32 %v271, %v272
    %v274 = vand.u32 %v273, 4294901760
    %275 = vmatmul.mubr.f32.gmra.mxu0 %v274
    %v276 = vpop.f32.mrf.mxu0
    %v277 = vadd.f32 0.0, %v276
    %v278 = vpop.f32.mrf.mxu0
    %279 = vdwg.mxu0
    %280 = vmatprep.subr.mxu0 0.0
    %v281 = vand.u32 %v126, 4294901760
    %v282 = vsub.f32 %v126, %v281
    %v283 = vand.u32 %v282, 4294901760
    %v284 = vsub.f32 %v282, %v283
    %v285 = vand.u32 %v284, 4294901760
    %286 = vmatpush1.msra.mxu0 %v285
    %287 = vmatprep.subr.mxu0 0.0
    %v288 = vand.u32 %v125, 4294901760
    %v289 = vsub.f32 %v125, %v288
    %v290 = vand.u32 %v289, 4294901760
    %v291 = vsub.f32 %v289, %v290
    %v292 = vand.u32 %v291, 4294901760
    %293 = vmatpush1.msra.mxu0 %v292
    %294 = vmatprep.subr.mxu0 0.0
    %v295 = vand.u32 %v124, 4294901760
    %v296 = vsub.f32 %v124, %v295
    %v297 = vand.u32 %v296, 4294901760
    %v298 = vsub.f32 %v296, %v297
    %v299 = vand.u32 %v298, 4294901760
    %300 = vmatpush1.msra.mxu0 %v299
    %301 = vmatprep.subr.mxu0 0.0
    %v302 = vand.u32 %v123, 4294901760
    %v303 = vsub.f32 %v123, %v302
    %v304 = vand.u32 %v303, 4294901760
    %v305 = vsub.f32 %v303, %v304
    %v306 = vand.u32 %v305, 4294901760
    %307 = vmatpush1.msra.mxu0 %v306
    %308 = vmatprep.subr.mxu0 0.0
    %v309 = vand.u32 %v122, 4294901760
    %v310 = vsub.f32 %v122, %v309
    %v311 = vand.u32 %v310, 4294901760
    %v312 = vsub.f32 %v310, %v311
    %v313 = vand.u32 %v312, 4294901760
    %314 = vmatpush1.msra.mxu0 %v313
    %315 = vmatprep.subr.mxu0 0.0
    %v316 = vand.u32 %v121, 4294901760
    %v317 = vsub.f32 %v121, %v316
    %v318 = vand.u32 %v317, 4294901760
    %v319 = vsub.f32 %v317, %v318
    %v320 = vand.u32 %v319, 4294901760
    %321 = vmatpush1.msra.mxu0 %v320
    %322 = vmatprep.subr.mxu0 0.0
    %v323 = vand.u32 %v120, 4294901760
    %v324 = vsub.f32 %v120, %v323
    %v325 = vand.u32 %v324, 4294901760
    %v326 = vsub.f32 %v324, %v325
    %v327 = vand.u32 %v326, 4294901760
    %328 = vmatpush1.msra.mxu0 %v327
    %329 = vmatprep.subr.mxu0 0.0
    %v330 = vand.u32 %v119, 4294901760
    %v331 = vsub.f32 %v119, %v330
    %v332 = vand.u32 %v331, 4294901760
    %v333 = vsub.f32 %v331, %v332
    %v334 = vand.u32 %v333, 4294901760
    %335 = vmatpush1.msra.mxu0 %v334
    %336 = vmatprep.subr.mxu0 0.0
    %v337 = vand.u32 %v118, 4294901760
    %v338 = vsub.f32 %v118, %v337
    %v339 = vand.u32 %v338, 4294901760
    %v340 = vsub.f32 %v338, %v339
    %v341 = vand.u32 %v340, 4294901760
    %342 = vmatpush1.msra.mxu0 %v341
    %343 = vmatprep.subr.mxu0 0.0
    %v344 = vand.u32 %v117, 4294901760
    %v345 = vsub.f32 %v117, %v344
    %v346 = vand.u32 %v345, 4294901760
    %v347 = vsub.f32 %v345, %v346
    %v348 = vand.u32 %v347, 4294901760
    %349 = vmatpush1.msra.mxu0 %v348
    %350 = vmatprep.subr.mxu0 0.0
    %v351 = vand.u32 %v116, 4294901760
    %v352 = vsub.f32 %v116, %v351
    %v353 = vand.u32 %v352, 4294901760
    %v354 = vsub.f32 %v352, %v353
    %v355 = vand.u32 %v354, 4294901760
    %356 = vmatpush1.msra.mxu0 %v355
    %357 = vmatprep.subr.mxu0 0.0
    %v358 = vand.u32 %v115, 4294901760
    %v359 = vsub.f32 %v115, %v358
    %v360 = vand.u32 %v359, 4294901760
    %v361 = vsub.f32 %v359, %v360
    %v362 = vand.u32 %v361, 4294901760
    %363 = vmatpush1.msra.mxu0 %v362
    %364 = vmatprep.subr.mxu0 0.0
    %v365 = vand.u32 %v114, 4294901760
    %v366 = vsub.f32 %v114, %v365
    %v367 = vand.u32 %v366, 4294901760
    %v368 = vsub.f32 %v366, %v367
    %v369 = vand.u32 %v368, 4294901760
    %370 = vmatpush1.msra.mxu0 %v369
    %371 = vmatprep.subr.mxu0 0.0
    %v372 = vand.u32 %v113, 4294901760
    %v373 = vsub.f32 %v113, %v372
    %v374 = vand.u32 %v373, 4294901760
    %v375 = vsub.f32 %v373, %v374
    %v376 = vand.u32 %v375, 4294901760
    %377 = vmatpush1.msra.mxu0 %v376
    %378 = vmatprep.subr.mxu0 0.0
    %v379 = vand.u32 %v112, 4294901760
    %v380 = vsub.f32 %v112, %v379
    %v381 = vand.u32 %v380, 4294901760
    %v382 = vsub.f32 %v380, %v381
    %v383 = vand.u32 %v382, 4294901760
    %384 = vmatpush1.msra.mxu0 %v383
    %385 = vmatprep.subr.mxu0 0.0
    %v386 = vand.u32 %v111, 4294901760
    %v387 = vsub.f32 %v111, %v386
    %v388 = vand.u32 %v387, 4294901760
    %v389 = vsub.f32 %v387, %v388
    %v390 = vand.u32 %v389, 4294901760
    %391 = vmatpush1.msra.mxu0 %v390
    %392 = vmatprep.subr.mxu0 0.0
    %393 = vmatpush2.msra.mxu0 0.0
    %394 = vmatprep.subr.mxu0 0.0
    %395 = vmatpush2.msra.mxu0 0.0
    %396 = vmatprep.subr.mxu0 0.0
    %397 = vmatpush2.msra.mxu0 0.0
    %398 = vmatprep.subr.mxu0 0.0
    %399 = vmatpush2.msra.mxu0 0.0
    %400 = vmatprep.subr.mxu0 0.0
    %401 = vmatpush2.msra.mxu0 0.0
    %402 = vmatprep.subr.mxu0 0.0
    %403 = vmatpush2.msra.mxu0 0.0
    %404 = vmatprep.subr.mxu0 0.0
    %405 = vmatpush2.msra.mxu0 0.0
    %406 = vmatprep.subr.mxu0 0.0
    %407 = vmatpush2.msra.mxu0 0.0
    %408 = vmatprep.subr.mxu0 0.0
    %409 = vmatpush2.msra.mxu0 0.0
    %410 = vmatprep.subr.mxu0 0.0
    %411 = vmatpush2.msra.mxu0 0.0
    %412 = vmatprep.subr.mxu0 0.0
    %413 = vmatpush2.msra.mxu0 0.0
    %414 = vmatprep.subr.mxu0 0.0
    %415 = vmatpush2.msra.mxu0 0.0
    %416 = vmatprep.subr.mxu0 0.0
    %417 = vmatpush2.msra.mxu0 0.0
    %418 = vmatprep.subr.mxu0 0.0
    %419 = vmatpush2.msra.mxu0 0.0
    %420 = vmatprep.subr.mxu0 0.0
    %421 = vmatpush2.msra.mxu0 0.0
    %422 = vmatprep.subr.mxu0 0.0
    %423 = vmatpush2.msra.mxu0 0.0
    %424 = vmatprep.mubr.f32.mxu0 0.0
    %425 = vmatmul.mubr.f32.gmra.mxu0 %v103
    %v426 = vpop.f32.mrf.mxu0
    %v427 = vadd.f32 %v214, %v426
    %v428 = vpop.f32.mrf.mxu0
    %429 = vmatprep.mubr.f32.mxu0 0.0
    %430 = vmatmul.mubr.f32.gmra.mxu0 %v104
    %v431 = vpop.f32.mrf.mxu0
    %v432 = vadd.f32 %v223, %v431
    %v433 = vpop.f32.mrf.mxu0
    %434 = vmatprep.mubr.f32.mxu0 0.0
    %435 = vmatmul.mubr.f32.gmra.mxu0 %v105
    %v436 = vpop.f32.mrf.mxu0
    %v437 = vadd.f32 %v232, %v436
    %v438 = vpop.f32.mrf.mxu0
    %439 = vmatprep.mubr.f32.mxu0 0.0
    %440 = vmatmul.mubr.f32.gmra.mxu0 %v106
    %v441 = vpop.f32.mrf.mxu0
    %v442 = vadd.f32 %v241, %v441
    %v443 = vpop.f32.mrf.mxu0
    %444 = vmatprep.mubr.f32.mxu0 0.0
    %445 = vmatmul.mubr.f32.gmra.mxu0 %v107
    %v446 = vpop.f32.mrf.mxu0
    %v447 = vadd.f32 %v250, %v446
    %v448 = vpop.f32.mrf.mxu0
    %449 = vmatprep.mubr.f32.mxu0 0.0
    %450 = vmatmul.mubr.f32.gmra.mxu0 %v108
    %v451 = vpop.f32.mrf.mxu0
    %v452 = vadd.f32 %v259, %v451
    %v453 = vpop.f32.mrf.mxu0
    %454 = vmatprep.mubr.f32.mxu0 0.0
    %455 = vmatmul.mubr.f32.gmra.mxu0 %v109
    %v456 = vpop.f32.mrf.mxu0
    %v457 = vadd.f32 %v268, %v456
    %v458 = vpop.f32.mrf.mxu0
    %459 = vmatprep.mubr.f32.mxu0 0.0
    %460 = vmatmul.mubr.f32.gmra.mxu0 %v110
    %v461 = vpop.f32.mrf.mxu0
    %v462 = vadd.f32 %v277, %v461
    %v463 = vpop.f32.mrf.mxu0
    %464 = vdwg.mxu0
    %465 = vmatprep.subr.mxu0 0.0
    %v466 = vand.u32 %v126, 4294901760
    %v467 = vsub.f32 %v126, %v466
    %468 = vmatpush1.msra.mxu0 %v467
    %469 = vmatprep.subr.mxu0 0.0
    %v470 = vand.u32 %v125, 4294901760
    %v471 = vsub.f32 %v125, %v470
    %472 = vmatpush1.msra.mxu0 %v471
    %473 = vmatprep.subr.mxu0 0.0
    %v474 = vand.u32 %v124, 4294901760
    %v475 = vsub.f32 %v124, %v474
    %476 = vmatpush1.msra.mxu0 %v475
    %477 = vmatprep.subr.mxu0 0.0
    %v478 = vand.u32 %v123, 4294901760
    %v479 = vsub.f32 %v123, %v478
    %480 = vmatpush1.msra.mxu0 %v479
    %481 = vmatprep.subr.mxu0 0.0
    %v482 = vand.u32 %v122, 4294901760
    %v483 = vsub.f32 %v122, %v482
    %484 = vmatpush1.msra.mxu0 %v483
    %485 = vmatprep.subr.mxu0 0.0
    %v486 = vand.u32 %v121, 4294901760
    %v487 = vsub.f32 %v121, %v486
    %488 = vmatpush1.msra.mxu0 %v487
    %489 = vmatprep.subr.mxu0 0.0
    %v490 = vand.u32 %v120, 4294901760
    %v491 = vsub.f32 %v120, %v490
    %492 = vmatpush1.msra.mxu0 %v491
    %493 = vmatprep.subr.mxu0 0.0
    %v494 = vand.u32 %v119, 4294901760
    %v495 = vsub.f32 %v119, %v494
    %496 = vmatpush1.msra.mxu0 %v495
    %497 = vmatprep.subr.mxu0 0.0
    %v498 = vand.u32 %v118, 4294901760
    %v499 = vsub.f32 %v118, %v498
    %500 = vmatpush1.msra.mxu0 %v499
    %501 = vmatprep.subr.mxu0 0.0
    %v502 = vand.u32 %v117, 4294901760
    %v503 = vsub.f32 %v117, %v502
    %504 = vmatpush1.msra.mxu0 %v503
    %505 = vmatprep.subr.mxu0 0.0
    %v506 = vand.u32 %v116, 4294901760
    %v507 = vsub.f32 %v116, %v506
    %508 = vmatpush1.msra.mxu0 %v507
    %509 = vmatprep.subr.mxu0 0.0
    %v510 = vand.u32 %v115, 4294901760
    %v511 = vsub.f32 %v115, %v510
    %512 = vmatpush1.msra.mxu0 %v511
    %513 = vmatprep.subr.mxu0 0.0
    %v514 = vand.u32 %v114, 4294901760
    %v515 = vsub.f32 %v114, %v514
    %516 = vmatpush1.msra.mxu0 %v515
    %517 = vmatprep.subr.mxu0 0.0
    %v518 = vand.u32 %v113, 4294901760
    %v519 = vsub.f32 %v113, %v518
    %520 = vmatpush1.msra.mxu0 %v519
    %521 = vmatprep.subr.mxu0 0.0
    %v522 = vand.u32 %v112, 4294901760
    %v523 = vsub.f32 %v112, %v522
    %524 = vmatpush1.msra.mxu0 %v523
    %525 = vmatprep.subr.mxu0 0.0
    %v526 = vand.u32 %v111, 4294901760
    %v527 = vsub.f32 %v111, %v526
    %528 = vmatpush1.msra.mxu0 %v527
    %529 = vmatprep.subr.mxu0 0.0
    %530 = vmatpush2.msra.mxu0 0.0
    %531 = vmatprep.subr.mxu0 0.0
    %532 = vmatpush2.msra.mxu0 0.0
    %533 = vmatprep.subr.mxu0 0.0
    %534 = vmatpush2.msra.mxu0 0.0
    %535 = vmatprep.subr.mxu0 0.0
    %536 = vmatpush2.msra.mxu0 0.0
    %537 = vmatprep.subr.mxu0 0.0
    %538 = vmatpush2.msra.mxu0 0.0
    %539 = vmatprep.subr.mxu0 0.0
    %540 = vmatpush2.msra.mxu0 0.0
    %541 = vmatprep.subr.mxu0 0.0
    %542 = vmatpush2.msra.mxu0 0.0
    %543 = vmatprep.subr.mxu0 0.0
    %544 = vmatpush2.msra.mxu0 0.0
    %545 = vmatprep.subr.mxu0 0.0
    %546 = vmatpush2.msra.mxu0 0.0
    %547 = vmatprep.subr.mxu0 0.0
    %548 = vmatpush2.msra.mxu0 0.0
    %549 = vmatprep.subr.mxu0 0.0
    %550 = vmatpush2.msra.mxu0 0.0
    %551 = vmatprep.subr.mxu0 0.0
    %552 = vmatpush2.msra.mxu0 0.0
    %553 = vmatprep.subr.mxu0 0.0
    %554 = vmatpush2.msra.mxu0 0.0
    %555 = vmatprep.subr.mxu0 0.0
    %556 = vmatpush2.msra.mxu0 0.0
    %557 = vmatprep.subr.mxu0 0.0
    %558 = vmatpush2.msra.mxu0 0.0
    %559 = vmatprep.subr.mxu0 0.0
    %560 = vmatpush2.msra.mxu0 0.0
    %561 = vmatprep.mubr.f32.mxu0 0.0
    %v562 = vsub.f32 %v103, %v103
    %563 = vmatmul.mubr.f32.gmra.mxu0 %v562
    %v564 = vpop.f32.mrf.mxu0
    %v565 = vadd.f32 %v427, %v564
    %v566 = vpop.f32.mrf.mxu0
    %567 = vmatprep.mubr.f32.mxu0 0.0
    %v568 = vsub.f32 %v104, %v104
    %569 = vmatmul.mubr.f32.gmra.mxu0 %v568
    %v570 = vpop.f32.mrf.mxu0
    %v571 = vadd.f32 %v432, %v570
    %v572 = vpop.f32.mrf.mxu0
    %573 = vmatprep.mubr.f32.mxu0 0.0
    %v574 = vsub.f32 %v105, %v105
    %575 = vmatmul.mubr.f32.gmra.mxu0 %v574
    %v576 = vpop.f32.mrf.mxu0
    %v577 = vadd.f32 %v437, %v576
    %v578 = vpop.f32.mrf.mxu0
    %579 = vmatprep.mubr.f32.mxu0 0.0
    %v580 = vsub.f32 %v106, %v106
    %581 = vmatmul.mubr.f32.gmra.mxu0 %v580
    %v582 = vpop.f32.mrf.mxu0
    %v583 = vadd.f32 %v442, %v582
    %v584 = vpop.f32.mrf.mxu0
    %585 = vmatprep.mubr.f32.mxu0 0.0
    %v586 = vsub.f32 %v107, %v107
    %587 = vmatmul.mubr.f32.gmra.mxu0 %v586
    %v588 = vpop.f32.mrf.mxu0
    %v589 = vadd.f32 %v447, %v588
    %v590 = vpop.f32.mrf.mxu0
    %591 = vmatprep.mubr.f32.mxu0 0.0
    %v592 = vsub.f32 %v108, %v108
    %593 = vmatmul.mubr.f32.gmra.mxu0 %v592
    %v594 = vpop.f32.mrf.mxu0
    %v595 = vadd.f32 %v452, %v594
    %v596 = vpop.f32.mrf.mxu0
    %597 = vmatprep.mubr.f32.mxu0 0.0
    %v598 = vsub.f32 %v109, %v109
    %599 = vmatmul.mubr.f32.gmra.mxu0 %v598
    %v600 = vpop.f32.mrf.mxu0
    %v601 = vadd.f32 %v457, %v600
    %v602 = vpop.f32.mrf.mxu0
    %603 = vmatprep.mubr.f32.mxu0 0.0
    %v604 = vsub.f32 %v110, %v110
    %605 = vmatmul.mubr.f32.gmra.mxu0 %v604
    %v606 = vpop.f32.mrf.mxu0
    %v607 = vadd.f32 %v462, %v606
    %v608 = vpop.f32.mrf.mxu0
    %609 = vdwg.mxu0
    %610 = vmatprep.subr.mxu0 0.0
    %v611 = vand.u32 %v126, 4294901760
    %612 = vmatpush1.msra.mxu0 %v611
    %613 = vmatprep.subr.mxu0 0.0
    %v614 = vand.u32 %v125, 4294901760
    %615 = vmatpush1.msra.mxu0 %v614
    %616 = vmatprep.subr.mxu0 0.0
    %v617 = vand.u32 %v124, 4294901760
    %618 = vmatpush1.msra.mxu0 %v617
    %619 = vmatprep.subr.mxu0 0.0
    %v620 = vand.u32 %v123, 4294901760
    %621 = vmatpush1.msra.mxu0 %v620
    %622 = vmatprep.subr.mxu0 0.0
    %v623 = vand.u32 %v122, 4294901760
    %624 = vmatpush1.msra.mxu0 %v623
    %625 = vmatprep.subr.mxu0 0.0
    %v626 = vand.u32 %v121, 4294901760
    %627 = vmatpush1.msra.mxu0 %v626
    %628 = vmatprep.subr.mxu0 0.0
    %v629 = vand.u32 %v120, 4294901760
    %630 = vmatpush1.msra.mxu0 %v629
    %631 = vmatprep.subr.mxu0 0.0
    %v632 = vand.u32 %v119, 4294901760
    %633 = vmatpush1.msra.mxu0 %v632
    %634 = vmatprep.subr.mxu0 0.0
    %v635 = vand.u32 %v118, 4294901760
    %636 = vmatpush1.msra.mxu0 %v635
    %637 = vmatprep.subr.mxu0 0.0
    %v638 = vand.u32 %v117, 4294901760
    %639 = vmatpush1.msra.mxu0 %v638
    %640 = vmatprep.subr.mxu0 0.0
    %v641 = vand.u32 %v116, 4294901760
    %642 = vmatpush1.msra.mxu0 %v641
    %643 = vmatprep.subr.mxu0 0.0
    %v644 = vand.u32 %v115, 4294901760
    %645 = vmatpush1.msra.mxu0 %v644
    %646 = vmatprep.subr.mxu0 0.0
    %v647 = vand.u32 %v114, 4294901760
    %648 = vmatpush1.msra.mxu0 %v647
    %649 = vmatprep.subr.mxu0 0.0
    %v650 = vand.u32 %v113, 4294901760
    %651 = vmatpush1.msra.mxu0 %v650
    %652 = vmatprep.subr.mxu0 0.0
    %v653 = vand.u32 %v112, 4294901760
    %654 = vmatpush1.msra.mxu0 %v653
    %655 = vmatprep.subr.mxu0 0.0
    %v656 = vand.u32 %v111, 4294901760
    %657 = vmatpush1.msra.mxu0 %v656
    %658 = vmatprep.subr.mxu0 0.0
    %659 = vmatpush2.msra.mxu0 0.0
    %660 = vmatprep.subr.mxu0 0.0
    %661 = vmatpush2.msra.mxu0 0.0
    %662 = vmatprep.subr.mxu0 0.0
    %663 = vmatpush2.msra.mxu0 0.0
    %664 = vmatprep.subr.mxu0 0.0
    %665 = vmatpush2.msra.mxu0 0.0
    %666 = vmatprep.subr.mxu0 0.0
    %667 = vmatpush2.msra.mxu0 0.0
    %668 = vmatprep.subr.mxu0 0.0
    %669 = vmatpush2.msra.mxu0 0.0
    %670 = vmatprep.subr.mxu0 0.0
    %671 = vmatpush2.msra.mxu0 0.0
    %672 = vmatprep.subr.mxu0 0.0
    %673 = vmatpush2.msra.mxu0 0.0
    %674 = vmatprep.subr.mxu0 0.0
    %675 = vmatpush2.msra.mxu0 0.0
    %676 = vmatprep.subr.mxu0 0.0
    %677 = vmatpush2.msra.mxu0 0.0
    %678 = vmatprep.subr.mxu0 0.0
    %679 = vmatpush2.msra.mxu0 0.0
    %680 = vmatprep.subr.mxu0 0.0
    %681 = vmatpush2.msra.mxu0 0.0
    %682 = vmatprep.subr.mxu0 0.0
    %683 = vmatpush2.msra.mxu0 0.0
    %684 = vmatprep.subr.mxu0 0.0
    %685 = vmatpush2.msra.mxu0 0.0
    %686 = vmatprep.subr.mxu0 0.0
    %687 = vmatpush2.msra.mxu0 0.0
    %688 = vmatprep.subr.mxu0 0.0
    %689 = vmatpush2.msra.mxu0 0.0
    %690 = vmatprep.mubr.f32.mxu0 0.0
    %v691 = vsub.f32 %v103, %v103
    %v692 = vand.u32 %v691, 4294901760
    %693 = vmatmul.mubr.f32.gmra.mxu0 %v692
    %v694 = vpop.f32.mrf.mxu0
    %v695 = vadd.f32 %v565, %v694
    %v696 = vpop.f32.mrf.mxu0
    %697 = vmatprep.mubr.f32.mxu0 0.0
    %v698 = vsub.f32 %v104, %v104
    %v699 = vand.u32 %v698, 4294901760
    %700 = vmatmul.mubr.f32.gmra.mxu0 %v699
    %v701 = vpop.f32.mrf.mxu0
    %v702 = vadd.f32 %v571, %v701
    %v703 = vpop.f32.mrf.mxu0
    %704 = vmatprep.mubr.f32.mxu0 0.0
    %v705 = vsub.f32 %v105, %v105
    %v706 = vand.u32 %v705, 4294901760
    %707 = vmatmul.mubr.f32.gmra.mxu0 %v706
    %v708 = vpop.f32.mrf.mxu0
    %v709 = vadd.f32 %v577, %v708
    %v710 = vpop.f32.mrf.mxu0
    %711 = vmatprep.mubr.f32.mxu0 0.0
    %v712 = vsub.f32 %v106, %v106
    %v713 = vand.u32 %v712, 4294901760
    %714 = vmatmul.mubr.f32.gmra.mxu0 %v713
    %v715 = vpop.f32.mrf.mxu0
    %v716 = vadd.f32 %v583, %v715
    %v717 = vpop.f32.mrf.mxu0
    %718 = vmatprep.mubr.f32.mxu0 0.0
    %v719 = vsub.f32 %v107, %v107
    %v720 = vand.u32 %v719, 4294901760
    %721 = vmatmul.mubr.f32.gmra.mxu0 %v720
    %v722 = vpop.f32.mrf.mxu0
    %v723 = vadd.f32 %v589, %v722
    %v724 = vpop.f32.mrf.mxu0
    %725 = vmatprep.mubr.f32.mxu0 0.0
    %v726 = vsub.f32 %v108, %v108
    %v727 = vand.u32 %v726, 4294901760
    %728 = vmatmul.mubr.f32.gmra.mxu0 %v727
    %v729 = vpop.f32.mrf.mxu0
    %v730 = vadd.f32 %v595, %v729
    %v731 = vpop.f32.mrf.mxu0
    %732 = vmatprep.mubr.f32.mxu0 0.0
    %v733 = vsub.f32 %v109, %v109
    %v734 = vand.u32 %v733, 4294901760
    %735 = vmatmul.mubr.f32.gmra.mxu0 %v734
    %v736 = vpop.f32.mrf.mxu0
    %v737 = vadd.f32 %v601, %v736
    %v738 = vpop.f32.mrf.mxu0
    %739 = vmatprep.mubr.f32.mxu0 0.0
    %v740 = vsub.f32 %v110, %v110
    %v741 = vand.u32 %v740, 4294901760
    %742 = vmatmul.mubr.f32.gmra.mxu0 %v741
    %v743 = vpop.f32.mrf.mxu0
    %v744 = vadd.f32 %v607, %v743
    %v745 = vpop.f32.mrf.mxu0
    %746 = vdwg.mxu0
    %747 = vmatprep.subr.mxu0 0.0
    %v748 = vand.u32 %v126, 4294901760
    %v749 = vsub.f32 %v126, %v748
    %v750 = vand.u32 %v749, 4294901760
    %751 = vmatpush1.msra.mxu0 %v750
    %752 = vmatprep.subr.mxu0 0.0
    %v753 = vand.u32 %v125, 4294901760
    %v754 = vsub.f32 %v125, %v753
    %v755 = vand.u32 %v754, 4294901760
    %756 = vmatpush1.msra.mxu0 %v755
    %757 = vmatprep.subr.mxu0 0.0
    %v758 = vand.u32 %v124, 4294901760
    %v759 = vsub.f32 %v124, %v758
    %v760 = vand.u32 %v759, 4294901760
    %761 = vmatpush1.msra.mxu0 %v760
    %762 = vmatprep.subr.mxu0 0.0
    %v763 = vand.u32 %v123, 4294901760
    %v764 = vsub.f32 %v123, %v763
    %v765 = vand.u32 %v764, 4294901760
    %766 = vmatpush1.msra.mxu0 %v765
    %767 = vmatprep.subr.mxu0 0.0
    %v768 = vand.u32 %v122, 4294901760
    %v769 = vsub.f32 %v122, %v768
    %v770 = vand.u32 %v769, 4294901760
    %771 = vmatpush1.msra.mxu0 %v770
    %772 = vmatprep.subr.mxu0 0.0
    %v773 = vand.u32 %v121, 4294901760
    %v774 = vsub.f32 %v121, %v773
    %v775 = vand.u32 %v774, 4294901760
    %776 = vmatpush1.msra.mxu0 %v775
    %777 = vmatprep.subr.mxu0 0.0
    %v778 = vand.u32 %v120, 4294901760
    %v779 = vsub.f32 %v120, %v778
    %v780 = vand.u32 %v779, 4294901760
    %781 = vmatpush1.msra.mxu0 %v780
    %782 = vmatprep.subr.mxu0 0.0
    %v783 = vand.u32 %v119, 4294901760
    %v784 = vsub.f32 %v119, %v783
    %v785 = vand.u32 %v784, 4294901760
    %786 = vmatpush1.msra.mxu0 %v785
    %787 = vmatprep.subr.mxu0 0.0
    %v788 = vand.u32 %v118, 4294901760
    %v789 = vsub.f32 %v118, %v788
    %v790 = vand.u32 %v789, 4294901760
    %791 = vmatpush1.msra.mxu0 %v790
    %792 = vmatprep.subr.mxu0 0.0
    %v793 = vand.u32 %v117, 4294901760
    %v794 = vsub.f32 %v117, %v793
    %v795 = vand.u32 %v794, 4294901760
    %796 = vmatpush1.msra.mxu0 %v795
    %797 = vmatprep.subr.mxu0 0.0
    %v798 = vand.u32 %v116, 4294901760
    %v799 = vsub.f32 %v116, %v798
    %v800 = vand.u32 %v799, 4294901760
    %801 = vmatpush1.msra.mxu0 %v800
    %802 = vmatprep.subr.mxu0 0.0
    %v803 = vand.u32 %v115, 4294901760
    %v804 = vsub.f32 %v115, %v803
    %v805 = vand.u32 %v804, 4294901760
    %806 = vmatpush1.msra.mxu0 %v805
    %807 = vmatprep.subr.mxu0 0.0
    %v808 = vand.u32 %v114, 4294901760
    %v809 = vsub.f32 %v114, %v808
    %v810 = vand.u32 %v809, 4294901760
    %811 = vmatpush1.msra.mxu0 %v810
    %812 = vmatprep.subr.mxu0 0.0
    %v813 = vand.u32 %v113, 4294901760
    %v814 = vsub.f32 %v113, %v813
    %v815 = vand.u32 %v814, 4294901760
    %816 = vmatpush1.msra.mxu0 %v815
    %817 = vmatprep.subr.mxu0 0.0
    %v818 = vand.u32 %v112, 4294901760
    %v819 = vsub.f32 %v112, %v818
    %v820 = vand.u32 %v819, 4294901760
    %821 = vmatpush1.msra.mxu0 %v820
    %822 = vmatprep.subr.mxu0 0.0
    %v823 = vand.u32 %v111, 4294901760
    %v824 = vsub.f32 %v111, %v823
    %v825 = vand.u32 %v824, 4294901760
    %826 = vmatpush1.msra.mxu0 %v825
    %827 = vmatprep.subr.mxu0 0.0
    %828 = vmatpush2.msra.mxu0 0.0
    %829 = vmatprep.subr.mxu0 0.0
    %830 = vmatpush2.msra.mxu0 0.0
    %831 = vmatprep.subr.mxu0 0.0
    %832 = vmatpush2.msra.mxu0 0.0
    %833 = vmatprep.subr.mxu0 0.0
    %834 = vmatpush2.msra.mxu0 0.0
    %835 = vmatprep.subr.mxu0 0.0
    %836 = vmatpush2.msra.mxu0 0.0
    %837 = vmatprep.subr.mxu0 0.0
    %838 = vmatpush2.msra.mxu0 0.0
    %839 = vmatprep.subr.mxu0 0.0
    %840 = vmatpush2.msra.mxu0 0.0
    %841 = vmatprep.subr.mxu0 0.0
    %842 = vmatpush2.msra.mxu0 0.0
    %843 = vmatprep.subr.mxu0 0.0
    %844 = vmatpush2.msra.mxu0 0.0
    %845 = vmatprep.subr.mxu0 0.0
    %846 = vmatpush2.msra.mxu0 0.0
    %847 = vmatprep.subr.mxu0 0.0
    %848 = vmatpush2.msra.mxu0 0.0
    %849 = vmatprep.subr.mxu0 0.0
    %850 = vmatpush2.msra.mxu0 0.0
    %851 = vmatprep.subr.mxu0 0.0
    %852 = vmatpush2.msra.mxu0 0.0
    %853 = vmatprep.subr.mxu0 0.0
    %854 = vmatpush2.msra.mxu0 0.0
    %855 = vmatprep.subr.mxu0 0.0
    %856 = vmatpush2.msra.mxu0 0.0
    %857 = vmatprep.subr.mxu0 0.0
    %858 = vmatpush2.msra.mxu0 0.0
    %859 = vmatprep.mubr.f32.mxu0 0.0
    %860 = vmatmul.mubr.f32.gmra.mxu0 %v103
    %v861 = vpop.f32.mrf.mxu0
    %v862 = vadd.f32 %v695, %v861
    %v863 = vpop.f32.mrf.mxu0
    %864 = vmatprep.mubr.f32.mxu0 0.0
    %865 = vmatmul.mubr.f32.gmra.mxu0 %v104
    %v866 = vpop.f32.mrf.mxu0
    %v867 = vadd.f32 %v702, %v866
    %v868 = vpop.f32.mrf.mxu0
    %869 = vmatprep.mubr.f32.mxu0 0.0
    %870 = vmatmul.mubr.f32.gmra.mxu0 %v105
    %v871 = vpop.f32.mrf.mxu0
    %v872 = vadd.f32 %v709, %v871
    %v873 = vpop.f32.mrf.mxu0
    %874 = vmatprep.mubr.f32.mxu0 0.0
    %875 = vmatmul.mubr.f32.gmra.mxu0 %v106
    %v876 = vpop.f32.mrf.mxu0
    %v877 = vadd.f32 %v716, %v876
    %v878 = vpop.f32.mrf.mxu0
    %879 = vmatprep.mubr.f32.mxu0 0.0
    %880 = vmatmul.mubr.f32.gmra.mxu0 %v107
    %v881 = vpop.f32.mrf.mxu0
    %v882 = vadd.f32 %v723, %v881
    %v883 = vpop.f32.mrf.mxu0
    %884 = vmatprep.mubr.f32.mxu0 0.0
    %885 = vmatmul.mubr.f32.gmra.mxu0 %v108
    %v886 = vpop.f32.mrf.mxu0
    %v887 = vadd.f32 %v730, %v886
    %v888 = vpop.f32.mrf.mxu0
    %889 = vmatprep.mubr.f32.mxu0 0.0
    %890 = vmatmul.mubr.f32.gmra.mxu0 %v109
    %v891 = vpop.f32.mrf.mxu0
    %v892 = vadd.f32 %v737, %v891
    %v893 = vpop.f32.mrf.mxu0
    %894 = vmatprep.mubr.f32.mxu0 0.0
    %895 = vmatmul.mubr.f32.gmra.mxu0 %v110
    %v896 = vpop.f32.mrf.mxu0
    %v897 = vadd.f32 %v744, %v896
    %v898 = vpop.f32.mrf.mxu0
    %899 = vdwg.mxu0
    %900 = vmatprep.subr.mxu0 0.0
    %v901 = vand.u32 %v126, 4294901760
    %902 = vmatpush1.msra.mxu0 %v901
    %903 = vmatprep.subr.mxu0 0.0
    %v904 = vand.u32 %v125, 4294901760
    %905 = vmatpush1.msra.mxu0 %v904
    %906 = vmatprep.subr.mxu0 0.0
    %v907 = vand.u32 %v124, 4294901760
    %908 = vmatpush1.msra.mxu0 %v907
    %909 = vmatprep.subr.mxu0 0.0
    %v910 = vand.u32 %v123, 4294901760
    %911 = vmatpush1.msra.mxu0 %v910
    %912 = vmatprep.subr.mxu0 0.0
    %v913 = vand.u32 %v122, 4294901760
    %914 = vmatpush1.msra.mxu0 %v913
    %915 = vmatprep.subr.mxu0 0.0
    %v916 = vand.u32 %v121, 4294901760
    %917 = vmatpush1.msra.mxu0 %v916
    %918 = vmatprep.subr.mxu0 0.0
    %v919 = vand.u32 %v120, 4294901760
    %920 = vmatpush1.msra.mxu0 %v919
    %921 = vmatprep.subr.mxu0 0.0
    %v922 = vand.u32 %v119, 4294901760
    %923 = vmatpush1.msra.mxu0 %v922
    %924 = vmatprep.subr.mxu0 0.0
    %v925 = vand.u32 %v118, 4294901760
    %926 = vmatpush1.msra.mxu0 %v925
    %927 = vmatprep.subr.mxu0 0.0
    %v928 = vand.u32 %v117, 4294901760
    %929 = vmatpush1.msra.mxu0 %v928
    %930 = vmatprep.subr.mxu0 0.0
    %v931 = vand.u32 %v116, 4294901760
    %932 = vmatpush1.msra.mxu0 %v931
    %933 = vmatprep.subr.mxu0 0.0
    %v934 = vand.u32 %v115, 4294901760
    %935 = vmatpush1.msra.mxu0 %v934
    %936 = vmatprep.subr.mxu0 0.0
    %v937 = vand.u32 %v114, 4294901760
    %938 = vmatpush1.msra.mxu0 %v937
    %939 = vmatprep.subr.mxu0 0.0
    %v940 = vand.u32 %v113, 4294901760
    %941 = vmatpush1.msra.mxu0 %v940
    %942 = vmatprep.subr.mxu0 0.0
    %v943 = vand.u32 %v112, 4294901760
    %944 = vmatpush1.msra.mxu0 %v943
    %945 = vmatprep.subr.mxu0 0.0
    %v946 = vand.u32 %v111, 4294901760
    %947 = vmatpush1.msra.mxu0 %v946
    %948 = vmatprep.subr.mxu0 0.0
    %949 = vmatpush2.msra.mxu0 0.0
    %950 = vmatprep.subr.mxu0 0.0
    %951 = vmatpush2.msra.mxu0 0.0
    %952 = vmatprep.subr.mxu0 0.0
    %953 = vmatpush2.msra.mxu0 0.0
    %954 = vmatprep.subr.mxu0 0.0
    %955 = vmatpush2.msra.mxu0 0.0
    %956 = vmatprep.subr.mxu0 0.0
    %957 = vmatpush2.msra.mxu0 0.0
    %958 = vmatprep.subr.mxu0 0.0
    %959 = vmatpush2.msra.mxu0 0.0
    %960 = vmatprep.subr.mxu0 0.0
    %961 = vmatpush2.msra.mxu0 0.0
    %962 = vmatprep.subr.mxu0 0.0
    %963 = vmatpush2.msra.mxu0 0.0
    %964 = vmatprep.subr.mxu0 0.0
    %965 = vmatpush2.msra.mxu0 0.0
    %966 = vmatprep.subr.mxu0 0.0
    %967 = vmatpush2.msra.mxu0 0.0
    %968 = vmatprep.subr.mxu0 0.0
    %969 = vmatpush2.msra.mxu0 0.0
    %970 = vmatprep.subr.mxu0 0.0
    %971 = vmatpush2.msra.mxu0 0.0
    %972 = vmatprep.subr.mxu0 0.0
    %973 = vmatpush2.msra.mxu0 0.0
    %974 = vmatprep.subr.mxu0 0.0
    %975 = vmatpush2.msra.mxu0 0.0
    %976 = vmatprep.subr.mxu0 0.0
    %977 = vmatpush2.msra.mxu0 0.0
    %978 = vmatprep.subr.mxu0 0.0
    %979 = vmatpush2.msra.mxu0 0.0
    %980 = vmatprep.mubr.f32.mxu0 0.0
    %981 = vmatmul.mubr.f32.gmra.mxu0 %v103
    %v982 = vpop.f32.mrf.mxu0
    %v983 = vadd.f32 %v862, %v982
    %v984 = vpop.f32.mrf.mxu0
    %985 = vmatprep.mubr.f32.mxu0 0.0
    %986 = vmatmul.mubr.f32.gmra.mxu0 %v104
    %v987 = vpop.f32.mrf.mxu0
    %v988 = vadd.f32 %v867, %v987
    %v989 = vpop.f32.mrf.mxu0
    %990 = vmatprep.mubr.f32.mxu0 0.0
    %991 = vmatmul.mubr.f32.gmra.mxu0 %v105
    %v992 = vpop.f32.mrf.mxu0
    %v993 = vadd.f32 %v872, %v992
    %v994 = vpop.f32.mrf.mxu0
    %995 = vmatprep.mubr.f32.mxu0 0.0
    %996 = vmatmul.mubr.f32.gmra.mxu0 %v106
    %v997 = vpop.f32.mrf.mxu0
    %v998 = vadd.f32 %v877, %v997
    %v999 = vpop.f32.mrf.mxu0
    %1000 = vmatprep.mubr.f32.mxu0 0.0
    %1001 = vmatmul.mubr.f32.gmra.mxu0 %v107
    %v1002 = vpop.f32.mrf.mxu0
    %v1003 = vadd.f32 %v882, %v1002
    %v1004 = vpop.f32.mrf.mxu0
    %1005 = vmatprep.mubr.f32.mxu0 0.0
    %1006 = vmatmul.mubr.f32.gmra.mxu0 %v108
    %v1007 = vpop.f32.mrf.mxu0
    %v1008 = vadd.f32 %v887, %v1007
    %v1009 = vpop.f32.mrf.mxu0
    %1010 = vmatprep.mubr.f32.mxu0 0.0
    %1011 = vmatmul.mubr.f32.gmra.mxu0 %v109
    %v1012 = vpop.f32.mrf.mxu0
    %v1013 = vadd.f32 %v892, %v1012
    %v1014 = vpop.f32.mrf.mxu0
    %1015 = vmatprep.mubr.f32.mxu0 0.0
    %1016 = vmatmul.mubr.f32.gmra.mxu0 %v110
    %v1017 = vpop.f32.mrf.mxu0
    %v1018 = vadd.f32 %v897, %v1017
    %v1019 = vpop.f32.mrf.mxu0
    %1020 = vdwg.mxu0
    %v1021 = vld [vmem:[#allocation4] sm:$0xff]
    %v1022 = vld [vmem:[#allocation4 + $0x8] sm:$0xff]
    %v1023 = vld [vmem:[#allocation4 + $0x10] sm:$0xff]
    %v1024 = vld [vmem:[#allocation4 + $0x18] sm:$0xff]
    %v1025 = vld [vmem:[#allocation4 + $0x20] sm:$0xff]
    %v1026 = vld [vmem:[#allocation4 + $0x28] sm:$0xff]
    %v1027 = vld [vmem:[#allocation4 + $0x30] sm:$0xff]
    %v1028 = vld [vmem:[#allocation4 + $0x38] sm:$0xff]
    %v1029 = vld [vmem:[#allocation4 + $0x40] sm:$0xff]
    %v1030 = vld [vmem:[#allocation4 + $0x48] sm:$0xff]
    %v1031 = vld [vmem:[#allocation4 + $0x50] sm:$0xff]
    %v1032 = vld [vmem:[#allocation4 + $0x58] sm:$0xff]
    %v1033 = vld [vmem:[#allocation4 + $0x60] sm:$0xff]
    %v1034 = vld [vmem:[#allocation4 + $0x68] sm:$0xff]
    %v1035 = vld [vmem:[#allocation4 + $0x70] sm:$0xff]
    %v1036 = vld [vmem:[#allocation4 + $0x78] sm:$0xff]
    %1037 = vmatprep.subr.mxu0 0.0
    %v1038 = vand.u32 %v1036, 4294901760
    %1039 = vmatpush1.msra.mxu0 %v1038
    %1040 = vmatprep.subr.mxu0 0.0
    %v1041 = vand.u32 %v1035, 4294901760
    %1042 = vmatpush1.msra.mxu0 %v1041
    %1043 = vmatprep.subr.mxu0 0.0
    %v1044 = vand.u32 %v1034, 4294901760
    %1045 = vmatpush1.msra.mxu0 %v1044
    %1046 = vmatprep.subr.mxu0 0.0
    %v1047 = vand.u32 %v1033, 4294901760
    %1048 = vmatpush1.msra.mxu0 %v1047
    %1049 = vmatprep.subr.mxu0 0.0
    %v1050 = vand.u32 %v1032, 4294901760
    %1051 = vmatpush1.msra.mxu0 %v1050
    %1052 = vmatprep.subr.mxu0 0.0
    %v1053 = vand.u32 %v1031, 4294901760
    %1054 = vmatpush1.msra.mxu0 %v1053
    %1055 = vmatprep.subr.mxu0 0.0
    %v1056 = vand.u32 %v1030, 4294901760
    %1057 = vmatpush1.msra.mxu0 %v1056
    %1058 = vmatprep.subr.mxu0 0.0
    %v1059 = vand.u32 %v1029, 4294901760
    %1060 = vmatpush1.msra.mxu0 %v1059
    %1061 = vmatprep.subr.mxu0 0.0
    %v1062 = vand.u32 %v1028, 4294901760
    %1063 = vmatpush1.msra.mxu0 %v1062
    %1064 = vmatprep.subr.mxu0 0.0
    %v1065 = vand.u32 %v1027, 4294901760
    %1066 = vmatpush1.msra.mxu0 %v1065
    %1067 = vmatprep.subr.mxu0 0.0
    %v1068 = vand.u32 %v1026, 4294901760
    %1069 = vmatpush1.msra.mxu0 %v1068
    %1070 = vmatprep.subr.mxu0 0.0
    %v1071 = vand.u32 %v1025, 4294901760
    %1072 = vmatpush1.msra.mxu0 %v1071
    %1073 = vmatprep.subr.mxu0 0.0
    %v1074 = vand.u32 %v1024, 4294901760
    %1075 = vmatpush1.msra.mxu0 %v1074
    %1076 = vmatprep.subr.mxu0 0.0
    %v1077 = vand.u32 %v1023, 4294901760
    %1078 = vmatpush1.msra.mxu0 %v1077
    %1079 = vmatprep.subr.mxu0 0.0
    %v1080 = vand.u32 %v1022, 4294901760
    %1081 = vmatpush1.msra.mxu0 %v1080
    %1082 = vmatprep.subr.mxu0 0.0
    %v1083 = vand.u32 %v1021, 4294901760
    %1084 = vmatpush1.msra.mxu0 %v1083
    %1085 = vmatprep.subr.mxu0 0.0
    %1086 = vmatpush2.msra.mxu0 0.0
    %1087 = vmatprep.subr.mxu0 0.0
    %1088 = vmatpush2.msra.mxu0 0.0
    %1089 = vmatprep.subr.mxu0 0.0
    %1090 = vmatpush2.msra.mxu0 0.0
    %1091 = vmatprep.subr.mxu0 0.0
    %1092 = vmatpush2.msra.mxu0 0.0
    %1093 = vmatprep.subr.mxu0 0.0
    %1094 = vmatpush2.msra.mxu0 0.0
    %1095 = vmatprep.subr.mxu0 0.0
    %1096 = vmatpush2.msra.mxu0 0.0
    %1097 = vmatprep.subr.mxu0 0.0
    %1098 = vmatpush2.msra.mxu0 0.0
    %1099 = vmatprep.subr.mxu0 0.0
    %1100 = vmatpush2.msra.mxu0 0.0
    %1101 = vmatprep.subr.mxu0 0.0
    %1102 = vmatpush2.msra.mxu0 0.0
    %1103 = vmatprep.subr.mxu0 0.0
    %1104 = vmatpush2.msra.mxu0 0.0
    %1105 = vmatprep.subr.mxu0 0.0
    %1106 = vmatpush2.msra.mxu0 0.0
    %1107 = vmatprep.subr.mxu0 0.0
    %1108 = vmatpush2.msra.mxu0 0.0
    %1109 = vmatprep.subr.mxu0 0.0
    %1110 = vmatpush2.msra.mxu0 0.0
    %1111 = vmatprep.subr.mxu0 0.0
    %1112 = vmatpush2.msra.mxu0 0.0
    %1113 = vmatprep.subr.mxu0 0.0
    %1114 = vmatpush2.msra.mxu0 0.0
    %1115 = vmatprep.subr.mxu0 0.0
    %1116 = vmatpush2.msra.mxu0 0.0
    %1117 = vmatprep.mubr.f32.mxu0 0.0
    %1118 = vmatmul.mubr.f32.gmra.mxu0 0.0
    %v1119 = vpop.f32.mrf.mxu0
    %v1120 = vadd.f32 0.0, %v1119
    %v1121 = vpop.f32.mrf.mxu0
    %1122 = vdwg.mxu0
    %1123 = vmatprep.subr.mxu0 0.0
    %v1124 = vand.u32 %v1036, 4294901760
    %v1125 = vsub.f32 %v1036, %v1124
    %v1126 = vand.u32 %v1125, 4294901760
    %v1127 = vsub.f32 %v1125, %v1126
    %v1128 = vand.u32 %v1127, 4294901760
    %1129 = vmatpush1.msra.mxu0 %v1128
    %1130 = vmatprep.subr.mxu0 0.0
    %v1131 = vand.u32 %v1035, 4294901760
    %v1132 = vsub.f32 %v1035, %v1131
    %v1133 = vand.u32 %v1132, 4294901760
    %v1134 = vsub.f32 %v1132, %v1133
    %v1135 = vand.u32 %v1134, 4294901760
    %1136 = vmatpush1.msra.mxu0 %v1135
    %1137 = vmatprep.subr.mxu0 0.0
    %v1138 = vand.u32 %v1034, 4294901760
    %v1139 = vsub.f32 %v1034, %v1138
    %v1140 = vand.u32 %v1139, 4294901760
    %v1141 = vsub.f32 %v1139, %v1140
    %v1142 = vand.u32 %v1141, 4294901760
    %1143 = vmatpush1.msra.mxu0 %v1142
    %1144 = vmatprep.subr.mxu0 0.0
    %v1145 = vand.u32 %v1033, 4294901760
    %v1146 = vsub.f32 %v1033, %v1145
    %v1147 = vand.u32 %v1146, 4294901760
    %v1148 = vsub.f32 %v1146, %v1147
    %v1149 = vand.u32 %v1148, 4294901760
    %1150 = vmatpush1.msra.mxu0 %v1149
    %1151 = vmatprep.subr.mxu0 0.0
    %v1152 = vand.u32 %v1032, 4294901760
    %v1153 = vsub.f32 %v1032, %v1152
    %v1154 = vand.u32 %v1153, 4294901760
    %v1155 = vsub.f32 %v1153, %v1154
    %v1156 = vand.u32 %v1155, 4294901760
    %1157 = vmatpush1.msra.mxu0 %v1156
    %1158 = vmatprep.subr.mxu0 0.0
    %v1159 = vand.u32 %v1031, 4294901760
    %v1160 = vsub.f32 %v1031, %v1159
    %v1161 = vand.u32 %v1160, 4294901760
    %v1162 = vsub.f32 %v1160, %v1161
    %v1163 = vand.u32 %v1162, 4294901760
    %1164 = vmatpush1.msra.mxu0 %v1163
    %1165 = vmatprep.subr.mxu0 0.0
    %v1166 = vand.u32 %v1030, 4294901760
    %v1167 = vsub.f32 %v1030, %v1166
    %v1168 = vand.u32 %v1167, 4294901760
    %v1169 = vsub.f32 %v1167, %v1168
    %v1170 = vand.u32 %v1169, 4294901760
    %1171 = vmatpush1.msra.mxu0 %v1170
    %1172 = vmatprep.subr.mxu0 0.0
    %v1173 = vand.u32 %v1029, 4294901760
    %v1174 = vsub.f32 %v1029, %v1173
    %v1175 = vand.u32 %v1174, 4294901760
    %v1176 = vsub.f32 %v1174, %v1175
    %v1177 = vand.u32 %v1176, 4294901760
    %1178 = vmatpush1.msra.mxu0 %v1177
    %1179 = vmatprep.subr.mxu0 0.0
    %v1180 = vand.u32 %v1028, 4294901760
    %v1181 = vsub.f32 %v1028, %v1180
    %v1182 = vand.u32 %v1181, 4294901760
    %v1183 = vsub.f32 %v1181, %v1182
    %v1184 = vand.u32 %v1183, 4294901760
    %1185 = vmatpush1.msra.mxu0 %v1184
    %1186 = vmatprep.subr.mxu0 0.0
    %v1187 = vand.u32 %v1027, 4294901760
    %v1188 = vsub.f32 %v1027, %v1187
    %v1189 = vand.u32 %v1188, 4294901760
    %v1190 = vsub.f32 %v1188, %v1189
    %v1191 = vand.u32 %v1190, 4294901760
    %1192 = vmatpush1.msra.mxu0 %v1191
    %1193 = vmatprep.subr.mxu0 0.0
    %v1194 = vand.u32 %v1026, 4294901760
    %v1195 = vsub.f32 %v1026, %v1194
    %v1196 = vand.u32 %v1195, 4294901760
    %v1197 = vsub.f32 %v1195, %v1196
    %v1198 = vand.u32 %v1197, 4294901760
    %1199 = vmatpush1.msra.mxu0 %v1198
    %1200 = vmatprep.subr.mxu0 0.0
    %v1201 = vand.u32 %v1025, 4294901760
    %v1202 = vsub.f32 %v1025, %v1201
    %v1203 = vand.u32 %v1202, 4294901760
    %v1204 = vsub.f32 %v1202, %v1203
    %v1205 = vand.u32 %v1204, 4294901760
    %1206 = vmatpush1.msra.mxu0 %v1205
    %1207 = vmatprep.subr.mxu0 0.0
    %v1208 = vand.u32 %v1024, 4294901760
    %v1209 = vsub.f32 %v1024, %v1208
    %v1210 = vand.u32 %v1209, 4294901760
    %v1211 = vsub.f32 %v1209, %v1210
    %v1212 = vand.u32 %v1211, 4294901760
    %1213 = vmatpush1.msra.mxu0 %v1212
    %1214 = vmatprep.subr.mxu0 0.0
    %v1215 = vand.u32 %v1023, 4294901760
    %v1216 = vsub.f32 %v1023, %v1215
    %v1217 = vand.u32 %v1216, 4294901760
    %v1218 = vsub.f32 %v1216, %v1217
    %v1219 = vand.u32 %v1218, 4294901760
    %1220 = vmatpush1.msra.mxu0 %v1219
    %1221 = vmatprep.subr.mxu0 0.0
    %v1222 = vand.u32 %v1022, 4294901760
    %v1223 = vsub.f32 %v1022, %v1222
    %v1224 = vand.u32 %v1223, 4294901760
    %v1225 = vsub.f32 %v1223, %v1224
    %v1226 = vand.u32 %v1225, 4294901760
    %1227 = vmatpush1.msra.mxu0 %v1226
    %1228 = vmatprep.subr.mxu0 0.0
    %v1229 = vand.u32 %v1021, 4294901760
    %v1230 = vsub.f32 %v1021, %v1229
    %v1231 = vand.u32 %v1230, 4294901760
    %v1232 = vsub.f32 %v1230, %v1231
    %v1233 = vand.u32 %v1232, 4294901760
    %1234 = vmatpush1.msra.mxu0 %v1233
    %1235 = vmatprep.subr.mxu0 0.0
    %1236 = vmatpush2.msra.mxu0 0.0
    %1237 = vmatprep.subr.mxu0 0.0
    %1238 = vmatpush2.msra.mxu0 0.0
    %1239 = vmatprep.subr.mxu0 0.0
    %1240 = vmatpush2.msra.mxu0 0.0
    %1241 = vmatprep.subr.mxu0 0.0
    %1242 = vmatpush2.msra.mxu0 0.0
    %1243 = vmatprep.subr.mxu0 0.0
    %1244 = vmatpush2.msra.mxu0 0.0
    %1245 = vmatprep.subr.mxu0 0.0
    %1246 = vmatpush2.msra.mxu0 0.0
    %1247 = vmatprep.subr.mxu0 0.0
    %1248 = vmatpush2.msra.mxu0 0.0
    %1249 = vmatprep.subr.mxu0 0.0
    %1250 = vmatpush2.msra.mxu0 0.0
    %1251 = vmatprep.subr.mxu0 0.0
    %1252 = vmatpush2.msra.mxu0 0.0
    %1253 = vmatprep.subr.mxu0 0.0
    %1254 = vmatpush2.msra.mxu0 0.0
    %1255 = vmatprep.subr.mxu0 0.0
    %1256 = vmatpush2.msra.mxu0 0.0
    %1257 = vmatprep.subr.mxu0 0.0
    %1258 = vmatpush2.msra.mxu0 0.0
    %1259 = vmatprep.subr.mxu0 0.0
    %1260 = vmatpush2.msra.mxu0 0.0
    %1261 = vmatprep.subr.mxu0 0.0
    %1262 = vmatpush2.msra.mxu0 0.0
    %1263 = vmatprep.subr.mxu0 0.0
    %1264 = vmatpush2.msra.mxu0 0.0
    %1265 = vmatprep.subr.mxu0 0.0
    %1266 = vmatpush2.msra.mxu0 0.0
    %1267 = vmatprep.mubr.f32.mxu0 0.0
    %1268 = vmatmul.mubr.f32.gmra.mxu0 0.0
    %v1269 = vpop.f32.mrf.mxu0
    %v1270 = vadd.f32 %v1120, %v1269
    %v1271 = vpop.f32.mrf.mxu0
    %1272 = vdwg.mxu0
    %1273 = vmatprep.subr.mxu0 0.0
    %v1274 = vand.u32 %v1036, 4294901760
    %v1275 = vsub.f32 %v1036, %v1274
    %1276 = vmatpush1.msra.mxu0 %v1275
    %1277 = vmatprep.subr.mxu0 0.0
    %v1278 = vand.u32 %v1035, 4294901760
    %v1279 = vsub.f32 %v1035, %v1278
    %1280 = vmatpush1.msra.mxu0 %v1279
    %1281 = vmatprep.subr.mxu0 0.0
    %v1282 = vand.u32 %v1034, 4294901760
    %v1283 = vsub.f32 %v1034, %v1282
    %1284 = vmatpush1.msra.mxu0 %v1283
    %1285 = vmatprep.subr.mxu0 0.0
    %v1286 = vand.u32 %v1033, 4294901760
    %v1287 = vsub.f32 %v1033, %v1286
    %1288 = vmatpush1.msra.mxu0 %v1287
    %1289 = vmatprep.subr.mxu0 0.0
    %v1290 = vand.u32 %v1032, 4294901760
    %v1291 = vsub.f32 %v1032, %v1290
    %1292 = vmatpush1.msra.mxu0 %v1291
    %1293 = vmatprep.subr.mxu0 0.0
    %v1294 = vand.u32 %v1031, 4294901760
    %v1295 = vsub.f32 %v1031, %v1294
    %1296 = vmatpush1.msra.mxu0 %v1295
    %1297 = vmatprep.subr.mxu0 0.0
    %v1298 = vand.u32 %v1030, 4294901760
    %v1299 = vsub.f32 %v1030, %v1298
    %1300 = vmatpush1.msra.mxu0 %v1299
    %1301 = vmatprep.subr.mxu0 0.0
    %v1302 = vand.u32 %v1029, 4294901760
    %v1303 = vsub.f32 %v1029, %v1302
    %1304 = vmatpush1.msra.mxu0 %v1303
    %1305 = vmatprep.subr.mxu0 0.0
    %v1306 = vand.u32 %v1028, 4294901760
    %v1307 = vsub.f32 %v1028, %v1306
    %1308 = vmatpush1.msra.mxu0 %v1307
    %1309 = vmatprep.subr.mxu0 0.0
    %v1310 = vand.u32 %v1027, 4294901760
    %v1311 = vsub.f32 %v1027, %v1310
    %1312 = vmatpush1.msra.mxu0 %v1311
    %1313 = vmatprep.subr.mxu0 0.0
    %v1314 = vand.u32 %v1026, 4294901760
    %v1315 = vsub.f32 %v1026, %v1314
    %1316 = vmatpush1.msra.mxu0 %v1315
    %1317 = vmatprep.subr.mxu0 0.0
    %v1318 = vand.u32 %v1025, 4294901760
    %v1319 = vsub.f32 %v1025, %v1318
    %1320 = vmatpush1.msra.mxu0 %v1319
    %1321 = vmatprep.subr.mxu0 0.0
    %v1322 = vand.u32 %v1024, 4294901760
    %v1323 = vsub.f32 %v1024, %v1322
    %1324 = vmatpush1.msra.mxu0 %v1323
    %1325 = vmatprep.subr.mxu0 0.0
    %v1326 = vand.u32 %v1023, 4294901760
    %v1327 = vsub.f32 %v1023, %v1326
    %1328 = vmatpush1.msra.mxu0 %v1327
    %1329 = vmatprep.subr.mxu0 0.0
    %v1330 = vand.u32 %v1022, 4294901760
    %v1331 = vsub.f32 %v1022, %v1330
    %1332 = vmatpush1.msra.mxu0 %v1331
    %1333 = vmatprep.subr.mxu0 0.0
    %v1334 = vand.u32 %v1021, 4294901760
    %v1335 = vsub.f32 %v1021, %v1334
    %1336 = vmatpush1.msra.mxu0 %v1335
    %1337 = vmatprep.subr.mxu0 0.0
    %1338 = vmatpush2.msra.mxu0 0.0
    %1339 = vmatprep.subr.mxu0 0.0
    %1340 = vmatpush2.msra.mxu0 0.0
    %1341 = vmatprep.subr.mxu0 0.0
    %1342 = vmatpush2.msra.mxu0 0.0
    %1343 = vmatprep.subr.mxu0 0.0
    %1344 = vmatpush2.msra.mxu0 0.0
    %1345 = vmatprep.subr.mxu0 0.0
    %1346 = vmatpush2.msra.mxu0 0.0
    %1347 = vmatprep.subr.mxu0 0.0
    %1348 = vmatpush2.msra.mxu0 0.0
    %1349 = vmatprep.subr.mxu0 0.0
    %1350 = vmatpush2.msra.mxu0 0.0
    %1351 = vmatprep.subr.mxu0 0.0
    %1352 = vmatpush2.msra.mxu0 0.0
    %1353 = vmatprep.subr.mxu0 0.0
    %1354 = vmatpush2.msra.mxu0 0.0
    %1355 = vmatprep.subr.mxu0 0.0
    %1356 = vmatpush2.msra.mxu0 0.0
    %1357 = vmatprep.subr.mxu0 0.0
    %1358 = vmatpush2.msra.mxu0 0.0
    %1359 = vmatprep.subr.mxu0 0.0
    %1360 = vmatpush2.msra.mxu0 0.0
    %1361 = vmatprep.subr.mxu0 0.0
    %1362 = vmatpush2.msra.mxu0 0.0
    %1363 = vmatprep.subr.mxu0 0.0
    %1364 = vmatpush2.msra.mxu0 0.0
    %1365 = vmatprep.subr.mxu0 0.0
    %1366 = vmatpush2.msra.mxu0 0.0
    %1367 = vmatprep.subr.mxu0 0.0
    %1368 = vmatpush2.msra.mxu0 0.0
    %1369 = vmatprep.mubr.f32.mxu0 0.0
    %1370 = vmatmul.mubr.f32.gmra.mxu0 0.0
    %v1371 = vpop.f32.mrf.mxu0
    %v1372 = vadd.f32 %v1270, %v1371
    %v1373 = vpop.f32.mrf.mxu0
    %1374 = vdwg.mxu0
    %1375 = vmatprep.subr.mxu0 0.0
    %v1376 = vand.u32 %v1036, 4294901760
    %1377 = vmatpush1.msra.mxu0 %v1376
    %1378 = vmatprep.subr.mxu0 0.0
    %v1379 = vand.u32 %v1035, 4294901760
    %1380 = vmatpush1.msra.mxu0 %v1379
    %1381 = vmatprep.subr.mxu0 0.0
    %v1382 = vand.u32 %v1034, 4294901760
    %1383 = vmatpush1.msra.mxu0 %v1382
    %1384 = vmatprep.subr.mxu0 0.0
    %v1385 = vand.u32 %v1033, 4294901760
    %1386 = vmatpush1.msra.mxu0 %v1385
    %1387 = vmatprep.subr.mxu0 0.0
    %v1388 = vand.u32 %v1032, 4294901760
    %1389 = vmatpush1.msra.mxu0 %v1388
    %1390 = vmatprep.subr.mxu0 0.0
    %v1391 = vand.u32 %v1031, 4294901760
    %1392 = vmatpush1.msra.mxu0 %v1391
    %1393 = vmatprep.subr.mxu0 0.0
    %v1394 = vand.u32 %v1030, 4294901760
    %1395 = vmatpush1.msra.mxu0 %v1394
    %1396 = vmatprep.subr.mxu0 0.0
    %v1397 = vand.u32 %v1029, 4294901760
    %1398 = vmatpush1.msra.mxu0 %v1397
    %1399 = vmatprep.subr.mxu0 0.0
    %v1400 = vand.u32 %v1028, 4294901760
    %1401 = vmatpush1.msra.mxu0 %v1400
    %1402 = vmatprep.subr.mxu0 0.0
    %v1403 = vand.u32 %v1027, 4294901760
    %1404 = vmatpush1.msra.mxu0 %v1403
    %1405 = vmatprep.subr.mxu0 0.0
    %v1406 = vand.u32 %v1026, 4294901760
    %1407 = vmatpush1.msra.mxu0 %v1406
    %1408 = vmatprep.subr.mxu0 0.0
    %v1409 = vand.u32 %v1025, 4294901760
    %1410 = vmatpush1.msra.mxu0 %v1409
    %1411 = vmatprep.subr.mxu0 0.0
    %v1412 = vand.u32 %v1024, 4294901760
    %1413 = vmatpush1.msra.mxu0 %v1412
    %1414 = vmatprep.subr.mxu0 0.0
    %v1415 = vand.u32 %v1023, 4294901760
    %1416 = vmatpush1.msra.mxu0 %v1415
    %1417 = vmatprep.subr.mxu0 0.0
    %v1418 = vand.u32 %v1022, 4294901760
    %1419 = vmatpush1.msra.mxu0 %v1418
    %1420 = vmatprep.subr.mxu0 0.0
    %v1421 = vand.u32 %v1021, 4294901760
    %1422 = vmatpush1.msra.mxu0 %v1421
    %1423 = vmatprep.subr.mxu0 0.0
    %1424 = vmatpush2.msra.mxu0 0.0
    %1425 = vmatprep.subr.mxu0 0.0
    %1426 = vmatpush2.msra.mxu0 0.0
    %1427 = vmatprep.subr.mxu0 0.0
    %1428 = vmatpush2.msra.mxu0 0.0
    %1429 = vmatprep.subr.mxu0 0.0
    %1430 = vmatpush2.msra.mxu0 0.0
    %1431 = vmatprep.subr.mxu0 0.0
    %1432 = vmatpush2.msra.mxu0 0.0
    %1433 = vmatprep.subr.mxu0 0.0
    %1434 = vmatpush2.msra.mxu0 0.0
    %1435 = vmatprep.subr.mxu0 0.0
    %1436 = vmatpush2.msra.mxu0 0.0
    %1437 = vmatprep.subr.mxu0 0.0
    %1438 = vmatpush2.msra.mxu0 0.0
    %1439 = vmatprep.subr.mxu0 0.0
    %1440 = vmatpush2.msra.mxu0 0.0
    %1441 = vmatprep.subr.mxu0 0.0
    %1442 = vmatpush2.msra.mxu0 0.0
    %1443 = vmatprep.subr.mxu0 0.0
    %1444 = vmatpush2.msra.mxu0 0.0
    %1445 = vmatprep.subr.mxu0 0.0
    %1446 = vmatpush2.msra.mxu0 0.0
    %1447 = vmatprep.subr.mxu0 0.0
    %1448 = vmatpush2.msra.mxu0 0.0
    %1449 = vmatprep.subr.mxu0 0.0
    %1450 = vmatpush2.msra.mxu0 0.0
    %1451 = vmatprep.subr.mxu0 0.0
    %1452 = vmatpush2.msra.mxu0 0.0
    %1453 = vmatprep.subr.mxu0 0.0
    %1454 = vmatpush2.msra.mxu0 0.0
    %1455 = vmatprep.mubr.f32.mxu0 0.0
    %1456 = vmatmul.mubr.f32.gmra.mxu0 0.0
    %v1457 = vpop.f32.mrf.mxu0
    %v1458 = vadd.f32 %v1372, %v1457
    %v1459 = vpop.f32.mrf.mxu0
    %1460 = vdwg.mxu0
    %1461 = vmatprep.subr.mxu0 0.0
    %v1462 = vand.u32 %v1036, 4294901760
    %v1463 = vsub.f32 %v1036, %v1462
    %v1464 = vand.u32 %v1463, 4294901760
    %1465 = vmatpush1.msra.mxu0 %v1464
    %1466 = vmatprep.subr.mxu0 0.0
    %v1467 = vand.u32 %v1035, 4294901760
    %v1468 = vsub.f32 %v1035, %v1467
    %v1469 = vand.u32 %v1468, 4294901760
    %1470 = vmatpush1.msra.mxu0 %v1469
    %1471 = vmatprep.subr.mxu0 0.0
    %v1472 = vand.u32 %v1034, 4294901760
    %v1473 = vsub.f32 %v1034, %v1472
    %v1474 = vand.u32 %v1473, 4294901760
    %1475 = vmatpush1.msra.mxu0 %v1474
    %1476 = vmatprep.subr.mxu0 0.0
    %v1477 = vand.u32 %v1033, 4294901760
    %v1478 = vsub.f32 %v1033, %v1477
    %v1479 = vand.u32 %v1478, 4294901760
    %1480 = vmatpush1.msra.mxu0 %v1479
    %1481 = vmatprep.subr.mxu0 0.0
    %v1482 = vand.u32 %v1032, 4294901760
    %v1483 = vsub.f32 %v1032, %v1482
    %v1484 = vand.u32 %v1483, 4294901760
    %1485 = vmatpush1.msra.mxu0 %v1484
    %1486 = vmatprep.subr.mxu0 0.0
    %v1487 = vand.u32 %v1031, 4294901760
    %v1488 = vsub.f32 %v1031, %v1487
    %v1489 = vand.u32 %v1488, 4294901760
    %1490 = vmatpush1.msra.mxu0 %v1489
    %1491 = vmatprep.subr.mxu0 0.0
    %v1492 = vand.u32 %v1030, 4294901760
    %v1493 = vsub.f32 %v1030, %v1492
    %v1494 = vand.u32 %v1493, 4294901760
    %1495 = vmatpush1.msra.mxu0 %v1494
    %1496 = vmatprep.subr.mxu0 0.0
    %v1497 = vand.u32 %v1029, 4294901760
    %v1498 = vsub.f32 %v1029, %v1497
    %v1499 = vand.u32 %v1498, 4294901760
    %1500 = vmatpush1.msra.mxu0 %v1499
    %1501 = vmatprep.subr.mxu0 0.0
    %v1502 = vand.u32 %v1028, 4294901760
    %v1503 = vsub.f32 %v1028, %v1502
    %v1504 = vand.u32 %v1503, 4294901760
    %1505 = vmatpush1.msra.mxu0 %v1504
    %1506 = vmatprep.subr.mxu0 0.0
    %v1507 = vand.u32 %v1027, 4294901760
    %v1508 = vsub.f32 %v1027, %v1507
    %v1509 = vand.u32 %v1508, 4294901760
    %1510 = vmatpush1.msra.mxu0 %v1509
    %1511 = vmatprep.subr.mxu0 0.0
    %v1512 = vand.u32 %v1026, 4294901760
    %v1513 = vsub.f32 %v1026, %v1512
    %v1514 = vand.u32 %v1513, 4294901760
    %1515 = vmatpush1.msra.mxu0 %v1514
    %1516 = vmatprep.subr.mxu0 0.0
    %v1517 = vand.u32 %v1025, 4294901760
    %v1518 = vsub.f32 %v1025, %v1517
    %v1519 = vand.u32 %v1518, 4294901760
    %1520 = vmatpush1.msra.mxu0 %v1519
    %1521 = vmatprep.subr.mxu0 0.0
    %v1522 = vand.u32 %v1024, 4294901760
    %v1523 = vsub.f32 %v1024, %v1522
    %v1524 = vand.u32 %v1523, 4294901760
    %1525 = vmatpush1.msra.mxu0 %v1524
    %1526 = vmatprep.subr.mxu0 0.0
    %v1527 = vand.u32 %v1023, 4294901760
    %v1528 = vsub.f32 %v1023, %v1527
    %v1529 = vand.u32 %v1528, 4294901760
    %1530 = vmatpush1.msra.mxu0 %v1529
    %1531 = vmatprep.subr.mxu0 0.0
    %v1532 = vand.u32 %v1022, 4294901760
    %v1533 = vsub.f32 %v1022, %v1532
    %v1534 = vand.u32 %v1533, 4294901760
    %1535 = vmatpush1.msra.mxu0 %v1534
    %1536 = vmatprep.subr.mxu0 0.0
    %v1537 = vand.u32 %v1021, 4294901760
    %v1538 = vsub.f32 %v1021, %v1537
    %v1539 = vand.u32 %v1538, 4294901760
    %1540 = vmatpush1.msra.mxu0 %v1539
    %1541 = vmatprep.subr.mxu0 0.0
    %1542 = vmatpush2.msra.mxu0 0.0
    %1543 = vmatprep.subr.mxu0 0.0
    %1544 = vmatpush2.msra.mxu0 0.0
    %1545 = vmatprep.subr.mxu0 0.0
    %1546 = vmatpush2.msra.mxu0 0.0
    %1547 = vmatprep.subr.mxu0 0.0
    %1548 = vmatpush2.msra.mxu0 0.0
    %1549 = vmatprep.subr.mxu0 0.0
    %1550 = vmatpush2.msra.mxu0 0.0
    %1551 = vmatprep.subr.mxu0 0.0
    %1552 = vmatpush2.msra.mxu0 0.0
    %1553 = vmatprep.subr.mxu0 0.0
    %1554 = vmatpush2.msra.mxu0 0.0
    %1555 = vmatprep.subr.mxu0 0.0
    %1556 = vmatpush2.msra.mxu0 0.0
    %1557 = vmatprep.subr.mxu0 0.0
    %1558 = vmatpush2.msra.mxu0 0.0
    %1559 = vmatprep.subr.mxu0 0.0
    %1560 = vmatpush2.msra.mxu0 0.0
    %1561 = vmatprep.subr.mxu0 0.0
    %1562 = vmatpush2.msra.mxu0 0.0
    %1563 = vmatprep.subr.mxu0 0.0
    %1564 = vmatpush2.msra.mxu0 0.0
    %1565 = vmatprep.subr.mxu0 0.0
    %1566 = vmatpush2.msra.mxu0 0.0
    %1567 = vmatprep.subr.mxu0 0.0
    %1568 = vmatpush2.msra.mxu0 0.0
    %1569 = vmatprep.subr.mxu0 0.0
    %1570 = vmatpush2.msra.mxu0 0.0
    %1571 = vmatprep.subr.mxu0 0.0
    %1572 = vmatpush2.msra.mxu0 0.0
    %1573 = vmatprep.mubr.f32.mxu0 0.0
    %1574 = vmatmul.mubr.f32.gmra.mxu0 0.0
    %v1575 = vpop.f32.mrf.mxu0
    %v1576 = vadd.f32 %v1458, %v1575
    %v1577 = vpop.f32.mrf.mxu0
    %1578 = vdwg.mxu0
    %1579 = vmatprep.subr.mxu0 0.0
    %v1580 = vand.u32 %v1036, 4294901760
    %1581 = vmatpush1.msra.mxu0 %v1580
    %1582 = vmatprep.subr.mxu0 0.0
    %v1583 = vand.u32 %v1035, 4294901760
    %1584 = vmatpush1.msra.mxu0 %v1583
    %1585 = vmatprep.subr.mxu0 0.0
    %v1586 = vand.u32 %v1034, 4294901760
    %1587 = vmatpush1.msra.mxu0 %v1586
    %1588 = vmatprep.subr.mxu0 0.0
    %v1589 = vand.u32 %v1033, 4294901760
    %1590 = vmatpush1.msra.mxu0 %v1589
    %1591 = vmatprep.subr.mxu0 0.0
    %v1592 = vand.u32 %v1032, 4294901760
    %1593 = vmatpush1.msra.mxu0 %v1592
    %1594 = vmatprep.subr.mxu0 0.0
    %v1595 = vand.u32 %v1031, 4294901760
    %1596 = vmatpush1.msra.mxu0 %v1595
    %1597 = vmatprep.subr.mxu0 0.0
    %v1598 = vand.u32 %v1030, 4294901760
    %1599 = vmatpush1.msra.mxu0 %v1598
    %1600 = vmatprep.subr.mxu0 0.0
    %v1601 = vand.u32 %v1029, 4294901760
    %1602 = vmatpush1.msra.mxu0 %v1601
    %1603 = vmatprep.subr.mxu0 0.0
    %v1604 = vand.u32 %v1028, 4294901760
    %1605 = vmatpush1.msra.mxu0 %v1604
    %1606 = vmatprep.subr.mxu0 0.0
    %v1607 = vand.u32 %v1027, 4294901760
    %1608 = vmatpush1.msra.mxu0 %v1607
    %1609 = vmatprep.subr.mxu0 0.0
    %v1610 = vand.u32 %v1026, 4294901760
    %1611 = vmatpush1.msra.mxu0 %v1610
    %1612 = vmatprep.subr.mxu0 0.0
    %v1613 = vand.u32 %v1025, 4294901760
    %1614 = vmatpush1.msra.mxu0 %v1613
    %1615 = vmatprep.subr.mxu0 0.0
    %v1616 = vand.u32 %v1024, 4294901760
    %1617 = vmatpush1.msra.mxu0 %v1616
    %1618 = vmatprep.subr.mxu0 0.0
    %v1619 = vand.u32 %v1023, 4294901760
    %1620 = vmatpush1.msra.mxu0 %v1619
    %1621 = vmatprep.subr.mxu0 0.0
    %v1622 = vand.u32 %v1022, 4294901760
    %1623 = vmatpush1.msra.mxu0 %v1622
    %1624 = vmatprep.subr.mxu0 0.0
    %v1625 = vand.u32 %v1021, 4294901760
    %1626 = vmatpush1.msra.mxu0 %v1625
    %1627 = vmatprep.subr.mxu0 0.0
    %1628 = vmatpush2.msra.mxu0 0.0
    %1629 = vmatprep.subr.mxu0 0.0
    %1630 = vmatpush2.msra.mxu0 0.0
    %1631 = vmatprep.subr.mxu0 0.0
    %1632 = vmatpush2.msra.mxu0 0.0
    %1633 = vmatprep.subr.mxu0 0.0
    %1634 = vmatpush2.msra.mxu0 0.0
    %1635 = vmatprep.subr.mxu0 0.0
    %1636 = vmatpush2.msra.mxu0 0.0
    %1637 = vmatprep.subr.mxu0 0.0
    %1638 = vmatpush2.msra.mxu0 0.0
    %1639 = vmatprep.subr.mxu0 0.0
    %1640 = vmatpush2.msra.mxu0 0.0
    %1641 = vmatprep.subr.mxu0 0.0
    %1642 = vmatpush2.msra.mxu0 0.0
    %1643 = vmatprep.subr.mxu0 0.0
    %1644 = vmatpush2.msra.mxu0 0.0
    %1645 = vmatprep.subr.mxu0 0.0
    %1646 = vmatpush2.msra.mxu0 0.0
    %1647 = vmatprep.subr.mxu0 0.0
    %1648 = vmatpush2.msra.mxu0 0.0
    %1649 = vmatprep.subr.mxu0 0.0
    %1650 = vmatpush2.msra.mxu0 0.0
    %1651 = vmatprep.subr.mxu0 0.0
    %1652 = vmatpush2.msra.mxu0 0.0
    %1653 = vmatprep.subr.mxu0 0.0
    %1654 = vmatpush2.msra.mxu0 0.0
    %1655 = vmatprep.subr.mxu0 0.0
    %1656 = vmatpush2.msra.mxu0 0.0
    %1657 = vmatprep.subr.mxu0 0.0
    %1658 = vmatpush2.msra.mxu0 0.0
    %1659 = vmatprep.mubr.f32.mxu0 0.0
    %1660 = vmatmul.mubr.f32.gmra.mxu0 0.0
    %v1661 = vpop.f32.mrf.mxu0
    %v1662 = vadd.f32 %v1576, %v1661
    %v1663 = vpop.f32.mrf.mxu0
    %1664 = vdwg.mxu0
    %v1665 = vadd.f32 %v983, %v1662
    %v1666 = vtanh.pop %v1665
    %1667 = vmatprep.subr.mxu0 0.0
    %v1668 = vand.u32 %v1036, 4294901760
    %1669 = vmatpush1.msra.mxu0 %v1668
    %1670 = vmatprep.subr.mxu0 0.0
    %v1671 = vand.u32 %v1035, 4294901760
    %1672 = vmatpush1.msra.mxu0 %v1671
    %1673 = vmatprep.subr.mxu0 0.0
    %v1674 = vand.u32 %v1034, 4294901760
    %1675 = vmatpush1.msra.mxu0 %v1674
    %1676 = vmatprep.subr.mxu0 0.0
    %v1677 = vand.u32 %v1033, 4294901760
    %1678 = vmatpush1.msra.mxu0 %v1677
    %1679 = vmatprep.subr.mxu0 0.0
    %v1680 = vand.u32 %v1032, 4294901760
    %1681 = vmatpush1.msra.mxu0 %v1680
    %1682 = vmatprep.subr.mxu0 0.0
    %v1683 = vand.u32 %v1031, 4294901760
    %1684 = vmatpush1.msra.mxu0 %v1683
    %1685 = vmatprep.subr.mxu0 0.0
    %v1686 = vand.u32 %v1030, 4294901760
    %1687 = vmatpush1.msra.mxu0 %v1686
    %1688 = vmatprep.subr.mxu0 0.0
    %v1689 = vand.u32 %v1029, 4294901760
    %1690 = vmatpush1.msra.mxu0 %v1689
    %1691 = vmatprep.subr.mxu0 0.0
    %v1692 = vand.u32 %v1028, 4294901760
    %1693 = vmatpush1.msra.mxu0 %v1692
    %1694 = vmatprep.subr.mxu0 0.0
    %v1695 = vand.u32 %v1027, 4294901760
    %1696 = vmatpush1.msra.mxu0 %v1695
    %1697 = vmatprep.subr.mxu0 0.0
    %v1698 = vand.u32 %v1026, 4294901760
    %1699 = vmatpush1.msra.mxu0 %v1698
    %1700 = vmatprep.subr.mxu0 0.0
    %v1701 = vand.u32 %v1025, 4294901760
    %1702 = vmatpush1.msra.mxu0 %v1701
    %1703 = vmatprep.subr.mxu0 0.0
    %v1704 = vand.u32 %v1024, 4294901760
    %1705 = vmatpush1.msra.mxu0 %v1704
    %1706 = vmatprep.subr.mxu0 0.0
    %v1707 = vand.u32 %v1023, 4294901760
    %1708 = vmatpush1.msra.mxu0 %v1707
    %1709 = vmatprep.subr.mxu0 0.0
    %v1710 = vand.u32 %v1022, 4294901760
    %1711 = vmatpush1.msra.mxu0 %v1710
    %1712 = vmatprep.subr.mxu0 0.0
    %v1713 = vand.u32 %v1021, 4294901760
    %1714 = vmatpush1.msra.mxu0 %v1713
    %1715 = vmatprep.subr.mxu0 0.0
    %1716 = vmatpush2.msra.mxu0 0.0
    %1717 = vmatprep.subr.mxu0 0.0
    %1718 = vmatpush2.msra.mxu0 0.0
    %1719 = vmatprep.subr.mxu0 0.0
    %1720 = vmatpush2.msra.mxu0 0.0
    %1721 = vmatprep.subr.mxu0 0.0
    %1722 = vmatpush2.msra.mxu0 0.0
    %1723 = vmatprep.subr.mxu0 0.0
    %1724 = vmatpush2.msra.mxu0 0.0
    %1725 = vmatprep.subr.mxu0 0.0
    %1726 = vmatpush2.msra.mxu0 0.0
    %1727 = vmatprep.subr.mxu0 0.0
    %1728 = vmatpush2.msra.mxu0 0.0
    %1729 = vmatprep.subr.mxu0 0.0
    %1730 = vmatpush2.msra.mxu0 0.0
    %1731 = vmatprep.subr.mxu0 0.0
    %1732 = vmatpush2.msra.mxu0 0.0
    %1733 = vmatprep.subr.mxu0 0.0
    %1734 = vmatpush2.msra.mxu0 0.0
    %1735 = vmatprep.subr.mxu0 0.0
    %1736 = vmatpush2.msra.mxu0 0.0
    %1737 = vmatprep.subr.mxu0 0.0
    %1738 = vmatpush2.msra.mxu0 0.0
    %1739 = vmatprep.subr.mxu0 0.0
    %1740 = vmatpush2.msra.mxu0 0.0
    %1741 = vmatprep.subr.mxu0 0.0
    %1742 = vmatpush2.msra.mxu0 0.0
    %1743 = vmatprep.subr.mxu0 0.0
    %1744 = vmatpush2.msra.mxu0 0.0
    %1745 = vmatprep.subr.mxu0 0.0
    %1746 = vmatpush2.msra.mxu0 0.0
    %1747 = vmatprep.mubr.f32.mxu0 0.0
    %v1748 = vand.u32 %v1666, 4294901760
    %v1749 = vsub.f32 %v1666, %v1748
    %v1750 = vand.u32 %v1749, 4294901760
    %v1751 = vsub.f32 %v1749, %v1750
    %v1752 = vand.u32 %v1751, 4294901760
    %1753 = vmatmul.mubr.f32.gmra.mxu0 %v1752
    %v1754 = vpop.f32.mrf.mxu0
    %v1755 = vadd.f32 0.0, %v1754
    %v1756 = vpop.f32.mrf.mxu0
    %1757 = vdwg.mxu0
    %1758 = vmatprep.subr.mxu0 0.0
    %v1759 = vand.u32 %v1036, 4294901760
    %v1760 = vsub.f32 %v1036, %v1759
    %v1761 = vand.u32 %v1760, 4294901760
    %v1762 = vsub.f32 %v1760, %v1761
    %v1763 = vand.u32 %v1762, 4294901760
    %1764 = vmatpush1.msra.mxu0 %v1763
    %1765 = vmatprep.subr.mxu0 0.0
    %v1766 = vand.u32 %v1035, 4294901760
    %v1767 = vsub.f32 %v1035, %v1766
    %v1768 = vand.u32 %v1767, 4294901760
    %v1769 = vsub.f32 %v1767, %v1768
    %v1770 = vand.u32 %v1769, 4294901760
    %1771 = vmatpush1.msra.mxu0 %v1770
    %1772 = vmatprep.subr.mxu0 0.0
    %v1773 = vand.u32 %v1034, 4294901760
    %v1774 = vsub.f32 %v1034, %v1773
    %v1775 = vand.u32 %v1774, 4294901760
    %v1776 = vsub.f32 %v1774, %v1775
    %v1777 = vand.u32 %v1776, 4294901760
    %1778 = vmatpush1.msra.mxu0 %v1777
    %1779 = vmatprep.subr.mxu0 0.0
    %v1780 = vand.u32 %v1033, 4294901760
    %v1781 = vsub.f32 %v1033, %v1780
    %v1782 = vand.u32 %v1781, 4294901760
    %v1783 = vsub.f32 %v1781, %v1782
    %v1784 = vand.u32 %v1783, 4294901760
    %1785 = vmatpush1.msra.mxu0 %v1784
    %1786 = vmatprep.subr.mxu0 0.0
    %v1787 = vand.u32 %v1032, 4294901760
    %v1788 = vsub.f32 %v1032, %v1787
    %v1789 = vand.u32 %v1788, 4294901760
    %v1790 = vsub.f32 %v1788, %v1789
    %v1791 = vand.u32 %v1790, 4294901760
    %1792 = vmatpush1.msra.mxu0 %v1791
    %1793 = vmatprep.subr.mxu0 0.0
    %v1794 = vand.u32 %v1031, 4294901760
    %v1795 = vsub.f32 %v1031, %v1794
    %v1796 = vand.u32 %v1795, 4294901760
    %v1797 = vsub.f32 %v1795, %v1796
    %v1798 = vand.u32 %v1797, 4294901760
    %1799 = vmatpush1.msra.mxu0 %v1798
    %1800 = vmatprep.subr.mxu0 0.0
    %v1801 = vand.u32 %v1030, 4294901760
    %v1802 = vsub.f32 %v1030, %v1801
    %v1803 = vand.u32 %v1802, 4294901760
    %v1804 = vsub.f32 %v1802, %v1803
    %v1805 = vand.u32 %v1804, 4294901760
    %1806 = vmatpush1.msra.mxu0 %v1805
    %1807 = vmatprep.subr.mxu0 0.0
    %v1808 = vand.u32 %v1029, 4294901760
    %v1809 = vsub.f32 %v1029, %v1808
    %v1810 = vand.u32 %v1809, 4294901760
    %v1811 = vsub.f32 %v1809, %v1810
    %v1812 = vand.u32 %v1811, 4294901760
    %1813 = vmatpush1.msra.mxu0 %v1812
    %1814 = vmatprep.subr.mxu0 0.0
    %v1815 = vand.u32 %v1028, 4294901760
    %v1816 = vsub.f32 %v1028, %v1815
    %v1817 = vand.u32 %v1816, 4294901760
    %v1818 = vsub.f32 %v1816, %v1817
    %v1819 = vand.u32 %v1818, 4294901760
    %1820 = vmatpush1.msra.mxu0 %v1819
    %1821 = vmatprep.subr.mxu0 0.0
    %v1822 = vand.u32 %v1027, 4294901760
    %v1823 = vsub.f32 %v1027, %v1822
    %v1824 = vand.u32 %v1823, 4294901760
    %v1825 = vsub.f32 %v1823, %v1824
    %v1826 = vand.u32 %v1825, 4294901760
    %1827 = vmatpush1.msra.mxu0 %v1826
    %1828 = vmatprep.subr.mxu0 0.0
    %v1829 = vand.u32 %v1026, 4294901760
    %v1830 = vsub.f32 %v1026, %v1829
    %v1831 = vand.u32 %v1830, 4294901760
    %v1832 = vsub.f32 %v1830, %v1831
    %v1833 = vand.u32 %v1832, 4294901760
    %1834 = vmatpush1.msra.mxu0 %v1833
    %1835 = vmatprep.subr.mxu0 0.0
    %v1836 = vand.u32 %v1025, 4294901760
    %v1837 = vsub.f32 %v1025, %v1836
    %v1838 = vand.u32 %v1837, 4294901760
    %v1839 = vsub.f32 %v1837, %v1838
    %v1840 = vand.u32 %v1839, 4294901760
    %1841 = vmatpush1.msra.mxu0 %v1840
    %1842 = vmatprep.subr.mxu0 0.0
    %v1843 = vand.u32 %v1024, 4294901760
    %v1844 = vsub.f32 %v1024, %v1843
    %v1845 = vand.u32 %v1844, 4294901760
    %v1846 = vsub.f32 %v1844, %v1845
    %v1847 = vand.u32 %v1846, 4294901760
    %1848 = vmatpush1.msra.mxu0 %v1847
    %1849 = vmatprep.subr.mxu0 0.0
    %v1850 = vand.u32 %v1023, 4294901760
    %v1851 = vsub.f32 %v1023, %v1850
    %v1852 = vand.u32 %v1851, 4294901760
    %v1853 = vsub.f32 %v1851, %v1852
    %v1854 = vand.u32 %v1853, 4294901760
    %1855 = vmatpush1.msra.mxu0 %v1854
    %1856 = vmatprep.subr.mxu0 0.0
    %v1857 = vand.u32 %v1022, 4294901760
    %v1858 = vsub.f32 %v1022, %v1857
    %v1859 = vand.u32 %v1858, 4294901760
    %v1860 = vsub.f32 %v1858, %v1859
    %v1861 = vand.u32 %v1860, 4294901760
    %1862 = vmatpush1.msra.mxu0 %v1861
    %1863 = vmatprep.subr.mxu0 0.0
    %v1864 = vand.u32 %v1021, 4294901760
    %v1865 = vsub.f32 %v1021, %v1864
    %v1866 = vand.u32 %v1865, 4294901760
    %v1867 = vsub.f32 %v1865, %v1866
    %v1868 = vand.u32 %v1867, 4294901760
    %1869 = vmatpush1.msra.mxu0 %v1868
    %1870 = vmatprep.subr.mxu0 0.0
    %1871 = vmatpush2.msra.mxu0 0.0
    %1872 = vmatprep.subr.mxu0 0.0
    %1873 = vmatpush2.msra.mxu0 0.0
    %1874 = vmatprep.subr.mxu0 0.0
    %1875 = vmatpush2.msra.mxu0 0.0
    %1876 = vmatprep.subr.mxu0 0.0
    %1877 = vmatpush2.msra.mxu0 0.0
    %1878 = vmatprep.subr.mxu0 0.0
    %1879 = vmatpush2.msra.mxu0 0.0
    %1880 = vmatprep.subr.mxu0 0.0
    %1881 = vmatpush2.msra.mxu0 0.0
    %1882 = vmatprep.subr.mxu0 0.0
    %1883 = vmatpush2.msra.mxu0 0.0
    %1884 = vmatprep.subr.mxu0 0.0
    %1885 = vmatpush2.msra.mxu0 0.0
    %1886 = vmatprep.subr.mxu0 0.0
    %1887 = vmatpush2.msra.mxu0 0.0
    %1888 = vmatprep.subr.mxu0 0.0
    %1889 = vmatpush2.msra.mxu0 0.0
    %1890 = vmatprep.subr.mxu0 0.0
    %1891 = vmatpush2.msra.mxu0 0.0
    %1892 = vmatprep.subr.mxu0 0.0
    %1893 = vmatpush2.msra.mxu0 0.0
    %1894 = vmatprep.subr.mxu0 0.0
    %1895 = vmatpush2.msra.mxu0 0.0
    %1896 = vmatprep.subr.mxu0 0.0
    %1897 = vmatpush2.msra.mxu0 0.0
    %1898 = vmatprep.subr.mxu0 0.0
    %1899 = vmatpush2.msra.mxu0 0.0
    %1900 = vmatprep.subr.mxu0 0.0
    %1901 = vmatpush2.msra.mxu0 0.0
    %1902 = vmatprep.mubr.f32.mxu0 0.0
    %v1903 = vand.u32 %v1666, 4294901760
    %1904 = vmatmul.mubr.f32.gmra.mxu0 %v1903
    %v1905 = vpop.f32.mrf.mxu0
    %v1906 = vadd.f32 %v1755, %v1905
    %v1907 = vpop.f32.mrf.mxu0
    %1908 = vdwg.mxu0
    %1909 = vmatprep.subr.mxu0 0.0
    %v1910 = vand.u32 %v1036, 4294901760
    %v1911 = vsub.f32 %v1036, %v1910
    %1912 = vmatpush1.msra.mxu0 %v1911
    %1913 = vmatprep.subr.mxu0 0.0
    %v1914 = vand.u32 %v1035, 4294901760
    %v1915 = vsub.f32 %v1035, %v1914
    %1916 = vmatpush1.msra.mxu0 %v1915
    %1917 = vmatprep.subr.mxu0 0.0
    %v1918 = vand.u32 %v1034, 4294901760
    %v1919 = vsub.f32 %v1034, %v1918
    %1920 = vmatpush1.msra.mxu0 %v1919
    %1921 = vmatprep.subr.mxu0 0.0
    %v1922 = vand.u32 %v1033, 4294901760
    %v1923 = vsub.f32 %v1033, %v1922
    %1924 = vmatpush1.msra.mxu0 %v1923
    %1925 = vmatprep.subr.mxu0 0.0
    %v1926 = vand.u32 %v1032, 4294901760
    %v1927 = vsub.f32 %v1032, %v1926
    %1928 = vmatpush1.msra.mxu0 %v1927
    %1929 = vmatprep.subr.mxu0 0.0
    %v1930 = vand.u32 %v1031, 4294901760
    %v1931 = vsub.f32 %v1031, %v1930
    %1932 = vmatpush1.msra.mxu0 %v1931
    %1933 = vmatprep.subr.mxu0 0.0
    %v1934 = vand.u32 %v1030, 4294901760
    %v1935 = vsub.f32 %v1030, %v1934
    %1936 = vmatpush1.msra.mxu0 %v1935
    %1937 = vmatprep.subr.mxu0 0.0
    %v1938 = vand.u32 %v1029, 4294901760
    %v1939 = vsub.f32 %v1029, %v1938
    %1940 = vmatpush1.msra.mxu0 %v1939
    %1941 = vmatprep.subr.mxu0 0.0
    %v1942 = vand.u32 %v1028, 4294901760
    %v1943 = vsub.f32 %v1028, %v1942
    %1944 = vmatpush1.msra.mxu0 %v1943
    %1945 = vmatprep.subr.mxu0 0.0
    %v1946 = vand.u32 %v1027, 4294901760
    %v1947 = vsub.f32 %v1027, %v1946
    %1948 = vmatpush1.msra.mxu0 %v1947
    %1949 = vmatprep.subr.mxu0 0.0
    %v1950 = vand.u32 %v1026, 4294901760
    %v1951 = vsub.f32 %v1026, %v1950
    %1952 = vmatpush1.msra.mxu0 %v1951
    %1953 = vmatprep.subr.mxu0 0.0
    %v1954 = vand.u32 %v1025, 4294901760
    %v1955 = vsub.f32 %v1025, %v1954
    %1956 = vmatpush1.msra.mxu0 %v1955
    %1957 = vmatprep.subr.mxu0 0.0
    %v1958 = vand.u32 %v1024, 4294901760
    %v1959 = vsub.f32 %v1024, %v1958
    %1960 = vmatpush1.msra.mxu0 %v1959
    %1961 = vmatprep.subr.mxu0 0.0
    %v1962 = vand.u32 %v1023, 4294901760
    %v1963 = vsub.f32 %v1023, %v1962
    %1964 = vmatpush1.msra.mxu0 %v1963
    %1965 = vmatprep.subr.mxu0 0.0
    %v1966 = vand.u32 %v1022, 4294901760
    %v1967 = vsub.f32 %v1022, %v1966
    %1968 = vmatpush1.msra.mxu0 %v1967
    %1969 = vmatprep.subr.mxu0 0.0
    %v1970 = vand.u32 %v1021, 4294901760
    %v1971 = vsub.f32 %v1021, %v1970
    %1972 = vmatpush1.msra.mxu0 %v1971
    %1973 = vmatprep.subr.mxu0 0.0
    %1974 = vmatpush2.msra.mxu0 0.0
    %1975 = vmatprep.subr.mxu0 0.0
    %1976 = vmatpush2.msra.mxu0 0.0
    %1977 = vmatprep.subr.mxu0 0.0
    %1978 = vmatpush2.msra.mxu0 0.0
    %1979 = vmatprep.subr.mxu0 0.0
    %1980 = vmatpush2.msra.mxu0 0.0
    %1981 = vmatprep.subr.mxu0 0.0
    %1982 = vmatpush2.msra.mxu0 0.0
    %1983 = vmatprep.subr.mxu0 0.0
    %1984 = vmatpush2.msra.mxu0 0.0
    %1985 = vmatprep.subr.mxu0 0.0
    %1986 = vmatpush2.msra.mxu0 0.0
    %1987 = vmatprep.subr.mxu0 0.0
    %1988 = vmatpush2.msra.mxu0 0.0
    %1989 = vmatprep.subr.mxu0 0.0
    %1990 = vmatpush2.msra.mxu0 0.0
    %1991 = vmatprep.subr.mxu0 0.0
    %1992 = vmatpush2.msra.mxu0 0.0
    %1993 = vmatprep.subr.mxu0 0.0
    %1994 = vmatpush2.msra.mxu0 0.0
    %1995 = vmatprep.subr.mxu0 0.0
    %1996 = vmatpush2.msra.mxu0 0.0
    %1997 = vmatprep.subr.mxu0 0.0
    %1998 = vmatpush2.msra.mxu0 0.0
    %1999 = vmatprep.subr.mxu0 0.0
    %2000 = vmatpush2.msra.mxu0 0.0
    %2001 = vmatprep.subr.mxu0 0.0
    %2002 = vmatpush2.msra.mxu0 0.0
    %2003 = vmatprep.subr.mxu0 0.0
    %2004 = vmatpush2.msra.mxu0 0.0
    %2005 = vmatprep.mubr.f32.mxu0 0.0
    %v2006 = vand.u32 %v1666, 4294901760
    %v2007 = vsub.f32 %v1666, %v2006
    %2008 = vmatmul.mubr.f32.gmra.mxu0 %v2007
    %v2009 = vpop.f32.mrf.mxu0
    %v2010 = vadd.f32 %v1906, %v2009
    %v2011 = vpop.f32.mrf.mxu0
    %2012 = vdwg.mxu0
    %2013 = vmatprep.subr.mxu0 0.0
    %v2014 = vand.u32 %v1036, 4294901760
    %2015 = vmatpush1.msra.mxu0 %v2014
    %2016 = vmatprep.subr.mxu0 0.0
    %v2017 = vand.u32 %v1035, 4294901760
    %2018 = vmatpush1.msra.mxu0 %v2017
    %2019 = vmatprep.subr.mxu0 0.0
    %v2020 = vand.u32 %v1034, 4294901760
    %2021 = vmatpush1.msra.mxu0 %v2020
    %2022 = vmatprep.subr.mxu0 0.0
    %v2023 = vand.u32 %v1033, 4294901760
    %2024 = vmatpush1.msra.mxu0 %v2023
    %2025 = vmatprep.subr.mxu0 0.0
    %v2026 = vand.u32 %v1032, 4294901760
    %2027 = vmatpush1.msra.mxu0 %v2026
    %2028 = vmatprep.subr.mxu0 0.0
    %v2029 = vand.u32 %v1031, 4294901760
    %2030 = vmatpush1.msra.mxu0 %v2029
    %2031 = vmatprep.subr.mxu0 0.0
    %v2032 = vand.u32 %v1030, 4294901760
    %2033 = vmatpush1.msra.mxu0 %v2032
    %2034 = vmatprep.subr.mxu0 0.0
    %v2035 = vand.u32 %v1029, 4294901760
    %2036 = vmatpush1.msra.mxu0 %v2035
    %2037 = vmatprep.subr.mxu0 0.0
    %v2038 = vand.u32 %v1028, 4294901760
    %2039 = vmatpush1.msra.mxu0 %v2038
    %2040 = vmatprep.subr.mxu0 0.0
    %v2041 = vand.u32 %v1027, 4294901760
    %2042 = vmatpush1.msra.mxu0 %v2041
    %2043 = vmatprep.subr.mxu0 0.0
    %v2044 = vand.u32 %v1026, 4294901760
    %2045 = vmatpush1.msra.mxu0 %v2044
    %2046 = vmatprep.subr.mxu0 0.0
    %v2047 = vand.u32 %v1025, 4294901760
    %2048 = vmatpush1.msra.mxu0 %v2047
    %2049 = vmatprep.subr.mxu0 0.0
    %v2050 = vand.u32 %v1024, 4294901760
    %2051 = vmatpush1.msra.mxu0 %v2050
    %2052 = vmatprep.subr.mxu0 0.0
    %v2053 = vand.u32 %v1023, 4294901760
    %2054 = vmatpush1.msra.mxu0 %v2053
    %2055 = vmatprep.subr.mxu0 0.0
    %v2056 = vand.u32 %v1022, 4294901760
    %2057 = vmatpush1.msra.mxu0 %v2056
    %2058 = vmatprep.subr.mxu0 0.0
    %v2059 = vand.u32 %v1021, 4294901760
    %2060 = vmatpush1.msra.mxu0 %v2059
    %2061 = vmatprep.subr.mxu0 0.0
    %2062 = vmatpush2.msra.mxu0 0.0
    %2063 = vmatprep.subr.mxu0 0.0
    %2064 = vmatpush2.msra.mxu0 0.0
    %2065 = vmatprep.subr.mxu0 0.0
    %2066 = vmatpush2.msra.mxu0 0.0
    %2067 = vmatprep.subr.mxu0 0.0
    %2068 = vmatpush2.msra.mxu0 0.0
    %2069 = vmatprep.subr.mxu0 0.0
    %2070 = vmatpush2.msra.mxu0 0.0
    %2071 = vmatprep.subr.mxu0 0.0
    %2072 = vmatpush2.msra.mxu0 0.0
    %2073 = vmatprep.subr.mxu0 0.0
    %2074 = vmatpush2.msra.mxu0 0.0
    %2075 = vmatprep.subr.mxu0 0.0
    %2076 = vmatpush2.msra.mxu0 0.0
    %2077 = vmatprep.subr.mxu0 0.0
    %2078 = vmatpush2.msra.mxu0 0.0
    %2079 = vmatprep.subr.mxu0 0.0
    %2080 = vmatpush2.msra.mxu0 0.0
    %2081 = vmatprep.subr.mxu0 0.0
    %2082 = vmatpush2.msra.mxu0 0.0
    %2083 = vmatprep.subr.mxu0 0.0
    %2084 = vmatpush2.msra.mxu0 0.0
    %2085 = vmatprep.subr.mxu0 0.0
    %2086 = vmatpush2.msra.mxu0 0.0
    %2087 = vmatprep.subr.mxu0 0.0
    %2088 = vmatpush2.msra.mxu0 0.0
    %2089 = vmatprep.subr.mxu0 0.0
    %2090 = vmatpush2.msra.mxu0 0.0
    %2091 = vmatprep.subr.mxu0 0.0
    %2092 = vmatpush2.msra.mxu0 0.0
    %2093 = vmatprep.mubr.f32.mxu0 0.0
    %v2094 = vand.u32 %v1666, 4294901760
    %v2095 = vsub.f32 %v1666, %v2094
    %v2096 = vand.u32 %v2095, 4294901760
    %2097 = vmatmul.mubr.f32.gmra.mxu0 %v2096
    %v2098 = vpop.f32.mrf.mxu0
    %v2099 = vadd.f32 %v2010, %v2098
    %v2100 = vpop.f32.mrf.mxu0
    %2101 = vdwg.mxu0
    %2102 = vmatprep.subr.mxu0 0.0
    %v2103 = vand.u32 %v1036, 4294901760
    %v2104 = vsub.f32 %v1036, %v2103
    %v2105 = vand.u32 %v2104, 4294901760
    %2106 = vmatpush1.msra.mxu0 %v2105
    %2107 = vmatprep.subr.mxu0 0.0
    %v2108 = vand.u32 %v1035, 4294901760
    %v2109 = vsub.f32 %v1035, %v2108
    %v2110 = vand.u32 %v2109, 4294901760
    %2111 = vmatpush1.msra.mxu0 %v2110
    %2112 = vmatprep.subr.mxu0 0.0
    %v2113 = vand.u32 %v1034, 4294901760
    %v2114 = vsub.f32 %v1034, %v2113
    %v2115 = vand.u32 %v2114, 4294901760
    %2116 = vmatpush1.msra.mxu0 %v2115
    %2117 = vmatprep.subr.mxu0 0.0
    %v2118 = vand.u32 %v1033, 4294901760
    %v2119 = vsub.f32 %v1033, %v2118
    %v2120 = vand.u32 %v2119, 4294901760
    %2121 = vmatpush1.msra.mxu0 %v2120
    %2122 = vmatprep.subr.mxu0 0.0
    %v2123 = vand.u32 %v1032, 4294901760
    %v2124 = vsub.f32 %v1032, %v2123
    %v2125 = vand.u32 %v2124, 4294901760
    %2126 = vmatpush1.msra.mxu0 %v2125
    %2127 = vmatprep.subr.mxu0 0.0
    %v2128 = vand.u32 %v1031, 4294901760
    %v2129 = vsub.f32 %v1031, %v2128
    %v2130 = vand.u32 %v2129, 4294901760
    %2131 = vmatpush1.msra.mxu0 %v2130
    %2132 = vmatprep.subr.mxu0 0.0
    %v2133 = vand.u32 %v1030, 4294901760
    %v2134 = vsub.f32 %v1030, %v2133
    %v2135 = vand.u32 %v2134, 4294901760
    %2136 = vmatpush1.msra.mxu0 %v2135
    %2137 = vmatprep.subr.mxu0 0.0
    %v2138 = vand.u32 %v1029, 4294901760
    %v2139 = vsub.f32 %v1029, %v2138
    %v2140 = vand.u32 %v2139, 4294901760
    %2141 = vmatpush1.msra.mxu0 %v2140
    %2142 = vmatprep.subr.mxu0 0.0
    %v2143 = vand.u32 %v1028, 4294901760
    %v2144 = vsub.f32 %v1028, %v2143
    %v2145 = vand.u32 %v2144, 4294901760
    %2146 = vmatpush1.msra.mxu0 %v2145
    %2147 = vmatprep.subr.mxu0 0.0
    %v2148 = vand.u32 %v1027, 4294901760
    %v2149 = vsub.f32 %v1027, %v2148
    %v2150 = vand.u32 %v2149, 4294901760
    %2151 = vmatpush1.msra.mxu0 %v2150
    %2152 = vmatprep.subr.mxu0 0.0
    %v2153 = vand.u32 %v1026, 4294901760
    %v2154 = vsub.f32 %v1026, %v2153
    %v2155 = vand.u32 %v2154, 4294901760
    %2156 = vmatpush1.msra.mxu0 %v2155
    %2157 = vmatprep.subr.mxu0 0.0
    %v2158 = vand.u32 %v1025, 4294901760
    %v2159 = vsub.f32 %v1025, %v2158
    %v2160 = vand.u32 %v2159, 4294901760
    %2161 = vmatpush1.msra.mxu0 %v2160
    %2162 = vmatprep.subr.mxu0 0.0
    %v2163 = vand.u32 %v1024, 4294901760
    %v2164 = vsub.f32 %v1024, %v2163
    %v2165 = vand.u32 %v2164, 4294901760
    %2166 = vmatpush1.msra.mxu0 %v2165
    %2167 = vmatprep.subr.mxu0 0.0
    %v2168 = vand.u32 %v1023, 4294901760
    %v2169 = vsub.f32 %v1023, %v2168
    %v2170 = vand.u32 %v2169, 4294901760
    %2171 = vmatpush1.msra.mxu0 %v2170
    %2172 = vmatprep.subr.mxu0 0.0
    %v2173 = vand.u32 %v1022, 4294901760
    %v2174 = vsub.f32 %v1022, %v2173
    %v2175 = vand.u32 %v2174, 4294901760
    %2176 = vmatpush1.msra.mxu0 %v2175
    %2177 = vmatprep.subr.mxu0 0.0
    %v2178 = vand.u32 %v1021, 4294901760
    %v2179 = vsub.f32 %v1021, %v2178
    %v2180 = vand.u32 %v2179, 4294901760
    %2181 = vmatpush1.msra.mxu0 %v2180
    %2182 = vmatprep.subr.mxu0 0.0
    %2183 = vmatpush2.msra.mxu0 0.0
    %2184 = vmatprep.subr.mxu0 0.0
    %2185 = vmatpush2.msra.mxu0 0.0
    %2186 = vmatprep.subr.mxu0 0.0
    %2187 = vmatpush2.msra.mxu0 0.0
    %2188 = vmatprep.subr.mxu0 0.0
    %2189 = vmatpush2.msra.mxu0 0.0
    %2190 = vmatprep.subr.mxu0 0.0
    %2191 = vmatpush2.msra.mxu0 0.0
    %2192 = vmatprep.subr.mxu0 0.0
    %2193 = vmatpush2.msra.mxu0 0.0
    %2194 = vmatprep.subr.mxu0 0.0
    %2195 = vmatpush2.msra.mxu0 0.0
    %2196 = vmatprep.subr.mxu0 0.0
    %2197 = vmatpush2.msra.mxu0 0.0
    %2198 = vmatprep.subr.mxu0 0.0
    %2199 = vmatpush2.msra.mxu0 0.0
    %2200 = vmatprep.subr.mxu0 0.0
    %2201 = vmatpush2.msra.mxu0 0.0
    %2202 = vmatprep.subr.mxu0 0.0
    %2203 = vmatpush2.msra.mxu0 0.0
    %2204 = vmatprep.subr.mxu0 0.0
    %2205 = vmatpush2.msra.mxu0 0.0
    %2206 = vmatprep.subr.mxu0 0.0
    %2207 = vmatpush2.msra.mxu0 0.0
    %2208 = vmatprep.subr.mxu0 0.0
    %2209 = vmatpush2.msra.mxu0 0.0
    %2210 = vmatprep.subr.mxu0 0.0
    %2211 = vmatpush2.msra.mxu0 0.0
    %2212 = vmatprep.subr.mxu0 0.0
    %2213 = vmatpush2.msra.mxu0 0.0
    %2214 = vmatprep.mubr.f32.mxu0 0.0
    %v2215 = vand.u32 %v1666, 4294901760
    %2216 = vmatmul.mubr.f32.gmra.mxu0 %v2215
    %v2217 = vpop.f32.mrf.mxu0
    %v2218 = vadd.f32 %v2099, %v2217
    %v2219 = vpop.f32.mrf.mxu0
    %2220 = vdwg.mxu0
    %2221 = vmatprep.subr.mxu0 0.0
    %v2222 = vand.u32 %v1036, 4294901760
    %2223 = vmatpush1.msra.mxu0 %v2222
    %2224 = vmatprep.subr.mxu0 0.0
    %v2225 = vand.u32 %v1035, 4294901760
    %2226 = vmatpush1.msra.mxu0 %v2225
    %2227 = vmatprep.subr.mxu0 0.0
    %v2228 = vand.u32 %v1034, 4294901760
    %2229 = vmatpush1.msra.mxu0 %v2228
    %2230 = vmatprep.subr.mxu0 0.0
    %v2231 = vand.u32 %v1033, 4294901760
    %2232 = vmatpush1.msra.mxu0 %v2231
    %2233 = vmatprep.subr.mxu0 0.0
    %v2234 = vand.u32 %v1032, 4294901760
    %2235 = vmatpush1.msra.mxu0 %v2234
    %2236 = vmatprep.subr.mxu0 0.0
    %v2237 = vand.u32 %v1031, 4294901760
    %2238 = vmatpush1.msra.mxu0 %v2237
    %2239 = vmatprep.subr.mxu0 0.0
    %v2240 = vand.u32 %v1030, 4294901760
    %2241 = vmatpush1.msra.mxu0 %v2240
    %2242 = vmatprep.subr.mxu0 0.0
    %v2243 = vand.u32 %v1029, 4294901760
    %2244 = vmatpush1.msra.mxu0 %v2243
    %2245 = vmatprep.subr.mxu0 0.0
    %v2246 = vand.u32 %v1028, 4294901760
    %2247 = vmatpush1.msra.mxu0 %v2246
    %2248 = vmatprep.subr.mxu0 0.0
    %v2249 = vand.u32 %v1027, 4294901760
    %2250 = vmatpush1.msra.mxu0 %v2249
    %2251 = vmatprep.subr.mxu0 0.0
    %v2252 = vand.u32 %v1026, 4294901760
    %2253 = vmatpush1.msra.mxu0 %v2252
    %2254 = vmatprep.subr.mxu0 0.0
    %v2255 = vand.u32 %v1025, 4294901760
    %2256 = vmatpush1.msra.mxu0 %v2255
    %2257 = vmatprep.subr.mxu0 0.0
    %v2258 = vand.u32 %v1024, 4294901760
    %2259 = vmatpush1.msra.mxu0 %v2258
    %2260 = vmatprep.subr.mxu0 0.0
    %v2261 = vand.u32 %v1023, 4294901760
    %2262 = vmatpush1.msra.mxu0 %v2261
    %2263 = vmatprep.subr.mxu0 0.0
    %v2264 = vand.u32 %v1022, 4294901760
    %2265 = vmatpush1.msra.mxu0 %v2264
    %2266 = vmatprep.subr.mxu0 0.0
    %v2267 = vand.u32 %v1021, 4294901760
    %2268 = vmatpush1.msra.mxu0 %v2267
    %2269 = vmatprep.subr.mxu0 0.0
    %2270 = vmatpush2.msra.mxu0 0.0
    %2271 = vmatprep.subr.mxu0 0.0
    %2272 = vmatpush2.msra.mxu0 0.0
    %2273 = vmatprep.subr.mxu0 0.0
    %2274 = vmatpush2.msra.mxu0 0.0
    %2275 = vmatprep.subr.mxu0 0.0
    %2276 = vmatpush2.msra.mxu0 0.0
    %2277 = vmatprep.subr.mxu0 0.0
    %2278 = vmatpush2.msra.mxu0 0.0
    %2279 = vmatprep.subr.mxu0 0.0
    %2280 = vmatpush2.msra.mxu0 0.0
    %2281 = vmatprep.subr.mxu0 0.0
    %2282 = vmatpush2.msra.mxu0 0.0
    %2283 = vmatprep.subr.mxu0 0.0
    %2284 = vmatpush2.msra.mxu0 0.0
    %2285 = vmatprep.subr.mxu0 0.0
    %2286 = vmatpush2.msra.mxu0 0.0
    %2287 = vmatprep.subr.mxu0 0.0
    %2288 = vmatpush2.msra.mxu0 0.0
    %2289 = vmatprep.subr.mxu0 0.0
    %2290 = vmatpush2.msra.mxu0 0.0
    %2291 = vmatprep.subr.mxu0 0.0
    %2292 = vmatpush2.msra.mxu0 0.0
    %2293 = vmatprep.subr.mxu0 0.0
    %2294 = vmatpush2.msra.mxu0 0.0
    %2295 = vmatprep.subr.mxu0 0.0
    %2296 = vmatpush2.msra.mxu0 0.0
    %2297 = vmatprep.subr.mxu0 0.0
    %2298 = vmatpush2.msra.mxu0 0.0
    %2299 = vmatprep.subr.mxu0 0.0
    %2300 = vmatpush2.msra.mxu0 0.0
    %2301 = vmatprep.mubr.f32.mxu0 0.0
    %v2302 = vand.u32 %v1666, 4294901760
    %2303 = vmatmul.mubr.f32.gmra.mxu0 %v2302
    %v2304 = vpop.f32.mrf.mxu0
    %v2305 = vadd.f32 %v2218, %v2304
    %v2306 = vpop.f32.mrf.mxu0
    %2307 = vdwg.mxu0
    %v2308 = vadd.f32 %v988, %v2305
    %v2309 = vtanh.pop %v2308
    %2310 = vmatprep.subr.mxu0 0.0
    %v2311 = vand.u32 %v1036, 4294901760
    %2312 = vmatpush1.msra.mxu0 %v2311
    %2313 = vmatprep.subr.mxu0 0.0
    %v2314 = vand.u32 %v1035, 4294901760
    %2315 = vmatpush1.msra.mxu0 %v2314
    %2316 = vmatprep.subr.mxu0 0.0
    %v2317 = vand.u32 %v1034, 4294901760
    %2318 = vmatpush1.msra.mxu0 %v2317
    %2319 = vmatprep.subr.mxu0 0.0
    %v2320 = vand.u32 %v1033, 4294901760
    %2321 = vmatpush1.msra.mxu0 %v2320
    %2322 = vmatprep.subr.mxu0 0.0
    %v2323 = vand.u32 %v1032, 4294901760
    %2324 = vmatpush1.msra.mxu0 %v2323
    %2325 = vmatprep.subr.mxu0 0.0
    %v2326 = vand.u32 %v1031, 4294901760
    %2327 = vmatpush1.msra.mxu0 %v2326
    %2328 = vmatprep.subr.mxu0 0.0
    %v2329 = vand.u32 %v1030, 4294901760
    %2330 = vmatpush1.msra.mxu0 %v2329
    %2331 = vmatprep.subr.mxu0 0.0
    %v2332 = vand.u32 %v1029, 4294901760
    %2333 = vmatpush1.msra.mxu0 %v2332
    %2334 = vmatprep.subr.mxu0 0.0
    %v2335 = vand.u32 %v1028, 4294901760
    %2336 = vmatpush1.msra.mxu0 %v2335
    %2337 = vmatprep.subr.mxu0 0.0
    %v2338 = vand.u32 %v1027, 4294901760
    %2339 = vmatpush1.msra.mxu0 %v2338
    %2340 = vmatprep.subr.mxu0 0.0
    %v2341 = vand.u32 %v1026, 4294901760
    %2342 = vmatpush1.msra.mxu0 %v2341
    %2343 = vmatprep.subr.mxu0 0.0
    %v2344 = vand.u32 %v1025, 4294901760
    %2345 = vmatpush1.msra.mxu0 %v2344
    %2346 = vmatprep.subr.mxu0 0.0
    %v2347 = vand.u32 %v1024, 4294901760
    %2348 = vmatpush1.msra.mxu0 %v2347
    %2349 = vmatprep.subr.mxu0 0.0
    %v2350 = vand.u32 %v1023, 4294901760
    %2351 = vmatpush1.msra.mxu0 %v2350
    %2352 = vmatprep.subr.mxu0 0.0
    %v2353 = vand.u32 %v1022, 4294901760
    %2354 = vmatpush1.msra.mxu0 %v2353
    %2355 = vmatprep.subr.mxu0 0.0
    %v2356 = vand.u32 %v1021, 4294901760
    %2357 = vmatpush1.msra.mxu0 %v2356
    %2358 = vmatprep.subr.mxu0 0.0
    %2359 = vmatpush2.msra.mxu0 0.0
    %2360 = vmatprep.subr.mxu0 0.0
    %2361 = vmatpush2.msra.mxu0 0.0
    %2362 = vmatprep.subr.mxu0 0.0
    %2363 = vmatpush2.msra.mxu0 0.0
    %2364 = vmatprep.subr.mxu0 0.0
    %2365 = vmatpush2.msra.mxu0 0.0
    %2366 = vmatprep.subr.mxu0 0.0
    %2367 = vmatpush2.msra.mxu0 0.0
    %2368 = vmatprep.subr.mxu0 0.0
    %2369 = vmatpush2.msra.mxu0 0.0
    %2370 = vmatprep.subr.mxu0 0.0
    %2371 = vmatpush2.msra.mxu0 0.0
    %2372 = vmatprep.subr.mxu0 0.0
    %2373 = vmatpush2.msra.mxu0 0.0
    %2374 = vmatprep.subr.mxu0 0.0
    %2375 = vmatpush2.msra.mxu0 0.0
    %2376 = vmatprep.subr.mxu0 0.0
    %2377 = vmatpush2.msra.mxu0 0.0
    %2378 = vmatprep.subr.mxu0 0.0
    %2379 = vmatpush2.msra.mxu0 0.0
    %2380 = vmatprep.subr.mxu0 0.0
    %2381 = vmatpush2.msra.mxu0 0.0
    %2382 = vmatprep.subr.mxu0 0.0
    %2383 = vmatpush2.msra.mxu0 0.0
    %2384 = vmatprep.subr.mxu0 0.0
    %2385 = vmatpush2.msra.mxu0 0.0
    %2386 = vmatprep.subr.mxu0 0.0
    %2387 = vmatpush2.msra.mxu0 0.0
    %2388 = vmatprep.subr.mxu0 0.0
    %2389 = vmatpush2.msra.mxu0 0.0
    %2390 = vmatprep.mubr.f32.mxu0 0.0
    %v2391 = vand.u32 %v2309, 4294901760
    %v2392 = vsub.f32 %v2309, %v2391
    %v2393 = vand.u32 %v2392, 4294901760
    %v2394 = vsub.f32 %v2392, %v2393
    %v2395 = vand.u32 %v2394, 4294901760
    %2396 = vmatmul.mubr.f32.gmra.mxu0 %v2395
    %v2397 = vpop.f32.mrf.mxu0
    %v2398 = vadd.f32 0.0, %v2397
    %v2399 = vpop.f32.mrf.mxu0
    %2400 = vdwg.mxu0
    %2401 = vmatprep.subr.mxu0 0.0
    %v2402 = vand.u32 %v1036, 4294901760
    %v2403 = vsub.f32 %v1036, %v2402
    %v2404 = vand.u32 %v2403, 4294901760
    %v2405 = vsub.f32 %v2403, %v2404
    %v2406 = vand.u32 %v2405, 4294901760
    %2407 = vmatpush1.msra.mxu0 %v2406
    %2408 = vmatprep.subr.mxu0 0.0
    %v2409 = vand.u32 %v1035, 4294901760
    %v2410 = vsub.f32 %v1035, %v2409
    %v2411 = vand.u32 %v2410, 4294901760
    %v2412 = vsub.f32 %v2410, %v2411
    %v2413 = vand.u32 %v2412, 4294901760
    %2414 = vmatpush1.msra.mxu0 %v2413
    %2415 = vmatprep.subr.mxu0 0.0
    %v2416 = vand.u32 %v1034, 4294901760
    %v2417 = vsub.f32 %v1034, %v2416
    %v2418 = vand.u32 %v2417, 4294901760
    %v2419 = vsub.f32 %v2417, %v2418
    %v2420 = vand.u32 %v2419, 4294901760
    %2421 = vmatpush1.msra.mxu0 %v2420
    %2422 = vmatprep.subr.mxu0 0.0
    %v2423 = vand.u32 %v1033, 4294901760
    %v2424 = vsub.f32 %v1033, %v2423
    %v2425 = vand.u32 %v2424, 4294901760
    %v2426 = vsub.f32 %v2424, %v2425
    %v2427 = vand.u32 %v2426, 4294901760
    %2428 = vmatpush1.msra.mxu0 %v2427
    %2429 = vmatprep.subr.mxu0 0.0
    %v2430 = vand.u32 %v1032, 4294901760
    %v2431 = vsub.f32 %v1032, %v2430
    %v2432 = vand.u32 %v2431, 4294901760
    %v2433 = vsub.f32 %v2431, %v2432
    %v2434 = vand.u32 %v2433, 4294901760
    %2435 = vmatpush1.msra.mxu0 %v2434
    %2436 = vmatprep.subr.mxu0 0.0
    %v2437 = vand.u32 %v1031, 4294901760
    %v2438 = vsub.f32 %v1031, %v2437
    %v2439 = vand.u32 %v2438, 4294901760
    %v2440 = vsub.f32 %v2438, %v2439
    %v2441 = vand.u32 %v2440, 4294901760
    %2442 = vmatpush1.msra.mxu0 %v2441
    %2443 = vmatprep.subr.mxu0 0.0
    %v2444 = vand.u32 %v1030, 4294901760
    %v2445 = vsub.f32 %v1030, %v2444
    %v2446 = vand.u32 %v2445, 4294901760
    %v2447 = vsub.f32 %v2445, %v2446
    %v2448 = vand.u32 %v2447, 4294901760
    %2449 = vmatpush1.msra.mxu0 %v2448
    %2450 = vmatprep.subr.mxu0 0.0
    %v2451 = vand.u32 %v1029, 4294901760
    %v2452 = vsub.f32 %v1029, %v2451
    %v2453 = vand.u32 %v2452, 4294901760
    %v2454 = vsub.f32 %v2452, %v2453
    %v2455 = vand.u32 %v2454, 4294901760
    %2456 = vmatpush1.msra.mxu0 %v2455
    %2457 = vmatprep.subr.mxu0 0.0
    %v2458 = vand.u32 %v1028, 4294901760
    %v2459 = vsub.f32 %v1028, %v2458
    %v2460 = vand.u32 %v2459, 4294901760
    %v2461 = vsub.f32 %v2459, %v2460
    %v2462 = vand.u32 %v2461, 4294901760
    %2463 = vmatpush1.msra.mxu0 %v2462
    %2464 = vmatprep.subr.mxu0 0.0
    %v2465 = vand.u32 %v1027, 4294901760
    %v2466 = vsub.f32 %v1027, %v2465
    %v2467 = vand.u32 %v2466, 4294901760
    %v2468 = vsub.f32 %v2466, %v2467
    %v2469 = vand.u32 %v2468, 4294901760
    %2470 = vmatpush1.msra.mxu0 %v2469
    %2471 = vmatprep.subr.mxu0 0.0
    %v2472 = vand.u32 %v1026, 4294901760
    %v2473 = vsub.f32 %v1026, %v2472
    %v2474 = vand.u32 %v2473, 4294901760
    %v2475 = vsub.f32 %v2473, %v2474
    %v2476 = vand.u32 %v2475, 4294901760
    %2477 = vmatpush1.msra.mxu0 %v2476
    %2478 = vmatprep.subr.mxu0 0.0
    %v2479 = vand.u32 %v1025, 4294901760
    %v2480 = vsub.f32 %v1025, %v2479
    %v2481 = vand.u32 %v2480, 4294901760
    %v2482 = vsub.f32 %v2480, %v2481
    %v2483 = vand.u32 %v2482, 4294901760
    %2484 = vmatpush1.msra.mxu0 %v2483
    %2485 = vmatprep.subr.mxu0 0.0
    %v2486 = vand.u32 %v1024, 4294901760
    %v2487 = vsub.f32 %v1024, %v2486
    %v2488 = vand.u32 %v2487, 4294901760
    %v2489 = vsub.f32 %v2487, %v2488
    %v2490 = vand.u32 %v2489, 4294901760
    %2491 = vmatpush1.msra.mxu0 %v2490
    %2492 = vmatprep.subr.mxu0 0.0
    %v2493 = vand.u32 %v1023, 4294901760
    %v2494 = vsub.f32 %v1023, %v2493
    %v2495 = vand.u32 %v2494, 4294901760
    %v2496 = vsub.f32 %v2494, %v2495
    %v2497 = vand.u32 %v2496, 4294901760
    %2498 = vmatpush1.msra.mxu0 %v2497
    %2499 = vmatprep.subr.mxu0 0.0
    %v2500 = vand.u32 %v1022, 4294901760
    %v2501 = vsub.f32 %v1022, %v2500
    %v2502 = vand.u32 %v2501, 4294901760
    %v2503 = vsub.f32 %v2501, %v2502
    %v2504 = vand.u32 %v2503, 4294901760
    %2505 = vmatpush1.msra.mxu0 %v2504
    %2506 = vmatprep.subr.mxu0 0.0
    %v2507 = vand.u32 %v1021, 4294901760
    %v2508 = vsub.f32 %v1021, %v2507
    %v2509 = vand.u32 %v2508, 4294901760
    %v2510 = vsub.f32 %v2508, %v2509
    %v2511 = vand.u32 %v2510, 4294901760
    %2512 = vmatpush1.msra.mxu0 %v2511
    %2513 = vmatprep.subr.mxu0 0.0
    %2514 = vmatpush2.msra.mxu0 0.0
    %2515 = vmatprep.subr.mxu0 0.0
    %2516 = vmatpush2.msra.mxu0 0.0
    %2517 = vmatprep.subr.mxu0 0.0
    %2518 = vmatpush2.msra.mxu0 0.0
    %2519 = vmatprep.subr.mxu0 0.0
    %2520 = vmatpush2.msra.mxu0 0.0
    %2521 = vmatprep.subr.mxu0 0.0
    %2522 = vmatpush2.msra.mxu0 0.0
    %2523 = vmatprep.subr.mxu0 0.0
    %2524 = vmatpush2.msra.mxu0 0.0
    %2525 = vmatprep.subr.mxu0 0.0
    %2526 = vmatpush2.msra.mxu0 0.0
    %2527 = vmatprep.subr.mxu0 0.0
    %2528 = vmatpush2.msra.mxu0 0.0
    %2529 = vmatprep.subr.mxu0 0.0
    %2530 = vmatpush2.msra.mxu0 0.0
    %2531 = vmatprep.subr.mxu0 0.0
    %2532 = vmatpush2.msra.mxu0 0.0
    %2533 = vmatprep.subr.mxu0 0.0
    %2534 = vmatpush2.msra.mxu0 0.0
    %2535 = vmatprep.subr.mxu0 0.0
    %2536 = vmatpush2.msra.mxu0 0.0
    %2537 = vmatprep.subr.mxu0 0.0
    %2538 = vmatpush2.msra.mxu0 0.0
    %2539 = vmatprep.subr.mxu0 0.0
    %2540 = vmatpush2.msra.mxu0 0.0
    %2541 = vmatprep.subr.mxu0 0.0
    %2542 = vmatpush2.msra.mxu0 0.0
    %2543 = vmatprep.subr.mxu0 0.0
    %2544 = vmatpush2.msra.mxu0 0.0
    %2545 = vmatprep.mubr.f32.mxu0 0.0
    %v2546 = vand.u32 %v2309, 4294901760
    %2547 = vmatmul.mubr.f32.gmra.mxu0 %v2546
    %v2548 = vpop.f32.mrf.mxu0
    %v2549 = vadd.f32 %v2398, %v2548
    %v2550 = vpop.f32.mrf.mxu0
    %2551 = vdwg.mxu0
    %2552 = vmatprep.subr.mxu0 0.0
    %v2553 = vand.u32 %v1036, 4294901760
    %v2554 = vsub.f32 %v1036, %v2553
    %2555 = vmatpush1.msra.mxu0 %v2554
    %2556 = vmatprep.subr.mxu0 0.0
    %v2557 = vand.u32 %v1035, 4294901760
    %v2558 = vsub.f32 %v1035, %v2557
    %2559 = vmatpush1.msra.mxu0 %v2558
    %2560 = vmatprep.subr.mxu0 0.0
    %v2561 = vand.u32 %v1034, 4294901760
    %v2562 = vsub.f32 %v1034, %v2561
    %2563 = vmatpush1.msra.mxu0 %v2562
    %2564 = vmatprep.subr.mxu0 0.0
    %v2565 = vand.u32 %v1033, 4294901760
    %v2566 = vsub.f32 %v1033, %v2565
    %2567 = vmatpush1.msra.mxu0 %v2566
    %2568 = vmatprep.subr.mxu0 0.0
    %v2569 = vand.u32 %v1032, 4294901760
    %v2570 = vsub.f32 %v1032, %v2569
    %2571 = vmatpush1.msra.mxu0 %v2570
    %2572 = vmatprep.subr.mxu0 0.0
    %v2573 = vand.u32 %v1031, 4294901760
    %v2574 = vsub.f32 %v1031, %v2573
    %2575 = vmatpush1.msra.mxu0 %v2574
    %2576 = vmatprep.subr.mxu0 0.0
    %v2577 = vand.u32 %v1030, 4294901760
    %v2578 = vsub.f32 %v1030, %v2577
    %2579 = vmatpush1.msra.mxu0 %v2578
    %2580 = vmatprep.subr.mxu0 0.0
    %v2581 = vand.u32 %v1029, 4294901760
    %v2582 = vsub.f32 %v1029, %v2581
    %2583 = vmatpush1.msra.mxu0 %v2582
    %2584 = vmatprep.subr.mxu0 0.0
    %v2585 = vand.u32 %v1028, 4294901760
    %v2586 = vsub.f32 %v1028, %v2585
    %2587 = vmatpush1.msra.mxu0 %v2586
    %2588 = vmatprep.subr.mxu0 0.0
    %v2589 = vand.u32 %v1027, 4294901760
    %v2590 = vsub.f32 %v1027, %v2589
    %2591 = vmatpush1.msra.mxu0 %v2590
    %2592 = vmatprep.subr.mxu0 0.0
    %v2593 = vand.u32 %v1026, 4294901760
    %v2594 = vsub.f32 %v1026, %v2593
    %2595 = vmatpush1.msra.mxu0 %v2594
    %2596 = vmatprep.subr.mxu0 0.0
    %v2597 = vand.u32 %v1025, 4294901760
    %v2598 = vsub.f32 %v1025, %v2597
    %2599 = vmatpush1.msra.mxu0 %v2598
    %2600 = vmatprep.subr.mxu0 0.0
    %v2601 = vand.u32 %v1024, 4294901760
    %v2602 = vsub.f32 %v1024, %v2601
    %2603 = vmatpush1.msra.mxu0 %v2602
    %2604 = vmatprep.subr.mxu0 0.0
    %v2605 = vand.u32 %v1023, 4294901760
    %v2606 = vsub.f32 %v1023, %v2605
    %2607 = vmatpush1.msra.mxu0 %v2606
    %2608 = vmatprep.subr.mxu0 0.0
    %v2609 = vand.u32 %v1022, 4294901760
    %v2610 = vsub.f32 %v1022, %v2609
    %2611 = vmatpush1.msra.mxu0 %v2610
    %2612 = vmatprep.subr.mxu0 0.0
    %v2613 = vand.u32 %v1021, 4294901760
    %v2614 = vsub.f32 %v1021, %v2613
    %2615 = vmatpush1.msra.mxu0 %v2614
    %2616 = vmatprep.subr.mxu0 0.0
    %2617 = vmatpush2.msra.mxu0 0.0
    %2618 = vmatprep.subr.mxu0 0.0
    %2619 = vmatpush2.msra.mxu0 0.0
    %2620 = vmatprep.subr.mxu0 0.0
    %2621 = vmatpush2.msra.mxu0 0.0
    %2622 = vmatprep.subr.mxu0 0.0
    %2623 = vmatpush2.msra.mxu0 0.0
    %2624 = vmatprep.subr.mxu0 0.0
    %2625 = vmatpush2.msra.mxu0 0.0
    %2626 = vmatprep.subr.mxu0 0.0
    %2627 = vmatpush2.msra.mxu0 0.0
    %2628 = vmatprep.subr.mxu0 0.0
    %2629 = vmatpush2.msra.mxu0 0.0
    %2630 = vmatprep.subr.mxu0 0.0
    %2631 = vmatpush2.msra.mxu0 0.0
    %2632 = vmatprep.subr.mxu0 0.0
    %2633 = vmatpush2.msra.mxu0 0.0
    %2634 = vmatprep.subr.mxu0 0.0
    %2635 = vmatpush2.msra.mxu0 0.0
    %2636 = vmatprep.subr.mxu0 0.0
    %2637 = vmatpush2.msra.mxu0 0.0
    %2638 = vmatprep.subr.mxu0 0.0
    %2639 = vmatpush2.msra.mxu0 0.0
    %2640 = vmatprep.subr.mxu0 0.0
    %2641 = vmatpush2.msra.mxu0 0.0
    %2642 = vmatprep.subr.mxu0 0.0
    %2643 = vmatpush2.msra.mxu0 0.0
    %2644 = vmatprep.subr.mxu0 0.0
    %2645 = vmatpush2.msra.mxu0 0.0
    %2646 = vmatprep.subr.mxu0 0.0
    %2647 = vmatpush2.msra.mxu0 0.0
    %2648 = vmatprep.mubr.f32.mxu0 0.0
    %v2649 = vand.u32 %v2309, 4294901760
    %v2650 = vsub.f32 %v2309, %v2649
    %2651 = vmatmul.mubr.f32.gmra.mxu0 %v2650
    %v2652 = vpop.f32.mrf.mxu0
    %v2653 = vadd.f32 %v2549, %v2652
    %v2654 = vpop.f32.mrf.mxu0
    %2655 = vdwg.mxu0
    %2656 = vmatprep.subr.mxu0 0.0
    %v2657 = vand.u32 %v1036, 4294901760
    %2658 = vmatpush1.msra.mxu0 %v2657
    %2659 = vmatprep.subr.mxu0 0.0
    %v2660 = vand.u32 %v1035, 4294901760
    %2661 = vmatpush1.msra.mxu0 %v2660
    %2662 = vmatprep.subr.mxu0 0.0
    %v2663 = vand.u32 %v1034, 4294901760
    %2664 = vmatpush1.msra.mxu0 %v2663
    %2665 = vmatprep.subr.mxu0 0.0
    %v2666 = vand.u32 %v1033, 4294901760
    %2667 = vmatpush1.msra.mxu0 %v2666
    %2668 = vmatprep.subr.mxu0 0.0
    %v2669 = vand.u32 %v1032, 4294901760
    %2670 = vmatpush1.msra.mxu0 %v2669
    %2671 = vmatprep.subr.mxu0 0.0
    %v2672 = vand.u32 %v1031, 4294901760
    %2673 = vmatpush1.msra.mxu0 %v2672
    %2674 = vmatprep.subr.mxu0 0.0
    %v2675 = vand.u32 %v1030, 4294901760
    %2676 = vmatpush1.msra.mxu0 %v2675
    %2677 = vmatprep.subr.mxu0 0.0
    %v2678 = vand.u32 %v1029, 4294901760
    %2679 = vmatpush1.msra.mxu0 %v2678
    %2680 = vmatprep.subr.mxu0 0.0
    %v2681 = vand.u32 %v1028, 4294901760
    %2682 = vmatpush1.msra.mxu0 %v2681
    %2683 = vmatprep.subr.mxu0 0.0
    %v2684 = vand.u32 %v1027, 4294901760
    %2685 = vmatpush1.msra.mxu0 %v2684
    %2686 = vmatprep.subr.mxu0 0.0
    %v2687 = vand.u32 %v1026, 4294901760
    %2688 = vmatpush1.msra.mxu0 %v2687
    %2689 = vmatprep.subr.mxu0 0.0
    %v2690 = vand.u32 %v1025, 4294901760
    %2691 = vmatpush1.msra.mxu0 %v2690
    %2692 = vmatprep.subr.mxu0 0.0
    %v2693 = vand.u32 %v1024, 4294901760
    %2694 = vmatpush1.msra.mxu0 %v2693
    %2695 = vmatprep.subr.mxu0 0.0
    %v2696 = vand.u32 %v1023, 4294901760
    %2697 = vmatpush1.msra.mxu0 %v2696
    %2698 = vmatprep.subr.mxu0 0.0
    %v2699 = vand.u32 %v1022, 4294901760
    %2700 = vmatpush1.msra.mxu0 %v2699
    %2701 = vmatprep.subr.mxu0 0.0
    %v2702 = vand.u32 %v1021, 4294901760
    %2703 = vmatpush1.msra.mxu0 %v2702
    %2704 = vmatprep.subr.mxu0 0.0
    %2705 = vmatpush2.msra.mxu0 0.0
    %2706 = vmatprep.subr.mxu0 0.0
    %2707 = vmatpush2.msra.mxu0 0.0
    %2708 = vmatprep.subr.mxu0 0.0
    %2709 = vmatpush2.msra.mxu0 0.0
    %2710 = vmatprep.subr.mxu0 0.0
    %2711 = vmatpush2.msra.mxu0 0.0
    %2712 = vmatprep.subr.mxu0 0.0
    %2713 = vmatpush2.msra.mxu0 0.0
    %2714 = vmatprep.subr.mxu0 0.0
    %2715 = vmatpush2.msra.mxu0 0.0
    %2716 = vmatprep.subr.mxu0 0.0
    %2717 = vmatpush2.msra.mxu0 0.0
    %2718 = vmatprep.subr.mxu0 0.0
    %2719 = vmatpush2.msra.mxu0 0.0
    %2720 = vmatprep.subr.mxu0 0.0
    %2721 = vmatpush2.msra.mxu0 0.0
    %2722 = vmatprep.subr.mxu0 0.0
    %2723 = vmatpush2.msra.mxu0 0.0
    %2724 = vmatprep.subr.mxu0 0.0
    %2725 = vmatpush2.msra.mxu0 0.0
    %2726 = vmatprep.subr.mxu0 0.0
    %2727 = vmatpush2.msra.mxu0 0.0
    %2728 = vmatprep.subr.mxu0 0.0
    %2729 = vmatpush2.msra.mxu0 0.0
    %2730 = vmatprep.subr.mxu0 0.0
    %2731 = vmatpush2.msra.mxu0 0.0
    %2732 = vmatprep.subr.mxu0 0.0
    %2733 = vmatpush2.msra.mxu0 0.0
    %2734 = vmatprep.subr.mxu0 0.0
    %2735 = vmatpush2.msra.mxu0 0.0
    %2736 = vmatprep.mubr.f32.mxu0 0.0
    %v2737 = vand.u32 %v2309, 4294901760
    %v2738 = vsub.f32 %v2309, %v2737
    %v2739 = vand.u32 %v2738, 4294901760
    %2740 = vmatmul.mubr.f32.gmra.mxu0 %v2739
    %v2741 = vpop.f32.mrf.mxu0
    %v2742 = vadd.f32 %v2653, %v2741
    %v2743 = vpop.f32.mrf.mxu0
    %2744 = vdwg.mxu0
    %2745 = vmatprep.subr.mxu0 0.0
    %v2746 = vand.u32 %v1036, 4294901760
    %v2747 = vsub.f32 %v1036, %v2746
    %v2748 = vand.u32 %v2747, 4294901760
    %2749 = vmatpush1.msra.mxu0 %v2748
    %2750 = vmatprep.subr.mxu0 0.0
    %v2751 = vand.u32 %v1035, 4294901760
    %v2752 = vsub.f32 %v1035, %v2751
    %v2753 = vand.u32 %v2752, 4294901760
    %2754 = vmatpush1.msra.mxu0 %v2753
    %2755 = vmatprep.subr.mxu0 0.0
    %v2756 = vand.u32 %v1034, 4294901760
    %v2757 = vsub.f32 %v1034, %v2756
    %v2758 = vand.u32 %v2757, 4294901760
    %2759 = vmatpush1.msra.mxu0 %v2758
    %2760 = vmatprep.subr.mxu0 0.0
    %v2761 = vand.u32 %v1033, 4294901760
    %v2762 = vsub.f32 %v1033, %v2761
    %v2763 = vand.u32 %v2762, 4294901760
    %2764 = vmatpush1.msra.mxu0 %v2763
    %2765 = vmatprep.subr.mxu0 0.0
    %v2766 = vand.u32 %v1032, 4294901760
    %v2767 = vsub.f32 %v1032, %v2766
    %v2768 = vand.u32 %v2767, 4294901760
    %2769 = vmatpush1.msra.mxu0 %v2768
    %2770 = vmatprep.subr.mxu0 0.0
    %v2771 = vand.u32 %v1031, 4294901760
    %v2772 = vsub.f32 %v1031, %v2771
    %v2773 = vand.u32 %v2772, 4294901760
    %2774 = vmatpush1.msra.mxu0 %v2773
    %2775 = vmatprep.subr.mxu0 0.0
    %v2776 = vand.u32 %v1030, 4294901760
    %v2777 = vsub.f32 %v1030, %v2776
    %v2778 = vand.u32 %v2777, 4294901760
    %2779 = vmatpush1.msra.mxu0 %v2778
    %2780 = vmatprep.subr.mxu0 0.0
    %v2781 = vand.u32 %v1029, 4294901760
    %v2782 = vsub.f32 %v1029, %v2781
    %v2783 = vand.u32 %v2782, 4294901760
    %2784 = vmatpush1.msra.mxu0 %v2783
    %2785 = vmatprep.subr.mxu0 0.0
    %v2786 = vand.u32 %v1028, 4294901760
    %v2787 = vsub.f32 %v1028, %v2786
    %v2788 = vand.u32 %v2787, 4294901760
    %2789 = vmatpush1.msra.mxu0 %v2788
    %2790 = vmatprep.subr.mxu0 0.0
    %v2791 = vand.u32 %v1027, 4294901760
    %v2792 = vsub.f32 %v1027, %v2791
    %v2793 = vand.u32 %v2792, 4294901760
    %2794 = vmatpush1.msra.mxu0 %v2793
    %2795 = vmatprep.subr.mxu0 0.0
    %v2796 = vand.u32 %v1026, 4294901760
    %v2797 = vsub.f32 %v1026, %v2796
    %v2798 = vand.u32 %v2797, 4294901760
    %2799 = vmatpush1.msra.mxu0 %v2798
    %2800 = vmatprep.subr.mxu0 0.0
    %v2801 = vand.u32 %v1025, 4294901760
    %v2802 = vsub.f32 %v1025, %v2801
    %v2803 = vand.u32 %v2802, 4294901760
    %2804 = vmatpush1.msra.mxu0 %v2803
    %2805 = vmatprep.subr.mxu0 0.0
    %v2806 = vand.u32 %v1024, 4294901760
    %v2807 = vsub.f32 %v1024, %v2806
    %v2808 = vand.u32 %v2807, 4294901760
    %2809 = vmatpush1.msra.mxu0 %v2808
    %2810 = vmatprep.subr.mxu0 0.0
    %v2811 = vand.u32 %v1023, 4294901760
    %v2812 = vsub.f32 %v1023, %v2811
    %v2813 = vand.u32 %v2812, 4294901760
    %2814 = vmatpush1.msra.mxu0 %v2813
    %2815 = vmatprep.subr.mxu0 0.0
    %v2816 = vand.u32 %v1022, 4294901760
    %v2817 = vsub.f32 %v1022, %v2816
    %v2818 = vand.u32 %v2817, 4294901760
    %2819 = vmatpush1.msra.mxu0 %v2818
    %2820 = vmatprep.subr.mxu0 0.0
    %v2821 = vand.u32 %v1021, 4294901760
    %v2822 = vsub.f32 %v1021, %v2821
    %v2823 = vand.u32 %v2822, 4294901760
    %2824 = vmatpush1.msra.mxu0 %v2823
    %2825 = vmatprep.subr.mxu0 0.0
    %2826 = vmatpush2.msra.mxu0 0.0
    %2827 = vmatprep.subr.mxu0 0.0
    %2828 = vmatpush2.msra.mxu0 0.0
    %2829 = vmatprep.subr.mxu0 0.0
    %2830 = vmatpush2.msra.mxu0 0.0
    %2831 = vmatprep.subr.mxu0 0.0
    %2832 = vmatpush2.msra.mxu0 0.0
    %2833 = vmatprep.subr.mxu0 0.0
    %2834 = vmatpush2.msra.mxu0 0.0
    %2835 = vmatprep.subr.mxu0 0.0
    %2836 = vmatpush2.msra.mxu0 0.0
    %2837 = vmatprep.subr.mxu0 0.0
    %2838 = vmatpush2.msra.mxu0 0.0
    %2839 = vmatprep.subr.mxu0 0.0
    %2840 = vmatpush2.msra.mxu0 0.0
    %2841 = vmatprep.subr.mxu0 0.0
    %2842 = vmatpush2.msra.mxu0 0.0
    %2843 = vmatprep.subr.mxu0 0.0
    %2844 = vmatpush2.msra.mxu0 0.0
    %2845 = vmatprep.subr.mxu0 0.0
    %2846 = vmatpush2.msra.mxu0 0.0
    %2847 = vmatprep.subr.mxu0 0.0
    %2848 = vmatpush2.msra.mxu0 0.0
    %2849 = vmatprep.subr.mxu0 0.0
    %2850 = vmatpush2.msra.mxu0 0.0
    %2851 = vmatprep.subr.mxu0 0.0
    %2852 = vmatpush2.msra.mxu0 0.0
    %2853 = vmatprep.subr.mxu0 0.0
    %2854 = vmatpush2.msra.mxu0 0.0
    %2855 = vmatprep.subr.mxu0 0.0
    %2856 = vmatpush2.msra.mxu0 0.0
    %2857 = vmatprep.mubr.f32.mxu0 0.0
    %v2858 = vand.u32 %v2309, 4294901760
    %2859 = vmatmul.mubr.f32.gmra.mxu0 %v2858
    %v2860 = vpop.f32.mrf.mxu0
    %v2861 = vadd.f32 %v2742, %v2860
    %v2862 = vpop.f32.mrf.mxu0
    %2863 = vdwg.mxu0
    %2864 = vmatprep.subr.mxu0 0.0
    %v2865 = vand.u32 %v1036, 4294901760
    %2866 = vmatpush1.msra.mxu0 %v2865
    %2867 = vmatprep.subr.mxu0 0.0
    %v2868 = vand.u32 %v1035, 4294901760
    %2869 = vmatpush1.msra.mxu0 %v2868
    %2870 = vmatprep.subr.mxu0 0.0
    %v2871 = vand.u32 %v1034, 4294901760
    %2872 = vmatpush1.msra.mxu0 %v2871
    %2873 = vmatprep.subr.mxu0 0.0
    %v2874 = vand.u32 %v1033, 4294901760
    %2875 = vmatpush1.msra.mxu0 %v2874
    %2876 = vmatprep.subr.mxu0 0.0
    %v2877 = vand.u32 %v1032, 4294901760
    %2878 = vmatpush1.msra.mxu0 %v2877
    %2879 = vmatprep.subr.mxu0 0.0
    %v2880 = vand.u32 %v1031, 4294901760
    %2881 = vmatpush1.msra.mxu0 %v2880
    %2882 = vmatprep.subr.mxu0 0.0
    %v2883 = vand.u32 %v1030, 4294901760
    %2884 = vmatpush1.msra.mxu0 %v2883
    %2885 = vmatprep.subr.mxu0 0.0
    %v2886 = vand.u32 %v1029, 4294901760
    %2887 = vmatpush1.msra.mxu0 %v2886
    %2888 = vmatprep.subr.mxu0 0.0
    %v2889 = vand.u32 %v1028, 4294901760
    %2890 = vmatpush1.msra.mxu0 %v2889
    %2891 = vmatprep.subr.mxu0 0.0
    %v2892 = vand.u32 %v1027, 4294901760
    %2893 = vmatpush1.msra.mxu0 %v2892
    %2894 = vmatprep.subr.mxu0 0.0
    %v2895 = vand.u32 %v1026, 4294901760
    %2896 = vmatpush1.msra.mxu0 %v2895
    %2897 = vmatprep.subr.mxu0 0.0
    %v2898 = vand.u32 %v1025, 4294901760
    %2899 = vmatpush1.msra.mxu0 %v2898
    %2900 = vmatprep.subr.mxu0 0.0
    %v2901 = vand.u32 %v1024, 4294901760
    %2902 = vmatpush1.msra.mxu0 %v2901
    %2903 = vmatprep.subr.mxu0 0.0
    %v2904 = vand.u32 %v1023, 4294901760
    %2905 = vmatpush1.msra.mxu0 %v2904
    %2906 = vmatprep.subr.mxu0 0.0
    %v2907 = vand.u32 %v1022, 4294901760
    %2908 = vmatpush1.msra.mxu0 %v2907
    %2909 = vmatprep.subr.mxu0 0.0
    %v2910 = vand.u32 %v1021, 4294901760
    %2911 = vmatpush1.msra.mxu0 %v2910
    %2912 = vmatprep.subr.mxu0 0.0
    %2913 = vmatpush2.msra.mxu0 0.0
    %2914 = vmatprep.subr.mxu0 0.0
    %2915 = vmatpush2.msra.mxu0 0.0
    %2916 = vmatprep.subr.mxu0 0.0
    %2917 = vmatpush2.msra.mxu0 0.0
    %2918 = vmatprep.subr.mxu0 0.0
    %2919 = vmatpush2.msra.mxu0 0.0
    %2920 = vmatprep.subr.mxu0 0.0
    %2921 = vmatpush2.msra.mxu0 0.0
    %2922 = vmatprep.subr.mxu0 0.0
    %2923 = vmatpush2.msra.mxu0 0.0
    %2924 = vmatprep.subr.mxu0 0.0
    %2925 = vmatpush2.msra.mxu0 0.0
    %2926 = vmatprep.subr.mxu0 0.0
    %2927 = vmatpush2.msra.mxu0 0.0
    %2928 = vmatprep.subr.mxu0 0.0
    %2929 = vmatpush2.msra.mxu0 0.0
    %2930 = vmatprep.subr.mxu0 0.0
    %2931 = vmatpush2.msra.mxu0 0.0
    %2932 = vmatprep.subr.mxu0 0.0
    %2933 = vmatpush2.msra.mxu0 0.0
    %2934 = vmatprep.subr.mxu0 0.0
    %2935 = vmatpush2.msra.mxu0 0.0
    %2936 = vmatprep.subr.mxu0 0.0
    %2937 = vmatpush2.msra.mxu0 0.0
    %2938 = vmatprep.subr.mxu0 0.0
    %2939 = vmatpush2.msra.mxu0 0.0
    %2940 = vmatprep.subr.mxu0 0.0
    %2941 = vmatpush2.msra.mxu0 0.0
    %2942 = vmatprep.subr.mxu0 0.0
    %2943 = vmatpush2.msra.mxu0 0.0
    %2944 = vmatprep.mubr.f32.mxu0 0.0
    %v2945 = vand.u32 %v2309, 4294901760
    %2946 = vmatmul.mubr.f32.gmra.mxu0 %v2945
    %v2947 = vpop.f32.mrf.mxu0
    %v2948 = vadd.f32 %v2861, %v2947
    %v2949 = vpop.f32.mrf.mxu0
    %2950 = vdwg.mxu0
    %v2951 = vadd.f32 %v993, %v2948
    %v2952 = vtanh.pop %v2951
    %2953 = vmatprep.subr.mxu0 0.0
    %v2954 = vand.u32 %v1036, 4294901760
    %2955 = vmatpush1.msra.mxu0 %v2954
    %2956 = vmatprep.subr.mxu0 0.0
    %v2957 = vand.u32 %v1035, 4294901760
    %2958 = vmatpush1.msra.mxu0 %v2957
    %2959 = vmatprep.subr.mxu0 0.0
    %v2960 = vand.u32 %v1034, 4294901760
    %2961 = vmatpush1.msra.mxu0 %v2960
    %2962 = vmatprep.subr.mxu0 0.0
    %v2963 = vand.u32 %v1033, 4294901760
    %2964 = vmatpush1.msra.mxu0 %v2963
    %2965 = vmatprep.subr.mxu0 0.0
    %v2966 = vand.u32 %v1032, 4294901760
    %2967 = vmatpush1.msra.mxu0 %v2966
    %2968 = vmatprep.subr.mxu0 0.0
    %v2969 = vand.u32 %v1031, 4294901760
    %2970 = vmatpush1.msra.mxu0 %v2969
    %2971 = vmatprep.subr.mxu0 0.0
    %v2972 = vand.u32 %v1030, 4294901760
    %2973 = vmatpush1.msra.mxu0 %v2972
    %2974 = vmatprep.subr.mxu0 0.0
    %v2975 = vand.u32 %v1029, 4294901760
    %2976 = vmatpush1.msra.mxu0 %v2975
    %2977 = vmatprep.subr.mxu0 0.0
    %v2978 = vand.u32 %v1028, 4294901760
    %2979 = vmatpush1.msra.mxu0 %v2978
    %2980 = vmatprep.subr.mxu0 0.0
    %v2981 = vand.u32 %v1027, 4294901760
    %2982 = vmatpush1.msra.mxu0 %v2981
    %2983 = vmatprep.subr.mxu0 0.0
    %v2984 = vand.u32 %v1026, 4294901760
    %2985 = vmatpush1.msra.mxu0 %v2984
    %2986 = vmatprep.subr.mxu0 0.0
    %v2987 = vand.u32 %v1025, 4294901760
    %2988 = vmatpush1.msra.mxu0 %v2987
    %2989 = vmatprep.subr.mxu0 0.0
    %v2990 = vand.u32 %v1024, 4294901760
    %2991 = vmatpush1.msra.mxu0 %v2990
    %2992 = vmatprep.subr.mxu0 0.0
    %v2993 = vand.u32 %v1023, 4294901760
    %2994 = vmatpush1.msra.mxu0 %v2993
    %2995 = vmatprep.subr.mxu0 0.0
    %v2996 = vand.u32 %v1022, 4294901760
    %2997 = vmatpush1.msra.mxu0 %v2996
    %2998 = vmatprep.subr.mxu0 0.0
    %v2999 = vand.u32 %v1021, 4294901760
    %3000 = vmatpush1.msra.mxu0 %v2999
    %3001 = vmatprep.subr.mxu0 0.0
    %3002 = vmatpush2.msra.mxu0 0.0
    %3003 = vmatprep.subr.mxu0 0.0
    %3004 = vmatpush2.msra.mxu0 0.0
    %3005 = vmatprep.subr.mxu0 0.0
    %3006 = vmatpush2.msra.mxu0 0.0
    %3007 = vmatprep.subr.mxu0 0.0
    %3008 = vmatpush2.msra.mxu0 0.0
    %3009 = vmatprep.subr.mxu0 0.0
    %3010 = vmatpush2.msra.mxu0 0.0
    %3011 = vmatprep.subr.mxu0 0.0
    %3012 = vmatpush2.msra.mxu0 0.0
    %3013 = vmatprep.subr.mxu0 0.0
    %3014 = vmatpush2.msra.mxu0 0.0
    %3015 = vmatprep.subr.mxu0 0.0
    %3016 = vmatpush2.msra.mxu0 0.0
    %3017 = vmatprep.subr.mxu0 0.0
    %3018 = vmatpush2.msra.mxu0 0.0
    %3019 = vmatprep.subr.mxu0 0.0
    %3020 = vmatpush2.msra.mxu0 0.0
    %3021 = vmatprep.subr.mxu0 0.0
    %3022 = vmatpush2.msra.mxu0 0.0
    %3023 = vmatprep.subr.mxu0 0.0
    %3024 = vmatpush2.msra.mxu0 0.0
    %3025 = vmatprep.subr.mxu0 0.0
    %3026 = vmatpush2.msra.mxu0 0.0
    %3027 = vmatprep.subr.mxu0 0.0
    %3028 = vmatpush2.msra.mxu0 0.0
    %3029 = vmatprep.subr.mxu0 0.0
    %3030 = vmatpush2.msra.mxu0 0.0
    %3031 = vmatprep.subr.mxu0 0.0
    %3032 = vmatpush2.msra.mxu0 0.0
    %3033 = vmatprep.mubr.f32.mxu0 0.0
    %v3034 = vand.u32 %v2952, 4294901760
    %v3035 = vsub.f32 %v2952, %v3034
    %v3036 = vand.u32 %v3035, 4294901760
    %v3037 = vsub.f32 %v3035, %v3036
    %v3038 = vand.u32 %v3037, 4294901760
    %3039 = vmatmul.mubr.f32.gmra.mxu0 %v3038
    %v3040 = vpop.f32.mrf.mxu0
    %v3041 = vadd.f32 0.0, %v3040
    %v3042 = vpop.f32.mrf.mxu0
    %3043 = vdwg.mxu0
    %3044 = vmatprep.subr.mxu0 0.0
    %v3045 = vand.u32 %v1036, 4294901760
    %v3046 = vsub.f32 %v1036, %v3045
    %v3047 = vand.u32 %v3046, 4294901760
    %v3048 = vsub.f32 %v3046, %v3047
    %v3049 = vand.u32 %v3048, 4294901760
    %3050 = vmatpush1.msra.mxu0 %v3049
    %3051 = vmatprep.subr.mxu0 0.0
    %v3052 = vand.u32 %v1035, 4294901760
    %v3053 = vsub.f32 %v1035, %v3052
    %v3054 = vand.u32 %v3053, 4294901760
    %v3055 = vsub.f32 %v3053, %v3054
    %v3056 = vand.u32 %v3055, 4294901760
    %3057 = vmatpush1.msra.mxu0 %v3056
    %3058 = vmatprep.subr.mxu0 0.0
    %v3059 = vand.u32 %v1034, 4294901760
    %v3060 = vsub.f32 %v1034, %v3059
    %v3061 = vand.u32 %v3060, 4294901760
    %v3062 = vsub.f32 %v3060, %v3061
    %v3063 = vand.u32 %v3062, 4294901760
    %3064 = vmatpush1.msra.mxu0 %v3063
    %3065 = vmatprep.subr.mxu0 0.0
    %v3066 = vand.u32 %v1033, 4294901760
    %v3067 = vsub.f32 %v1033, %v3066
    %v3068 = vand.u32 %v3067, 4294901760
    %v3069 = vsub.f32 %v3067, %v3068
    %v3070 = vand.u32 %v3069, 4294901760
    %3071 = vmatpush1.msra.mxu0 %v3070
    %3072 = vmatprep.subr.mxu0 0.0
    %v3073 = vand.u32 %v1032, 4294901760
    %v3074 = vsub.f32 %v1032, %v3073
    %v3075 = vand.u32 %v3074, 4294901760
    %v3076 = vsub.f32 %v3074, %v3075
    %v3077 = vand.u32 %v3076, 4294901760
    %3078 = vmatpush1.msra.mxu0 %v3077
    %3079 = vmatprep.subr.mxu0 0.0
    %v3080 = vand.u32 %v1031, 4294901760
    %v3081 = vsub.f32 %v1031, %v3080
    %v3082 = vand.u32 %v3081, 4294901760
    %v3083 = vsub.f32 %v3081, %v3082
    %v3084 = vand.u32 %v3083, 4294901760
    %3085 = vmatpush1.msra.mxu0 %v3084
    %3086 = vmatprep.subr.mxu0 0.0
    %v3087 = vand.u32 %v1030, 4294901760
    %v3088 = vsub.f32 %v1030, %v3087
    %v3089 = vand.u32 %v3088, 4294901760
    %v3090 = vsub.f32 %v3088, %v3089
    %v3091 = vand.u32 %v3090, 4294901760
    %3092 = vmatpush1.msra.mxu0 %v3091
    %3093 = vmatprep.subr.mxu0 0.0
    %v3094 = vand.u32 %v1029, 4294901760
    %v3095 = vsub.f32 %v1029, %v3094
    %v3096 = vand.u32 %v3095, 4294901760
    %v3097 = vsub.f32 %v3095, %v3096
    %v3098 = vand.u32 %v3097, 4294901760
    %3099 = vmatpush1.msra.mxu0 %v3098
    %3100 = vmatprep.subr.mxu0 0.0
    %v3101 = vand.u32 %v1028, 4294901760
    %v3102 = vsub.f32 %v1028, %v3101
    %v3103 = vand.u32 %v3102, 4294901760
    %v3104 = vsub.f32 %v3102, %v3103
    %v3105 = vand.u32 %v3104, 4294901760
    %3106 = vmatpush1.msra.mxu0 %v3105
    %3107 = vmatprep.subr.mxu0 0.0
    %v3108 = vand.u32 %v1027, 4294901760
    %v3109 = vsub.f32 %v1027, %v3108
    %v3110 = vand.u32 %v3109, 4294901760
    %v3111 = vsub.f32 %v3109, %v3110
    %v3112 = vand.u32 %v3111, 4294901760
    %3113 = vmatpush1.msra.mxu0 %v3112
    %3114 = vmatprep.subr.mxu0 0.0
    %v3115 = vand.u32 %v1026, 4294901760
    %v3116 = vsub.f32 %v1026, %v3115
    %v3117 = vand.u32 %v3116, 4294901760
    %v3118 = vsub.f32 %v3116, %v3117
    %v3119 = vand.u32 %v3118, 4294901760
    %3120 = vmatpush1.msra.mxu0 %v3119
    %3121 = vmatprep.subr.mxu0 0.0
    %v3122 = vand.u32 %v1025, 4294901760
    %v3123 = vsub.f32 %v1025, %v3122
    %v3124 = vand.u32 %v3123, 4294901760
    %v3125 = vsub.f32 %v3123, %v3124
    %v3126 = vand.u32 %v3125, 4294901760
    %3127 = vmatpush1.msra.mxu0 %v3126
    %3128 = vmatprep.subr.mxu0 0.0
    %v3129 = vand.u32 %v1024, 4294901760
    %v3130 = vsub.f32 %v1024, %v3129
    %v3131 = vand.u32 %v3130, 4294901760
    %v3132 = vsub.f32 %v3130, %v3131
    %v3133 = vand.u32 %v3132, 4294901760
    %3134 = vmatpush1.msra.mxu0 %v3133
    %3135 = vmatprep.subr.mxu0 0.0
    %v3136 = vand.u32 %v1023, 4294901760
    %v3137 = vsub.f32 %v1023, %v3136
    %v3138 = vand.u32 %v3137, 4294901760
    %v3139 = vsub.f32 %v3137, %v3138
    %v3140 = vand.u32 %v3139, 4294901760
    %3141 = vmatpush1.msra.mxu0 %v3140
    %3142 = vmatprep.subr.mxu0 0.0
    %v3143 = vand.u32 %v1022, 4294901760
    %v3144 = vsub.f32 %v1022, %v3143
    %v3145 = vand.u32 %v3144, 4294901760
    %v3146 = vsub.f32 %v3144, %v3145
    %v3147 = vand.u32 %v3146, 4294901760
    %3148 = vmatpush1.msra.mxu0 %v3147
    %3149 = vmatprep.subr.mxu0 0.0
    %v3150 = vand.u32 %v1021, 4294901760
    %v3151 = vsub.f32 %v1021, %v3150
    %v3152 = vand.u32 %v3151, 4294901760
    %v3153 = vsub.f32 %v3151, %v3152
    %v3154 = vand.u32 %v3153, 4294901760
    %3155 = vmatpush1.msra.mxu0 %v3154
    %3156 = vmatprep.subr.mxu0 0.0
    %3157 = vmatpush2.msra.mxu0 0.0
    %3158 = vmatprep.subr.mxu0 0.0
    %3159 = vmatpush2.msra.mxu0 0.0
    %3160 = vmatprep.subr.mxu0 0.0
    %3161 = vmatpush2.msra.mxu0 0.0
    %3162 = vmatprep.subr.mxu0 0.0
    %3163 = vmatpush2.msra.mxu0 0.0
    %3164 = vmatprep.subr.mxu0 0.0
    %3165 = vmatpush2.msra.mxu0 0.0
    %3166 = vmatprep.subr.mxu0 0.0
    %3167 = vmatpush2.msra.mxu0 0.0
    %3168 = vmatprep.subr.mxu0 0.0
    %3169 = vmatpush2.msra.mxu0 0.0
    %3170 = vmatprep.subr.mxu0 0.0
    %3171 = vmatpush2.msra.mxu0 0.0
    %3172 = vmatprep.subr.mxu0 0.0
    %3173 = vmatpush2.msra.mxu0 0.0
    %3174 = vmatprep.subr.mxu0 0.0
    %3175 = vmatpush2.msra.mxu0 0.0
    %3176 = vmatprep.subr.mxu0 0.0
    %3177 = vmatpush2.msra.mxu0 0.0
    %3178 = vmatprep.subr.mxu0 0.0
    %3179 = vmatpush2.msra.mxu0 0.0
    %3180 = vmatprep.subr.mxu0 0.0
    %3181 = vmatpush2.msra.mxu0 0.0
    %3182 = vmatprep.subr.mxu0 0.0
    %3183 = vmatpush2.msra.mxu0 0.0
    %3184 = vmatprep.subr.mxu0 0.0
    %3185 = vmatpush2.msra.mxu0 0.0
    %3186 = vmatprep.subr.mxu0 0.0
    %3187 = vmatpush2.msra.mxu0 0.0
    %3188 = vmatprep.mubr.f32.mxu0 0.0
    %v3189 = vand.u32 %v2952, 4294901760
    %3190 = vmatmul.mubr.f32.gmra.mxu0 %v3189
    %v3191 = vpop.f32.mrf.mxu0
    %v3192 = vadd.f32 %v3041, %v3191
    %v3193 = vpop.f32.mrf.mxu0
    %3194 = vdwg.mxu0
    %3195 = vmatprep.subr.mxu0 0.0
    %v3196 = vand.u32 %v1036, 4294901760
    %v3197 = vsub.f32 %v1036, %v3196
    %3198 = vmatpush1.msra.mxu0 %v3197
    %3199 = vmatprep.subr.mxu0 0.0
    %v3200 = vand.u32 %v1035, 4294901760
    %v3201 = vsub.f32 %v1035, %v3200
    %3202 = vmatpush1.msra.mxu0 %v3201
    %3203 = vmatprep.subr.mxu0 0.0
    %v3204 = vand.u32 %v1034, 4294901760
    %v3205 = vsub.f32 %v1034, %v3204
    %3206 = vmatpush1.msra.mxu0 %v3205
    %3207 = vmatprep.subr.mxu0 0.0
    %v3208 = vand.u32 %v1033, 4294901760
    %v3209 = vsub.f32 %v1033, %v3208
    %3210 = vmatpush1.msra.mxu0 %v3209
    %3211 = vmatprep.subr.mxu0 0.0
    %v3212 = vand.u32 %v1032, 4294901760
    %v3213 = vsub.f32 %v1032, %v3212
    %3214 = vmatpush1.msra.mxu0 %v3213
    %3215 = vmatprep.subr.mxu0 0.0
    %v3216 = vand.u32 %v1031, 4294901760
    %v3217 = vsub.f32 %v1031, %v3216
    %3218 = vmatpush1.msra.mxu0 %v3217
    %3219 = vmatprep.subr.mxu0 0.0
    %v3220 = vand.u32 %v1030, 4294901760
    %v3221 = vsub.f32 %v1030, %v3220
    %3222 = vmatpush1.msra.mxu0 %v3221
    %3223 = vmatprep.subr.mxu0 0.0
    %v3224 = vand.u32 %v1029, 4294901760
    %v3225 = vsub.f32 %v1029, %v3224
    %3226 = vmatpush1.msra.mxu0 %v3225
    %3227 = vmatprep.subr.mxu0 0.0
    %v3228 = vand.u32 %v1028, 4294901760
    %v3229 = vsub.f32 %v1028, %v3228
    %3230 = vmatpush1.msra.mxu0 %v3229
    %3231 = vmatprep.subr.mxu0 0.0
    %v3232 = vand.u32 %v1027, 4294901760
    %v3233 = vsub.f32 %v1027, %v3232
    %3234 = vmatpush1.msra.mxu0 %v3233
    %3235 = vmatprep.subr.mxu0 0.0
    %v3236 = vand.u32 %v1026, 4294901760
    %v3237 = vsub.f32 %v1026, %v3236
    %3238 = vmatpush1.msra.mxu0 %v3237
    %3239 = vmatprep.subr.mxu0 0.0
    %v3240 = vand.u32 %v1025, 4294901760
    %v3241 = vsub.f32 %v1025, %v3240
    %3242 = vmatpush1.msra.mxu0 %v3241
    %3243 = vmatprep.subr.mxu0 0.0
    %v3244 = vand.u32 %v1024, 4294901760
    %v3245 = vsub.f32 %v1024, %v3244
    %3246 = vmatpush1.msra.mxu0 %v3245
    %3247 = vmatprep.subr.mxu0 0.0
    %v3248 = vand.u32 %v1023, 4294901760
    %v3249 = vsub.f32 %v1023, %v3248
    %3250 = vmatpush1.msra.mxu0 %v3249
    %3251 = vmatprep.subr.mxu0 0.0
    %v3252 = vand.u32 %v1022, 4294901760
    %v3253 = vsub.f32 %v1022, %v3252
    %3254 = vmatpush1.msra.mxu0 %v3253
    %3255 = vmatprep.subr.mxu0 0.0
    %v3256 = vand.u32 %v1021, 4294901760
    %v3257 = vsub.f32 %v1021, %v3256
    %3258 = vmatpush1.msra.mxu0 %v3257
    %3259 = vmatprep.subr.mxu0 0.0
    %3260 = vmatpush2.msra.mxu0 0.0
    %3261 = vmatprep.subr.mxu0 0.0
    %3262 = vmatpush2.msra.mxu0 0.0
    %3263 = vmatprep.subr.mxu0 0.0
    %3264 = vmatpush2.msra.mxu0 0.0
    %3265 = vmatprep.subr.mxu0 0.0
    %3266 = vmatpush2.msra.mxu0 0.0
    %3267 = vmatprep.subr.mxu0 0.0
    %3268 = vmatpush2.msra.mxu0 0.0
    %3269 = vmatprep.subr.mxu0 0.0
    %3270 = vmatpush2.msra.mxu0 0.0
    %3271 = vmatprep.subr.mxu0 0.0
    %3272 = vmatpush2.msra.mxu0 0.0
    %3273 = vmatprep.subr.mxu0 0.0
    %3274 = vmatpush2.msra.mxu0 0.0
    %3275 = vmatprep.subr.mxu0 0.0
    %3276 = vmatpush2.msra.mxu0 0.0
    %3277 = vmatprep.subr.mxu0 0.0
    %3278 = vmatpush2.msra.mxu0 0.0
    %3279 = vmatprep.subr.mxu0 0.0
    %3280 = vmatpush2.msra.mxu0 0.0
    %3281 = vmatprep.subr.mxu0 0.0
    %3282 = vmatpush2.msra.mxu0 0.0
    %3283 = vmatprep.subr.mxu0 0.0
    %3284 = vmatpush2.msra.mxu0 0.0
    %3285 = vmatprep.subr.mxu0 0.0
    %3286 = vmatpush2.msra.mxu0 0.0
    %3287 = vmatprep.subr.mxu0 0.0
    %3288 = vmatpush2.msra.mxu0 0.0
    %3289 = vmatprep.subr.mxu0 0.0
    %3290 = vmatpush2.msra.mxu0 0.0
    %3291 = vmatprep.mubr.f32.mxu0 0.0
    %v3292 = vand.u32 %v2952, 4294901760
    %v3293 = vsub.f32 %v2952, %v3292
    %3294 = vmatmul.mubr.f32.gmra.mxu0 %v3293
    %v3295 = vpop.f32.mrf.mxu0
    %v3296 = vadd.f32 %v3192, %v3295
    %v3297 = vpop.f32.mrf.mxu0
    %3298 = vdwg.mxu0
    %3299 = vmatprep.subr.mxu0 0.0
    %v3300 = vand.u32 %v1036, 4294901760
    %3301 = vmatpush1.msra.mxu0 %v3300
    %3302 = vmatprep.subr.mxu0 0.0
    %v3303 = vand.u32 %v1035, 4294901760
    %3304 = vmatpush1.msra.mxu0 %v3303
    %3305 = vmatprep.subr.mxu0 0.0
    %v3306 = vand.u32 %v1034, 4294901760
    %3307 = vmatpush1.msra.mxu0 %v3306
    %3308 = vmatprep.subr.mxu0 0.0
    %v3309 = vand.u32 %v1033, 4294901760
    %3310 = vmatpush1.msra.mxu0 %v3309
    %3311 = vmatprep.subr.mxu0 0.0
    %v3312 = vand.u32 %v1032, 4294901760
    %3313 = vmatpush1.msra.mxu0 %v3312
    %3314 = vmatprep.subr.mxu0 0.0
    %v3315 = vand.u32 %v1031, 4294901760
    %3316 = vmatpush1.msra.mxu0 %v3315
    %3317 = vmatprep.subr.mxu0 0.0
    %v3318 = vand.u32 %v1030, 4294901760
    %3319 = vmatpush1.msra.mxu0 %v3318
    %3320 = vmatprep.subr.mxu0 0.0
    %v3321 = vand.u32 %v1029, 4294901760
    %3322 = vmatpush1.msra.mxu0 %v3321
    %3323 = vmatprep.subr.mxu0 0.0
    %v3324 = vand.u32 %v1028, 4294901760
    %3325 = vmatpush1.msra.mxu0 %v3324
    %3326 = vmatprep.subr.mxu0 0.0
    %v3327 = vand.u32 %v1027, 4294901760
    %3328 = vmatpush1.msra.mxu0 %v3327
    %3329 = vmatprep.subr.mxu0 0.0
    %v3330 = vand.u32 %v1026, 4294901760
    %3331 = vmatpush1.msra.mxu0 %v3330
    %3332 = vmatprep.subr.mxu0 0.0
    %v3333 = vand.u32 %v1025, 4294901760
    %3334 = vmatpush1.msra.mxu0 %v3333
    %3335 = vmatprep.subr.mxu0 0.0
    %v3336 = vand.u32 %v1024, 4294901760
    %3337 = vmatpush1.msra.mxu0 %v3336
    %3338 = vmatprep.subr.mxu0 0.0
    %v3339 = vand.u32 %v1023, 4294901760
    %3340 = vmatpush1.msra.mxu0 %v3339
    %3341 = vmatprep.subr.mxu0 0.0
    %v3342 = vand.u32 %v1022, 4294901760
    %3343 = vmatpush1.msra.mxu0 %v3342
    %3344 = vmatprep.subr.mxu0 0.0
    %v3345 = vand.u32 %v1021, 4294901760
    %3346 = vmatpush1.msra.mxu0 %v3345
    %3347 = vmatprep.subr.mxu0 0.0
    %3348 = vmatpush2.msra.mxu0 0.0
    %3349 = vmatprep.subr.mxu0 0.0
    %3350 = vmatpush2.msra.mxu0 0.0
    %3351 = vmatprep.subr.mxu0 0.0
    %3352 = vmatpush2.msra.mxu0 0.0
    %3353 = vmatprep.subr.mxu0 0.0
    %3354 = vmatpush2.msra.mxu0 0.0
    %3355 = vmatprep.subr.mxu0 0.0
    %3356 = vmatpush2.msra.mxu0 0.0
    %3357 = vmatprep.subr.mxu0 0.0
    %3358 = vmatpush2.msra.mxu0 0.0
    %3359 = vmatprep.subr.mxu0 0.0
    %3360 = vmatpush2.msra.mxu0 0.0
    %3361 = vmatprep.subr.mxu0 0.0
    %3362 = vmatpush2.msra.mxu0 0.0
    %3363 = vmatprep.subr.mxu0 0.0
    %3364 = vmatpush2.msra.mxu0 0.0
    %3365 = vmatprep.subr.mxu0 0.0
    %3366 = vmatpush2.msra.mxu0 0.0
    %3367 = vmatprep.subr.mxu0 0.0
    %3368 = vmatpush2.msra.mxu0 0.0
    %3369 = vmatprep.subr.mxu0 0.0
    %3370 = vmatpush2.msra.mxu0 0.0
    %3371 = vmatprep.subr.mxu0 0.0
    %3372 = vmatpush2.msra.mxu0 0.0
    %3373 = vmatprep.subr.mxu0 0.0
    %3374 = vmatpush2.msra.mxu0 0.0
    %3375 = vmatprep.subr.mxu0 0.0
    %3376 = vmatpush2.msra.mxu0 0.0
    %3377 = vmatprep.subr.mxu0 0.0
    %3378 = vmatpush2.msra.mxu0 0.0
    %3379 = vmatprep.mubr.f32.mxu0 0.0
    %v3380 = vand.u32 %v2952, 4294901760
    %v3381 = vsub.f32 %v2952, %v3380
    %v3382 = vand.u32 %v3381, 4294901760
    %3383 = vmatmul.mubr.f32.gmra.mxu0 %v3382
    %v3384 = vpop.f32.mrf.mxu0
    %v3385 = vadd.f32 %v3296, %v3384
    %v3386 = vpop.f32.mrf.mxu0
    %3387 = vdwg.mxu0
    %3388 = vmatprep.subr.mxu0 0.0
    %v3389 = vand.u32 %v1036, 4294901760
    %v3390 = vsub.f32 %v1036, %v3389
    %v3391 = vand.u32 %v3390, 4294901760
    %3392 = vmatpush1.msra.mxu0 %v3391
    %3393 = vmatprep.subr.mxu0 0.0
    %v3394 = vand.u32 %v1035, 4294901760
    %v3395 = vsub.f32 %v1035, %v3394
    %v3396 = vand.u32 %v3395, 4294901760
    %3397 = vmatpush1.msra.mxu0 %v3396
    %3398 = vmatprep.subr.mxu0 0.0
    %v3399 = vand.u32 %v1034, 4294901760
    %v3400 = vsub.f32 %v1034, %v3399
    %v3401 = vand.u32 %v3400, 4294901760
    %3402 = vmatpush1.msra.mxu0 %v3401
    %3403 = vmatprep.subr.mxu0 0.0
    %v3404 = vand.u32 %v1033, 4294901760
    %v3405 = vsub.f32 %v1033, %v3404
    %v3406 = vand.u32 %v3405, 4294901760
    %3407 = vmatpush1.msra.mxu0 %v3406
    %3408 = vmatprep.subr.mxu0 0.0
    %v3409 = vand.u32 %v1032, 4294901760
    %v3410 = vsub.f32 %v1032, %v3409
    %v3411 = vand.u32 %v3410, 4294901760
    %3412 = vmatpush1.msra.mxu0 %v3411
    %3413 = vmatprep.subr.mxu0 0.0
    %v3414 = vand.u32 %v1031, 4294901760
    %v3415 = vsub.f32 %v1031, %v3414
    %v3416 = vand.u32 %v3415, 4294901760
    %3417 = vmatpush1.msra.mxu0 %v3416
    %3418 = vmatprep.subr.mxu0 0.0
    %v3419 = vand.u32 %v1030, 4294901760
    %v3420 = vsub.f32 %v1030, %v3419
    %v3421 = vand.u32 %v3420, 4294901760
    %3422 = vmatpush1.msra.mxu0 %v3421
    %3423 = vmatprep.subr.mxu0 0.0
    %v3424 = vand.u32 %v1029, 4294901760
    %v3425 = vsub.f32 %v1029, %v3424
    %v3426 = vand.u32 %v3425, 4294901760
    %3427 = vmatpush1.msra.mxu0 %v3426
    %3428 = vmatprep.subr.mxu0 0.0
    %v3429 = vand.u32 %v1028, 4294901760
    %v3430 = vsub.f32 %v1028, %v3429
    %v3431 = vand.u32 %v3430, 4294901760
    %3432 = vmatpush1.msra.mxu0 %v3431
    %3433 = vmatprep.subr.mxu0 0.0
    %v3434 = vand.u32 %v1027, 4294901760
    %v3435 = vsub.f32 %v1027, %v3434
    %v3436 = vand.u32 %v3435, 4294901760
    %3437 = vmatpush1.msra.mxu0 %v3436
    %3438 = vmatprep.subr.mxu0 0.0
    %v3439 = vand.u32 %v1026, 4294901760
    %v3440 = vsub.f32 %v1026, %v3439
    %v3441 = vand.u32 %v3440, 4294901760
    %3442 = vmatpush1.msra.mxu0 %v3441
    %3443 = vmatprep.subr.mxu0 0.0
    %v3444 = vand.u32 %v1025, 4294901760
    %v3445 = vsub.f32 %v1025, %v3444
    %v3446 = vand.u32 %v3445, 4294901760
    %3447 = vmatpush1.msra.mxu0 %v3446
    %3448 = vmatprep.subr.mxu0 0.0
    %v3449 = vand.u32 %v1024, 4294901760
    %v3450 = vsub.f32 %v1024, %v3449
    %v3451 = vand.u32 %v3450, 4294901760
    %3452 = vmatpush1.msra.mxu0 %v3451
    %3453 = vmatprep.subr.mxu0 0.0
    %v3454 = vand.u32 %v1023, 4294901760
    %v3455 = vsub.f32 %v1023, %v3454
    %v3456 = vand.u32 %v3455, 4294901760
    %3457 = vmatpush1.msra.mxu0 %v3456
    %3458 = vmatprep.subr.mxu0 0.0
    %v3459 = vand.u32 %v1022, 4294901760
    %v3460 = vsub.f32 %v1022, %v3459
    %v3461 = vand.u32 %v3460, 4294901760
    %3462 = vmatpush1.msra.mxu0 %v3461
    %3463 = vmatprep.subr.mxu0 0.0
    %v3464 = vand.u32 %v1021, 4294901760
    %v3465 = vsub.f32 %v1021, %v3464
    %v3466 = vand.u32 %v3465, 4294901760
    %3467 = vmatpush1.msra.mxu0 %v3466
    %3468 = vmatprep.subr.mxu0 0.0
    %3469 = vmatpush2.msra.mxu0 0.0
    %3470 = vmatprep.subr.mxu0 0.0
    %3471 = vmatpush2.msra.mxu0 0.0
    %3472 = vmatprep.subr.mxu0 0.0
    %3473 = vmatpush2.msra.mxu0 0.0
    %3474 = vmatprep.subr.mxu0 0.0
    %3475 = vmatpush2.msra.mxu0 0.0
    %3476 = vmatprep.subr.mxu0 0.0
    %3477 = vmatpush2.msra.mxu0 0.0
    %3478 = vmatprep.subr.mxu0 0.0
    %3479 = vmatpush2.msra.mxu0 0.0
    %3480 = vmatprep.subr.mxu0 0.0
    %3481 = vmatpush2.msra.mxu0 0.0
    %3482 = vmatprep.subr.mxu0 0.0
    %3483 = vmatpush2.msra.mxu0 0.0
    %3484 = vmatprep.subr.mxu0 0.0
    %3485 = vmatpush2.msra.mxu0 0.0
    %3486 = vmatprep.subr.mxu0 0.0
    %3487 = vmatpush2.msra.mxu0 0.0
    %3488 = vmatprep.subr.mxu0 0.0
    %3489 = vmatpush2.msra.mxu0 0.0
    %3490 = vmatprep.subr.mxu0 0.0
    %3491 = vmatpush2.msra.mxu0 0.0
    %3492 = vmatprep.subr.mxu0 0.0
    %3493 = vmatpush2.msra.mxu0 0.0
    %3494 = vmatprep.subr.mxu0 0.0
    %3495 = vmatpush2.msra.mxu0 0.0
    %3496 = vmatprep.subr.mxu0 0.0
    %3497 = vmatpush2.msra.mxu0 0.0
    %3498 = vmatprep.subr.mxu0 0.0
    %3499 = vmatpush2.msra.mxu0 0.0
    %3500 = vmatprep.mubr.f32.mxu0 0.0
    %v3501 = vand.u32 %v2952, 4294901760
    %3502 = vmatmul.mubr.f32.gmra.mxu0 %v3501
    %v3503 = vpop.f32.mrf.mxu0
    %v3504 = vadd.f32 %v3385, %v3503
    %v3505 = vpop.f32.mrf.mxu0
    %3506 = vdwg.mxu0
    %3507 = vmatprep.subr.mxu0 0.0
    %v3508 = vand.u32 %v1036, 4294901760
    %3509 = vmatpush1.msra.mxu0 %v3508
    %3510 = vmatprep.subr.mxu0 0.0
    %v3511 = vand.u32 %v1035, 4294901760
    %3512 = vmatpush1.msra.mxu0 %v3511
    %3513 = vmatprep.subr.mxu0 0.0
    %v3514 = vand.u32 %v1034, 4294901760
    %3515 = vmatpush1.msra.mxu0 %v3514
    %3516 = vmatprep.subr.mxu0 0.0
    %v3517 = vand.u32 %v1033, 4294901760
    %3518 = vmatpush1.msra.mxu0 %v3517
    %3519 = vmatprep.subr.mxu0 0.0
    %v3520 = vand.u32 %v1032, 4294901760
    %3521 = vmatpush1.msra.mxu0 %v3520
    %3522 = vmatprep.subr.mxu0 0.0
    %v3523 = vand.u32 %v1031, 4294901760
    %3524 = vmatpush1.msra.mxu0 %v3523
    %3525 = vmatprep.subr.mxu0 0.0
    %v3526 = vand.u32 %v1030, 4294901760
    %3527 = vmatpush1.msra.mxu0 %v3526
    %3528 = vmatprep.subr.mxu0 0.0
    %v3529 = vand.u32 %v1029, 4294901760
    %3530 = vmatpush1.msra.mxu0 %v3529
    %3531 = vmatprep.subr.mxu0 0.0
    %v3532 = vand.u32 %v1028, 4294901760
    %3533 = vmatpush1.msra.mxu0 %v3532
    %3534 = vmatprep.subr.mxu0 0.0
    %v3535 = vand.u32 %v1027, 4294901760
    %3536 = vmatpush1.msra.mxu0 %v3535
    %3537 = vmatprep.subr.mxu0 0.0
    %v3538 = vand.u32 %v1026, 4294901760
    %3539 = vmatpush1.msra.mxu0 %v3538
    %3540 = vmatprep.subr.mxu0 0.0
    %v3541 = vand.u32 %v1025, 4294901760
    %3542 = vmatpush1.msra.mxu0 %v3541
    %3543 = vmatprep.subr.mxu0 0.0
    %v3544 = vand.u32 %v1024, 4294901760
    %3545 = vmatpush1.msra.mxu0 %v3544
    %3546 = vmatprep.subr.mxu0 0.0
    %v3547 = vand.u32 %v1023, 4294901760
    %3548 = vmatpush1.msra.mxu0 %v3547
    %3549 = vmatprep.subr.mxu0 0.0
    %v3550 = vand.u32 %v1022, 4294901760
    %3551 = vmatpush1.msra.mxu0 %v3550
    %3552 = vmatprep.subr.mxu0 0.0
    %v3553 = vand.u32 %v1021, 4294901760
    %3554 = vmatpush1.msra.mxu0 %v3553
    %3555 = vmatprep.subr.mxu0 0.0
    %3556 = vmatpush2.msra.mxu0 0.0
    %3557 = vmatprep.subr.mxu0 0.0
    %3558 = vmatpush2.msra.mxu0 0.0
    %3559 = vmatprep.subr.mxu0 0.0
    %3560 = vmatpush2.msra.mxu0 0.0
    %3561 = vmatprep.subr.mxu0 0.0
    %3562 = vmatpush2.msra.mxu0 0.0
    %3563 = vmatprep.subr.mxu0 0.0
    %3564 = vmatpush2.msra.mxu0 0.0
    %3565 = vmatprep.subr.mxu0 0.0
    %3566 = vmatpush2.msra.mxu0 0.0
    %3567 = vmatprep.subr.mxu0 0.0
    %3568 = vmatpush2.msra.mxu0 0.0
    %3569 = vmatprep.subr.mxu0 0.0
    %3570 = vmatpush2.msra.mxu0 0.0
    %3571 = vmatprep.subr.mxu0 0.0
    %3572 = vmatpush2.msra.mxu0 0.0
    %3573 = vmatprep.subr.mxu0 0.0
    %3574 = vmatpush2.msra.mxu0 0.0
    %3575 = vmatprep.subr.mxu0 0.0
    %3576 = vmatpush2.msra.mxu0 0.0
    %3577 = vmatprep.subr.mxu0 0.0
    %3578 = vmatpush2.msra.mxu0 0.0
    %3579 = vmatprep.subr.mxu0 0.0
    %3580 = vmatpush2.msra.mxu0 0.0
    %3581 = vmatprep.subr.mxu0 0.0
    %3582 = vmatpush2.msra.mxu0 0.0
    %3583 = vmatprep.subr.mxu0 0.0
    %3584 = vmatpush2.msra.mxu0 0.0
    %3585 = vmatprep.subr.mxu0 0.0
    %3586 = vmatpush2.msra.mxu0 0.0
    %3587 = vmatprep.mubr.f32.mxu0 0.0
    %v3588 = vand.u32 %v2952, 4294901760
    %3589 = vmatmul.mubr.f32.gmra.mxu0 %v3588
    %v3590 = vpop.f32.mrf.mxu0
    %v3591 = vadd.f32 %v3504, %v3590
    %v3592 = vpop.f32.mrf.mxu0
    %3593 = vdwg.mxu0
    %v3594 = vadd.f32 %v998, %v3591
    %v3595 = vtanh.pop %v3594
    %3596 = vmatprep.subr.mxu0 0.0
    %v3597 = vand.u32 %v1036, 4294901760
    %3598 = vmatpush1.msra.mxu0 %v3597
    %3599 = vmatprep.subr.mxu0 0.0
    %v3600 = vand.u32 %v1035, 4294901760
    %3601 = vmatpush1.msra.mxu0 %v3600
    %3602 = vmatprep.subr.mxu0 0.0
    %v3603 = vand.u32 %v1034, 4294901760
    %3604 = vmatpush1.msra.mxu0 %v3603
    %3605 = vmatprep.subr.mxu0 0.0
    %v3606 = vand.u32 %v1033, 4294901760
    %3607 = vmatpush1.msra.mxu0 %v3606
    %3608 = vmatprep.subr.mxu0 0.0
    %v3609 = vand.u32 %v1032, 4294901760
    %3610 = vmatpush1.msra.mxu0 %v3609
    %3611 = vmatprep.subr.mxu0 0.0
    %v3612 = vand.u32 %v1031, 4294901760
    %3613 = vmatpush1.msra.mxu0 %v3612
    %3614 = vmatprep.subr.mxu0 0.0
    %v3615 = vand.u32 %v1030, 4294901760
    %3616 = vmatpush1.msra.mxu0 %v3615
    %3617 = vmatprep.subr.mxu0 0.0
    %v3618 = vand.u32 %v1029, 4294901760
    %3619 = vmatpush1.msra.mxu0 %v3618
    %3620 = vmatprep.subr.mxu0 0.0
    %v3621 = vand.u32 %v1028, 4294901760
    %3622 = vmatpush1.msra.mxu0 %v3621
    %3623 = vmatprep.subr.mxu0 0.0
    %v3624 = vand.u32 %v1027, 4294901760
    %3625 = vmatpush1.msra.mxu0 %v3624
    %3626 = vmatprep.subr.mxu0 0.0
    %v3627 = vand.u32 %v1026, 4294901760
    %3628 = vmatpush1.msra.mxu0 %v3627
    %3629 = vmatprep.subr.mxu0 0.0
    %v3630 = vand.u32 %v1025, 4294901760
    %3631 = vmatpush1.msra.mxu0 %v3630
    %3632 = vmatprep.subr.mxu0 0.0
    %v3633 = vand.u32 %v1024, 4294901760
    %3634 = vmatpush1.msra.mxu0 %v3633
    %3635 = vmatprep.subr.mxu0 0.0
    %v3636 = vand.u32 %v1023, 4294901760
    %3637 = vmatpush1.msra.mxu0 %v3636
    %3638 = vmatprep.subr.mxu0 0.0
    %v3639 = vand.u32 %v1022, 4294901760
    %3640 = vmatpush1.msra.mxu0 %v3639
    %3641 = vmatprep.subr.mxu0 0.0
    %v3642 = vand.u32 %v1021, 4294901760
    %3643 = vmatpush1.msra.mxu0 %v3642
    %3644 = vmatprep.subr.mxu0 0.0
    %3645 = vmatpush2.msra.mxu0 0.0
    %3646 = vmatprep.subr.mxu0 0.0
    %3647 = vmatpush2.msra.mxu0 0.0
    %3648 = vmatprep.subr.mxu0 0.0
    %3649 = vmatpush2.msra.mxu0 0.0
    %3650 = vmatprep.subr.mxu0 0.0
    %3651 = vmatpush2.msra.mxu0 0.0
    %3652 = vmatprep.subr.mxu0 0.0
    %3653 = vmatpush2.msra.mxu0 0.0
    %3654 = vmatprep.subr.mxu0 0.0
    %3655 = vmatpush2.msra.mxu0 0.0
    %3656 = vmatprep.subr.mxu0 0.0
    %3657 = vmatpush2.msra.mxu0 0.0
    %3658 = vmatprep.subr.mxu0 0.0
    %3659 = vmatpush2.msra.mxu0 0.0
    %3660 = vmatprep.subr.mxu0 0.0
    %3661 = vmatpush2.msra.mxu0 0.0
    %3662 = vmatprep.subr.mxu0 0.0
    %3663 = vmatpush2.msra.mxu0 0.0
    %3664 = vmatprep.subr.mxu0 0.0
    %3665 = vmatpush2.msra.mxu0 0.0
    %3666 = vmatprep.subr.mxu0 0.0
    %3667 = vmatpush2.msra.mxu0 0.0
    %3668 = vmatprep.subr.mxu0 0.0
    %3669 = vmatpush2.msra.mxu0 0.0
    %3670 = vmatprep.subr.mxu0 0.0
    %3671 = vmatpush2.msra.mxu0 0.0
    %3672 = vmatprep.subr.mxu0 0.0
    %3673 = vmatpush2.msra.mxu0 0.0
    %3674 = vmatprep.subr.mxu0 0.0
    %3675 = vmatpush2.msra.mxu0 0.0
    %3676 = vmatprep.mubr.f32.mxu0 0.0
    %v3677 = vand.u32 %v3595, 4294901760
    %v3678 = vsub.f32 %v3595, %v3677
    %v3679 = vand.u32 %v3678, 4294901760
    %v3680 = vsub.f32 %v3678, %v3679
    %v3681 = vand.u32 %v3680, 4294901760
    %3682 = vmatmul.mubr.f32.gmra.mxu0 %v3681
    %v3683 = vpop.f32.mrf.mxu0
    %v3684 = vadd.f32 0.0, %v3683
    %v3685 = vpop.f32.mrf.mxu0
    %3686 = vdwg.mxu0
    %3687 = vmatprep.subr.mxu0 0.0
    %v3688 = vand.u32 %v1036, 4294901760
    %v3689 = vsub.f32 %v1036, %v3688
    %v3690 = vand.u32 %v3689, 4294901760
    %v3691 = vsub.f32 %v3689, %v3690
    %v3692 = vand.u32 %v3691, 4294901760
    %3693 = vmatpush1.msra.mxu0 %v3692
    %3694 = vmatprep.subr.mxu0 0.0
    %v3695 = vand.u32 %v1035, 4294901760
    %v3696 = vsub.f32 %v1035, %v3695
    %v3697 = vand.u32 %v3696, 4294901760
    %v3698 = vsub.f32 %v3696, %v3697
    %v3699 = vand.u32 %v3698, 4294901760
    %3700 = vmatpush1.msra.mxu0 %v3699
    %3701 = vmatprep.subr.mxu0 0.0
    %v3702 = vand.u32 %v1034, 4294901760
    %v3703 = vsub.f32 %v1034, %v3702
    %v3704 = vand.u32 %v3703, 4294901760
    %v3705 = vsub.f32 %v3703, %v3704
    %v3706 = vand.u32 %v3705, 4294901760
    %3707 = vmatpush1.msra.mxu0 %v3706
    %3708 = vmatprep.subr.mxu0 0.0
    %v3709 = vand.u32 %v1033, 4294901760
    %v3710 = vsub.f32 %v1033, %v3709
    %v3711 = vand.u32 %v3710, 4294901760
    %v3712 = vsub.f32 %v3710, %v3711
    %v3713 = vand.u32 %v3712, 4294901760
    %3714 = vmatpush1.msra.mxu0 %v3713
    %3715 = vmatprep.subr.mxu0 0.0
    %v3716 = vand.u32 %v1032, 4294901760
    %v3717 = vsub.f32 %v1032, %v3716
    %v3718 = vand.u32 %v3717, 4294901760
    %v3719 = vsub.f32 %v3717, %v3718
    %v3720 = vand.u32 %v3719, 4294901760
    %3721 = vmatpush1.msra.mxu0 %v3720
    %3722 = vmatprep.subr.mxu0 0.0
    %v3723 = vand.u32 %v1031, 4294901760
    %v3724 = vsub.f32 %v1031, %v3723
    %v3725 = vand.u32 %v3724, 4294901760
    %v3726 = vsub.f32 %v3724, %v3725
    %v3727 = vand.u32 %v3726, 4294901760
    %3728 = vmatpush1.msra.mxu0 %v3727
    %3729 = vmatprep.subr.mxu0 0.0
    %v3730 = vand.u32 %v1030, 4294901760
    %v3731 = vsub.f32 %v1030, %v3730
    %v3732 = vand.u32 %v3731, 4294901760
    %v3733 = vsub.f32 %v3731, %v3732
    %v3734 = vand.u32 %v3733, 4294901760
    %3735 = vmatpush1.msra.mxu0 %v3734
    %3736 = vmatprep.subr.mxu0 0.0
    %v3737 = vand.u32 %v1029, 4294901760
    %v3738 = vsub.f32 %v1029, %v3737
    %v3739 = vand.u32 %v3738, 4294901760
    %v3740 = vsub.f32 %v3738, %v3739
    %v3741 = vand.u32 %v3740, 4294901760
    %3742 = vmatpush1.msra.mxu0 %v3741
    %3743 = vmatprep.subr.mxu0 0.0
    %v3744 = vand.u32 %v1028, 4294901760
    %v3745 = vsub.f32 %v1028, %v3744
    %v3746 = vand.u32 %v3745, 4294901760
    %v3747 = vsub.f32 %v3745, %v3746
    %v3748 = vand.u32 %v3747, 4294901760
    %3749 = vmatpush1.msra.mxu0 %v3748
    %3750 = vmatprep.subr.mxu0 0.0
    %v3751 = vand.u32 %v1027, 4294901760
    %v3752 = vsub.f32 %v1027, %v3751
    %v3753 = vand.u32 %v3752, 4294901760
    %v3754 = vsub.f32 %v3752, %v3753
    %v3755 = vand.u32 %v3754, 4294901760
    %3756 = vmatpush1.msra.mxu0 %v3755
    %3757 = vmatprep.subr.mxu0 0.0
    %v3758 = vand.u32 %v1026, 4294901760
    %v3759 = vsub.f32 %v1026, %v3758
    %v3760 = vand.u32 %v3759, 4294901760
    %v3761 = vsub.f32 %v3759, %v3760
    %v3762 = vand.u32 %v3761, 4294901760
    %3763 = vmatpush1.msra.mxu0 %v3762
    %3764 = vmatprep.subr.mxu0 0.0
    %v3765 = vand.u32 %v1025, 4294901760
    %v3766 = vsub.f32 %v1025, %v3765
    %v3767 = vand.u32 %v3766, 4294901760
    %v3768 = vsub.f32 %v3766, %v3767
    %v3769 = vand.u32 %v3768, 4294901760
    %3770 = vmatpush1.msra.mxu0 %v3769
    %3771 = vmatprep.subr.mxu0 0.0
    %v3772 = vand.u32 %v1024, 4294901760
    %v3773 = vsub.f32 %v1024, %v3772
    %v3774 = vand.u32 %v3773, 4294901760
    %v3775 = vsub.f32 %v3773, %v3774
    %v3776 = vand.u32 %v3775, 4294901760
    %3777 = vmatpush1.msra.mxu0 %v3776
    %3778 = vmatprep.subr.mxu0 0.0
    %v3779 = vand.u32 %v1023, 4294901760
    %v3780 = vsub.f32 %v1023, %v3779
    %v3781 = vand.u32 %v3780, 4294901760
    %v3782 = vsub.f32 %v3780, %v3781
    %v3783 = vand.u32 %v3782, 4294901760
    %3784 = vmatpush1.msra.mxu0 %v3783
    %3785 = vmatprep.subr.mxu0 0.0
    %v3786 = vand.u32 %v1022, 4294901760
    %v3787 = vsub.f32 %v1022, %v3786
    %v3788 = vand.u32 %v3787, 4294901760
    %v3789 = vsub.f32 %v3787, %v3788
    %v3790 = vand.u32 %v3789, 4294901760
    %3791 = vmatpush1.msra.mxu0 %v3790
    %3792 = vmatprep.subr.mxu0 0.0
    %v3793 = vand.u32 %v1021, 4294901760
    %v3794 = vsub.f32 %v1021, %v3793
    %v3795 = vand.u32 %v3794, 4294901760
    %v3796 = vsub.f32 %v3794, %v3795
    %v3797 = vand.u32 %v3796, 4294901760
    %3798 = vmatpush1.msra.mxu0 %v3797
    %3799 = vmatprep.subr.mxu0 0.0
    %3800 = vmatpush2.msra.mxu0 0.0
    %3801 = vmatprep.subr.mxu0 0.0
    %3802 = vmatpush2.msra.mxu0 0.0
    %3803 = vmatprep.subr.mxu0 0.0
    %3804 = vmatpush2.msra.mxu0 0.0
    %3805 = vmatprep.subr.mxu0 0.0
    %3806 = vmatpush2.msra.mxu0 0.0
    %3807 = vmatprep.subr.mxu0 0.0
    %3808 = vmatpush2.msra.mxu0 0.0
    %3809 = vmatprep.subr.mxu0 0.0
    %3810 = vmatpush2.msra.mxu0 0.0
    %3811 = vmatprep.subr.mxu0 0.0
    %3812 = vmatpush2.msra.mxu0 0.0
    %3813 = vmatprep.subr.mxu0 0.0
    %3814 = vmatpush2.msra.mxu0 0.0
    %3815 = vmatprep.subr.mxu0 0.0
    %3816 = vmatpush2.msra.mxu0 0.0
    %3817 = vmatprep.subr.mxu0 0.0
    %3818 = vmatpush2.msra.mxu0 0.0
    %3819 = vmatprep.subr.mxu0 0.0
    %3820 = vmatpush2.msra.mxu0 0.0
    %3821 = vmatprep.subr.mxu0 0.0
    %3822 = vmatpush2.msra.mxu0 0.0
    %3823 = vmatprep.subr.mxu0 0.0
    %3824 = vmatpush2.msra.mxu0 0.0
    %3825 = vmatprep.subr.mxu0 0.0
    %3826 = vmatpush2.msra.mxu0 0.0
    %3827 = vmatprep.subr.mxu0 0.0
    %3828 = vmatpush2.msra.mxu0 0.0
    %3829 = vmatprep.subr.mxu0 0.0
    %3830 = vmatpush2.msra.mxu0 0.0
    %3831 = vmatprep.mubr.f32.mxu0 0.0
    %v3832 = vand.u32 %v3595, 4294901760
    %3833 = vmatmul.mubr.f32.gmra.mxu0 %v3832
    %v3834 = vpop.f32.mrf.mxu0
    %v3835 = vadd.f32 %v3684, %v3834
    %v3836 = vpop.f32.mrf.mxu0
    %3837 = vdwg.mxu0
    %3838 = vmatprep.subr.mxu0 0.0
    %v3839 = vand.u32 %v1036, 4294901760
    %v3840 = vsub.f32 %v1036, %v3839
    %3841 = vmatpush1.msra.mxu0 %v3840
    %3842 = vmatprep.subr.mxu0 0.0
    %v3843 = vand.u32 %v1035, 4294901760
    %v3844 = vsub.f32 %v1035, %v3843
    %3845 = vmatpush1.msra.mxu0 %v3844
    %3846 = vmatprep.subr.mxu0 0.0
    %v3847 = vand.u32 %v1034, 4294901760
    %v3848 = vsub.f32 %v1034, %v3847
    %3849 = vmatpush1.msra.mxu0 %v3848
    %3850 = vmatprep.subr.mxu0 0.0
    %v3851 = vand.u32 %v1033, 4294901760
    %v3852 = vsub.f32 %v1033, %v3851
    %3853 = vmatpush1.msra.mxu0 %v3852
    %3854 = vmatprep.subr.mxu0 0.0
    %v3855 = vand.u32 %v1032, 4294901760
    %v3856 = vsub.f32 %v1032, %v3855
    %3857 = vmatpush1.msra.mxu0 %v3856
    %3858 = vmatprep.subr.mxu0 0.0
    %v3859 = vand.u32 %v1031, 4294901760
    %v3860 = vsub.f32 %v1031, %v3859
    %3861 = vmatpush1.msra.mxu0 %v3860
    %3862 = vmatprep.subr.mxu0 0.0
    %v3863 = vand.u32 %v1030, 4294901760
    %v3864 = vsub.f32 %v1030, %v3863
    %3865 = vmatpush1.msra.mxu0 %v3864
    %3866 = vmatprep.subr.mxu0 0.0
    %v3867 = vand.u32 %v1029, 4294901760
    %v3868 = vsub.f32 %v1029, %v3867
    %3869 = vmatpush1.msra.mxu0 %v3868
    %3870 = vmatprep.subr.mxu0 0.0
    %v3871 = vand.u32 %v1028, 4294901760
    %v3872 = vsub.f32 %v1028, %v3871
    %3873 = vmatpush1.msra.mxu0 %v3872
    %3874 = vmatprep.subr.mxu0 0.0
    %v3875 = vand.u32 %v1027, 4294901760
    %v3876 = vsub.f32 %v1027, %v3875
    %3877 = vmatpush1.msra.mxu0 %v3876
    %3878 = vmatprep.subr.mxu0 0.0
    %v3879 = vand.u32 %v1026, 4294901760
    %v3880 = vsub.f32 %v1026, %v3879
    %3881 = vmatpush1.msra.mxu0 %v3880
    %3882 = vmatprep.subr.mxu0 0.0
    %v3883 = vand.u32 %v1025, 4294901760
    %v3884 = vsub.f32 %v1025, %v3883
    %3885 = vmatpush1.msra.mxu0 %v3884
    %3886 = vmatprep.subr.mxu0 0.0
    %v3887 = vand.u32 %v1024, 4294901760
    %v3888 = vsub.f32 %v1024, %v3887
    %3889 = vmatpush1.msra.mxu0 %v3888
    %3890 = vmatprep.subr.mxu0 0.0
    %v3891 = vand.u32 %v1023, 4294901760
    %v3892 = vsub.f32 %v1023, %v3891
    %3893 = vmatpush1.msra.mxu0 %v3892
    %3894 = vmatprep.subr.mxu0 0.0
    %v3895 = vand.u32 %v1022, 4294901760
    %v3896 = vsub.f32 %v1022, %v3895
    %3897 = vmatpush1.msra.mxu0 %v3896
    %3898 = vmatprep.subr.mxu0 0.0
    %v3899 = vand.u32 %v1021, 4294901760
    %v3900 = vsub.f32 %v1021, %v3899
    %3901 = vmatpush1.msra.mxu0 %v3900
    %3902 = vmatprep.subr.mxu0 0.0
    %3903 = vmatpush2.msra.mxu0 0.0
    %3904 = vmatprep.subr.mxu0 0.0
    %3905 = vmatpush2.msra.mxu0 0.0
    %3906 = vmatprep.subr.mxu0 0.0
    %3907 = vmatpush2.msra.mxu0 0.0
    %3908 = vmatprep.subr.mxu0 0.0
    %3909 = vmatpush2.msra.mxu0 0.0
    %3910 = vmatprep.subr.mxu0 0.0
    %3911 = vmatpush2.msra.mxu0 0.0
    %3912 = vmatprep.subr.mxu0 0.0
    %3913 = vmatpush2.msra.mxu0 0.0
    %3914 = vmatprep.subr.mxu0 0.0
    %3915 = vmatpush2.msra.mxu0 0.0
    %3916 = vmatprep.subr.mxu0 0.0
    %3917 = vmatpush2.msra.mxu0 0.0
    %3918 = vmatprep.subr.mxu0 0.0
    %3919 = vmatpush2.msra.mxu0 0.0
    %3920 = vmatprep.subr.mxu0 0.0
    %3921 = vmatpush2.msra.mxu0 0.0
    %3922 = vmatprep.subr.mxu0 0.0
    %3923 = vmatpush2.msra.mxu0 0.0
    %3924 = vmatprep.subr.mxu0 0.0
    %3925 = vmatpush2.msra.mxu0 0.0
    %3926 = vmatprep.subr.mxu0 0.0
    %3927 = vmatpush2.msra.mxu0 0.0
    %3928 = vmatprep.subr.mxu0 0.0
    %3929 = vmatpush2.msra.mxu0 0.0
    %3930 = vmatprep.subr.mxu0 0.0
    %3931 = vmatpush2.msra.mxu0 0.0
    %3932 = vmatprep.subr.mxu0 0.0
    %3933 = vmatpush2.msra.mxu0 0.0
    %3934 = vmatprep.mubr.f32.mxu0 0.0
    %v3935 = vand.u32 %v3595, 4294901760
    %v3936 = vsub.f32 %v3595, %v3935
    %3937 = vmatmul.mubr.f32.gmra.mxu0 %v3936
    %v3938 = vpop.f32.mrf.mxu0
    %v3939 = vadd.f32 %v3835, %v3938
    %v3940 = vpop.f32.mrf.mxu0
    %3941 = vdwg.mxu0
    %3942 = vmatprep.subr.mxu0 0.0
    %v3943 = vand.u32 %v1036, 4294901760
    %3944 = vmatpush1.msra.mxu0 %v3943
    %3945 = vmatprep.subr.mxu0 0.0
    %v3946 = vand.u32 %v1035, 4294901760
    %3947 = vmatpush1.msra.mxu0 %v3946
    %3948 = vmatprep.subr.mxu0 0.0
    %v3949 = vand.u32 %v1034, 4294901760
    %3950 = vmatpush1.msra.mxu0 %v3949
    %3951 = vmatprep.subr.mxu0 0.0
    %v3952 = vand.u32 %v1033, 4294901760
    %3953 = vmatpush1.msra.mxu0 %v3952
    %3954 = vmatprep.subr.mxu0 0.0
    %v3955 = vand.u32 %v1032, 4294901760
    %3956 = vmatpush1.msra.mxu0 %v3955
    %3957 = vmatprep.subr.mxu0 0.0
    %v3958 = vand.u32 %v1031, 4294901760
    %3959 = vmatpush1.msra.mxu0 %v3958
    %3960 = vmatprep.subr.mxu0 0.0
    %v3961 = vand.u32 %v1030, 4294901760
    %3962 = vmatpush1.msra.mxu0 %v3961
    %3963 = vmatprep.subr.mxu0 0.0
    %v3964 = vand.u32 %v1029, 4294901760
    %3965 = vmatpush1.msra.mxu0 %v3964
    %3966 = vmatprep.subr.mxu0 0.0
    %v3967 = vand.u32 %v1028, 4294901760
    %3968 = vmatpush1.msra.mxu0 %v3967
    %3969 = vmatprep.subr.mxu0 0.0
    %v3970 = vand.u32 %v1027, 4294901760
    %3971 = vmatpush1.msra.mxu0 %v3970
    %3972 = vmatprep.subr.mxu0 0.0
    %v3973 = vand.u32 %v1026, 4294901760
    %3974 = vmatpush1.msra.mxu0 %v3973
    %3975 = vmatprep.subr.mxu0 0.0
    %v3976 = vand.u32 %v1025, 4294901760
    %3977 = vmatpush1.msra.mxu0 %v3976
    %3978 = vmatprep.subr.mxu0 0.0
    %v3979 = vand.u32 %v1024, 4294901760
    %3980 = vmatpush1.msra.mxu0 %v3979
    %3981 = vmatprep.subr.mxu0 0.0
    %v3982 = vand.u32 %v1023, 4294901760
    %3983 = vmatpush1.msra.mxu0 %v3982
    %3984 = vmatprep.subr.mxu0 0.0
    %v3985 = vand.u32 %v1022, 4294901760
    %3986 = vmatpush1.msra.mxu0 %v3985
    %3987 = vmatprep.subr.mxu0 0.0
    %v3988 = vand.u32 %v1021, 4294901760
    %3989 = vmatpush1.msra.mxu0 %v3988
    %3990 = vmatprep.subr.mxu0 0.0
    %3991 = vmatpush2.msra.mxu0 0.0
    %3992 = vmatprep.subr.mxu0 0.0
    %3993 = vmatpush2.msra.mxu0 0.0
    %3994 = vmatprep.subr.mxu0 0.0
    %3995 = vmatpush2.msra.mxu0 0.0
    %3996 = vmatprep.subr.mxu0 0.0
    %3997 = vmatpush2.msra.mxu0 0.0
    %3998 = vmatprep.subr.mxu0 0.0
    %3999 = vmatpush2.msra.mxu0 0.0
    %4000 = vmatprep.subr.mxu0 0.0
    %4001 = vmatpush2.msra.mxu0 0.0
    %4002 = vmatprep.subr.mxu0 0.0
    %4003 = vmatpush2.msra.mxu0 0.0
    %4004 = vmatprep.subr.mxu0 0.0
    %4005 = vmatpush2.msra.mxu0 0.0
    %4006 = vmatprep.subr.mxu0 0.0
    %4007 = vmatpush2.msra.mxu0 0.0
    %4008 = vmatprep.subr.mxu0 0.0
    %4009 = vmatpush2.msra.mxu0 0.0
    %4010 = vmatprep.subr.mxu0 0.0
    %4011 = vmatpush2.msra.mxu0 0.0
    %4012 = vmatprep.subr.mxu0 0.0
    %4013 = vmatpush2.msra.mxu0 0.0
    %4014 = vmatprep.subr.mxu0 0.0
    %4015 = vmatpush2.msra.mxu0 0.0
    %4016 = vmatprep.subr.mxu0 0.0
    %4017 = vmatpush2.msra.mxu0 0.0
    %4018 = vmatprep.subr.mxu0 0.0
    %4019 = vmatpush2.msra.mxu0 0.0
    %4020 = vmatprep.subr.mxu0 0.0
    %4021 = vmatpush2.msra.mxu0 0.0
    %4022 = vmatprep.mubr.f32.mxu0 0.0
    %v4023 = vand.u32 %v3595, 4294901760
    %v4024 = vsub.f32 %v3595, %v4023
    %v4025 = vand.u32 %v4024, 4294901760
    %4026 = vmatmul.mubr.f32.gmra.mxu0 %v4025
    %v4027 = vpop.f32.mrf.mxu0
    %v4028 = vadd.f32 %v3939, %v4027
    %v4029 = vpop.f32.mrf.mxu0
    %4030 = vdwg.mxu0
    %4031 = vmatprep.subr.mxu0 0.0
    %v4032 = vand.u32 %v1036, 4294901760
    %v4033 = vsub.f32 %v1036, %v4032
    %v4034 = vand.u32 %v4033, 4294901760
    %4035 = vmatpush1.msra.mxu0 %v4034
    %4036 = vmatprep.subr.mxu0 0.0
    %v4037 = vand.u32 %v1035, 4294901760
    %v4038 = vsub.f32 %v1035, %v4037
    %v4039 = vand.u32 %v4038, 4294901760
    %4040 = vmatpush1.msra.mxu0 %v4039
    %4041 = vmatprep.subr.mxu0 0.0
    %v4042 = vand.u32 %v1034, 4294901760
    %v4043 = vsub.f32 %v1034, %v4042
    %v4044 = vand.u32 %v4043, 4294901760
    %4045 = vmatpush1.msra.mxu0 %v4044
    %4046 = vmatprep.subr.mxu0 0.0
    %v4047 = vand.u32 %v1033, 4294901760
    %v4048 = vsub.f32 %v1033, %v4047
    %v4049 = vand.u32 %v4048, 4294901760
    %4050 = vmatpush1.msra.mxu0 %v4049
    %4051 = vmatprep.subr.mxu0 0.0
    %v4052 = vand.u32 %v1032, 4294901760
    %v4053 = vsub.f32 %v1032, %v4052
    %v4054 = vand.u32 %v4053, 4294901760
    %4055 = vmatpush1.msra.mxu0 %v4054
    %4056 = vmatprep.subr.mxu0 0.0
    %v4057 = vand.u32 %v1031, 4294901760
    %v4058 = vsub.f32 %v1031, %v4057
    %v4059 = vand.u32 %v4058, 4294901760
    %4060 = vmatpush1.msra.mxu0 %v4059
    %4061 = vmatprep.subr.mxu0 0.0
    %v4062 = vand.u32 %v1030, 4294901760
    %v4063 = vsub.f32 %v1030, %v4062
    %v4064 = vand.u32 %v4063, 4294901760
    %4065 = vmatpush1.msra.mxu0 %v4064
    %4066 = vmatprep.subr.mxu0 0.0
    %v4067 = vand.u32 %v1029, 4294901760
    %v4068 = vsub.f32 %v1029, %v4067
    %v4069 = vand.u32 %v4068, 4294901760
    %4070 = vmatpush1.msra.mxu0 %v4069
    %4071 = vmatprep.subr.mxu0 0.0
    %v4072 = vand.u32 %v1028, 4294901760
    %v4073 = vsub.f32 %v1028, %v4072
    %v4074 = vand.u32 %v4073, 4294901760
    %4075 = vmatpush1.msra.mxu0 %v4074
    %4076 = vmatprep.subr.mxu0 0.0
    %v4077 = vand.u32 %v1027, 4294901760
    %v4078 = vsub.f32 %v1027, %v4077
    %v4079 = vand.u32 %v4078, 4294901760
    %4080 = vmatpush1.msra.mxu0 %v4079
    %4081 = vmatprep.subr.mxu0 0.0
    %v4082 = vand.u32 %v1026, 4294901760
    %v4083 = vsub.f32 %v1026, %v4082
    %v4084 = vand.u32 %v4083, 4294901760
    %4085 = vmatpush1.msra.mxu0 %v4084
    %4086 = vmatprep.subr.mxu0 0.0
    %v4087 = vand.u32 %v1025, 4294901760
    %v4088 = vsub.f32 %v1025, %v4087
    %v4089 = vand.u32 %v4088, 4294901760
    %4090 = vmatpush1.msra.mxu0 %v4089
    %4091 = vmatprep.subr.mxu0 0.0
    %v4092 = vand.u32 %v1024, 4294901760
    %v4093 = vsub.f32 %v1024, %v4092
    %v4094 = vand.u32 %v4093, 4294901760
    %4095 = vmatpush1.msra.mxu0 %v4094
    %4096 = vmatprep.subr.mxu0 0.0
    %v4097 = vand.u32 %v1023, 4294901760
    %v4098 = vsub.f32 %v1023, %v4097
    %v4099 = vand.u32 %v4098, 4294901760
    %4100 = vmatpush1.msra.mxu0 %v4099
    %4101 = vmatprep.subr.mxu0 0.0
    %v4102 = vand.u32 %v1022, 4294901760
    %v4103 = vsub.f32 %v1022, %v4102
    %v4104 = vand.u32 %v4103, 4294901760
    %4105 = vmatpush1.msra.mxu0 %v4104
    %4106 = vmatprep.subr.mxu0 0.0
    %v4107 = vand.u32 %v1021, 4294901760
    %v4108 = vsub.f32 %v1021, %v4107
    %v4109 = vand.u32 %v4108, 4294901760
    %4110 = vmatpush1.msra.mxu0 %v4109
    %4111 = vmatprep.subr.mxu0 0.0
    %4112 = vmatpush2.msra.mxu0 0.0
    %4113 = vmatprep.subr.mxu0 0.0
    %4114 = vmatpush2.msra.mxu0 0.0
    %4115 = vmatprep.subr.mxu0 0.0
    %4116 = vmatpush2.msra.mxu0 0.0
    %4117 = vmatprep.subr.mxu0 0.0
    %4118 = vmatpush2.msra.mxu0 0.0
    %4119 = vmatprep.subr.mxu0 0.0
    %4120 = vmatpush2.msra.mxu0 0.0
    %4121 = vmatprep.subr.mxu0 0.0
    %4122 = vmatpush2.msra.mxu0 0.0
    %4123 = vmatprep.subr.mxu0 0.0
    %4124 = vmatpush2.msra.mxu0 0.0
    %4125 = vmatprep.subr.mxu0 0.0
    %4126 = vmatpush2.msra.mxu0 0.0
    %4127 = vmatprep.subr.mxu0 0.0
    %4128 = vmatpush2.msra.mxu0 0.0
    %4129 = vmatprep.subr.mxu0 0.0
    %4130 = vmatpush2.msra.mxu0 0.0
    %4131 = vmatprep.subr.mxu0 0.0
    %4132 = vmatpush2.msra.mxu0 0.0
    %4133 = vmatprep.subr.mxu0 0.0
    %4134 = vmatpush2.msra.mxu0 0.0
    %4135 = vmatprep.subr.mxu0 0.0
    %4136 = vmatpush2.msra.mxu0 0.0
    %4137 = vmatprep.subr.mxu0 0.0
    %4138 = vmatpush2.msra.mxu0 0.0
    %4139 = vmatprep.subr.mxu0 0.0
    %4140 = vmatpush2.msra.mxu0 0.0
    %4141 = vmatprep.subr.mxu0 0.0
    %4142 = vmatpush2.msra.mxu0 0.0
    %4143 = vmatprep.mubr.f32.mxu0 0.0
    %v4144 = vand.u32 %v3595, 4294901760
    %4145 = vmatmul.mubr.f32.gmra.mxu0 %v4144
    %v4146 = vpop.f32.mrf.mxu0
    %v4147 = vadd.f32 %v4028, %v4146
    %v4148 = vpop.f32.mrf.mxu0
    %4149 = vdwg.mxu0
    %4150 = vmatprep.subr.mxu0 0.0
    %v4151 = vand.u32 %v1036, 4294901760
    %4152 = vmatpush1.msra.mxu0 %v4151
    %4153 = vmatprep.subr.mxu0 0.0
    %v4154 = vand.u32 %v1035, 4294901760
    %4155 = vmatpush1.msra.mxu0 %v4154
    %4156 = vmatprep.subr.mxu0 0.0
    %v4157 = vand.u32 %v1034, 4294901760
    %4158 = vmatpush1.msra.mxu0 %v4157
    %4159 = vmatprep.subr.mxu0 0.0
    %v4160 = vand.u32 %v1033, 4294901760
    %4161 = vmatpush1.msra.mxu0 %v4160
    %4162 = vmatprep.subr.mxu0 0.0
    %v4163 = vand.u32 %v1032, 4294901760
    %4164 = vmatpush1.msra.mxu0 %v4163
    %4165 = vmatprep.subr.mxu0 0.0
    %v4166 = vand.u32 %v1031, 4294901760
    %4167 = vmatpush1.msra.mxu0 %v4166
    %4168 = vmatprep.subr.mxu0 0.0
    %v4169 = vand.u32 %v1030, 4294901760
    %4170 = vmatpush1.msra.mxu0 %v4169
    %4171 = vmatprep.subr.mxu0 0.0
    %v4172 = vand.u32 %v1029, 4294901760
    %4173 = vmatpush1.msra.mxu0 %v4172
    %4174 = vmatprep.subr.mxu0 0.0
    %v4175 = vand.u32 %v1028, 4294901760
    %4176 = vmatpush1.msra.mxu0 %v4175
    %4177 = vmatprep.subr.mxu0 0.0
    %v4178 = vand.u32 %v1027, 4294901760
    %4179 = vmatpush1.msra.mxu0 %v4178
    %4180 = vmatprep.subr.mxu0 0.0
    %v4181 = vand.u32 %v1026, 4294901760
    %4182 = vmatpush1.msra.mxu0 %v4181
    %4183 = vmatprep.subr.mxu0 0.0
    %v4184 = vand.u32 %v1025, 4294901760
    %4185 = vmatpush1.msra.mxu0 %v4184
    %4186 = vmatprep.subr.mxu0 0.0
    %v4187 = vand.u32 %v1024, 4294901760
    %4188 = vmatpush1.msra.mxu0 %v4187
    %4189 = vmatprep.subr.mxu0 0.0
    %v4190 = vand.u32 %v1023, 4294901760
    %4191 = vmatpush1.msra.mxu0 %v4190
    %4192 = vmatprep.subr.mxu0 0.0
    %v4193 = vand.u32 %v1022, 4294901760
    %4194 = vmatpush1.msra.mxu0 %v4193
    %4195 = vmatprep.subr.mxu0 0.0
    %v4196 = vand.u32 %v1021, 4294901760
    %4197 = vmatpush1.msra.mxu0 %v4196
    %4198 = vmatprep.subr.mxu0 0.0
    %4199 = vmatpush2.msra.mxu0 0.0
    %4200 = vmatprep.subr.mxu0 0.0
    %4201 = vmatpush2.msra.mxu0 0.0
    %4202 = vmatprep.subr.mxu0 0.0
    %4203 = vmatpush2.msra.mxu0 0.0
    %4204 = vmatprep.subr.mxu0 0.0
    %4205 = vmatpush2.msra.mxu0 0.0
    %4206 = vmatprep.subr.mxu0 0.0
    %4207 = vmatpush2.msra.mxu0 0.0
    %4208 = vmatprep.subr.mxu0 0.0
    %4209 = vmatpush2.msra.mxu0 0.0
    %4210 = vmatprep.subr.mxu0 0.0
    %4211 = vmatpush2.msra.mxu0 0.0
    %4212 = vmatprep.subr.mxu0 0.0
    %4213 = vmatpush2.msra.mxu0 0.0
    %4214 = vmatprep.subr.mxu0 0.0
    %4215 = vmatpush2.msra.mxu0 0.0
    %4216 = vmatprep.subr.mxu0 0.0
    %4217 = vmatpush2.msra.mxu0 0.0
    %4218 = vmatprep.subr.mxu0 0.0
    %4219 = vmatpush2.msra.mxu0 0.0
    %4220 = vmatprep.subr.mxu0 0.0
    %4221 = vmatpush2.msra.mxu0 0.0
    %4222 = vmatprep.subr.mxu0 0.0
    %4223 = vmatpush2.msra.mxu0 0.0
    %4224 = vmatprep.subr.mxu0 0.0
    %4225 = vmatpush2.msra.mxu0 0.0
    %4226 = vmatprep.subr.mxu0 0.0
    %4227 = vmatpush2.msra.mxu0 0.0
    %4228 = vmatprep.subr.mxu0 0.0
    %4229 = vmatpush2.msra.mxu0 0.0
    %4230 = vmatprep.mubr.f32.mxu0 0.0
    %v4231 = vand.u32 %v3595, 4294901760
    %4232 = vmatmul.mubr.f32.gmra.mxu0 %v4231
    %v4233 = vpop.f32.mrf.mxu0
    %v4234 = vadd.f32 %v4147, %v4233
    %v4235 = vpop.f32.mrf.mxu0
    %4236 = vdwg.mxu0
    %v4237 = vadd.f32 %v1003, %v4234
    %v4238 = vtanh.pop %v4237
    %4239 = vmatprep.subr.mxu0 0.0
    %v4240 = vand.u32 %v1036, 4294901760
    %4241 = vmatpush1.msra.mxu0 %v4240
    %4242 = vmatprep.subr.mxu0 0.0
    %v4243 = vand.u32 %v1035, 4294901760
    %4244 = vmatpush1.msra.mxu0 %v4243
    %4245 = vmatprep.subr.mxu0 0.0
    %v4246 = vand.u32 %v1034, 4294901760
    %4247 = vmatpush1.msra.mxu0 %v4246
    %4248 = vmatprep.subr.mxu0 0.0
    %v4249 = vand.u32 %v1033, 4294901760
    %4250 = vmatpush1.msra.mxu0 %v4249
    %4251 = vmatprep.subr.mxu0 0.0
    %v4252 = vand.u32 %v1032, 4294901760
    %4253 = vmatpush1.msra.mxu0 %v4252
    %4254 = vmatprep.subr.mxu0 0.0
    %v4255 = vand.u32 %v1031, 4294901760
    %4256 = vmatpush1.msra.mxu0 %v4255
    %4257 = vmatprep.subr.mxu0 0.0
    %v4258 = vand.u32 %v1030, 4294901760
    %4259 = vmatpush1.msra.mxu0 %v4258
    %4260 = vmatprep.subr.mxu0 0.0
    %v4261 = vand.u32 %v1029, 4294901760
    %4262 = vmatpush1.msra.mxu0 %v4261
    %4263 = vmatprep.subr.mxu0 0.0
    %v4264 = vand.u32 %v1028, 4294901760
    %4265 = vmatpush1.msra.mxu0 %v4264
    %4266 = vmatprep.subr.mxu0 0.0
    %v4267 = vand.u32 %v1027, 4294901760
    %4268 = vmatpush1.msra.mxu0 %v4267
    %4269 = vmatprep.subr.mxu0 0.0
    %v4270 = vand.u32 %v1026, 4294901760
    %4271 = vmatpush1.msra.mxu0 %v4270
    %4272 = vmatprep.subr.mxu0 0.0
    %v4273 = vand.u32 %v1025, 4294901760
    %4274 = vmatpush1.msra.mxu0 %v4273
    %4275 = vmatprep.subr.mxu0 0.0
    %v4276 = vand.u32 %v1024, 4294901760
    %4277 = vmatpush1.msra.mxu0 %v4276
    %4278 = vmatprep.subr.mxu0 0.0
    %v4279 = vand.u32 %v1023, 4294901760
    %4280 = vmatpush1.msra.mxu0 %v4279
    %4281 = vmatprep.subr.mxu0 0.0
    %v4282 = vand.u32 %v1022, 4294901760
    %4283 = vmatpush1.msra.mxu0 %v4282
    %4284 = vmatprep.subr.mxu0 0.0
    %v4285 = vand.u32 %v1021, 4294901760
    %4286 = vmatpush1.msra.mxu0 %v4285
    %4287 = vmatprep.subr.mxu0 0.0
    %4288 = vmatpush2.msra.mxu0 0.0
    %4289 = vmatprep.subr.mxu0 0.0
    %4290 = vmatpush2.msra.mxu0 0.0
    %4291 = vmatprep.subr.mxu0 0.0
    %4292 = vmatpush2.msra.mxu0 0.0
    %4293 = vmatprep.subr.mxu0 0.0
    %4294 = vmatpush2.msra.mxu0 0.0
    %4295 = vmatprep.subr.mxu0 0.0
    %4296 = vmatpush2.msra.mxu0 0.0
    %4297 = vmatprep.subr.mxu0 0.0
    %4298 = vmatpush2.msra.mxu0 0.0
    %4299 = vmatprep.subr.mxu0 0.0
    %4300 = vmatpush2.msra.mxu0 0.0
    %4301 = vmatprep.subr.mxu0 0.0
    %4302 = vmatpush2.msra.mxu0 0.0
    %4303 = vmatprep.subr.mxu0 0.0
    %4304 = vmatpush2.msra.mxu0 0.0
    %4305 = vmatprep.subr.mxu0 0.0
    %4306 = vmatpush2.msra.mxu0 0.0
    %4307 = vmatprep.subr.mxu0 0.0
    %4308 = vmatpush2.msra.mxu0 0.0
    %4309 = vmatprep.subr.mxu0 0.0
    %4310 = vmatpush2.msra.mxu0 0.0
    %4311 = vmatprep.subr.mxu0 0.0
    %4312 = vmatpush2.msra.mxu0 0.0
    %4313 = vmatprep.subr.mxu0 0.0
    %4314 = vmatpush2.msra.mxu0 0.0
    %4315 = vmatprep.subr.mxu0 0.0
    %4316 = vmatpush2.msra.mxu0 0.0
    %4317 = vmatprep.subr.mxu0 0.0
    %4318 = vmatpush2.msra.mxu0 0.0
    %4319 = vmatprep.mubr.f32.mxu0 0.0
    %v4320 = vand.u32 %v4238, 4294901760
    %v4321 = vsub.f32 %v4238, %v4320
    %v4322 = vand.u32 %v4321, 4294901760
    %v4323 = vsub.f32 %v4321, %v4322
    %v4324 = vand.u32 %v4323, 4294901760
    %4325 = vmatmul.mubr.f32.gmra.mxu0 %v4324
    %v4326 = vpop.f32.mrf.mxu0
    %v4327 = vadd.f32 0.0, %v4326
    %v4328 = vpop.f32.mrf.mxu0
    %4329 = vdwg.mxu0
    %4330 = vmatprep.subr.mxu0 0.0
    %v4331 = vand.u32 %v1036, 4294901760
    %v4332 = vsub.f32 %v1036, %v4331
    %v4333 = vand.u32 %v4332, 4294901760
    %v4334 = vsub.f32 %v4332, %v4333
    %v4335 = vand.u32 %v4334, 4294901760
    %4336 = vmatpush1.msra.mxu0 %v4335
    %4337 = vmatprep.subr.mxu0 0.0
    %v4338 = vand.u32 %v1035, 4294901760
    %v4339 = vsub.f32 %v1035, %v4338
    %v4340 = vand.u32 %v4339, 4294901760
    %v4341 = vsub.f32 %v4339, %v4340
    %v4342 = vand.u32 %v4341, 4294901760
    %4343 = vmatpush1.msra.mxu0 %v4342
    %4344 = vmatprep.subr.mxu0 0.0
    %v4345 = vand.u32 %v1034, 4294901760
    %v4346 = vsub.f32 %v1034, %v4345
    %v4347 = vand.u32 %v4346, 4294901760
    %v4348 = vsub.f32 %v4346, %v4347
    %v4349 = vand.u32 %v4348, 4294901760
    %4350 = vmatpush1.msra.mxu0 %v4349
    %4351 = vmatprep.subr.mxu0 0.0
    %v4352 = vand.u32 %v1033, 4294901760
    %v4353 = vsub.f32 %v1033, %v4352
    %v4354 = vand.u32 %v4353, 4294901760
    %v4355 = vsub.f32 %v4353, %v4354
    %v4356 = vand.u32 %v4355, 4294901760
    %4357 = vmatpush1.msra.mxu0 %v4356
    %4358 = vmatprep.subr.mxu0 0.0
    %v4359 = vand.u32 %v1032, 4294901760
    %v4360 = vsub.f32 %v1032, %v4359
    %v4361 = vand.u32 %v4360, 4294901760
    %v4362 = vsub.f32 %v4360, %v4361
    %v4363 = vand.u32 %v4362, 4294901760
    %4364 = vmatpush1.msra.mxu0 %v4363
    %4365 = vmatprep.subr.mxu0 0.0
    %v4366 = vand.u32 %v1031, 4294901760
    %v4367 = vsub.f32 %v1031, %v4366
    %v4368 = vand.u32 %v4367, 4294901760
    %v4369 = vsub.f32 %v4367, %v4368
    %v4370 = vand.u32 %v4369, 4294901760
    %4371 = vmatpush1.msra.mxu0 %v4370
    %4372 = vmatprep.subr.mxu0 0.0
    %v4373 = vand.u32 %v1030, 4294901760
    %v4374 = vsub.f32 %v1030, %v4373
    %v4375 = vand.u32 %v4374, 4294901760
    %v4376 = vsub.f32 %v4374, %v4375
    %v4377 = vand.u32 %v4376, 4294901760
    %4378 = vmatpush1.msra.mxu0 %v4377
    %4379 = vmatprep.subr.mxu0 0.0
    %v4380 = vand.u32 %v1029, 4294901760
    %v4381 = vsub.f32 %v1029, %v4380
    %v4382 = vand.u32 %v4381, 4294901760
    %v4383 = vsub.f32 %v4381, %v4382
    %v4384 = vand.u32 %v4383, 4294901760
    %4385 = vmatpush1.msra.mxu0 %v4384
    %4386 = vmatprep.subr.mxu0 0.0
    %v4387 = vand.u32 %v1028, 4294901760
    %v4388 = vsub.f32 %v1028, %v4387
    %v4389 = vand.u32 %v4388, 4294901760
    %v4390 = vsub.f32 %v4388, %v4389
    %v4391 = vand.u32 %v4390, 4294901760
    %4392 = vmatpush1.msra.mxu0 %v4391
    %4393 = vmatprep.subr.mxu0 0.0
    %v4394 = vand.u32 %v1027, 4294901760
    %v4395 = vsub.f32 %v1027, %v4394
    %v4396 = vand.u32 %v4395, 4294901760
    %v4397 = vsub.f32 %v4395, %v4396
    %v4398 = vand.u32 %v4397, 4294901760
    %4399 = vmatpush1.msra.mxu0 %v4398
    %4400 = vmatprep.subr.mxu0 0.0
    %v4401 = vand.u32 %v1026, 4294901760
    %v4402 = vsub.f32 %v1026, %v4401
    %v4403 = vand.u32 %v4402, 4294901760
    %v4404 = vsub.f32 %v4402, %v4403
    %v4405 = vand.u32 %v4404, 4294901760
    %4406 = vmatpush1.msra.mxu0 %v4405
    %4407 = vmatprep.subr.mxu0 0.0
    %v4408 = vand.u32 %v1025, 4294901760
    %v4409 = vsub.f32 %v1025, %v4408
    %v4410 = vand.u32 %v4409, 4294901760
    %v4411 = vsub.f32 %v4409, %v4410
    %v4412 = vand.u32 %v4411, 4294901760
    %4413 = vmatpush1.msra.mxu0 %v4412
    %4414 = vmatprep.subr.mxu0 0.0
    %v4415 = vand.u32 %v1024, 4294901760
    %v4416 = vsub.f32 %v1024, %v4415
    %v4417 = vand.u32 %v4416, 4294901760
    %v4418 = vsub.f32 %v4416, %v4417
    %v4419 = vand.u32 %v4418, 4294901760
    %4420 = vmatpush1.msra.mxu0 %v4419
    %4421 = vmatprep.subr.mxu0 0.0
    %v4422 = vand.u32 %v1023, 4294901760
    %v4423 = vsub.f32 %v1023, %v4422
    %v4424 = vand.u32 %v4423, 4294901760
    %v4425 = vsub.f32 %v4423, %v4424
    %v4426 = vand.u32 %v4425, 4294901760
    %4427 = vmatpush1.msra.mxu0 %v4426
    %4428 = vmatprep.subr.mxu0 0.0
    %v4429 = vand.u32 %v1022, 4294901760
    %v4430 = vsub.f32 %v1022, %v4429
    %v4431 = vand.u32 %v4430, 4294901760
    %v4432 = vsub.f32 %v4430, %v4431
    %v4433 = vand.u32 %v4432, 4294901760
    %4434 = vmatpush1.msra.mxu0 %v4433
    %4435 = vmatprep.subr.mxu0 0.0
    %v4436 = vand.u32 %v1021, 4294901760
    %v4437 = vsub.f32 %v1021, %v4436
    %v4438 = vand.u32 %v4437, 4294901760
    %v4439 = vsub.f32 %v4437, %v4438
    %v4440 = vand.u32 %v4439, 4294901760
    %4441 = vmatpush1.msra.mxu0 %v4440
    %4442 = vmatprep.subr.mxu0 0.0
    %4443 = vmatpush2.msra.mxu0 0.0
    %4444 = vmatprep.subr.mxu0 0.0
    %4445 = vmatpush2.msra.mxu0 0.0
    %4446 = vmatprep.subr.mxu0 0.0
    %4447 = vmatpush2.msra.mxu0 0.0
    %4448 = vmatprep.subr.mxu0 0.0
    %4449 = vmatpush2.msra.mxu0 0.0
    %4450 = vmatprep.subr.mxu0 0.0
    %4451 = vmatpush2.msra.mxu0 0.0
    %4452 = vmatprep.subr.mxu0 0.0
    %4453 = vmatpush2.msra.mxu0 0.0
    %4454 = vmatprep.subr.mxu0 0.0
    %4455 = vmatpush2.msra.mxu0 0.0
    %4456 = vmatprep.subr.mxu0 0.0
    %4457 = vmatpush2.msra.mxu0 0.0
    %4458 = vmatprep.subr.mxu0 0.0
    %4459 = vmatpush2.msra.mxu0 0.0
    %4460 = vmatprep.subr.mxu0 0.0
    %4461 = vmatpush2.msra.mxu0 0.0
    %4462 = vmatprep.subr.mxu0 0.0
    %4463 = vmatpush2.msra.mxu0 0.0
    %4464 = vmatprep.subr.mxu0 0.0
    %4465 = vmatpush2.msra.mxu0 0.0
    %4466 = vmatprep.subr.mxu0 0.0
    %4467 = vmatpush2.msra.mxu0 0.0
    %4468 = vmatprep.subr.mxu0 0.0
    %4469 = vmatpush2.msra.mxu0 0.0
    %4470 = vmatprep.subr.mxu0 0.0
    %4471 = vmatpush2.msra.mxu0 0.0
    %4472 = vmatprep.subr.mxu0 0.0
    %4473 = vmatpush2.msra.mxu0 0.0
    %4474 = vmatprep.mubr.f32.mxu0 0.0
    %v4475 = vand.u32 %v4238, 4294901760
    %4476 = vmatmul.mubr.f32.gmra.mxu0 %v4475
    %v4477 = vpop.f32.mrf.mxu0
    %v4478 = vadd.f32 %v4327, %v4477
    %v4479 = vpop.f32.mrf.mxu0
    %4480 = vdwg.mxu0
    %4481 = vmatprep.subr.mxu0 0.0
    %v4482 = vand.u32 %v1036, 4294901760
    %v4483 = vsub.f32 %v1036, %v4482
    %4484 = vmatpush1.msra.mxu0 %v4483
    %4485 = vmatprep.subr.mxu0 0.0
    %v4486 = vand.u32 %v1035, 4294901760
    %v4487 = vsub.f32 %v1035, %v4486
    %4488 = vmatpush1.msra.mxu0 %v4487
    %4489 = vmatprep.subr.mxu0 0.0
    %v4490 = vand.u32 %v1034, 4294901760
    %v4491 = vsub.f32 %v1034, %v4490
    %4492 = vmatpush1.msra.mxu0 %v4491
    %4493 = vmatprep.subr.mxu0 0.0
    %v4494 = vand.u32 %v1033, 4294901760
    %v4495 = vsub.f32 %v1033, %v4494
    %4496 = vmatpush1.msra.mxu0 %v4495
    %4497 = vmatprep.subr.mxu0 0.0
    %v4498 = vand.u32 %v1032, 4294901760
    %v4499 = vsub.f32 %v1032, %v4498
    %4500 = vmatpush1.msra.mxu0 %v4499
    %4501 = vmatprep.subr.mxu0 0.0
    %v4502 = vand.u32 %v1031, 4294901760
    %v4503 = vsub.f32 %v1031, %v4502
    %4504 = vmatpush1.msra.mxu0 %v4503
    %4505 = vmatprep.subr.mxu0 0.0
    %v4506 = vand.u32 %v1030, 4294901760
    %v4507 = vsub.f32 %v1030, %v4506
    %4508 = vmatpush1.msra.mxu0 %v4507
    %4509 = vmatprep.subr.mxu0 0.0
    %v4510 = vand.u32 %v1029, 4294901760
    %v4511 = vsub.f32 %v1029, %v4510
    %4512 = vmatpush1.msra.mxu0 %v4511
    %4513 = vmatprep.subr.mxu0 0.0
    %v4514 = vand.u32 %v1028, 4294901760
    %v4515 = vsub.f32 %v1028, %v4514
    %4516 = vmatpush1.msra.mxu0 %v4515
    %4517 = vmatprep.subr.mxu0 0.0
    %v4518 = vand.u32 %v1027, 4294901760
    %v4519 = vsub.f32 %v1027, %v4518
    %4520 = vmatpush1.msra.mxu0 %v4519
    %4521 = vmatprep.subr.mxu0 0.0
    %v4522 = vand.u32 %v1026, 4294901760
    %v4523 = vsub.f32 %v1026, %v4522
    %4524 = vmatpush1.msra.mxu0 %v4523
    %4525 = vmatprep.subr.mxu0 0.0
    %v4526 = vand.u32 %v1025, 4294901760
    %v4527 = vsub.f32 %v1025, %v4526
    %4528 = vmatpush1.msra.mxu0 %v4527
    %4529 = vmatprep.subr.mxu0 0.0
    %v4530 = vand.u32 %v1024, 4294901760
    %v4531 = vsub.f32 %v1024, %v4530
    %4532 = vmatpush1.msra.mxu0 %v4531
    %4533 = vmatprep.subr.mxu0 0.0
    %v4534 = vand.u32 %v1023, 4294901760
    %v4535 = vsub.f32 %v1023, %v4534
    %4536 = vmatpush1.msra.mxu0 %v4535
    %4537 = vmatprep.subr.mxu0 0.0
    %v4538 = vand.u32 %v1022, 4294901760
    %v4539 = vsub.f32 %v1022, %v4538
    %4540 = vmatpush1.msra.mxu0 %v4539
    %4541 = vmatprep.subr.mxu0 0.0
    %v4542 = vand.u32 %v1021, 4294901760
    %v4543 = vsub.f32 %v1021, %v4542
    %4544 = vmatpush1.msra.mxu0 %v4543
    %4545 = vmatprep.subr.mxu0 0.0
    %4546 = vmatpush2.msra.mxu0 0.0
    %4547 = vmatprep.subr.mxu0 0.0
    %4548 = vmatpush2.msra.mxu0 0.0
    %4549 = vmatprep.subr.mxu0 0.0
    %4550 = vmatpush2.msra.mxu0 0.0
    %4551 = vmatprep.subr.mxu0 0.0
    %4552 = vmatpush2.msra.mxu0 0.0
    %4553 = vmatprep.subr.mxu0 0.0
    %4554 = vmatpush2.msra.mxu0 0.0
    %4555 = vmatprep.subr.mxu0 0.0
    %4556 = vmatpush2.msra.mxu0 0.0
    %4557 = vmatprep.subr.mxu0 0.0
    %4558 = vmatpush2.msra.mxu0 0.0
    %4559 = vmatprep.subr.mxu0 0.0
    %4560 = vmatpush2.msra.mxu0 0.0
    %4561 = vmatprep.subr.mxu0 0.0
    %4562 = vmatpush2.msra.mxu0 0.0
    %4563 = vmatprep.subr.mxu0 0.0
    %4564 = vmatpush2.msra.mxu0 0.0
    %4565 = vmatprep.subr.mxu0 0.0
    %4566 = vmatpush2.msra.mxu0 0.0
    %4567 = vmatprep.subr.mxu0 0.0
    %4568 = vmatpush2.msra.mxu0 0.0
    %4569 = vmatprep.subr.mxu0 0.0
    %4570 = vmatpush2.msra.mxu0 0.0
    %4571 = vmatprep.subr.mxu0 0.0
    %4572 = vmatpush2.msra.mxu0 0.0
    %4573 = vmatprep.subr.mxu0 0.0
    %4574 = vmatpush2.msra.mxu0 0.0
    %4575 = vmatprep.subr.mxu0 0.0
    %4576 = vmatpush2.msra.mxu0 0.0
    %4577 = vmatprep.mubr.f32.mxu0 0.0
    %v4578 = vand.u32 %v4238, 4294901760
    %v4579 = vsub.f32 %v4238, %v4578
    %4580 = vmatmul.mubr.f32.gmra.mxu0 %v4579
    %v4581 = vpop.f32.mrf.mxu0
    %v4582 = vadd.f32 %v4478, %v4581
    %v4583 = vpop.f32.mrf.mxu0
    %4584 = vdwg.mxu0
    %4585 = vmatprep.subr.mxu0 0.0
    %v4586 = vand.u32 %v1036, 4294901760
    %4587 = vmatpush1.msra.mxu0 %v4586
    %4588 = vmatprep.subr.mxu0 0.0
    %v4589 = vand.u32 %v1035, 4294901760
    %4590 = vmatpush1.msra.mxu0 %v4589
    %4591 = vmatprep.subr.mxu0 0.0
    %v4592 = vand.u32 %v1034, 4294901760
    %4593 = vmatpush1.msra.mxu0 %v4592
    %4594 = vmatprep.subr.mxu0 0.0
    %v4595 = vand.u32 %v1033, 4294901760
    %4596 = vmatpush1.msra.mxu0 %v4595
    %4597 = vmatprep.subr.mxu0 0.0
    %v4598 = vand.u32 %v1032, 4294901760
    %4599 = vmatpush1.msra.mxu0 %v4598
    %4600 = vmatprep.subr.mxu0 0.0
    %v4601 = vand.u32 %v1031, 4294901760
    %4602 = vmatpush1.msra.mxu0 %v4601
    %4603 = vmatprep.subr.mxu0 0.0
    %v4604 = vand.u32 %v1030, 4294901760
    %4605 = vmatpush1.msra.mxu0 %v4604
    %4606 = vmatprep.subr.mxu0 0.0
    %v4607 = vand.u32 %v1029, 4294901760
    %4608 = vmatpush1.msra.mxu0 %v4607
    %4609 = vmatprep.subr.mxu0 0.0
    %v4610 = vand.u32 %v1028, 4294901760
    %4611 = vmatpush1.msra.mxu0 %v4610
    %4612 = vmatprep.subr.mxu0 0.0
    %v4613 = vand.u32 %v1027, 4294901760
    %4614 = vmatpush1.msra.mxu0 %v4613
    %4615 = vmatprep.subr.mxu0 0.0
    %v4616 = vand.u32 %v1026, 4294901760
    %4617 = vmatpush1.msra.mxu0 %v4616
    %4618 = vmatprep.subr.mxu0 0.0
    %v4619 = vand.u32 %v1025, 4294901760
    %4620 = vmatpush1.msra.mxu0 %v4619
    %4621 = vmatprep.subr.mxu0 0.0
    %v4622 = vand.u32 %v1024, 4294901760
    %4623 = vmatpush1.msra.mxu0 %v4622
    %4624 = vmatprep.subr.mxu0 0.0
    %v4625 = vand.u32 %v1023, 4294901760
    %4626 = vmatpush1.msra.mxu0 %v4625
    %4627 = vmatprep.subr.mxu0 0.0
    %v4628 = vand.u32 %v1022, 4294901760
    %4629 = vmatpush1.msra.mxu0 %v4628
    %4630 = vmatprep.subr.mxu0 0.0
    %v4631 = vand.u32 %v1021, 4294901760
    %4632 = vmatpush1.msra.mxu0 %v4631
    %4633 = vmatprep.subr.mxu0 0.0
    %4634 = vmatpush2.msra.mxu0 0.0
    %4635 = vmatprep.subr.mxu0 0.0
    %4636 = vmatpush2.msra.mxu0 0.0
    %4637 = vmatprep.subr.mxu0 0.0
    %4638 = vmatpush2.msra.mxu0 0.0
    %4639 = vmatprep.subr.mxu0 0.0
    %4640 = vmatpush2.msra.mxu0 0.0
    %4641 = vmatprep.subr.mxu0 0.0
    %4642 = vmatpush2.msra.mxu0 0.0
    %4643 = vmatprep.subr.mxu0 0.0
    %4644 = vmatpush2.msra.mxu0 0.0
    %4645 = vmatprep.subr.mxu0 0.0
    %4646 = vmatpush2.msra.mxu0 0.0
    %4647 = vmatprep.subr.mxu0 0.0
    %4648 = vmatpush2.msra.mxu0 0.0
    %4649 = vmatprep.subr.mxu0 0.0
    %4650 = vmatpush2.msra.mxu0 0.0
    %4651 = vmatprep.subr.mxu0 0.0
    %4652 = vmatpush2.msra.mxu0 0.0
    %4653 = vmatprep.subr.mxu0 0.0
    %4654 = vmatpush2.msra.mxu0 0.0
    %4655 = vmatprep.subr.mxu0 0.0
    %4656 = vmatpush2.msra.mxu0 0.0
    %4657 = vmatprep.subr.mxu0 0.0
    %4658 = vmatpush2.msra.mxu0 0.0
    %4659 = vmatprep.subr.mxu0 0.0
    %4660 = vmatpush2.msra.mxu0 0.0
    %4661 = vmatprep.subr.mxu0 0.0
    %4662 = vmatpush2.msra.mxu0 0.0
    %4663 = vmatprep.subr.mxu0 0.0
    %4664 = vmatpush2.msra.mxu0 0.0
    %4665 = vmatprep.mubr.f32.mxu0 0.0
    %v4666 = vand.u32 %v4238, 4294901760
    %v4667 = vsub.f32 %v4238, %v4666
    %v4668 = vand.u32 %v4667, 4294901760
    %4669 = vmatmul.mubr.f32.gmra.mxu0 %v4668
    %v4670 = vpop.f32.mrf.mxu0
    %v4671 = vadd.f32 %v4582, %v4670
    %v4672 = vpop.f32.mrf.mxu0
    %4673 = vdwg.mxu0
    %4674 = vmatprep.subr.mxu0 0.0
    %v4675 = vand.u32 %v1036, 4294901760
    %v4676 = vsub.f32 %v1036, %v4675
    %v4677 = vand.u32 %v4676, 4294901760
    %4678 = vmatpush1.msra.mxu0 %v4677
    %4679 = vmatprep.subr.mxu0 0.0
    %v4680 = vand.u32 %v1035, 4294901760
    %v4681 = vsub.f32 %v1035, %v4680
    %v4682 = vand.u32 %v4681, 4294901760
    %4683 = vmatpush1.msra.mxu0 %v4682
    %4684 = vmatprep.subr.mxu0 0.0
    %v4685 = vand.u32 %v1034, 4294901760
    %v4686 = vsub.f32 %v1034, %v4685
    %v4687 = vand.u32 %v4686, 4294901760
    %4688 = vmatpush1.msra.mxu0 %v4687
    %4689 = vmatprep.subr.mxu0 0.0
    %v4690 = vand.u32 %v1033, 4294901760
    %v4691 = vsub.f32 %v1033, %v4690
    %v4692 = vand.u32 %v4691, 4294901760
    %4693 = vmatpush1.msra.mxu0 %v4692
    %4694 = vmatprep.subr.mxu0 0.0
    %v4695 = vand.u32 %v1032, 4294901760
    %v4696 = vsub.f32 %v1032, %v4695
    %v4697 = vand.u32 %v4696, 4294901760
    %4698 = vmatpush1.msra.mxu0 %v4697
    %4699 = vmatprep.subr.mxu0 0.0
    %v4700 = vand.u32 %v1031, 4294901760
    %v4701 = vsub.f32 %v1031, %v4700
    %v4702 = vand.u32 %v4701, 4294901760
    %4703 = vmatpush1.msra.mxu0 %v4702
    %4704 = vmatprep.subr.mxu0 0.0
    %v4705 = vand.u32 %v1030, 4294901760
    %v4706 = vsub.f32 %v1030, %v4705
    %v4707 = vand.u32 %v4706, 4294901760
    %4708 = vmatpush1.msra.mxu0 %v4707
    %4709 = vmatprep.subr.mxu0 0.0
    %v4710 = vand.u32 %v1029, 4294901760
    %v4711 = vsub.f32 %v1029, %v4710
    %v4712 = vand.u32 %v4711, 4294901760
    %4713 = vmatpush1.msra.mxu0 %v4712
    %4714 = vmatprep.subr.mxu0 0.0
    %v4715 = vand.u32 %v1028, 4294901760
    %v4716 = vsub.f32 %v1028, %v4715
    %v4717 = vand.u32 %v4716, 4294901760
    %4718 = vmatpush1.msra.mxu0 %v4717
    %4719 = vmatprep.subr.mxu0 0.0
    %v4720 = vand.u32 %v1027, 4294901760
    %v4721 = vsub.f32 %v1027, %v4720
    %v4722 = vand.u32 %v4721, 4294901760
    %4723 = vmatpush1.msra.mxu0 %v4722
    %4724 = vmatprep.subr.mxu0 0.0
    %v4725 = vand.u32 %v1026, 4294901760
    %v4726 = vsub.f32 %v1026, %v4725
    %v4727 = vand.u32 %v4726, 4294901760
    %4728 = vmatpush1.msra.mxu0 %v4727
    %4729 = vmatprep.subr.mxu0 0.0
    %v4730 = vand.u32 %v1025, 4294901760
    %v4731 = vsub.f32 %v1025, %v4730
    %v4732 = vand.u32 %v4731, 4294901760
    %4733 = vmatpush1.msra.mxu0 %v4732
    %4734 = vmatprep.subr.mxu0 0.0
    %v4735 = vand.u32 %v1024, 4294901760
    %v4736 = vsub.f32 %v1024, %v4735
    %v4737 = vand.u32 %v4736, 4294901760
    %4738 = vmatpush1.msra.mxu0 %v4737
    %4739 = vmatprep.subr.mxu0 0.0
    %v4740 = vand.u32 %v1023, 4294901760
    %v4741 = vsub.f32 %v1023, %v4740
    %v4742 = vand.u32 %v4741, 4294901760
    %4743 = vmatpush1.msra.mxu0 %v4742
    %4744 = vmatprep.subr.mxu0 0.0
    %v4745 = vand.u32 %v1022, 4294901760
    %v4746 = vsub.f32 %v1022, %v4745
    %v4747 = vand.u32 %v4746, 4294901760
    %4748 = vmatpush1.msra.mxu0 %v4747
    %4749 = vmatprep.subr.mxu0 0.0
    %v4750 = vand.u32 %v1021, 4294901760
    %v4751 = vsub.f32 %v1021, %v4750
    %v4752 = vand.u32 %v4751, 4294901760
    %4753 = vmatpush1.msra.mxu0 %v4752
    %4754 = vmatprep.subr.mxu0 0.0
    %4755 = vmatpush2.msra.mxu0 0.0
    %4756 = vmatprep.subr.mxu0 0.0
    %4757 = vmatpush2.msra.mxu0 0.0
    %4758 = vmatprep.subr.mxu0 0.0
    %4759 = vmatpush2.msra.mxu0 0.0
    %4760 = vmatprep.subr.mxu0 0.0
    %4761 = vmatpush2.msra.mxu0 0.0
    %4762 = vmatprep.subr.mxu0 0.0
    %4763 = vmatpush2.msra.mxu0 0.0
    %4764 = vmatprep.subr.mxu0 0.0
    %4765 = vmatpush2.msra.mxu0 0.0
    %4766 = vmatprep.subr.mxu0 0.0
    %4767 = vmatpush2.msra.mxu0 0.0
    %4768 = vmatprep.subr.mxu0 0.0
    %4769 = vmatpush2.msra.mxu0 0.0
    %4770 = vmatprep.subr.mxu0 0.0
    %4771 = vmatpush2.msra.mxu0 0.0
    %4772 = vmatprep.subr.mxu0 0.0
    %4773 = vmatpush2.msra.mxu0 0.0
    %4774 = vmatprep.subr.mxu0 0.0
    %4775 = vmatpush2.msra.mxu0 0.0
    %4776 = vmatprep.subr.mxu0 0.0
    %4777 = vmatpush2.msra.mxu0 0.0
    %4778 = vmatprep.subr.mxu0 0.0
    %4779 = vmatpush2.msra.mxu0 0.0
    %4780 = vmatprep.subr.mxu0 0.0
    %4781 = vmatpush2.msra.mxu0 0.0
    %4782 = vmatprep.subr.mxu0 0.0
    %4783 = vmatpush2.msra.mxu0 0.0
    %4784 = vmatprep.subr.mxu0 0.0
    %4785 = vmatpush2.msra.mxu0 0.0
    %4786 = vmatprep.mubr.f32.mxu0 0.0
    %v4787 = vand.u32 %v4238, 4294901760
    %4788 = vmatmul.mubr.f32.gmra.mxu0 %v4787
    %v4789 = vpop.f32.mrf.mxu0
    %v4790 = vadd.f32 %v4671, %v4789
    %v4791 = vpop.f32.mrf.mxu0
    %4792 = vdwg.mxu0
    %4793 = vmatprep.subr.mxu0 0.0
    %v4794 = vand.u32 %v1036, 4294901760
    %4795 = vmatpush1.msra.mxu0 %v4794
    %4796 = vmatprep.subr.mxu0 0.0
    %v4797 = vand.u32 %v1035, 4294901760
    %4798 = vmatpush1.msra.mxu0 %v4797
    %4799 = vmatprep.subr.mxu0 0.0
    %v4800 = vand.u32 %v1034, 4294901760
    %4801 = vmatpush1.msra.mxu0 %v4800
    %4802 = vmatprep.subr.mxu0 0.0
    %v4803 = vand.u32 %v1033, 4294901760
    %4804 = vmatpush1.msra.mxu0 %v4803
    %4805 = vmatprep.subr.mxu0 0.0
    %v4806 = vand.u32 %v1032, 4294901760
    %4807 = vmatpush1.msra.mxu0 %v4806
    %4808 = vmatprep.subr.mxu0 0.0
    %v4809 = vand.u32 %v1031, 4294901760
    %4810 = vmatpush1.msra.mxu0 %v4809
    %4811 = vmatprep.subr.mxu0 0.0
    %v4812 = vand.u32 %v1030, 4294901760
    %4813 = vmatpush1.msra.mxu0 %v4812
    %4814 = vmatprep.subr.mxu0 0.0
    %v4815 = vand.u32 %v1029, 4294901760
    %4816 = vmatpush1.msra.mxu0 %v4815
    %4817 = vmatprep.subr.mxu0 0.0
    %v4818 = vand.u32 %v1028, 4294901760
    %4819 = vmatpush1.msra.mxu0 %v4818
    %4820 = vmatprep.subr.mxu0 0.0
    %v4821 = vand.u32 %v1027, 4294901760
    %4822 = vmatpush1.msra.mxu0 %v4821
    %4823 = vmatprep.subr.mxu0 0.0
    %v4824 = vand.u32 %v1026, 4294901760
    %4825 = vmatpush1.msra.mxu0 %v4824
    %4826 = vmatprep.subr.mxu0 0.0
    %v4827 = vand.u32 %v1025, 4294901760
    %4828 = vmatpush1.msra.mxu0 %v4827
    %4829 = vmatprep.subr.mxu0 0.0
    %v4830 = vand.u32 %v1024, 4294901760
    %4831 = vmatpush1.msra.mxu0 %v4830
    %4832 = vmatprep.subr.mxu0 0.0
    %v4833 = vand.u32 %v1023, 4294901760
    %4834 = vmatpush1.msra.mxu0 %v4833
    %4835 = vmatprep.subr.mxu0 0.0
    %v4836 = vand.u32 %v1022, 4294901760
    %4837 = vmatpush1.msra.mxu0 %v4836
    %4838 = vmatprep.subr.mxu0 0.0
    %v4839 = vand.u32 %v1021, 4294901760
    %4840 = vmatpush1.msra.mxu0 %v4839
    %4841 = vmatprep.subr.mxu0 0.0
    %4842 = vmatpush2.msra.mxu0 0.0
    %4843 = vmatprep.subr.mxu0 0.0
    %4844 = vmatpush2.msra.mxu0 0.0
    %4845 = vmatprep.subr.mxu0 0.0
    %4846 = vmatpush2.msra.mxu0 0.0
    %4847 = vmatprep.subr.mxu0 0.0
    %4848 = vmatpush2.msra.mxu0 0.0
    %4849 = vmatprep.subr.mxu0 0.0
    %4850 = vmatpush2.msra.mxu0 0.0
    %4851 = vmatprep.subr.mxu0 0.0
    %4852 = vmatpush2.msra.mxu0 0.0
    %4853 = vmatprep.subr.mxu0 0.0
    %4854 = vmatpush2.msra.mxu0 0.0
    %4855 = vmatprep.subr.mxu0 0.0
    %4856 = vmatpush2.msra.mxu0 0.0
    %4857 = vmatprep.subr.mxu0 0.0
    %4858 = vmatpush2.msra.mxu0 0.0
    %4859 = vmatprep.subr.mxu0 0.0
    %4860 = vmatpush2.msra.mxu0 0.0
    %4861 = vmatprep.subr.mxu0 0.0
    %4862 = vmatpush2.msra.mxu0 0.0
    %4863 = vmatprep.subr.mxu0 0.0
    %4864 = vmatpush2.msra.mxu0 0.0
    %4865 = vmatprep.subr.mxu0 0.0
    %4866 = vmatpush2.msra.mxu0 0.0
    %4867 = vmatprep.subr.mxu0 0.0
    %4868 = vmatpush2.msra.mxu0 0.0
    %4869 = vmatprep.subr.mxu0 0.0
    %4870 = vmatpush2.msra.mxu0 0.0
    %4871 = vmatprep.subr.mxu0 0.0
    %4872 = vmatpush2.msra.mxu0 0.0
    %4873 = vmatprep.mubr.f32.mxu0 0.0
    %v4874 = vand.u32 %v4238, 4294901760
    %4875 = vmatmul.mubr.f32.gmra.mxu0 %v4874
    %v4876 = vpop.f32.mrf.mxu0
    %v4877 = vadd.f32 %v4790, %v4876
    %v4878 = vpop.f32.mrf.mxu0
    %4879 = vdwg.mxu0
    %v4880 = vadd.f32 %v1008, %v4877
    %v4881 = vtanh.pop %v4880
    %4882 = vmatprep.subr.mxu0 0.0
    %v4883 = vand.u32 %v1036, 4294901760
    %4884 = vmatpush1.msra.mxu0 %v4883
    %4885 = vmatprep.subr.mxu0 0.0
    %v4886 = vand.u32 %v1035, 4294901760
    %4887 = vmatpush1.msra.mxu0 %v4886
    %4888 = vmatprep.subr.mxu0 0.0
    %v4889 = vand.u32 %v1034, 4294901760
    %4890 = vmatpush1.msra.mxu0 %v4889
    %4891 = vmatprep.subr.mxu0 0.0
    %v4892 = vand.u32 %v1033, 4294901760
    %4893 = vmatpush1.msra.mxu0 %v4892
    %4894 = vmatprep.subr.mxu0 0.0
    %v4895 = vand.u32 %v1032, 4294901760
    %4896 = vmatpush1.msra.mxu0 %v4895
    %4897 = vmatprep.subr.mxu0 0.0
    %v4898 = vand.u32 %v1031, 4294901760
    %4899 = vmatpush1.msra.mxu0 %v4898
    %4900 = vmatprep.subr.mxu0 0.0
    %v4901 = vand.u32 %v1030, 4294901760
    %4902 = vmatpush1.msra.mxu0 %v4901
    %4903 = vmatprep.subr.mxu0 0.0
    %v4904 = vand.u32 %v1029, 4294901760
    %4905 = vmatpush1.msra.mxu0 %v4904
    %4906 = vmatprep.subr.mxu0 0.0
    %v4907 = vand.u32 %v1028, 4294901760
    %4908 = vmatpush1.msra.mxu0 %v4907
    %4909 = vmatprep.subr.mxu0 0.0
    %v4910 = vand.u32 %v1027, 4294901760
    %4911 = vmatpush1.msra.mxu0 %v4910
    %4912 = vmatprep.subr.mxu0 0.0
    %v4913 = vand.u32 %v1026, 4294901760
    %4914 = vmatpush1.msra.mxu0 %v4913
    %4915 = vmatprep.subr.mxu0 0.0
    %v4916 = vand.u32 %v1025, 4294901760
    %4917 = vmatpush1.msra.mxu0 %v4916
    %4918 = vmatprep.subr.mxu0 0.0
    %v4919 = vand.u32 %v1024, 4294901760
    %4920 = vmatpush1.msra.mxu0 %v4919
    %4921 = vmatprep.subr.mxu0 0.0
    %v4922 = vand.u32 %v1023, 4294901760
    %4923 = vmatpush1.msra.mxu0 %v4922
    %4924 = vmatprep.subr.mxu0 0.0
    %v4925 = vand.u32 %v1022, 4294901760
    %4926 = vmatpush1.msra.mxu0 %v4925
    %4927 = vmatprep.subr.mxu0 0.0
    %v4928 = vand.u32 %v1021, 4294901760
    %4929 = vmatpush1.msra.mxu0 %v4928
    %4930 = vmatprep.subr.mxu0 0.0
    %4931 = vmatpush2.msra.mxu0 0.0
    %4932 = vmatprep.subr.mxu0 0.0
    %4933 = vmatpush2.msra.mxu0 0.0
    %4934 = vmatprep.subr.mxu0 0.0
    %4935 = vmatpush2.msra.mxu0 0.0
    %4936 = vmatprep.subr.mxu0 0.0
    %4937 = vmatpush2.msra.mxu0 0.0
    %4938 = vmatprep.subr.mxu0 0.0
    %4939 = vmatpush2.msra.mxu0 0.0
    %4940 = vmatprep.subr.mxu0 0.0
    %4941 = vmatpush2.msra.mxu0 0.0
    %4942 = vmatprep.subr.mxu0 0.0
    %4943 = vmatpush2.msra.mxu0 0.0
    %4944 = vmatprep.subr.mxu0 0.0
    %4945 = vmatpush2.msra.mxu0 0.0
    %4946 = vmatprep.subr.mxu0 0.0
    %4947 = vmatpush2.msra.mxu0 0.0
    %4948 = vmatprep.subr.mxu0 0.0
    %4949 = vmatpush2.msra.mxu0 0.0
    %4950 = vmatprep.subr.mxu0 0.0
    %4951 = vmatpush2.msra.mxu0 0.0
    %4952 = vmatprep.subr.mxu0 0.0
    %4953 = vmatpush2.msra.mxu0 0.0
    %4954 = vmatprep.subr.mxu0 0.0
    %4955 = vmatpush2.msra.mxu0 0.0
    %4956 = vmatprep.subr.mxu0 0.0
    %4957 = vmatpush2.msra.mxu0 0.0
    %4958 = vmatprep.subr.mxu0 0.0
    %4959 = vmatpush2.msra.mxu0 0.0
    %4960 = vmatprep.subr.mxu0 0.0
    %4961 = vmatpush2.msra.mxu0 0.0
    %4962 = vmatprep.mubr.f32.mxu0 0.0
    %v4963 = vand.u32 %v4881, 4294901760
    %v4964 = vsub.f32 %v4881, %v4963
    %v4965 = vand.u32 %v4964, 4294901760
    %v4966 = vsub.f32 %v4964, %v4965
    %v4967 = vand.u32 %v4966, 4294901760
    %4968 = vmatmul.mubr.f32.gmra.mxu0 %v4967
    %v4969 = vpop.f32.mrf.mxu0
    %v4970 = vadd.f32 0.0, %v4969
    %v4971 = vpop.f32.mrf.mxu0
    %4972 = vdwg.mxu0
    %4973 = vmatprep.subr.mxu0 0.0
    %v4974 = vand.u32 %v1036, 4294901760
    %v4975 = vsub.f32 %v1036, %v4974
    %v4976 = vand.u32 %v4975, 4294901760
    %v4977 = vsub.f32 %v4975, %v4976
    %v4978 = vand.u32 %v4977, 4294901760
    %4979 = vmatpush1.msra.mxu0 %v4978
    %4980 = vmatprep.subr.mxu0 0.0
    %v4981 = vand.u32 %v1035, 4294901760
    %v4982 = vsub.f32 %v1035, %v4981
    %v4983 = vand.u32 %v4982, 4294901760
    %v4984 = vsub.f32 %v4982, %v4983
    %v4985 = vand.u32 %v4984, 4294901760
    %4986 = vmatpush1.msra.mxu0 %v4985
    %4987 = vmatprep.subr.mxu0 0.0
    %v4988 = vand.u32 %v1034, 4294901760
    %v4989 = vsub.f32 %v1034, %v4988
    %v4990 = vand.u32 %v4989, 4294901760
    %v4991 = vsub.f32 %v4989, %v4990
    %v4992 = vand.u32 %v4991, 4294901760
    %4993 = vmatpush1.msra.mxu0 %v4992
    %4994 = vmatprep.subr.mxu0 0.0
    %v4995 = vand.u32 %v1033, 4294901760
    %v4996 = vsub.f32 %v1033, %v4995
    %v4997 = vand.u32 %v4996, 4294901760
    %v4998 = vsub.f32 %v4996, %v4997
    %v4999 = vand.u32 %v4998, 4294901760
    %5000 = vmatpush1.msra.mxu0 %v4999
    %5001 = vmatprep.subr.mxu0 0.0
    %v5002 = vand.u32 %v1032, 4294901760
    %v5003 = vsub.f32 %v1032, %v5002
    %v5004 = vand.u32 %v5003, 4294901760
    %v5005 = vsub.f32 %v5003, %v5004
    %v5006 = vand.u32 %v5005, 4294901760
    %5007 = vmatpush1.msra.mxu0 %v5006
    %5008 = vmatprep.subr.mxu0 0.0
    %v5009 = vand.u32 %v1031, 4294901760
    %v5010 = vsub.f32 %v1031, %v5009
    %v5011 = vand.u32 %v5010, 4294901760
    %v5012 = vsub.f32 %v5010, %v5011
    %v5013 = vand.u32 %v5012, 4294901760
    %5014 = vmatpush1.msra.mxu0 %v5013
    %5015 = vmatprep.subr.mxu0 0.0
    %v5016 = vand.u32 %v1030, 4294901760
    %v5017 = vsub.f32 %v1030, %v5016
    %v5018 = vand.u32 %v5017, 4294901760
    %v5019 = vsub.f32 %v5017, %v5018
    %v5020 = vand.u32 %v5019, 4294901760
    %5021 = vmatpush1.msra.mxu0 %v5020
    %5022 = vmatprep.subr.mxu0 0.0
    %v5023 = vand.u32 %v1029, 4294901760
    %v5024 = vsub.f32 %v1029, %v5023
    %v5025 = vand.u32 %v5024, 4294901760
    %v5026 = vsub.f32 %v5024, %v5025
    %v5027 = vand.u32 %v5026, 4294901760
    %5028 = vmatpush1.msra.mxu0 %v5027
    %5029 = vmatprep.subr.mxu0 0.0
    %v5030 = vand.u32 %v1028, 4294901760
    %v5031 = vsub.f32 %v1028, %v5030
    %v5032 = vand.u32 %v5031, 4294901760
    %v5033 = vsub.f32 %v5031, %v5032
    %v5034 = vand.u32 %v5033, 4294901760
    %5035 = vmatpush1.msra.mxu0 %v5034
    %5036 = vmatprep.subr.mxu0 0.0
    %v5037 = vand.u32 %v1027, 4294901760
    %v5038 = vsub.f32 %v1027, %v5037
    %v5039 = vand.u32 %v5038, 4294901760
    %v5040 = vsub.f32 %v5038, %v5039
    %v5041 = vand.u32 %v5040, 4294901760
    %5042 = vmatpush1.msra.mxu0 %v5041
    %5043 = vmatprep.subr.mxu0 0.0
    %v5044 = vand.u32 %v1026, 4294901760
    %v5045 = vsub.f32 %v1026, %v5044
    %v5046 = vand.u32 %v5045, 4294901760
    %v5047 = vsub.f32 %v5045, %v5046
    %v5048 = vand.u32 %v5047, 4294901760
    %5049 = vmatpush1.msra.mxu0 %v5048
    %5050 = vmatprep.subr.mxu0 0.0
    %v5051 = vand.u32 %v1025, 4294901760
    %v5052 = vsub.f32 %v1025, %v5051
    %v5053 = vand.u32 %v5052, 4294901760
    %v5054 = vsub.f32 %v5052, %v5053
    %v5055 = vand.u32 %v5054, 4294901760
    %5056 = vmatpush1.msra.mxu0 %v5055
    %5057 = vmatprep.subr.mxu0 0.0
    %v5058 = vand.u32 %v1024, 4294901760
    %v5059 = vsub.f32 %v1024, %v5058
    %v5060 = vand.u32 %v5059, 4294901760
    %v5061 = vsub.f32 %v5059, %v5060
    %v5062 = vand.u32 %v5061, 4294901760
    %5063 = vmatpush1.msra.mxu0 %v5062
    %5064 = vmatprep.subr.mxu0 0.0
    %v5065 = vand.u32 %v1023, 4294901760
    %v5066 = vsub.f32 %v1023, %v5065
    %v5067 = vand.u32 %v5066, 4294901760
    %v5068 = vsub.f32 %v5066, %v5067
    %v5069 = vand.u32 %v5068, 4294901760
    %5070 = vmatpush1.msra.mxu0 %v5069
    %5071 = vmatprep.subr.mxu0 0.0
    %v5072 = vand.u32 %v1022, 4294901760
    %v5073 = vsub.f32 %v1022, %v5072
    %v5074 = vand.u32 %v5073, 4294901760
    %v5075 = vsub.f32 %v5073, %v5074
    %v5076 = vand.u32 %v5075, 4294901760
    %5077 = vmatpush1.msra.mxu0 %v5076
    %5078 = vmatprep.subr.mxu0 0.0
    %v5079 = vand.u32 %v1021, 4294901760
    %v5080 = vsub.f32 %v1021, %v5079
    %v5081 = vand.u32 %v5080, 4294901760
    %v5082 = vsub.f32 %v5080, %v5081
    %v5083 = vand.u32 %v5082, 4294901760
    %5084 = vmatpush1.msra.mxu0 %v5083
    %5085 = vmatprep.subr.mxu0 0.0
    %5086 = vmatpush2.msra.mxu0 0.0
    %5087 = vmatprep.subr.mxu0 0.0
    %5088 = vmatpush2.msra.mxu0 0.0
    %5089 = vmatprep.subr.mxu0 0.0
    %5090 = vmatpush2.msra.mxu0 0.0
    %5091 = vmatprep.subr.mxu0 0.0
    %5092 = vmatpush2.msra.mxu0 0.0
    %5093 = vmatprep.subr.mxu0 0.0
    %5094 = vmatpush2.msra.mxu0 0.0
    %5095 = vmatprep.subr.mxu0 0.0
    %5096 = vmatpush2.msra.mxu0 0.0
    %5097 = vmatprep.subr.mxu0 0.0
    %5098 = vmatpush2.msra.mxu0 0.0
    %5099 = vmatprep.subr.mxu0 0.0
    %5100 = vmatpush2.msra.mxu0 0.0
    %5101 = vmatprep.subr.mxu0 0.0
    %5102 = vmatpush2.msra.mxu0 0.0
    %5103 = vmatprep.subr.mxu0 0.0
    %5104 = vmatpush2.msra.mxu0 0.0
    %5105 = vmatprep.subr.mxu0 0.0
    %5106 = vmatpush2.msra.mxu0 0.0
    %5107 = vmatprep.subr.mxu0 0.0
    %5108 = vmatpush2.msra.mxu0 0.0
    %5109 = vmatprep.subr.mxu0 0.0
    %5110 = vmatpush2.msra.mxu0 0.0
    %5111 = vmatprep.subr.mxu0 0.0
    %5112 = vmatpush2.msra.mxu0 0.0
    %5113 = vmatprep.subr.mxu0 0.0
    %5114 = vmatpush2.msra.mxu0 0.0
    %5115 = vmatprep.subr.mxu0 0.0
    %5116 = vmatpush2.msra.mxu0 0.0
    %5117 = vmatprep.mubr.f32.mxu0 0.0
    %v5118 = vand.u32 %v4881, 4294901760
    %5119 = vmatmul.mubr.f32.gmra.mxu0 %v5118
    %v5120 = vpop.f32.mrf.mxu0
    %v5121 = vadd.f32 %v4970, %v5120
    %v5122 = vpop.f32.mrf.mxu0
    %5123 = vdwg.mxu0
    %5124 = vmatprep.subr.mxu0 0.0
    %v5125 = vand.u32 %v1036, 4294901760
    %v5126 = vsub.f32 %v1036, %v5125
    %5127 = vmatpush1.msra.mxu0 %v5126
    %5128 = vmatprep.subr.mxu0 0.0
    %v5129 = vand.u32 %v1035, 4294901760
    %v5130 = vsub.f32 %v1035, %v5129
    %5131 = vmatpush1.msra.mxu0 %v5130
    %5132 = vmatprep.subr.mxu0 0.0
    %v5133 = vand.u32 %v1034, 4294901760
    %v5134 = vsub.f32 %v1034, %v5133
    %5135 = vmatpush1.msra.mxu0 %v5134
    %5136 = vmatprep.subr.mxu0 0.0
    %v5137 = vand.u32 %v1033, 4294901760
    %v5138 = vsub.f32 %v1033, %v5137
    %5139 = vmatpush1.msra.mxu0 %v5138
    %5140 = vmatprep.subr.mxu0 0.0
    %v5141 = vand.u32 %v1032, 4294901760
    %v5142 = vsub.f32 %v1032, %v5141
    %5143 = vmatpush1.msra.mxu0 %v5142
    %5144 = vmatprep.subr.mxu0 0.0
    %v5145 = vand.u32 %v1031, 4294901760
    %v5146 = vsub.f32 %v1031, %v5145
    %5147 = vmatpush1.msra.mxu0 %v5146
    %5148 = vmatprep.subr.mxu0 0.0
    %v5149 = vand.u32 %v1030, 4294901760
    %v5150 = vsub.f32 %v1030, %v5149
    %5151 = vmatpush1.msra.mxu0 %v5150
    %5152 = vmatprep.subr.mxu0 0.0
    %v5153 = vand.u32 %v1029, 4294901760
    %v5154 = vsub.f32 %v1029, %v5153
    %5155 = vmatpush1.msra.mxu0 %v5154
    %5156 = vmatprep.subr.mxu0 0.0
    %v5157 = vand.u32 %v1028, 4294901760
    %v5158 = vsub.f32 %v1028, %v5157
    %5159 = vmatpush1.msra.mxu0 %v5158
    %5160 = vmatprep.subr.mxu0 0.0
    %v5161 = vand.u32 %v1027, 4294901760
    %v5162 = vsub.f32 %v1027, %v5161
    %5163 = vmatpush1.msra.mxu0 %v5162
    %5164 = vmatprep.subr.mxu0 0.0
    %v5165 = vand.u32 %v1026, 4294901760
    %v5166 = vsub.f32 %v1026, %v5165
    %5167 = vmatpush1.msra.mxu0 %v5166
    %5168 = vmatprep.subr.mxu0 0.0
    %v5169 = vand.u32 %v1025, 4294901760
    %v5170 = vsub.f32 %v1025, %v5169
    %5171 = vmatpush1.msra.mxu0 %v5170
    %5172 = vmatprep.subr.mxu0 0.0
    %v5173 = vand.u32 %v1024, 4294901760
    %v5174 = vsub.f32 %v1024, %v5173
    %5175 = vmatpush1.msra.mxu0 %v5174
    %5176 = vmatprep.subr.mxu0 0.0
    %v5177 = vand.u32 %v1023, 4294901760
    %v5178 = vsub.f32 %v1023, %v5177
    %5179 = vmatpush1.msra.mxu0 %v5178
    %5180 = vmatprep.subr.mxu0 0.0
    %v5181 = vand.u32 %v1022, 4294901760
    %v5182 = vsub.f32 %v1022, %v5181
    %5183 = vmatpush1.msra.mxu0 %v5182
    %5184 = vmatprep.subr.mxu0 0.0
    %v5185 = vand.u32 %v1021, 4294901760
    %v5186 = vsub.f32 %v1021, %v5185
    %5187 = vmatpush1.msra.mxu0 %v5186
    %5188 = vmatprep.subr.mxu0 0.0
    %5189 = vmatpush2.msra.mxu0 0.0
    %5190 = vmatprep.subr.mxu0 0.0
    %5191 = vmatpush2.msra.mxu0 0.0
    %5192 = vmatprep.subr.mxu0 0.0
    %5193 = vmatpush2.msra.mxu0 0.0
    %5194 = vmatprep.subr.mxu0 0.0
    %5195 = vmatpush2.msra.mxu0 0.0
    %5196 = vmatprep.subr.mxu0 0.0
    %5197 = vmatpush2.msra.mxu0 0.0
    %5198 = vmatprep.subr.mxu0 0.0
    %5199 = vmatpush2.msra.mxu0 0.0
    %5200 = vmatprep.subr.mxu0 0.0
    %5201 = vmatpush2.msra.mxu0 0.0
    %5202 = vmatprep.subr.mxu0 0.0
    %5203 = vmatpush2.msra.mxu0 0.0
    %5204 = vmatprep.subr.mxu0 0.0
    %5205 = vmatpush2.msra.mxu0 0.0
    %5206 = vmatprep.subr.mxu0 0.0
    %5207 = vmatpush2.msra.mxu0 0.0
    %5208 = vmatprep.subr.mxu0 0.0
    %5209 = vmatpush2.msra.mxu0 0.0
    %5210 = vmatprep.subr.mxu0 0.0
    %5211 = vmatpush2.msra.mxu0 0.0
    %5212 = vmatprep.subr.mxu0 0.0
    %5213 = vmatpush2.msra.mxu0 0.0
    %5214 = vmatprep.subr.mxu0 0.0
    %5215 = vmatpush2.msra.mxu0 0.0
    %5216 = vmatprep.subr.mxu0 0.0
    %5217 = vmatpush2.msra.mxu0 0.0
    %5218 = vmatprep.subr.mxu0 0.0
    %5219 = vmatpush2.msra.mxu0 0.0
    %5220 = vmatprep.mubr.f32.mxu0 0.0
    %v5221 = vand.u32 %v4881, 4294901760
    %v5222 = vsub.f32 %v4881, %v5221
    %5223 = vmatmul.mubr.f32.gmra.mxu0 %v5222
    %v5224 = vpop.f32.mrf.mxu0
    %v5225 = vadd.f32 %v5121, %v5224
    %v5226 = vpop.f32.mrf.mxu0
    %5227 = vdwg.mxu0
    %5228 = vmatprep.subr.mxu0 0.0
    %v5229 = vand.u32 %v1036, 4294901760
    %5230 = vmatpush1.msra.mxu0 %v5229
    %5231 = vmatprep.subr.mxu0 0.0
    %v5232 = vand.u32 %v1035, 4294901760
    %5233 = vmatpush1.msra.mxu0 %v5232
    %5234 = vmatprep.subr.mxu0 0.0
    %v5235 = vand.u32 %v1034, 4294901760
    %5236 = vmatpush1.msra.mxu0 %v5235
    %5237 = vmatprep.subr.mxu0 0.0
    %v5238 = vand.u32 %v1033, 4294901760
    %5239 = vmatpush1.msra.mxu0 %v5238
    %5240 = vmatprep.subr.mxu0 0.0
    %v5241 = vand.u32 %v1032, 4294901760
    %5242 = vmatpush1.msra.mxu0 %v5241
    %5243 = vmatprep.subr.mxu0 0.0
    %v5244 = vand.u32 %v1031, 4294901760
    %5245 = vmatpush1.msra.mxu0 %v5244
    %5246 = vmatprep.subr.mxu0 0.0
    %v5247 = vand.u32 %v1030, 4294901760
    %5248 = vmatpush1.msra.mxu0 %v5247
    %5249 = vmatprep.subr.mxu0 0.0
    %v5250 = vand.u32 %v1029, 4294901760
    %5251 = vmatpush1.msra.mxu0 %v5250
    %5252 = vmatprep.subr.mxu0 0.0
    %v5253 = vand.u32 %v1028, 4294901760
    %5254 = vmatpush1.msra.mxu0 %v5253
    %5255 = vmatprep.subr.mxu0 0.0
    %v5256 = vand.u32 %v1027, 4294901760
    %5257 = vmatpush1.msra.mxu0 %v5256
    %5258 = vmatprep.subr.mxu0 0.0
    %v5259 = vand.u32 %v1026, 4294901760
    %5260 = vmatpush1.msra.mxu0 %v5259
    %5261 = vmatprep.subr.mxu0 0.0
    %v5262 = vand.u32 %v1025, 4294901760
    %5263 = vmatpush1.msra.mxu0 %v5262
    %5264 = vmatprep.subr.mxu0 0.0
    %v5265 = vand.u32 %v1024, 4294901760
    %5266 = vmatpush1.msra.mxu0 %v5265
    %5267 = vmatprep.subr.mxu0 0.0
    %v5268 = vand.u32 %v1023, 4294901760
    %5269 = vmatpush1.msra.mxu0 %v5268
    %5270 = vmatprep.subr.mxu0 0.0
    %v5271 = vand.u32 %v1022, 4294901760
    %5272 = vmatpush1.msra.mxu0 %v5271
    %5273 = vmatprep.subr.mxu0 0.0
    %v5274 = vand.u32 %v1021, 4294901760
    %5275 = vmatpush1.msra.mxu0 %v5274
    %5276 = vmatprep.subr.mxu0 0.0
    %5277 = vmatpush2.msra.mxu0 0.0
    %5278 = vmatprep.subr.mxu0 0.0
    %5279 = vmatpush2.msra.mxu0 0.0
    %5280 = vmatprep.subr.mxu0 0.0
    %5281 = vmatpush2.msra.mxu0 0.0
    %5282 = vmatprep.subr.mxu0 0.0
    %5283 = vmatpush2.msra.mxu0 0.0
    %5284 = vmatprep.subr.mxu0 0.0
    %5285 = vmatpush2.msra.mxu0 0.0
    %5286 = vmatprep.subr.mxu0 0.0
    %5287 = vmatpush2.msra.mxu0 0.0
    %5288 = vmatprep.subr.mxu0 0.0
    %5289 = vmatpush2.msra.mxu0 0.0
    %5290 = vmatprep.subr.mxu0 0.0
    %5291 = vmatpush2.msra.mxu0 0.0
    %5292 = vmatprep.subr.mxu0 0.0
    %5293 = vmatpush2.msra.mxu0 0.0
    %5294 = vmatprep.subr.mxu0 0.0
    %5295 = vmatpush2.msra.mxu0 0.0
    %5296 = vmatprep.subr.mxu0 0.0
    %5297 = vmatpush2.msra.mxu0 0.0
    %5298 = vmatprep.subr.mxu0 0.0
    %5299 = vmatpush2.msra.mxu0 0.0
    %5300 = vmatprep.subr.mxu0 0.0
    %5301 = vmatpush2.msra.mxu0 0.0
    %5302 = vmatprep.subr.mxu0 0.0
    %5303 = vmatpush2.msra.mxu0 0.0
    %5304 = vmatprep.subr.mxu0 0.0
    %5305 = vmatpush2.msra.mxu0 0.0
    %5306 = vmatprep.subr.mxu0 0.0
    %5307 = vmatpush2.msra.mxu0 0.0
    %5308 = vmatprep.mubr.f32.mxu0 0.0
    %v5309 = vand.u32 %v4881, 4294901760
    %v5310 = vsub.f32 %v4881, %v5309
    %v5311 = vand.u32 %v5310, 4294901760
    %5312 = vmatmul.mubr.f32.gmra.mxu0 %v5311
    %v5313 = vpop.f32.mrf.mxu0
    %v5314 = vadd.f32 %v5225, %v5313
    %v5315 = vpop.f32.mrf.mxu0
    %5316 = vdwg.mxu0
    %5317 = vmatprep.subr.mxu0 0.0
    %v5318 = vand.u32 %v1036, 4294901760
    %v5319 = vsub.f32 %v1036, %v5318
    %v5320 = vand.u32 %v5319, 4294901760
    %5321 = vmatpush1.msra.mxu0 %v5320
    %5322 = vmatprep.subr.mxu0 0.0
    %v5323 = vand.u32 %v1035, 4294901760
    %v5324 = vsub.f32 %v1035, %v5323
    %v5325 = vand.u32 %v5324, 4294901760
    %5326 = vmatpush1.msra.mxu0 %v5325
    %5327 = vmatprep.subr.mxu0 0.0
    %v5328 = vand.u32 %v1034, 4294901760
    %v5329 = vsub.f32 %v1034, %v5328
    %v5330 = vand.u32 %v5329, 4294901760
    %5331 = vmatpush1.msra.mxu0 %v5330
    %5332 = vmatprep.subr.mxu0 0.0
    %v5333 = vand.u32 %v1033, 4294901760
    %v5334 = vsub.f32 %v1033, %v5333
    %v5335 = vand.u32 %v5334, 4294901760
    %5336 = vmatpush1.msra.mxu0 %v5335
    %5337 = vmatprep.subr.mxu0 0.0
    %v5338 = vand.u32 %v1032, 4294901760
    %v5339 = vsub.f32 %v1032, %v5338
    %v5340 = vand.u32 %v5339, 4294901760
    %5341 = vmatpush1.msra.mxu0 %v5340
    %5342 = vmatprep.subr.mxu0 0.0
    %v5343 = vand.u32 %v1031, 4294901760
    %v5344 = vsub.f32 %v1031, %v5343
    %v5345 = vand.u32 %v5344, 4294901760
    %5346 = vmatpush1.msra.mxu0 %v5345
    %5347 = vmatprep.subr.mxu0 0.0
    %v5348 = vand.u32 %v1030, 4294901760
    %v5349 = vsub.f32 %v1030, %v5348
    %v5350 = vand.u32 %v5349, 4294901760
    %5351 = vmatpush1.msra.mxu0 %v5350
    %5352 = vmatprep.subr.mxu0 0.0
    %v5353 = vand.u32 %v1029, 4294901760
    %v5354 = vsub.f32 %v1029, %v5353
    %v5355 = vand.u32 %v5354, 4294901760
    %5356 = vmatpush1.msra.mxu0 %v5355
    %5357 = vmatprep.subr.mxu0 0.0
    %v5358 = vand.u32 %v1028, 4294901760
    %v5359 = vsub.f32 %v1028, %v5358
    %v5360 = vand.u32 %v5359, 4294901760
    %5361 = vmatpush1.msra.mxu0 %v5360
    %5362 = vmatprep.subr.mxu0 0.0
    %v5363 = vand.u32 %v1027, 4294901760
    %v5364 = vsub.f32 %v1027, %v5363
    %v5365 = vand.u32 %v5364, 4294901760
    %5366 = vmatpush1.msra.mxu0 %v5365
    %5367 = vmatprep.subr.mxu0 0.0
    %v5368 = vand.u32 %v1026, 4294901760
    %v5369 = vsub.f32 %v1026, %v5368
    %v5370 = vand.u32 %v5369, 4294901760
    %5371 = vmatpush1.msra.mxu0 %v5370
    %5372 = vmatprep.subr.mxu0 0.0
    %v5373 = vand.u32 %v1025, 4294901760
    %v5374 = vsub.f32 %v1025, %v5373
    %v5375 = vand.u32 %v5374, 4294901760
    %5376 = vmatpush1.msra.mxu0 %v5375
    %5377 = vmatprep.subr.mxu0 0.0
    %v5378 = vand.u32 %v1024, 4294901760
    %v5379 = vsub.f32 %v1024, %v5378
    %v5380 = vand.u32 %v5379, 4294901760
    %5381 = vmatpush1.msra.mxu0 %v5380
    %5382 = vmatprep.subr.mxu0 0.0
    %v5383 = vand.u32 %v1023, 4294901760
    %v5384 = vsub.f32 %v1023, %v5383
    %v5385 = vand.u32 %v5384, 4294901760
    %5386 = vmatpush1.msra.mxu0 %v5385
    %5387 = vmatprep.subr.mxu0 0.0
    %v5388 = vand.u32 %v1022, 4294901760
    %v5389 = vsub.f32 %v1022, %v5388
    %v5390 = vand.u32 %v5389, 4294901760
    %5391 = vmatpush1.msra.mxu0 %v5390
    %5392 = vmatprep.subr.mxu0 0.0
    %v5393 = vand.u32 %v1021, 4294901760
    %v5394 = vsub.f32 %v1021, %v5393
    %v5395 = vand.u32 %v5394, 4294901760
    %5396 = vmatpush1.msra.mxu0 %v5395
    %5397 = vmatprep.subr.mxu0 0.0
    %5398 = vmatpush2.msra.mxu0 0.0
    %5399 = vmatprep.subr.mxu0 0.0
    %5400 = vmatpush2.msra.mxu0 0.0
    %5401 = vmatprep.subr.mxu0 0.0
    %5402 = vmatpush2.msra.mxu0 0.0
    %5403 = vmatprep.subr.mxu0 0.0
    %5404 = vmatpush2.msra.mxu0 0.0
    %5405 = vmatprep.subr.mxu0 0.0
    %5406 = vmatpush2.msra.mxu0 0.0
    %5407 = vmatprep.subr.mxu0 0.0
    %5408 = vmatpush2.msra.mxu0 0.0
    %5409 = vmatprep.subr.mxu0 0.0
    %5410 = vmatpush2.msra.mxu0 0.0
    %5411 = vmatprep.subr.mxu0 0.0
    %5412 = vmatpush2.msra.mxu0 0.0
    %5413 = vmatprep.subr.mxu0 0.0
    %5414 = vmatpush2.msra.mxu0 0.0
    %5415 = vmatprep.subr.mxu0 0.0
    %5416 = vmatpush2.msra.mxu0 0.0
    %5417 = vmatprep.subr.mxu0 0.0
    %5418 = vmatpush2.msra.mxu0 0.0
    %5419 = vmatprep.subr.mxu0 0.0
    %5420 = vmatpush2.msra.mxu0 0.0
    %5421 = vmatprep.subr.mxu0 0.0
    %5422 = vmatpush2.msra.mxu0 0.0
    %5423 = vmatprep.subr.mxu0 0.0
    %5424 = vmatpush2.msra.mxu0 0.0
    %5425 = vmatprep.subr.mxu0 0.0
    %5426 = vmatpush2.msra.mxu0 0.0
    %5427 = vmatprep.subr.mxu0 0.0
    %5428 = vmatpush2.msra.mxu0 0.0
    %5429 = vmatprep.mubr.f32.mxu0 0.0
    %v5430 = vand.u32 %v4881, 4294901760
    %5431 = vmatmul.mubr.f32.gmra.mxu0 %v5430
    %v5432 = vpop.f32.mrf.mxu0
    %v5433 = vadd.f32 %v5314, %v5432
    %v5434 = vpop.f32.mrf.mxu0
    %5435 = vdwg.mxu0
    %5436 = vmatprep.subr.mxu0 0.0
    %v5437 = vand.u32 %v1036, 4294901760
    %5438 = vmatpush1.msra.mxu0 %v5437
    %5439 = vmatprep.subr.mxu0 0.0
    %v5440 = vand.u32 %v1035, 4294901760
    %5441 = vmatpush1.msra.mxu0 %v5440
    %5442 = vmatprep.subr.mxu0 0.0
    %v5443 = vand.u32 %v1034, 4294901760
    %5444 = vmatpush1.msra.mxu0 %v5443
    %5445 = vmatprep.subr.mxu0 0.0
    %v5446 = vand.u32 %v1033, 4294901760
    %5447 = vmatpush1.msra.mxu0 %v5446
    %5448 = vmatprep.subr.mxu0 0.0
    %v5449 = vand.u32 %v1032, 4294901760
    %5450 = vmatpush1.msra.mxu0 %v5449
    %5451 = vmatprep.subr.mxu0 0.0
    %v5452 = vand.u32 %v1031, 4294901760
    %5453 = vmatpush1.msra.mxu0 %v5452
    %5454 = vmatprep.subr.mxu0 0.0
    %v5455 = vand.u32 %v1030, 4294901760
    %5456 = vmatpush1.msra.mxu0 %v5455
    %5457 = vmatprep.subr.mxu0 0.0
    %v5458 = vand.u32 %v1029, 4294901760
    %5459 = vmatpush1.msra.mxu0 %v5458
    %5460 = vmatprep.subr.mxu0 0.0
    %v5461 = vand.u32 %v1028, 4294901760
    %5462 = vmatpush1.msra.mxu0 %v5461
    %5463 = vmatprep.subr.mxu0 0.0
    %v5464 = vand.u32 %v1027, 4294901760
    %5465 = vmatpush1.msra.mxu0 %v5464
    %5466 = vmatprep.subr.mxu0 0.0
    %v5467 = vand.u32 %v1026, 4294901760
    %5468 = vmatpush1.msra.mxu0 %v5467
    %5469 = vmatprep.subr.mxu0 0.0
    %v5470 = vand.u32 %v1025, 4294901760
    %5471 = vmatpush1.msra.mxu0 %v5470
    %5472 = vmatprep.subr.mxu0 0.0
    %v5473 = vand.u32 %v1024, 4294901760
    %5474 = vmatpush1.msra.mxu0 %v5473
    %5475 = vmatprep.subr.mxu0 0.0
    %v5476 = vand.u32 %v1023, 4294901760
    %5477 = vmatpush1.msra.mxu0 %v5476
    %5478 = vmatprep.subr.mxu0 0.0
    %v5479 = vand.u32 %v1022, 4294901760
    %5480 = vmatpush1.msra.mxu0 %v5479
    %5481 = vmatprep.subr.mxu0 0.0
    %v5482 = vand.u32 %v1021, 4294901760
    %5483 = vmatpush1.msra.mxu0 %v5482
    %5484 = vmatprep.subr.mxu0 0.0
    %5485 = vmatpush2.msra.mxu0 0.0
    %5486 = vmatprep.subr.mxu0 0.0
    %5487 = vmatpush2.msra.mxu0 0.0
    %5488 = vmatprep.subr.mxu0 0.0
    %5489 = vmatpush2.msra.mxu0 0.0
    %5490 = vmatprep.subr.mxu0 0.0
    %5491 = vmatpush2.msra.mxu0 0.0
    %5492 = vmatprep.subr.mxu0 0.0
    %5493 = vmatpush2.msra.mxu0 0.0
    %5494 = vmatprep.subr.mxu0 0.0
    %5495 = vmatpush2.msra.mxu0 0.0
    %5496 = vmatprep.subr.mxu0 0.0
    %5497 = vmatpush2.msra.mxu0 0.0
    %5498 = vmatprep.subr.mxu0 0.0
    %5499 = vmatpush2.msra.mxu0 0.0
    %5500 = vmatprep.subr.mxu0 0.0
    %5501 = vmatpush2.msra.mxu0 0.0
    %5502 = vmatprep.subr.mxu0 0.0
    %5503 = vmatpush2.msra.mxu0 0.0
    %5504 = vmatprep.subr.mxu0 0.0
    %5505 = vmatpush2.msra.mxu0 0.0
    %5506 = vmatprep.subr.mxu0 0.0
    %5507 = vmatpush2.msra.mxu0 0.0
    %5508 = vmatprep.subr.mxu0 0.0
    %5509 = vmatpush2.msra.mxu0 0.0
    %5510 = vmatprep.subr.mxu0 0.0
    %5511 = vmatpush2.msra.mxu0 0.0
    %5512 = vmatprep.subr.mxu0 0.0
    %5513 = vmatpush2.msra.mxu0 0.0
    %5514 = vmatprep.subr.mxu0 0.0
    %5515 = vmatpush2.msra.mxu0 0.0
    %5516 = vmatprep.mubr.f32.mxu0 0.0
    %v5517 = vand.u32 %v4881, 4294901760
    %5518 = vmatmul.mubr.f32.gmra.mxu0 %v5517
    %v5519 = vpop.f32.mrf.mxu0
    %v5520 = vadd.f32 %v5433, %v5519
    %v5521 = vpop.f32.mrf.mxu0
    %5522 = vdwg.mxu0
    %v5523 = vadd.f32 %v1013, %v5520
    %v5524 = vtanh.pop %v5523
    %5525 = vmatprep.subr.mxu0 0.0
    %v5526 = vand.u32 %v1036, 4294901760
    %5527 = vmatpush1.msra.mxu0 %v5526
    %5528 = vmatprep.subr.mxu0 0.0
    %v5529 = vand.u32 %v1035, 4294901760
    %5530 = vmatpush1.msra.mxu0 %v5529
    %5531 = vmatprep.subr.mxu0 0.0
    %v5532 = vand.u32 %v1034, 4294901760
    %5533 = vmatpush1.msra.mxu0 %v5532
    %5534 = vmatprep.subr.mxu0 0.0
    %v5535 = vand.u32 %v1033, 4294901760
    %5536 = vmatpush1.msra.mxu0 %v5535
    %5537 = vmatprep.subr.mxu0 0.0
    %v5538 = vand.u32 %v1032, 4294901760
    %5539 = vmatpush1.msra.mxu0 %v5538
    %5540 = vmatprep.subr.mxu0 0.0
    %v5541 = vand.u32 %v1031, 4294901760
    %5542 = vmatpush1.msra.mxu0 %v5541
    %5543 = vmatprep.subr.mxu0 0.0
    %v5544 = vand.u32 %v1030, 4294901760
    %5545 = vmatpush1.msra.mxu0 %v5544
    %5546 = vmatprep.subr.mxu0 0.0
    %v5547 = vand.u32 %v1029, 4294901760
    %5548 = vmatpush1.msra.mxu0 %v5547
    %5549 = vmatprep.subr.mxu0 0.0
    %v5550 = vand.u32 %v1028, 4294901760
    %5551 = vmatpush1.msra.mxu0 %v5550
    %5552 = vmatprep.subr.mxu0 0.0
    %v5553 = vand.u32 %v1027, 4294901760
    %5554 = vmatpush1.msra.mxu0 %v5553
    %5555 = vmatprep.subr.mxu0 0.0
    %v5556 = vand.u32 %v1026, 4294901760
    %5557 = vmatpush1.msra.mxu0 %v5556
    %5558 = vmatprep.subr.mxu0 0.0
    %v5559 = vand.u32 %v1025, 4294901760
    %5560 = vmatpush1.msra.mxu0 %v5559
    %5561 = vmatprep.subr.mxu0 0.0
    %v5562 = vand.u32 %v1024, 4294901760
    %5563 = vmatpush1.msra.mxu0 %v5562
    %5564 = vmatprep.subr.mxu0 0.0
    %v5565 = vand.u32 %v1023, 4294901760
    %5566 = vmatpush1.msra.mxu0 %v5565
    %5567 = vmatprep.subr.mxu0 0.0
    %v5568 = vand.u32 %v1022, 4294901760
    %5569 = vmatpush1.msra.mxu0 %v5568
    %5570 = vmatprep.subr.mxu0 0.0
    %v5571 = vand.u32 %v1021, 4294901760
    %5572 = vmatpush1.msra.mxu0 %v5571
    %5573 = vmatprep.subr.mxu0 0.0
    %5574 = vmatpush2.msra.mxu0 0.0
    %5575 = vmatprep.subr.mxu0 0.0
    %5576 = vmatpush2.msra.mxu0 0.0
    %5577 = vmatprep.subr.mxu0 0.0
    %5578 = vmatpush2.msra.mxu0 0.0
    %5579 = vmatprep.subr.mxu0 0.0
    %5580 = vmatpush2.msra.mxu0 0.0
    %5581 = vmatprep.subr.mxu0 0.0
    %5582 = vmatpush2.msra.mxu0 0.0
    %5583 = vmatprep.subr.mxu0 0.0
    %5584 = vmatpush2.msra.mxu0 0.0
    %5585 = vmatprep.subr.mxu0 0.0
    %5586 = vmatpush2.msra.mxu0 0.0
    %5587 = vmatprep.subr.mxu0 0.0
    %5588 = vmatpush2.msra.mxu0 0.0
    %5589 = vmatprep.subr.mxu0 0.0
    %5590 = vmatpush2.msra.mxu0 0.0
    %5591 = vmatprep.subr.mxu0 0.0
    %5592 = vmatpush2.msra.mxu0 0.0
    %5593 = vmatprep.subr.mxu0 0.0
    %5594 = vmatpush2.msra.mxu0 0.0
    %5595 = vmatprep.subr.mxu0 0.0
    %5596 = vmatpush2.msra.mxu0 0.0
    %5597 = vmatprep.subr.mxu0 0.0
    %5598 = vmatpush2.msra.mxu0 0.0
    %5599 = vmatprep.subr.mxu0 0.0
    %5600 = vmatpush2.msra.mxu0 0.0
    %5601 = vmatprep.subr.mxu0 0.0
    %5602 = vmatpush2.msra.mxu0 0.0
    %5603 = vmatprep.subr.mxu0 0.0
    %5604 = vmatpush2.msra.mxu0 0.0
    %5605 = vmatprep.mubr.f32.mxu0 0.0
    %v5606 = vand.u32 %v5524, 4294901760
    %v5607 = vsub.f32 %v5524, %v5606
    %v5608 = vand.u32 %v5607, 4294901760
    %v5609 = vsub.f32 %v5607, %v5608
    %v5610 = vand.u32 %v5609, 4294901760
    %5611 = vmatmul.mubr.f32.gmra.mxu0 %v5610
    %v5612 = vpop.f32.mrf.mxu0
    %v5613 = vadd.f32 0.0, %v5612
    %v5614 = vpop.f32.mrf.mxu0
    %5615 = vdwg.mxu0
    %5616 = vmatprep.subr.mxu0 0.0
    %v5617 = vand.u32 %v1036, 4294901760
    %v5618 = vsub.f32 %v1036, %v5617
    %v5619 = vand.u32 %v5618, 4294901760
    %v5620 = vsub.f32 %v5618, %v5619
    %v5621 = vand.u32 %v5620, 4294901760
    %5622 = vmatpush1.msra.mxu0 %v5621
    %5623 = vmatprep.subr.mxu0 0.0
    %v5624 = vand.u32 %v1035, 4294901760
    %v5625 = vsub.f32 %v1035, %v5624
    %v5626 = vand.u32 %v5625, 4294901760
    %v5627 = vsub.f32 %v5625, %v5626
    %v5628 = vand.u32 %v5627, 4294901760
    %5629 = vmatpush1.msra.mxu0 %v5628
    %5630 = vmatprep.subr.mxu0 0.0
    %v5631 = vand.u32 %v1034, 4294901760
    %v5632 = vsub.f32 %v1034, %v5631
    %v5633 = vand.u32 %v5632, 4294901760
    %v5634 = vsub.f32 %v5632, %v5633
    %v5635 = vand.u32 %v5634, 4294901760
    %5636 = vmatpush1.msra.mxu0 %v5635
    %5637 = vmatprep.subr.mxu0 0.0
    %v5638 = vand.u32 %v1033, 4294901760
    %v5639 = vsub.f32 %v1033, %v5638
    %v5640 = vand.u32 %v5639, 4294901760
    %v5641 = vsub.f32 %v5639, %v5640
    %v5642 = vand.u32 %v5641, 4294901760
    %5643 = vmatpush1.msra.mxu0 %v5642
    %5644 = vmatprep.subr.mxu0 0.0
    %v5645 = vand.u32 %v1032, 4294901760
    %v5646 = vsub.f32 %v1032, %v5645
    %v5647 = vand.u32 %v5646, 4294901760
    %v5648 = vsub.f32 %v5646, %v5647
    %v5649 = vand.u32 %v5648, 4294901760
    %5650 = vmatpush1.msra.mxu0 %v5649
    %5651 = vmatprep.subr.mxu0 0.0
    %v5652 = vand.u32 %v1031, 4294901760
    %v5653 = vsub.f32 %v1031, %v5652
    %v5654 = vand.u32 %v5653, 4294901760
    %v5655 = vsub.f32 %v5653, %v5654
    %v5656 = vand.u32 %v5655, 4294901760
    %5657 = vmatpush1.msra.mxu0 %v5656
    %5658 = vmatprep.subr.mxu0 0.0
    %v5659 = vand.u32 %v1030, 4294901760
    %v5660 = vsub.f32 %v1030, %v5659
    %v5661 = vand.u32 %v5660, 4294901760
    %v5662 = vsub.f32 %v5660, %v5661
    %v5663 = vand.u32 %v5662, 4294901760
    %5664 = vmatpush1.msra.mxu0 %v5663
    %5665 = vmatprep.subr.mxu0 0.0
    %v5666 = vand.u32 %v1029, 4294901760
    %v5667 = vsub.f32 %v1029, %v5666
    %v5668 = vand.u32 %v5667, 4294901760
    %v5669 = vsub.f32 %v5667, %v5668
    %v5670 = vand.u32 %v5669, 4294901760
    %5671 = vmatpush1.msra.mxu0 %v5670
    %5672 = vmatprep.subr.mxu0 0.0
    %v5673 = vand.u32 %v1028, 4294901760
    %v5674 = vsub.f32 %v1028, %v5673
    %v5675 = vand.u32 %v5674, 4294901760
    %v5676 = vsub.f32 %v5674, %v5675
    %v5677 = vand.u32 %v5676, 4294901760
    %5678 = vmatpush1.msra.mxu0 %v5677
    %5679 = vmatprep.subr.mxu0 0.0
    %v5680 = vand.u32 %v1027, 4294901760
    %v5681 = vsub.f32 %v1027, %v5680
    %v5682 = vand.u32 %v5681, 4294901760
    %v5683 = vsub.f32 %v5681, %v5682
    %v5684 = vand.u32 %v5683, 4294901760
    %5685 = vmatpush1.msra.mxu0 %v5684
    %5686 = vmatprep.subr.mxu0 0.0
    %v5687 = vand.u32 %v1026, 4294901760
    %v5688 = vsub.f32 %v1026, %v5687
    %v5689 = vand.u32 %v5688, 4294901760
    %v5690 = vsub.f32 %v5688, %v5689
    %v5691 = vand.u32 %v5690, 4294901760
    %5692 = vmatpush1.msra.mxu0 %v5691
    %5693 = vmatprep.subr.mxu0 0.0
    %v5694 = vand.u32 %v1025, 4294901760
    %v5695 = vsub.f32 %v1025, %v5694
    %v5696 = vand.u32 %v5695, 4294901760
    %v5697 = vsub.f32 %v5695, %v5696
    %v5698 = vand.u32 %v5697, 4294901760
    %5699 = vmatpush1.msra.mxu0 %v5698
    %5700 = vmatprep.subr.mxu0 0.0
    %v5701 = vand.u32 %v1024, 4294901760
    %v5702 = vsub.f32 %v1024, %v5701
    %v5703 = vand.u32 %v5702, 4294901760
    %v5704 = vsub.f32 %v5702, %v5703
    %v5705 = vand.u32 %v5704, 4294901760
    %5706 = vmatpush1.msra.mxu0 %v5705
    %5707 = vmatprep.subr.mxu0 0.0
    %v5708 = vand.u32 %v1023, 4294901760
    %v5709 = vsub.f32 %v1023, %v5708
    %v5710 = vand.u32 %v5709, 4294901760
    %v5711 = vsub.f32 %v5709, %v5710
    %v5712 = vand.u32 %v5711, 4294901760
    %5713 = vmatpush1.msra.mxu0 %v5712
    %5714 = vmatprep.subr.mxu0 0.0
    %v5715 = vand.u32 %v1022, 4294901760
    %v5716 = vsub.f32 %v1022, %v5715
    %v5717 = vand.u32 %v5716, 4294901760
    %v5718 = vsub.f32 %v5716, %v5717
    %v5719 = vand.u32 %v5718, 4294901760
    %5720 = vmatpush1.msra.mxu0 %v5719
    %5721 = vmatprep.subr.mxu0 0.0
    %v5722 = vand.u32 %v1021, 4294901760
    %v5723 = vsub.f32 %v1021, %v5722
    %v5724 = vand.u32 %v5723, 4294901760
    %v5725 = vsub.f32 %v5723, %v5724
    %v5726 = vand.u32 %v5725, 4294901760
    %5727 = vmatpush1.msra.mxu0 %v5726
    %5728 = vmatprep.subr.mxu0 0.0
    %5729 = vmatpush2.msra.mxu0 0.0
    %5730 = vmatprep.subr.mxu0 0.0
    %5731 = vmatpush2.msra.mxu0 0.0
    %5732 = vmatprep.subr.mxu0 0.0
    %5733 = vmatpush2.msra.mxu0 0.0
    %5734 = vmatprep.subr.mxu0 0.0
    %5735 = vmatpush2.msra.mxu0 0.0
    %5736 = vmatprep.subr.mxu0 0.0
    %5737 = vmatpush2.msra.mxu0 0.0
    %5738 = vmatprep.subr.mxu0 0.0
    %5739 = vmatpush2.msra.mxu0 0.0
    %5740 = vmatprep.subr.mxu0 0.0
    %5741 = vmatpush2.msra.mxu0 0.0
    %5742 = vmatprep.subr.mxu0 0.0
    %5743 = vmatpush2.msra.mxu0 0.0
    %5744 = vmatprep.subr.mxu0 0.0
    %5745 = vmatpush2.msra.mxu0 0.0
    %5746 = vmatprep.subr.mxu0 0.0
    %5747 = vmatpush2.msra.mxu0 0.0
    %5748 = vmatprep.subr.mxu0 0.0
    %5749 = vmatpush2.msra.mxu0 0.0
    %5750 = vmatprep.subr.mxu0 0.0
    %5751 = vmatpush2.msra.mxu0 0.0
    %5752 = vmatprep.subr.mxu0 0.0
    %5753 = vmatpush2.msra.mxu0 0.0
    %5754 = vmatprep.subr.mxu0 0.0
    %5755 = vmatpush2.msra.mxu0 0.0
    %5756 = vmatprep.subr.mxu0 0.0
    %5757 = vmatpush2.msra.mxu0 0.0
    %5758 = vmatprep.subr.mxu0 0.0
    %5759 = vmatpush2.msra.mxu0 0.0
    %5760 = vmatprep.mubr.f32.mxu0 0.0
    %v5761 = vand.u32 %v5524, 4294901760
    %5762 = vmatmul.mubr.f32.gmra.mxu0 %v5761
    %v5763 = vpop.f32.mrf.mxu0
    %v5764 = vadd.f32 %v5613, %v5763
    %v5765 = vpop.f32.mrf.mxu0
    %5766 = vdwg.mxu0
    %5767 = vmatprep.subr.mxu0 0.0
    %v5768 = vand.u32 %v1036, 4294901760
    %v5769 = vsub.f32 %v1036, %v5768
    %5770 = vmatpush1.msra.mxu0 %v5769
    %5771 = vmatprep.subr.mxu0 0.0
    %v5772 = vand.u32 %v1035, 4294901760
    %v5773 = vsub.f32 %v1035, %v5772
    %5774 = vmatpush1.msra.mxu0 %v5773
    %5775 = vmatprep.subr.mxu0 0.0
    %v5776 = vand.u32 %v1034, 4294901760
    %v5777 = vsub.f32 %v1034, %v5776
    %5778 = vmatpush1.msra.mxu0 %v5777
    %5779 = vmatprep.subr.mxu0 0.0
    %v5780 = vand.u32 %v1033, 4294901760
    %v5781 = vsub.f32 %v1033, %v5780
    %5782 = vmatpush1.msra.mxu0 %v5781
    %5783 = vmatprep.subr.mxu0 0.0
    %v5784 = vand.u32 %v1032, 4294901760
    %v5785 = vsub.f32 %v1032, %v5784
    %5786 = vmatpush1.msra.mxu0 %v5785
    %5787 = vmatprep.subr.mxu0 0.0
    %v5788 = vand.u32 %v1031, 4294901760
    %v5789 = vsub.f32 %v1031, %v5788
    %5790 = vmatpush1.msra.mxu0 %v5789
    %5791 = vmatprep.subr.mxu0 0.0
    %v5792 = vand.u32 %v1030, 4294901760
    %v5793 = vsub.f32 %v1030, %v5792
    %5794 = vmatpush1.msra.mxu0 %v5793
    %5795 = vmatprep.subr.mxu0 0.0
    %v5796 = vand.u32 %v1029, 4294901760
    %v5797 = vsub.f32 %v1029, %v5796
    %5798 = vmatpush1.msra.mxu0 %v5797
    %5799 = vmatprep.subr.mxu0 0.0
    %v5800 = vand.u32 %v1028, 4294901760
    %v5801 = vsub.f32 %v1028, %v5800
    %5802 = vmatpush1.msra.mxu0 %v5801
    %5803 = vmatprep.subr.mxu0 0.0
    %v5804 = vand.u32 %v1027, 4294901760
    %v5805 = vsub.f32 %v1027, %v5804
    %5806 = vmatpush1.msra.mxu0 %v5805
    %5807 = vmatprep.subr.mxu0 0.0
    %v5808 = vand.u32 %v1026, 4294901760
    %v5809 = vsub.f32 %v1026, %v5808
    %5810 = vmatpush1.msra.mxu0 %v5809
    %5811 = vmatprep.subr.mxu0 0.0
    %v5812 = vand.u32 %v1025, 4294901760
    %v5813 = vsub.f32 %v1025, %v5812
    %5814 = vmatpush1.msra.mxu0 %v5813
    %5815 = vmatprep.subr.mxu0 0.0
    %v5816 = vand.u32 %v1024, 4294901760
    %v5817 = vsub.f32 %v1024, %v5816
    %5818 = vmatpush1.msra.mxu0 %v5817
    %5819 = vmatprep.subr.mxu0 0.0
    %v5820 = vand.u32 %v1023, 4294901760
    %v5821 = vsub.f32 %v1023, %v5820
    %5822 = vmatpush1.msra.mxu0 %v5821
    %5823 = vmatprep.subr.mxu0 0.0
    %v5824 = vand.u32 %v1022, 4294901760
    %v5825 = vsub.f32 %v1022, %v5824
    %5826 = vmatpush1.msra.mxu0 %v5825
    %5827 = vmatprep.subr.mxu0 0.0
    %v5828 = vand.u32 %v1021, 4294901760
    %v5829 = vsub.f32 %v1021, %v5828
    %5830 = vmatpush1.msra.mxu0 %v5829
    %5831 = vmatprep.subr.mxu0 0.0
    %5832 = vmatpush2.msra.mxu0 0.0
    %5833 = vmatprep.subr.mxu0 0.0
    %5834 = vmatpush2.msra.mxu0 0.0
    %5835 = vmatprep.subr.mxu0 0.0
    %5836 = vmatpush2.msra.mxu0 0.0
    %5837 = vmatprep.subr.mxu0 0.0
    %5838 = vmatpush2.msra.mxu0 0.0
    %5839 = vmatprep.subr.mxu0 0.0
    %5840 = vmatpush2.msra.mxu0 0.0
    %5841 = vmatprep.subr.mxu0 0.0
    %5842 = vmatpush2.msra.mxu0 0.0
    %5843 = vmatprep.subr.mxu0 0.0
    %5844 = vmatpush2.msra.mxu0 0.0
    %5845 = vmatprep.subr.mxu0 0.0
    %5846 = vmatpush2.msra.mxu0 0.0
    %5847 = vmatprep.subr.mxu0 0.0
    %5848 = vmatpush2.msra.mxu0 0.0
    %5849 = vmatprep.subr.mxu0 0.0
    %5850 = vmatpush2.msra.mxu0 0.0
    %5851 = vmatprep.subr.mxu0 0.0
    %5852 = vmatpush2.msra.mxu0 0.0
    %5853 = vmatprep.subr.mxu0 0.0
    %5854 = vmatpush2.msra.mxu0 0.0
    %5855 = vmatprep.subr.mxu0 0.0
    %5856 = vmatpush2.msra.mxu0 0.0
    %5857 = vmatprep.subr.mxu0 0.0
    %5858 = vmatpush2.msra.mxu0 0.0
    %5859 = vmatprep.subr.mxu0 0.0
    %5860 = vmatpush2.msra.mxu0 0.0
    %5861 = vmatprep.subr.mxu0 0.0
    %5862 = vmatpush2.msra.mxu0 0.0
    %5863 = vmatprep.mubr.f32.mxu0 0.0
    %v5864 = vand.u32 %v5524, 4294901760
    %v5865 = vsub.f32 %v5524, %v5864
    %5866 = vmatmul.mubr.f32.gmra.mxu0 %v5865
    %v5867 = vpop.f32.mrf.mxu0
    %v5868 = vadd.f32 %v5764, %v5867
    %v5869 = vpop.f32.mrf.mxu0
    %5870 = vdwg.mxu0
    %5871 = vmatprep.subr.mxu0 0.0
    %v5872 = vand.u32 %v1036, 4294901760
    %5873 = vmatpush1.msra.mxu0 %v5872
    %5874 = vmatprep.subr.mxu0 0.0
    %v5875 = vand.u32 %v1035, 4294901760
    %5876 = vmatpush1.msra.mxu0 %v5875
    %5877 = vmatprep.subr.mxu0 0.0
    %v5878 = vand.u32 %v1034, 4294901760
    %5879 = vmatpush1.msra.mxu0 %v5878
    %5880 = vmatprep.subr.mxu0 0.0
    %v5881 = vand.u32 %v1033, 4294901760
    %5882 = vmatpush1.msra.mxu0 %v5881
    %5883 = vmatprep.subr.mxu0 0.0
    %v5884 = vand.u32 %v1032, 4294901760
    %5885 = vmatpush1.msra.mxu0 %v5884
    %5886 = vmatprep.subr.mxu0 0.0
    %v5887 = vand.u32 %v1031, 4294901760
    %5888 = vmatpush1.msra.mxu0 %v5887
    %5889 = vmatprep.subr.mxu0 0.0
    %v5890 = vand.u32 %v1030, 4294901760
    %5891 = vmatpush1.msra.mxu0 %v5890
    %5892 = vmatprep.subr.mxu0 0.0
    %v5893 = vand.u32 %v1029, 4294901760
    %5894 = vmatpush1.msra.mxu0 %v5893
    %5895 = vmatprep.subr.mxu0 0.0
    %v5896 = vand.u32 %v1028, 4294901760
    %5897 = vmatpush1.msra.mxu0 %v5896
    %5898 = vmatprep.subr.mxu0 0.0
    %v5899 = vand.u32 %v1027, 4294901760
    %5900 = vmatpush1.msra.mxu0 %v5899
    %5901 = vmatprep.subr.mxu0 0.0
    %v5902 = vand.u32 %v1026, 4294901760
    %5903 = vmatpush1.msra.mxu0 %v5902
    %5904 = vmatprep.subr.mxu0 0.0
    %v5905 = vand.u32 %v1025, 4294901760
    %5906 = vmatpush1.msra.mxu0 %v5905
    %5907 = vmatprep.subr.mxu0 0.0
    %v5908 = vand.u32 %v1024, 4294901760
    %5909 = vmatpush1.msra.mxu0 %v5908
    %5910 = vmatprep.subr.mxu0 0.0
    %v5911 = vand.u32 %v1023, 4294901760
    %5912 = vmatpush1.msra.mxu0 %v5911
    %5913 = vmatprep.subr.mxu0 0.0
    %v5914 = vand.u32 %v1022, 4294901760
    %5915 = vmatpush1.msra.mxu0 %v5914
    %5916 = vmatprep.subr.mxu0 0.0
    %v5917 = vand.u32 %v1021, 4294901760
    %5918 = vmatpush1.msra.mxu0 %v5917
    %5919 = vmatprep.subr.mxu0 0.0
    %5920 = vmatpush2.msra.mxu0 0.0
    %5921 = vmatprep.subr.mxu0 0.0
    %5922 = vmatpush2.msra.mxu0 0.0
    %5923 = vmatprep.subr.mxu0 0.0
    %5924 = vmatpush2.msra.mxu0 0.0
    %5925 = vmatprep.subr.mxu0 0.0
    %5926 = vmatpush2.msra.mxu0 0.0
    %5927 = vmatprep.subr.mxu0 0.0
    %5928 = vmatpush2.msra.mxu0 0.0
    %5929 = vmatprep.subr.mxu0 0.0
    %5930 = vmatpush2.msra.mxu0 0.0
    %5931 = vmatprep.subr.mxu0 0.0
    %5932 = vmatpush2.msra.mxu0 0.0
    %5933 = vmatprep.subr.mxu0 0.0
    %5934 = vmatpush2.msra.mxu0 0.0
    %5935 = vmatprep.subr.mxu0 0.0
    %5936 = vmatpush2.msra.mxu0 0.0
    %5937 = vmatprep.subr.mxu0 0.0
    %5938 = vmatpush2.msra.mxu0 0.0
    %5939 = vmatprep.subr.mxu0 0.0
    %5940 = vmatpush2.msra.mxu0 0.0
    %5941 = vmatprep.subr.mxu0 0.0
    %5942 = vmatpush2.msra.mxu0 0.0
    %5943 = vmatprep.subr.mxu0 0.0
    %5944 = vmatpush2.msra.mxu0 0.0
    %5945 = vmatprep.subr.mxu0 0.0
    %5946 = vmatpush2.msra.mxu0 0.0
    %5947 = vmatprep.subr.mxu0 0.0
    %5948 = vmatpush2.msra.mxu0 0.0
    %5949 = vmatprep.subr.mxu0 0.0
    %5950 = vmatpush2.msra.mxu0 0.0
    %5951 = vmatprep.mubr.f32.mxu0 0.0
    %v5952 = vand.u32 %v5524, 4294901760
    %v5953 = vsub.f32 %v5524, %v5952
    %v5954 = vand.u32 %v5953, 4294901760
    %5955 = vmatmul.mubr.f32.gmra.mxu0 %v5954
    %v5956 = vpop.f32.mrf.mxu0
    %v5957 = vadd.f32 %v5868, %v5956
    %v5958 = vpop.f32.mrf.mxu0
    %5959 = vdwg.mxu0
    %5960 = vmatprep.subr.mxu0 0.0
    %v5961 = vand.u32 %v1036, 4294901760
    %v5962 = vsub.f32 %v1036, %v5961
    %v5963 = vand.u32 %v5962, 4294901760
    %5964 = vmatpush1.msra.mxu0 %v5963
    %5965 = vmatprep.subr.mxu0 0.0
    %v5966 = vand.u32 %v1035, 4294901760
    %v5967 = vsub.f32 %v1035, %v5966
    %v5968 = vand.u32 %v5967, 4294901760
    %5969 = vmatpush1.msra.mxu0 %v5968
    %5970 = vmatprep.subr.mxu0 0.0
    %v5971 = vand.u32 %v1034, 4294901760
    %v5972 = vsub.f32 %v1034, %v5971
    %v5973 = vand.u32 %v5972, 4294901760
    %5974 = vmatpush1.msra.mxu0 %v5973
    %5975 = vmatprep.subr.mxu0 0.0
    %v5976 = vand.u32 %v1033, 4294901760
    %v5977 = vsub.f32 %v1033, %v5976
    %v5978 = vand.u32 %v5977, 4294901760
    %5979 = vmatpush1.msra.mxu0 %v5978
    %5980 = vmatprep.subr.mxu0 0.0
    %v5981 = vand.u32 %v1032, 4294901760
    %v5982 = vsub.f32 %v1032, %v5981
    %v5983 = vand.u32 %v5982, 4294901760
    %5984 = vmatpush1.msra.mxu0 %v5983
    %5985 = vmatprep.subr.mxu0 0.0
    %v5986 = vand.u32 %v1031, 4294901760
    %v5987 = vsub.f32 %v1031, %v5986
    %v5988 = vand.u32 %v5987, 4294901760
    %5989 = vmatpush1.msra.mxu0 %v5988
    %5990 = vmatprep.subr.mxu0 0.0
    %v5991 = vand.u32 %v1030, 4294901760
    %v5992 = vsub.f32 %v1030, %v5991
    %v5993 = vand.u32 %v5992, 4294901760
    %5994 = vmatpush1.msra.mxu0 %v5993
    %5995 = vmatprep.subr.mxu0 0.0
    %v5996 = vand.u32 %v1029, 4294901760
    %v5997 = vsub.f32 %v1029, %v5996
    %v5998 = vand.u32 %v5997, 4294901760
    %5999 = vmatpush1.msra.mxu0 %v5998
    %6000 = vmatprep.subr.mxu0 0.0
    %v6001 = vand.u32 %v1028, 4294901760
    %v6002 = vsub.f32 %v1028, %v6001
    %v6003 = vand.u32 %v6002, 4294901760
    %6004 = vmatpush1.msra.mxu0 %v6003
    %6005 = vmatprep.subr.mxu0 0.0
    %v6006 = vand.u32 %v1027, 4294901760
    %v6007 = vsub.f32 %v1027, %v6006
    %v6008 = vand.u32 %v6007, 4294901760
    %6009 = vmatpush1.msra.mxu0 %v6008
    %6010 = vmatprep.subr.mxu0 0.0
    %v6011 = vand.u32 %v1026, 4294901760
    %v6012 = vsub.f32 %v1026, %v6011
    %v6013 = vand.u32 %v6012, 4294901760
    %6014 = vmatpush1.msra.mxu0 %v6013
    %6015 = vmatprep.subr.mxu0 0.0
    %v6016 = vand.u32 %v1025, 4294901760
    %v6017 = vsub.f32 %v1025, %v6016
    %v6018 = vand.u32 %v6017, 4294901760
    %6019 = vmatpush1.msra.mxu0 %v6018
    %6020 = vmatprep.subr.mxu0 0.0
    %v6021 = vand.u32 %v1024, 4294901760
    %v6022 = vsub.f32 %v1024, %v6021
    %v6023 = vand.u32 %v6022, 4294901760
    %6024 = vmatpush1.msra.mxu0 %v6023
    %6025 = vmatprep.subr.mxu0 0.0
    %v6026 = vand.u32 %v1023, 4294901760
    %v6027 = vsub.f32 %v1023, %v6026
    %v6028 = vand.u32 %v6027, 4294901760
    %6029 = vmatpush1.msra.mxu0 %v6028
    %6030 = vmatprep.subr.mxu0 0.0
    %v6031 = vand.u32 %v1022, 4294901760
    %v6032 = vsub.f32 %v1022, %v6031
    %v6033 = vand.u32 %v6032, 4294901760
    %6034 = vmatpush1.msra.mxu0 %v6033
    %6035 = vmatprep.subr.mxu0 0.0
    %v6036 = vand.u32 %v1021, 4294901760
    %v6037 = vsub.f32 %v1021, %v6036
    %v6038 = vand.u32 %v6037, 4294901760
    %6039 = vmatpush1.msra.mxu0 %v6038
    %6040 = vmatprep.subr.mxu0 0.0
    %6041 = vmatpush2.msra.mxu0 0.0
    %6042 = vmatprep.subr.mxu0 0.0
    %6043 = vmatpush2.msra.mxu0 0.0
    %6044 = vmatprep.subr.mxu0 0.0
    %6045 = vmatpush2.msra.mxu0 0.0
    %6046 = vmatprep.subr.mxu0 0.0
    %6047 = vmatpush2.msra.mxu0 0.0
    %6048 = vmatprep.subr.mxu0 0.0
    %6049 = vmatpush2.msra.mxu0 0.0
    %6050 = vmatprep.subr.mxu0 0.0
    %6051 = vmatpush2.msra.mxu0 0.0
    %6052 = vmatprep.subr.mxu0 0.0
    %6053 = vmatpush2.msra.mxu0 0.0
    %6054 = vmatprep.subr.mxu0 0.0
    %6055 = vmatpush2.msra.mxu0 0.0
    %6056 = vmatprep.subr.mxu0 0.0
    %6057 = vmatpush2.msra.mxu0 0.0
    %6058 = vmatprep.subr.mxu0 0.0
    %6059 = vmatpush2.msra.mxu0 0.0
    %6060 = vmatprep.subr.mxu0 0.0
    %6061 = vmatpush2.msra.mxu0 0.0
    %6062 = vmatprep.subr.mxu0 0.0
    %6063 = vmatpush2.msra.mxu0 0.0
    %6064 = vmatprep.subr.mxu0 0.0
    %6065 = vmatpush2.msra.mxu0 0.0
    %6066 = vmatprep.subr.mxu0 0.0
    %6067 = vmatpush2.msra.mxu0 0.0
    %6068 = vmatprep.subr.mxu0 0.0
    %6069 = vmatpush2.msra.mxu0 0.0
    %6070 = vmatprep.subr.mxu0 0.0
    %6071 = vmatpush2.msra.mxu0 0.0
    %6072 = vmatprep.mubr.f32.mxu0 0.0
    %v6073 = vand.u32 %v5524, 4294901760
    %6074 = vmatmul.mubr.f32.gmra.mxu0 %v6073
    %v6075 = vpop.f32.mrf.mxu0
    %v6076 = vadd.f32 %v5957, %v6075
    %v6077 = vpop.f32.mrf.mxu0
    %6078 = vdwg.mxu0
    %6079 = vmatprep.subr.mxu0 0.0
    %v6080 = vand.u32 %v1036, 4294901760
    %6081 = vmatpush1.msra.mxu0 %v6080
    %6082 = vmatprep.subr.mxu0 0.0
    %v6083 = vand.u32 %v1035, 4294901760
    %6084 = vmatpush1.msra.mxu0 %v6083
    %6085 = vmatprep.subr.mxu0 0.0
    %v6086 = vand.u32 %v1034, 4294901760
    %6087 = vmatpush1.msra.mxu0 %v6086
    %6088 = vmatprep.subr.mxu0 0.0
    %v6089 = vand.u32 %v1033, 4294901760
    %6090 = vmatpush1.msra.mxu0 %v6089
    %6091 = vmatprep.subr.mxu0 0.0
    %v6092 = vand.u32 %v1032, 4294901760
    %6093 = vmatpush1.msra.mxu0 %v6092
    %6094 = vmatprep.subr.mxu0 0.0
    %v6095 = vand.u32 %v1031, 4294901760
    %6096 = vmatpush1.msra.mxu0 %v6095
    %6097 = vmatprep.subr.mxu0 0.0
    %v6098 = vand.u32 %v1030, 4294901760
    %6099 = vmatpush1.msra.mxu0 %v6098
    %6100 = vmatprep.subr.mxu0 0.0
    %v6101 = vand.u32 %v1029, 4294901760
    %6102 = vmatpush1.msra.mxu0 %v6101
    %6103 = vmatprep.subr.mxu0 0.0
    %v6104 = vand.u32 %v1028, 4294901760
    %6105 = vmatpush1.msra.mxu0 %v6104
    %6106 = vmatprep.subr.mxu0 0.0
    %v6107 = vand.u32 %v1027, 4294901760
    %6108 = vmatpush1.msra.mxu0 %v6107
    %6109 = vmatprep.subr.mxu0 0.0
    %v6110 = vand.u32 %v1026, 4294901760
    %6111 = vmatpush1.msra.mxu0 %v6110
    %6112 = vmatprep.subr.mxu0 0.0
    %v6113 = vand.u32 %v1025, 4294901760
    %6114 = vmatpush1.msra.mxu0 %v6113
    %6115 = vmatprep.subr.mxu0 0.0
    %v6116 = vand.u32 %v1024, 4294901760
    %6117 = vmatpush1.msra.mxu0 %v6116
    %6118 = vmatprep.subr.mxu0 0.0
    %v6119 = vand.u32 %v1023, 4294901760
    %6120 = vmatpush1.msra.mxu0 %v6119
    %6121 = vmatprep.subr.mxu0 0.0
    %v6122 = vand.u32 %v1022, 4294901760
    %6123 = vmatpush1.msra.mxu0 %v6122
    %6124 = vmatprep.subr.mxu0 0.0
    %v6125 = vand.u32 %v1021, 4294901760
    %6126 = vmatpush1.msra.mxu0 %v6125
    %6127 = vmatprep.subr.mxu0 0.0
    %6128 = vmatpush2.msra.mxu0 0.0
    %6129 = vmatprep.subr.mxu0 0.0
    %6130 = vmatpush2.msra.mxu0 0.0
    %6131 = vmatprep.subr.mxu0 0.0
    %6132 = vmatpush2.msra.mxu0 0.0
    %6133 = vmatprep.subr.mxu0 0.0
    %6134 = vmatpush2.msra.mxu0 0.0
    %6135 = vmatprep.subr.mxu0 0.0
    %6136 = vmatpush2.msra.mxu0 0.0
    %6137 = vmatprep.subr.mxu0 0.0
    %6138 = vmatpush2.msra.mxu0 0.0
    %6139 = vmatprep.subr.mxu0 0.0
    %6140 = vmatpush2.msra.mxu0 0.0
    %6141 = vmatprep.subr.mxu0 0.0
    %6142 = vmatpush2.msra.mxu0 0.0
    %6143 = vmatprep.subr.mxu0 0.0
    %6144 = vmatpush2.msra.mxu0 0.0
    %6145 = vmatprep.subr.mxu0 0.0
    %6146 = vmatpush2.msra.mxu0 0.0
    %6147 = vmatprep.subr.mxu0 0.0
    %6148 = vmatpush2.msra.mxu0 0.0
    %6149 = vmatprep.subr.mxu0 0.0
    %6150 = vmatpush2.msra.mxu0 0.0
    %6151 = vmatprep.subr.mxu0 0.0
    %6152 = vmatpush2.msra.mxu0 0.0
    %6153 = vmatprep.subr.mxu0 0.0
    %6154 = vmatpush2.msra.mxu0 0.0
    %6155 = vmatprep.subr.mxu0 0.0
    %6156 = vmatpush2.msra.mxu0 0.0
    %6157 = vmatprep.subr.mxu0 0.0
    %6158 = vmatpush2.msra.mxu0 0.0
    %6159 = vmatprep.mubr.f32.mxu0 0.0
    %v6160 = vand.u32 %v5524, 4294901760
    %6161 = vmatmul.mubr.f32.gmra.mxu0 %v6160
    %v6162 = vpop.f32.mrf.mxu0
    %v6163 = vadd.f32 %v6076, %v6162
    %v6164 = vpop.f32.mrf.mxu0
    %6165 = vdwg.mxu0
    %v6166 = vadd.f32 %v1018, %v6163
    %v6167 = vtanh.pop %v6166
    %v6168 = vld [vmem:[#allocation6] sm:$0xff]
    %v6169 = vld [vmem:[#allocation6 + $0x8] sm:$0xff]
    %v6170 = vld [vmem:[#allocation6 + $0x10] sm:$0xff]
    %v6171 = vld [vmem:[#allocation6 + $0x18] sm:$0xff]
    %v6172 = vld [vmem:[#allocation6 + $0x20] sm:$0xff]
    %v6173 = vld [vmem:[#allocation6 + $0x28] sm:$0xff]
    %v6174 = vld [vmem:[#allocation6 + $0x30] sm:$0xff]
    %v6175 = vld [vmem:[#allocation6 + $0x38] sm:$0xff]
    %v6176 = vld [vmem:[#allocation6 + $0x40] sm:$0xff]
    %v6177 = vld [vmem:[#allocation6 + $0x48] sm:$0xff]
    %v6178 = vld [vmem:[#allocation6 + $0x50] sm:$0xff]
    %v6179 = vld [vmem:[#allocation6 + $0x58] sm:$0xff]
    %v6180 = vld [vmem:[#allocation6 + $0x60] sm:$0xff]
    %v6181 = vld [vmem:[#allocation6 + $0x68] sm:$0xff]
    %v6182 = vld [vmem:[#allocation6 + $0x70] sm:$0xff]
    %v6183 = vld [vmem:[#allocation6 + $0x78] sm:$0xff]
    %v6184 = vld [vmem:[%s4] sm:$0x1]
    %v6186 = vlaneseq
    %v6187 = vshrl.u32 %v6186, 7
    %v6188 = vsub.s32 0, %v6187
    %v6189 = vrot.slane %v6184, %v6188
    %6191 = vmatprep.subr.mxu0 0.0
    %v6192 = vand.u32 %v6183, 4294901760
    %6193 = vmatpush1.msra.mxu0 %v6192
    %6194 = vmatprep.subr.mxu0 0.0
    %v6195 = vand.u32 %v6182, 4294901760
    %6196 = vmatpush1.msra.mxu0 %v6195
    %6197 = vmatprep.subr.mxu0 0.0
    %v6198 = vand.u32 %v6181, 4294901760
    %6199 = vmatpush1.msra.mxu0 %v6198
    %6200 = vmatprep.subr.mxu0 0.0
    %v6201 = vand.u32 %v6180, 4294901760
    %6202 = vmatpush1.msra.mxu0 %v6201
    %6203 = vmatprep.subr.mxu0 0.0
    %v6204 = vand.u32 %v6179, 4294901760
    %6205 = vmatpush1.msra.mxu0 %v6204
    %6206 = vmatprep.subr.mxu0 0.0
    %v6207 = vand.u32 %v6178, 4294901760
    %6208 = vmatpush1.msra.mxu0 %v6207
    %6209 = vmatprep.subr.mxu0 0.0
    %v6210 = vand.u32 %v6177, 4294901760
    %6211 = vmatpush1.msra.mxu0 %v6210
    %6212 = vmatprep.subr.mxu0 0.0
    %v6213 = vand.u32 %v6176, 4294901760
    %6214 = vmatpush1.msra.mxu0 %v6213
    %6215 = vmatprep.subr.mxu0 0.0
    %v6216 = vand.u32 %v6175, 4294901760
    %6217 = vmatpush1.msra.mxu0 %v6216
    %6218 = vmatprep.subr.mxu0 0.0
    %v6219 = vand.u32 %v6174, 4294901760
    %6220 = vmatpush1.msra.mxu0 %v6219
    %6221 = vmatprep.subr.mxu0 0.0
    %v6222 = vand.u32 %v6173, 4294901760
    %6223 = vmatpush1.msra.mxu0 %v6222
    %6224 = vmatprep.subr.mxu0 0.0
    %v6225 = vand.u32 %v6172, 4294901760
    %6226 = vmatpush1.msra.mxu0 %v6225
    %6227 = vmatprep.subr.mxu0 0.0
    %v6228 = vand.u32 %v6171, 4294901760
    %6229 = vmatpush1.msra.mxu0 %v6228
    %6230 = vmatprep.subr.mxu0 0.0
    %v6231 = vand.u32 %v6170, 4294901760
    %6232 = vmatpush1.msra.mxu0 %v6231
    %6233 = vmatprep.subr.mxu0 0.0
    %v6234 = vand.u32 %v6169, 4294901760
    %6235 = vmatpush1.msra.mxu0 %v6234
    %6236 = vmatprep.subr.mxu0 0.0
    %v6237 = vand.u32 %v6168, 4294901760
    %6238 = vmatpush1.msra.mxu0 %v6237
    %6239 = vmatprep.subr.mxu0 0.0
    %6240 = vmatpush2.msra.mxu0 0.0
    %6241 = vmatprep.subr.mxu0 0.0
    %6242 = vmatpush2.msra.mxu0 0.0
    %6243 = vmatprep.subr.mxu0 0.0
    %6244 = vmatpush2.msra.mxu0 0.0
    %6245 = vmatprep.subr.mxu0 0.0
    %6246 = vmatpush2.msra.mxu0 0.0
    %6247 = vmatprep.subr.mxu0 0.0
    %6248 = vmatpush2.msra.mxu0 0.0
    %6249 = vmatprep.subr.mxu0 0.0
    %6250 = vmatpush2.msra.mxu0 0.0
    %6251 = vmatprep.subr.mxu0 0.0
    %6252 = vmatpush2.msra.mxu0 0.0
    %6253 = vmatprep.subr.mxu0 0.0
    %6254 = vmatpush2.msra.mxu0 0.0
    %6255 = vmatprep.subr.mxu0 0.0
    %6256 = vmatpush2.msra.mxu0 0.0
    %6257 = vmatprep.subr.mxu0 0.0
    %6258 = vmatpush2.msra.mxu0 0.0
    %6259 = vmatprep.subr.mxu0 0.0
    %6260 = vmatpush2.msra.mxu0 0.0
    %6261 = vmatprep.subr.mxu0 0.0
    %6262 = vmatpush2.msra.mxu0 0.0
    %6263 = vmatprep.subr.mxu0 0.0
    %6264 = vmatpush2.msra.mxu0 0.0
    %6265 = vmatprep.subr.mxu0 0.0
    %6266 = vmatpush2.msra.mxu0 0.0
    %6267 = vmatprep.subr.mxu0 0.0
    %6268 = vmatpush2.msra.mxu0 0.0
    %6269 = vmatprep.subr.mxu0 0.0
    %6270 = vmatpush2.msra.mxu0 0.0
    %6271 = vmatprep.mubr.f32.mxu0 0.0
    %v6272 = vand.u32 %v6167, 4294901760
    %v6273 = vsub.f32 %v6167, %v6272
    %v6274 = vand.u32 %v6273, 4294901760
    %v6275 = vsub.f32 %v6273, %v6274
    %v6276 = vand.u32 %v6275, 4294901760
    %6277 = vmatmul.mubr.f32.gmra.mxu0 %v6276
    %v6278 = vpop.f32.mrf.mxu0
    %v6279 = vadd.f32 %v6189, %v6278
    %v6280 = vpop.f32.mrf.mxu0
    %6281 = vdwg.mxu0
    %6282 = vmatprep.subr.mxu0 0.0
    %v6283 = vand.u32 %v6183, 4294901760
    %v6284 = vsub.f32 %v6183, %v6283
    %v6285 = vand.u32 %v6284, 4294901760
    %v6286 = vsub.f32 %v6284, %v6285
    %v6287 = vand.u32 %v6286, 4294901760
    %6288 = vmatpush1.msra.mxu0 %v6287
    %6289 = vmatprep.subr.mxu0 0.0
    %v6290 = vand.u32 %v6182, 4294901760
    %v6291 = vsub.f32 %v6182, %v6290
    %v6292 = vand.u32 %v6291, 4294901760
    %v6293 = vsub.f32 %v6291, %v6292
    %v6294 = vand.u32 %v6293, 4294901760
    %6295 = vmatpush1.msra.mxu0 %v6294
    %6296 = vmatprep.subr.mxu0 0.0
    %v6297 = vand.u32 %v6181, 4294901760
    %v6298 = vsub.f32 %v6181, %v6297
    %v6299 = vand.u32 %v6298, 4294901760
    %v6300 = vsub.f32 %v6298, %v6299
    %v6301 = vand.u32 %v6300, 4294901760
    %6302 = vmatpush1.msra.mxu0 %v6301
    %6303 = vmatprep.subr.mxu0 0.0
    %v6304 = vand.u32 %v6180, 4294901760
    %v6305 = vsub.f32 %v6180, %v6304
    %v6306 = vand.u32 %v6305, 4294901760
    %v6307 = vsub.f32 %v6305, %v6306
    %v6308 = vand.u32 %v6307, 4294901760
    %6309 = vmatpush1.msra.mxu0 %v6308
    %6310 = vmatprep.subr.mxu0 0.0
    %v6311 = vand.u32 %v6179, 4294901760
    %v6312 = vsub.f32 %v6179, %v6311
    %v6313 = vand.u32 %v6312, 4294901760
    %v6314 = vsub.f32 %v6312, %v6313
    %v6315 = vand.u32 %v6314, 4294901760
    %6316 = vmatpush1.msra.mxu0 %v6315
    %6317 = vmatprep.subr.mxu0 0.0
    %v6318 = vand.u32 %v6178, 4294901760
    %v6319 = vsub.f32 %v6178, %v6318
    %v6320 = vand.u32 %v6319, 4294901760
    %v6321 = vsub.f32 %v6319, %v6320
    %v6322 = vand.u32 %v6321, 4294901760
    %6323 = vmatpush1.msra.mxu0 %v6322
    %6324 = vmatprep.subr.mxu0 0.0
    %v6325 = vand.u32 %v6177, 4294901760
    %v6326 = vsub.f32 %v6177, %v6325
    %v6327 = vand.u32 %v6326, 4294901760
    %v6328 = vsub.f32 %v6326, %v6327
    %v6329 = vand.u32 %v6328, 4294901760
    %6330 = vmatpush1.msra.mxu0 %v6329
    %6331 = vmatprep.subr.mxu0 0.0
    %v6332 = vand.u32 %v6176, 4294901760
    %v6333 = vsub.f32 %v6176, %v6332
    %v6334 = vand.u32 %v6333, 4294901760
    %v6335 = vsub.f32 %v6333, %v6334
    %v6336 = vand.u32 %v6335, 4294901760
    %6337 = vmatpush1.msra.mxu0 %v6336
    %6338 = vmatprep.subr.mxu0 0.0
    %v6339 = vand.u32 %v6175, 4294901760
    %v6340 = vsub.f32 %v6175, %v6339
    %v6341 = vand.u32 %v6340, 4294901760
    %v6342 = vsub.f32 %v6340, %v6341
    %v6343 = vand.u32 %v6342, 4294901760
    %6344 = vmatpush1.msra.mxu0 %v6343
    %6345 = vmatprep.subr.mxu0 0.0
    %v6346 = vand.u32 %v6174, 4294901760
    %v6347 = vsub.f32 %v6174, %v6346
    %v6348 = vand.u32 %v6347, 4294901760
    %v6349 = vsub.f32 %v6347, %v6348
    %v6350 = vand.u32 %v6349, 4294901760
    %6351 = vmatpush1.msra.mxu0 %v6350
    %6352 = vmatprep.subr.mxu0 0.0
    %v6353 = vand.u32 %v6173, 4294901760
    %v6354 = vsub.f32 %v6173, %v6353
    %v6355 = vand.u32 %v6354, 4294901760
    %v6356 = vsub.f32 %v6354, %v6355
    %v6357 = vand.u32 %v6356, 4294901760
    %6358 = vmatpush1.msra.mxu0 %v6357
    %6359 = vmatprep.subr.mxu0 0.0
    %v6360 = vand.u32 %v6172, 4294901760
    %v6361 = vsub.f32 %v6172, %v6360
    %v6362 = vand.u32 %v6361, 4294901760
    %v6363 = vsub.f32 %v6361, %v6362
    %v6364 = vand.u32 %v6363, 4294901760
    %6365 = vmatpush1.msra.mxu0 %v6364
    %6366 = vmatprep.subr.mxu0 0.0
    %v6367 = vand.u32 %v6171, 4294901760
    %v6368 = vsub.f32 %v6171, %v6367
    %v6369 = vand.u32 %v6368, 4294901760
    %v6370 = vsub.f32 %v6368, %v6369
    %v6371 = vand.u32 %v6370, 4294901760
    %6372 = vmatpush1.msra.mxu0 %v6371
    %6373 = vmatprep.subr.mxu0 0.0
    %v6374 = vand.u32 %v6170, 4294901760
    %v6375 = vsub.f32 %v6170, %v6374
    %v6376 = vand.u32 %v6375, 4294901760
    %v6377 = vsub.f32 %v6375, %v6376
    %v6378 = vand.u32 %v6377, 4294901760
    %6379 = vmatpush1.msra.mxu0 %v6378
    %6380 = vmatprep.subr.mxu0 0.0
    %v6381 = vand.u32 %v6169, 4294901760
    %v6382 = vsub.f32 %v6169, %v6381
    %v6383 = vand.u32 %v6382, 4294901760
    %v6384 = vsub.f32 %v6382, %v6383
    %v6385 = vand.u32 %v6384, 4294901760
    %6386 = vmatpush1.msra.mxu0 %v6385
    %6387 = vmatprep.subr.mxu0 0.0
    %v6388 = vand.u32 %v6168, 4294901760
    %v6389 = vsub.f32 %v6168, %v6388
    %v6390 = vand.u32 %v6389, 4294901760
    %v6391 = vsub.f32 %v6389, %v6390
    %v6392 = vand.u32 %v6391, 4294901760
    %6393 = vmatpush1.msra.mxu0 %v6392
    %6394 = vmatprep.subr.mxu0 0.0
    %6395 = vmatpush2.msra.mxu0 0.0
    %6396 = vmatprep.subr.mxu0 0.0
    %6397 = vmatpush2.msra.mxu0 0.0
    %6398 = vmatprep.subr.mxu0 0.0
    %6399 = vmatpush2.msra.mxu0 0.0
    %6400 = vmatprep.subr.mxu0 0.0
    %6401 = vmatpush2.msra.mxu0 0.0
    %6402 = vmatprep.subr.mxu0 0.0
    %6403 = vmatpush2.msra.mxu0 0.0
    %6404 = vmatprep.subr.mxu0 0.0
    %6405 = vmatpush2.msra.mxu0 0.0
    %6406 = vmatprep.subr.mxu0 0.0
    %6407 = vmatpush2.msra.mxu0 0.0
    %6408 = vmatprep.subr.mxu0 0.0
    %6409 = vmatpush2.msra.mxu0 0.0
    %6410 = vmatprep.subr.mxu0 0.0
    %6411 = vmatpush2.msra.mxu0 0.0
    %6412 = vmatprep.subr.mxu0 0.0
    %6413 = vmatpush2.msra.mxu0 0.0
    %6414 = vmatprep.subr.mxu0 0.0
    %6415 = vmatpush2.msra.mxu0 0.0
    %6416 = vmatprep.subr.mxu0 0.0
    %6417 = vmatpush2.msra.mxu0 0.0
    %6418 = vmatprep.subr.mxu0 0.0
    %6419 = vmatpush2.msra.mxu0 0.0
    %6420 = vmatprep.subr.mxu0 0.0
    %6421 = vmatpush2.msra.mxu0 0.0
    %6422 = vmatprep.subr.mxu0 0.0
    %6423 = vmatpush2.msra.mxu0 0.0
    %6424 = vmatprep.subr.mxu0 0.0
    %6425 = vmatpush2.msra.mxu0 0.0
    %6426 = vmatprep.mubr.f32.mxu0 0.0
    %v6427 = vand.u32 %v6167, 4294901760
    %6428 = vmatmul.mubr.f32.gmra.mxu0 %v6427
    %v6429 = vpop.f32.mrf.mxu0
    %v6430 = vadd.f32 %v6279, %v6429
    %v6431 = vpop.f32.mrf.mxu0
    %6432 = vdwg.mxu0
    %6433 = vmatprep.subr.mxu0 0.0
    %v6434 = vand.u32 %v6183, 4294901760
    %v6435 = vsub.f32 %v6183, %v6434
    %6436 = vmatpush1.msra.mxu0 %v6435
    %6437 = vmatprep.subr.mxu0 0.0
    %v6438 = vand.u32 %v6182, 4294901760
    %v6439 = vsub.f32 %v6182, %v6438
    %6440 = vmatpush1.msra.mxu0 %v6439
    %6441 = vmatprep.subr.mxu0 0.0
    %v6442 = vand.u32 %v6181, 4294901760
    %v6443 = vsub.f32 %v6181, %v6442
    %6444 = vmatpush1.msra.mxu0 %v6443
    %6445 = vmatprep.subr.mxu0 0.0
    %v6446 = vand.u32 %v6180, 4294901760
    %v6447 = vsub.f32 %v6180, %v6446
    %6448 = vmatpush1.msra.mxu0 %v6447
    %6449 = vmatprep.subr.mxu0 0.0
    %v6450 = vand.u32 %v6179, 4294901760
    %v6451 = vsub.f32 %v6179, %v6450
    %6452 = vmatpush1.msra.mxu0 %v6451
    %6453 = vmatprep.subr.mxu0 0.0
    %v6454 = vand.u32 %v6178, 4294901760
    %v6455 = vsub.f32 %v6178, %v6454
    %6456 = vmatpush1.msra.mxu0 %v6455
    %6457 = vmatprep.subr.mxu0 0.0
    %v6458 = vand.u32 %v6177, 4294901760
    %v6459 = vsub.f32 %v6177, %v6458
    %6460 = vmatpush1.msra.mxu0 %v6459
    %6461 = vmatprep.subr.mxu0 0.0
    %v6462 = vand.u32 %v6176, 4294901760
    %v6463 = vsub.f32 %v6176, %v6462
    %6464 = vmatpush1.msra.mxu0 %v6463
    %6465 = vmatprep.subr.mxu0 0.0
    %v6466 = vand.u32 %v6175, 4294901760
    %v6467 = vsub.f32 %v6175, %v6466
    %6468 = vmatpush1.msra.mxu0 %v6467
    %6469 = vmatprep.subr.mxu0 0.0
    %v6470 = vand.u32 %v6174, 4294901760
    %v6471 = vsub.f32 %v6174, %v6470
    %6472 = vmatpush1.msra.mxu0 %v6471
    %6473 = vmatprep.subr.mxu0 0.0
    %v6474 = vand.u32 %v6173, 4294901760
    %v6475 = vsub.f32 %v6173, %v6474
    %6476 = vmatpush1.msra.mxu0 %v6475
    %6477 = vmatprep.subr.mxu0 0.0
    %v6478 = vand.u32 %v6172, 4294901760
    %v6479 = vsub.f32 %v6172, %v6478
    %6480 = vmatpush1.msra.mxu0 %v6479
    %6481 = vmatprep.subr.mxu0 0.0
    %v6482 = vand.u32 %v6171, 4294901760
    %v6483 = vsub.f32 %v6171, %v6482
    %6484 = vmatpush1.msra.mxu0 %v6483
    %6485 = vmatprep.subr.mxu0 0.0
    %v6486 = vand.u32 %v6170, 4294901760
    %v6487 = vsub.f32 %v6170, %v6486
    %6488 = vmatpush1.msra.mxu0 %v6487
    %6489 = vmatprep.subr.mxu0 0.0
    %v6490 = vand.u32 %v6169, 4294901760
    %v6491 = vsub.f32 %v6169, %v6490
    %6492 = vmatpush1.msra.mxu0 %v6491
    %6493 = vmatprep.subr.mxu0 0.0
    %v6494 = vand.u32 %v6168, 4294901760
    %v6495 = vsub.f32 %v6168, %v6494
    %6496 = vmatpush1.msra.mxu0 %v6495
    %6497 = vmatprep.subr.mxu0 0.0
    %6498 = vmatpush2.msra.mxu0 0.0
    %6499 = vmatprep.subr.mxu0 0.0
    %6500 = vmatpush2.msra.mxu0 0.0
    %6501 = vmatprep.subr.mxu0 0.0
    %6502 = vmatpush2.msra.mxu0 0.0
    %6503 = vmatprep.subr.mxu0 0.0
    %6504 = vmatpush2.msra.mxu0 0.0
    %6505 = vmatprep.subr.mxu0 0.0
    %6506 = vmatpush2.msra.mxu0 0.0
    %6507 = vmatprep.subr.mxu0 0.0
    %6508 = vmatpush2.msra.mxu0 0.0
    %6509 = vmatprep.subr.mxu0 0.0
    %6510 = vmatpush2.msra.mxu0 0.0
    %6511 = vmatprep.subr.mxu0 0.0
    %6512 = vmatpush2.msra.mxu0 0.0
    %6513 = vmatprep.subr.mxu0 0.0
    %6514 = vmatpush2.msra.mxu0 0.0
    %6515 = vmatprep.subr.mxu0 0.0
    %6516 = vmatpush2.msra.mxu0 0.0
    %6517 = vmatprep.subr.mxu0 0.0
    %6518 = vmatpush2.msra.mxu0 0.0
    %6519 = vmatprep.subr.mxu0 0.0
    %6520 = vmatpush2.msra.mxu0 0.0
    %6521 = vmatprep.subr.mxu0 0.0
    %6522 = vmatpush2.msra.mxu0 0.0
    %6523 = vmatprep.subr.mxu0 0.0
    %6524 = vmatpush2.msra.mxu0 0.0
    %6525 = vmatprep.subr.mxu0 0.0
    %6526 = vmatpush2.msra.mxu0 0.0
    %6527 = vmatprep.subr.mxu0 0.0
    %6528 = vmatpush2.msra.mxu0 0.0
    %6529 = vmatprep.mubr.f32.mxu0 0.0
    %v6530 = vand.u32 %v6167, 4294901760
    %v6531 = vsub.f32 %v6167, %v6530
    %6532 = vmatmul.mubr.f32.gmra.mxu0 %v6531
    %v6533 = vpop.f32.mrf.mxu0
    %v6534 = vadd.f32 %v6430, %v6533
    %v6535 = vpop.f32.mrf.mxu0
    %6536 = vdwg.mxu0
    %6537 = vmatprep.subr.mxu0 0.0
    %v6538 = vand.u32 %v6183, 4294901760
    %6539 = vmatpush1.msra.mxu0 %v6538
    %6540 = vmatprep.subr.mxu0 0.0
    %v6541 = vand.u32 %v6182, 4294901760
    %6542 = vmatpush1.msra.mxu0 %v6541
    %6543 = vmatprep.subr.mxu0 0.0
    %v6544 = vand.u32 %v6181, 4294901760
    %6545 = vmatpush1.msra.mxu0 %v6544
    %6546 = vmatprep.subr.mxu0 0.0
    %v6547 = vand.u32 %v6180, 4294901760
    %6548 = vmatpush1.msra.mxu0 %v6547
    %6549 = vmatprep.subr.mxu0 0.0
    %v6550 = vand.u32 %v6179, 4294901760
    %6551 = vmatpush1.msra.mxu0 %v6550
    %6552 = vmatprep.subr.mxu0 0.0
    %v6553 = vand.u32 %v6178, 4294901760
    %6554 = vmatpush1.msra.mxu0 %v6553
    %6555 = vmatprep.subr.mxu0 0.0
    %v6556 = vand.u32 %v6177, 4294901760
    %6557 = vmatpush1.msra.mxu0 %v6556
    %6558 = vmatprep.subr.mxu0 0.0
    %v6559 = vand.u32 %v6176, 4294901760
    %6560 = vmatpush1.msra.mxu0 %v6559
    %6561 = vmatprep.subr.mxu0 0.0
    %v6562 = vand.u32 %v6175, 4294901760
    %6563 = vmatpush1.msra.mxu0 %v6562
    %6564 = vmatprep.subr.mxu0 0.0
    %v6565 = vand.u32 %v6174, 4294901760
    %6566 = vmatpush1.msra.mxu0 %v6565
    %6567 = vmatprep.subr.mxu0 0.0
    %v6568 = vand.u32 %v6173, 4294901760
    %6569 = vmatpush1.msra.mxu0 %v6568
    %6570 = vmatprep.subr.mxu0 0.0
    %v6571 = vand.u32 %v6172, 4294901760
    %6572 = vmatpush1.msra.mxu0 %v6571
    %6573 = vmatprep.subr.mxu0 0.0
    %v6574 = vand.u32 %v6171, 4294901760
    %6575 = vmatpush1.msra.mxu0 %v6574
    %6576 = vmatprep.subr.mxu0 0.0
    %v6577 = vand.u32 %v6170, 4294901760
    %6578 = vmatpush1.msra.mxu0 %v6577
    %6579 = vmatprep.subr.mxu0 0.0
    %v6580 = vand.u32 %v6169, 4294901760
    %6581 = vmatpush1.msra.mxu0 %v6580
    %6582 = vmatprep.subr.mxu0 0.0
    %v6583 = vand.u32 %v6168, 4294901760
    %6584 = vmatpush1.msra.mxu0 %v6583
    %6585 = vmatprep.subr.mxu0 0.0
    %6586 = vmatpush2.msra.mxu0 0.0
    %6587 = vmatprep.subr.mxu0 0.0
    %6588 = vmatpush2.msra.mxu0 0.0
    %6589 = vmatprep.subr.mxu0 0.0
    %6590 = vmatpush2.msra.mxu0 0.0
    %6591 = vmatprep.subr.mxu0 0.0
    %6592 = vmatpush2.msra.mxu0 0.0
    %6593 = vmatprep.subr.mxu0 0.0
    %6594 = vmatpush2.msra.mxu0 0.0
    %6595 = vmatprep.subr.mxu0 0.0
    %6596 = vmatpush2.msra.mxu0 0.0
    %6597 = vmatprep.subr.mxu0 0.0
    %6598 = vmatpush2.msra.mxu0 0.0
    %6599 = vmatprep.subr.mxu0 0.0
    %6600 = vmatpush2.msra.mxu0 0.0
    %6601 = vmatprep.subr.mxu0 0.0
    %6602 = vmatpush2.msra.mxu0 0.0
    %6603 = vmatprep.subr.mxu0 0.0
    %6604 = vmatpush2.msra.mxu0 0.0
    %6605 = vmatprep.subr.mxu0 0.0
    %6606 = vmatpush2.msra.mxu0 0.0
    %6607 = vmatprep.subr.mxu0 0.0
    %6608 = vmatpush2.msra.mxu0 0.0
    %6609 = vmatprep.subr.mxu0 0.0
    %6610 = vmatpush2.msra.mxu0 0.0
    %6611 = vmatprep.subr.mxu0 0.0
    %6612 = vmatpush2.msra.mxu0 0.0
    %6613 = vmatprep.subr.mxu0 0.0
    %6614 = vmatpush2.msra.mxu0 0.0
    %6615 = vmatprep.subr.mxu0 0.0
    %6616 = vmatpush2.msra.mxu0 0.0
    %6617 = vmatprep.mubr.f32.mxu0 0.0
    %v6618 = vand.u32 %v6167, 4294901760
    %v6619 = vsub.f32 %v6167, %v6618
    %v6620 = vand.u32 %v6619, 4294901760
    %6621 = vmatmul.mubr.f32.gmra.mxu0 %v6620
    %v6622 = vpop.f32.mrf.mxu0
    %v6623 = vadd.f32 %v6534, %v6622
    %v6624 = vpop.f32.mrf.mxu0
    %6625 = vdwg.mxu0
    %6626 = vmatprep.subr.mxu0 0.0
    %v6627 = vand.u32 %v6183, 4294901760
    %v6628 = vsub.f32 %v6183, %v6627
    %v6629 = vand.u32 %v6628, 4294901760
    %6630 = vmatpush1.msra.mxu0 %v6629
    %6631 = vmatprep.subr.mxu0 0.0
    %v6632 = vand.u32 %v6182, 4294901760
    %v6633 = vsub.f32 %v6182, %v6632
    %v6634 = vand.u32 %v6633, 4294901760
    %6635 = vmatpush1.msra.mxu0 %v6634
    %6636 = vmatprep.subr.mxu0 0.0
    %v6637 = vand.u32 %v6181, 4294901760
    %v6638 = vsub.f32 %v6181, %v6637
    %v6639 = vand.u32 %v6638, 4294901760
    %6640 = vmatpush1.msra.mxu0 %v6639
    %6641 = vmatprep.subr.mxu0 0.0
    %v6642 = vand.u32 %v6180, 4294901760
    %v6643 = vsub.f32 %v6180, %v6642
    %v6644 = vand.u32 %v6643, 4294901760
    %6645 = vmatpush1.msra.mxu0 %v6644
    %6646 = vmatprep.subr.mxu0 0.0
    %v6647 = vand.u32 %v6179, 4294901760
    %v6648 = vsub.f32 %v6179, %v6647
    %v6649 = vand.u32 %v6648, 4294901760
    %6650 = vmatpush1.msra.mxu0 %v6649
    %6651 = vmatprep.subr.mxu0 0.0
    %v6652 = vand.u32 %v6178, 4294901760
    %v6653 = vsub.f32 %v6178, %v6652
    %v6654 = vand.u32 %v6653, 4294901760
    %6655 = vmatpush1.msra.mxu0 %v6654
    %6656 = vmatprep.subr.mxu0 0.0
    %v6657 = vand.u32 %v6177, 4294901760
    %v6658 = vsub.f32 %v6177, %v6657
    %v6659 = vand.u32 %v6658, 4294901760
    %6660 = vmatpush1.msra.mxu0 %v6659
    %6661 = vmatprep.subr.mxu0 0.0
    %v6662 = vand.u32 %v6176, 4294901760
    %v6663 = vsub.f32 %v6176, %v6662
    %v6664 = vand.u32 %v6663, 4294901760
    %6665 = vmatpush1.msra.mxu0 %v6664
    %6666 = vmatprep.subr.mxu0 0.0
    %v6667 = vand.u32 %v6175, 4294901760
    %v6668 = vsub.f32 %v6175, %v6667
    %v6669 = vand.u32 %v6668, 4294901760
    %6670 = vmatpush1.msra.mxu0 %v6669
    %6671 = vmatprep.subr.mxu0 0.0
    %v6672 = vand.u32 %v6174, 4294901760
    %v6673 = vsub.f32 %v6174, %v6672
    %v6674 = vand.u32 %v6673, 4294901760
    %6675 = vmatpush1.msra.mxu0 %v6674
    %6676 = vmatprep.subr.mxu0 0.0
    %v6677 = vand.u32 %v6173, 4294901760
    %v6678 = vsub.f32 %v6173, %v6677
    %v6679 = vand.u32 %v6678, 4294901760
    %6680 = vmatpush1.msra.mxu0 %v6679
    %6681 = vmatprep.subr.mxu0 0.0
    %v6682 = vand.u32 %v6172, 4294901760
    %v6683 = vsub.f32 %v6172, %v6682
    %v6684 = vand.u32 %v6683, 4294901760
    %6685 = vmatpush1.msra.mxu0 %v6684
    %6686 = vmatprep.subr.mxu0 0.0
    %v6687 = vand.u32 %v6171, 4294901760
    %v6688 = vsub.f32 %v6171, %v6687
    %v6689 = vand.u32 %v6688, 4294901760
    %6690 = vmatpush1.msra.mxu0 %v6689
    %6691 = vmatprep.subr.mxu0 0.0
    %v6692 = vand.u32 %v6170, 4294901760
    %v6693 = vsub.f32 %v6170, %v6692
    %v6694 = vand.u32 %v6693, 4294901760
    %6695 = vmatpush1.msra.mxu0 %v6694
    %6696 = vmatprep.subr.mxu0 0.0
    %v6697 = vand.u32 %v6169, 4294901760
    %v6698 = vsub.f32 %v6169, %v6697
    %v6699 = vand.u32 %v6698, 4294901760
    %6700 = vmatpush1.msra.mxu0 %v6699
    %6701 = vmatprep.subr.mxu0 0.0
    %v6702 = vand.u32 %v6168, 4294901760
    %v6703 = vsub.f32 %v6168, %v6702
    %v6704 = vand.u32 %v6703, 4294901760
    %6705 = vmatpush1.msra.mxu0 %v6704
    %6706 = vmatprep.subr.mxu0 0.0
    %6707 = vmatpush2.msra.mxu0 0.0
    %6708 = vmatprep.subr.mxu0 0.0
    %6709 = vmatpush2.msra.mxu0 0.0
    %6710 = vmatprep.subr.mxu0 0.0
    %6711 = vmatpush2.msra.mxu0 0.0
    %6712 = vmatprep.subr.mxu0 0.0
    %6713 = vmatpush2.msra.mxu0 0.0
    %6714 = vmatprep.subr.mxu0 0.0
    %6715 = vmatpush2.msra.mxu0 0.0
    %6716 = vmatprep.subr.mxu0 0.0
    %6717 = vmatpush2.msra.mxu0 0.0
    %6718 = vmatprep.subr.mxu0 0.0
    %6719 = vmatpush2.msra.mxu0 0.0
    %6720 = vmatprep.subr.mxu0 0.0
    %6721 = vmatpush2.msra.mxu0 0.0
    %6722 = vmatprep.subr.mxu0 0.0
    %6723 = vmatpush2.msra.mxu0 0.0
    %6724 = vmatprep.subr.mxu0 0.0
    %6725 = vmatpush2.msra.mxu0 0.0
    %6726 = vmatprep.subr.mxu0 0.0
    %6727 = vmatpush2.msra.mxu0 0.0
    %6728 = vmatprep.subr.mxu0 0.0
    %6729 = vmatpush2.msra.mxu0 0.0
    %6730 = vmatprep.subr.mxu0 0.0
    %6731 = vmatpush2.msra.mxu0 0.0
    %6732 = vmatprep.subr.mxu0 0.0
    %6733 = vmatpush2.msra.mxu0 0.0
    %6734 = vmatprep.subr.mxu0 0.0
    %6735 = vmatpush2.msra.mxu0 0.0
    %6736 = vmatprep.subr.mxu0 0.0
    %6737 = vmatpush2.msra.mxu0 0.0
    %6738 = vmatprep.mubr.f32.mxu0 0.0
    %v6739 = vand.u32 %v6167, 4294901760
    %6740 = vmatmul.mubr.f32.gmra.mxu0 %v6739
    %v6741 = vpop.f32.mrf.mxu0
    %v6742 = vadd.f32 %v6623, %v6741
    %v6743 = vpop.f32.mrf.mxu0
    %6744 = vdwg.mxu0
    %6745 = vmatprep.subr.mxu0 0.0
    %v6746 = vand.u32 %v6183, 4294901760
    %6747 = vmatpush1.msra.mxu0 %v6746
    %6748 = vmatprep.subr.mxu0 0.0
    %v6749 = vand.u32 %v6182, 4294901760
    %6750 = vmatpush1.msra.mxu0 %v6749
    %6751 = vmatprep.subr.mxu0 0.0
    %v6752 = vand.u32 %v6181, 4294901760
    %6753 = vmatpush1.msra.mxu0 %v6752
    %6754 = vmatprep.subr.mxu0 0.0
    %v6755 = vand.u32 %v6180, 4294901760
    %6756 = vmatpush1.msra.mxu0 %v6755
    %6757 = vmatprep.subr.mxu0 0.0
    %v6758 = vand.u32 %v6179, 4294901760
    %6759 = vmatpush1.msra.mxu0 %v6758
    %6760 = vmatprep.subr.mxu0 0.0
    %v6761 = vand.u32 %v6178, 4294901760
    %6762 = vmatpush1.msra.mxu0 %v6761
    %6763 = vmatprep.subr.mxu0 0.0
    %v6764 = vand.u32 %v6177, 4294901760
    %6765 = vmatpush1.msra.mxu0 %v6764
    %6766 = vmatprep.subr.mxu0 0.0
    %v6767 = vand.u32 %v6176, 4294901760
    %6768 = vmatpush1.msra.mxu0 %v6767
    %6769 = vmatprep.subr.mxu0 0.0
    %v6770 = vand.u32 %v6175, 4294901760
    %6771 = vmatpush1.msra.mxu0 %v6770
    %6772 = vmatprep.subr.mxu0 0.0
    %v6773 = vand.u32 %v6174, 4294901760
    %6774 = vmatpush1.msra.mxu0 %v6773
    %6775 = vmatprep.subr.mxu0 0.0
    %v6776 = vand.u32 %v6173, 4294901760
    %6777 = vmatpush1.msra.mxu0 %v6776
    %6778 = vmatprep.subr.mxu0 0.0
    %v6779 = vand.u32 %v6172, 4294901760
    %6780 = vmatpush1.msra.mxu0 %v6779
    %6781 = vmatprep.subr.mxu0 0.0
    %v6782 = vand.u32 %v6171, 4294901760
    %6783 = vmatpush1.msra.mxu0 %v6782
    %6784 = vmatprep.subr.mxu0 0.0
    %v6785 = vand.u32 %v6170, 4294901760
    %6786 = vmatpush1.msra.mxu0 %v6785
    %6787 = vmatprep.subr.mxu0 0.0
    %v6788 = vand.u32 %v6169, 4294901760
    %6789 = vmatpush1.msra.mxu0 %v6788
    %6790 = vmatprep.subr.mxu0 0.0
    %v6791 = vand.u32 %v6168, 4294901760
    %6792 = vmatpush1.msra.mxu0 %v6791
    %6793 = vmatprep.subr.mxu0 0.0
    %6794 = vmatpush2.msra.mxu0 0.0
    %6795 = vmatprep.subr.mxu0 0.0
    %6796 = vmatpush2.msra.mxu0 0.0
    %6797 = vmatprep.subr.mxu0 0.0
    %6798 = vmatpush2.msra.mxu0 0.0
    %6799 = vmatprep.subr.mxu0 0.0
    %6800 = vmatpush2.msra.mxu0 0.0
    %6801 = vmatprep.subr.mxu0 0.0
    %6802 = vmatpush2.msra.mxu0 0.0
    %6803 = vmatprep.subr.mxu0 0.0
    %6804 = vmatpush2.msra.mxu0 0.0
    %6805 = vmatprep.subr.mxu0 0.0
    %6806 = vmatpush2.msra.mxu0 0.0
    %6807 = vmatprep.subr.mxu0 0.0
    %6808 = vmatpush2.msra.mxu0 0.0
    %6809 = vmatprep.subr.mxu0 0.0
    %6810 = vmatpush2.msra.mxu0 0.0
    %6811 = vmatprep.subr.mxu0 0.0
    %6812 = vmatpush2.msra.mxu0 0.0
    %6813 = vmatprep.subr.mxu0 0.0
    %6814 = vmatpush2.msra.mxu0 0.0
    %6815 = vmatprep.subr.mxu0 0.0
    %6816 = vmatpush2.msra.mxu0 0.0
    %6817 = vmatprep.subr.mxu0 0.0
    %6818 = vmatpush2.msra.mxu0 0.0
    %6819 = vmatprep.subr.mxu0 0.0
    %6820 = vmatpush2.msra.mxu0 0.0
    %6821 = vmatprep.subr.mxu0 0.0
    %6822 = vmatpush2.msra.mxu0 0.0
    %6823 = vmatprep.subr.mxu0 0.0
    %6824 = vmatpush2.msra.mxu0 0.0
    %6825 = vmatprep.mubr.f32.mxu0 0.0
    %v6826 = vand.u32 %v6167, 4294901760
    %6827 = vmatmul.mubr.f32.gmra.mxu0 %v6826
    %v6828 = vpop.f32.mrf.mxu0
    %v6829 = vadd.f32 %v6742, %v6828
    %v6830 = vpop.f32.mrf.mxu0
    %6831 = vdwg.mxu0
    %6832 = vmax.xlane.f32.xlu0 %v6829
    %v6833 = vpop.xlane.xlu0 %6832
    %v6834 = vsub.f32 %v6829, %v6833
    %v6835 = vmul.f32 %v6834, 1.442695
    %v6836 = vpow.pop %v6835
    %6837 = vadd.xlane.f32.xlu0 %v6836
    %v6838 = vpop.xlane.xlu0 %6837
    %v6839 = vrcp.pop %v6838
    %v6840 = vmul.f32 %v6836, %v6839
    %6841 = vst [vmem:[%s5] sm:$0xff] %v6840
    // Predicated region
    $region34: #{torch_model_forward.1} parent=1 // pred_check
      _
    $region35: #{torch_model_forward.1} parent=1 // pred_check_branch
      %6843 = sbr.rel (0) target = $region37
    $region36: #{torch_model_forward.1} parent=1 // pred_region
      _
    $region37: #{torch_model_forward.1} parent=1 // pred_fallthru
      _
    // Predicated region
    $region38: #{torch_model_forward.1} parent=1 // pred_check
      _
    $region39: #{torch_model_forward.1} parent=1 // pred_check_branch
      %6845 = sbr.rel (0) target = $region41
    $region40: #{torch_model_forward.1} parent=1 // pred_region
      _
    $region41: #{torch_model_forward.1} parent=1 // pred_fallthru
      _
    %6846 = vsyncpa [#allocation3], 1
    %6847 = vsyncpa [#allocation5], 1

</llo_original>
